<compile_context>
chip_gen: v6e
topology: v6e:2x2x1
jax: 0.10.0
libtpu: 0.0.40
codegen_flags: <defaults>
</compile_context>

<pallas_src>
import functools
import math

import jax
import jax.numpy as jnp
from jax.experimental import pallas as pl
from jax.experimental.pallas import tpu as pltpu

BN_EPS = 1e-5


def _ceil_to(x, m):
    return ((x + m - 1) // m) * m


# --------------------------------------------------------------------------
# Fused Pallas kernels:  out = [res +] act(X @ W + b)
#   X : (M, K) bf16 patches/activations     W : (K, N) bf16 BN-folded weight
#   b : (1, N) f32 folded bias              res : optional (M, N) residual
# --------------------------------------------------------------------------
def _epilogue(y_f32, b_f32, r, act, out_dtype):
    y = y_f32 + b_f32
    if act:                                   # SiLU in f32
        y = y * jax.nn.sigmoid(y)
    if r is not None:                         # fused residual: res + SiLU(...)
        y = y + r.astype(jnp.float32)
    return y.astype(out_dtype)


def _mm_fused_kernel(*refs, act, has_res):
    """Single-K-pass variant. Grid = (M tiles, N tiles); no scratch."""
    if has_res:
        x_ref, w_ref, b_ref, r_ref, o_ref = refs
        r = r_ref[...]
    else:
        x_ref, w_ref, b_ref, o_ref = refs
        r = None
    y = jnp.dot(x_ref[...], w_ref[...], preferred_element_type=jnp.float32)
    o_ref[...] = _epilogue(y, b_ref[...], r, act, o_ref.dtype)


def _mm_ksplit_kernel(*refs, act, has_res):
    """K-tiled variant. Grid = (M tiles, N tiles, K tiles); VMEM accumulator."""
    if has_res:
        x_ref, w_ref, b_ref, r_ref, o_ref, acc_ref = refs
    else:
        x_ref, w_ref, b_ref, o_ref, acc_ref = refs

    k = pl.program_id(2)

    @pl.when(k == 0)
    def _():
        acc_ref[...] = jnp.zeros_like(acc_ref)

    acc_ref[...] += jnp.dot(x_ref[...], w_ref[...],
                            preferred_element_type=jnp.float32)

    @pl.when(k == pl.num_programs(2) - 1)
    def _():
        r = r_ref[...] if has_res else None
        o_ref[...] = _epilogue(acc_ref[...], b_ref[...], r, act, o_ref.dtype)


_TM = 512        # row tile: bounds VMEM, exact at these shapes, megacore axis
_TN_MAX = 256    # v6e/v7x MXU is 256x256
_TK_MAX = 2048   # full-extent K below this (single MXU reduction pass)


def matmul_bias_act(x, w, b, res=None, *, act=True, out_dtype=jnp.bfloat16):
    """y = [res +] act(x @ w + b) computed in one tiled Pallas TPU kernel."""
    M, K = x.shape
    Kw, N = w.shape
    assert Kw == K

    # Tiny sublane pad (at most 7 rows) so small-M full-extent blocks are legal.
    Mp = M if M % 8 == 0 else _ceil_to(M, 8)
    if Mp != M:
        x = jnp.pad(x, ((0, Mp - M), (0, 0)))
        if res is not None:
            res = jnp.pad(res, ((0, Mp - M), (0, 0)))

    tm = _TM if Mp >= _TM else Mp             # full-extent block when M small
    tn = N if N <= _TN_MAX else _TN_MAX       # never zero-pad small N to 128
    has_res = res is not None
    b2 = b.reshape(1, N).astype(jnp.float32)
    inputs = [x.astype(jnp.bfloat16), w.astype(jnp.bfloat16), b2]
    if has_res:
        inputs.append(res.astype(jnp.bfloat16))

    nm, nn = pl.cdiv(Mp, tm), pl.cdiv(N, tn)

    if K <= _TK_MAX:
        # Common path: K fits one pass -> 2-D grid, no accumulator scratch.
        in_specs = [
            pl.BlockSpec((tm, K), lambda m, n: (m, 0)),      # X
            pl.BlockSpec((K, tn), lambda m, n: (0, n)),      # W (BN folded)
            pl.BlockSpec((1, tn), lambda m, n: (0, n)),      # bias
        ]
        if has_res:
            in_specs.append(pl.BlockSpec((tm, tn), lambda m, n: (m, n)))
        out = pl.pallas_call(
            functools.partial(_mm_fused_kernel, act=act, has_res=has_res),
            out_shape=jax.ShapeDtypeStruct((Mp, N), out_dtype),
            grid_spec=pltpu.PrefetchScalarGridSpec(
                num_scalar_prefetch=0,
                grid=(nm, nn),
                in_specs=in_specs,
                out_specs=pl.BlockSpec((tm, tn), lambda m, n: (m, n)),
            ),
            compiler_params=pltpu.CompilerParams(
                dimension_semantics=("parallel", "parallel")),
        )(*inputs)
    else:
        # Large-K path (not hit at this model size): 3-D grid, K reduction.
        tk = _TK_MAX
        Kp = _ceil_to(K, tk)
        inputs[0] = jnp.pad(inputs[0], ((0, 0), (0, Kp - K)))
        inputs[1] = jnp.pad(inputs[1], ((0, Kp - K), (0, 0)))
        nk = Kp // tk
        in_specs = [
            pl.BlockSpec((tm, tk), lambda m, n, k: (m, k)),  # X
            pl.BlockSpec((tk, tn), lambda m, n, k: (k, n)),  # W
            pl.BlockSpec((1, tn), lambda m, n, k: (0, n)),   # bias
        ]
        if has_res:
            in_specs.append(pl.BlockSpec((tm, tn), lambda m, n, k: (m, n)))
        out = pl.pallas_call(
            functools.partial(_mm_ksplit_kernel, act=act, has_res=has_res),
            out_shape=jax.ShapeDtypeStruct((Mp, N), out_dtype),
            grid_spec=pltpu.PrefetchScalarGridSpec(
                num_scalar_prefetch=0,
                grid=(nm, nn, nk),
                in_specs=in_specs,
                out_specs=pl.BlockSpec((tm, tn), lambda m, n, k: (m, n)),
                scratch_shapes=[pltpu.VMEM((tm, tn), jnp.float32)],
            ),
            compiler_params=pltpu.CompilerParams(
                dimension_semantics=("parallel", "parallel", "arbitrary")),
        )(*inputs)

    return out[:M] if Mp != M else out


# --------------------------------------------------------------------------
# Glue: im2col patch extraction (NHWC, bf16) and Conv+BN+SiLU wrapper.
# --------------------------------------------------------------------------
def im2col(x, kh, kw, stride, pad):
    n, h, w, c = x.shape
    xp = jnp.pad(x, ((0, 0), (pad, pad), (pad, pad), (0, 0)))
    ho = (h + 2 * pad - kh) // stride + 1
    wo = (w + 2 * pad - kw) // stride + 1
    pieces = []
    for i in range(kh):
        for j in range(kw):
            pieces.append(xp[:, i::stride, j::stride, :][:, :ho, :wo, :])
    cols = jnp.concatenate(pieces, axis=-1)       # single bf16 materialization
    return cols.reshape(n * ho * wo, kh * kw * c), ho, wo


def conv_bn_act(x, p, *, ksize, stride, padding, res=None, act=True):
    n, h, w, c = x.shape
    if ksize == 1 and stride == 1 and padding == 0:
        cols, ho, wo = x.reshape(n * h * w, c), h, w        # 1x1: plain reshape
    else:
        cols, ho, wo = im2col(x, ksize, ksize, stride, padding)
    res2 = None if res is None else res.reshape(n * ho * wo, -1)
    y = matmul_bias_act(cols, p['wmat'], p['bias'], res2, act=act)
    return y.reshape(n, ho, wo, -1)


# --------------------------------------------------------------------------
# Model structure (ELANLayer / YoloBottleneck / RTCBackbone), NHWC.
# --------------------------------------------------------------------------
def elan_forward(x, p):
    y = conv_bn_act(x, p['input_proj'], ksize=1, stride=1, padding=0)
    inter = y.shape[-1] // 2
    outs = [y[..., :inter], y[..., inter:]]       # torch.chunk(dim=channel)
    for bp in p['blocks']:                        # YoloBottleneck, shortcut=True
        h = conv_bn_act(outs[-1], bp['c1'], ksize=3, stride=1, padding=1)
        # residual add (x + SiLU(BN(conv2(h)))) fused into the c2 epilogue
        outs.append(conv_bn_act(h, bp['c2'], ksize=3, stride=1, padding=1,
                                res=outs[-1]))
    cat = jnp.concatenate(outs, axis=-1)
    return conv_bn_act(cat, p['output_proj'], ksize=1, stride=1, padding=0)


def forward(prep, x_nchw):
    x = jnp.transpose(x_nchw, (0, 2, 3, 1)).astype(jnp.bfloat16)  # NCHW -> NHWC
    c = conv_bn_act(x, prep['layer1'], ksize=3, stride=2, padding=1)
    for name in ('layer2', 'layer3', 'layer4', 'layer5'):
        lp = prep[name]
        c = conv_bn_act(c, lp['down'], ksize=3, stride=2, padding=1)
        c = elan_forward(c, lp['elan'])
    # AdaptiveAvgPool2d((1,1)) + flatten: trivial glue (spatial is 1x1 here).
    pooled = jnp.mean(c.astype(jnp.float32), axis=(1, 2))          # (B, C5)
    logits = matmul_bias_act(pooled.astype(jnp.bfloat16),
                             prep['fc']['wmat'], prep['fc']['bias'],
                             act=False, out_dtype=jnp.float32)
    return logits


# --------------------------------------------------------------------------
# Parameter prep: fold BN into (transposed, bf16) weight matrices ONCE.
# --------------------------------------------------------------------------
def fold_conv_bn(p):
    w = p['w']                                    # (Cout, Cin, kh, kw)
    cout, cin, kh, kw = w.shape
    scale = p['gamma'] / jnp.sqrt(p['var'] + BN_EPS)
    wmat = jnp.transpose(w, (2, 3, 1, 0)).reshape(kh * kw * cin, cout)
    wmat = wmat * scale[None, :]
    bias = p['beta'] - p['mean'] * scale
    return {'wmat': wmat.astype(jnp.bfloat16),
            'bias': bias.reshape(1, cout).astype(jnp.float32)}


def prepare_params(params):
    prep = {'layer1': fold_conv_bn(params['layer1'])}
    for name in ('layer2', 'layer3', 'layer4', 'layer5'):
        lp = params[name]
        elan = lp['elan']
        prep[name] = {
            'down': fold_conv_bn(lp['down']),
            'elan': {
                'input_proj': fold_conv_bn(elan['input_proj']),
                'output_proj': fold_conv_bn(elan['output_proj']),
                'blocks': [{'c1': fold_conv_bn(b['c1']),
                            'c2': fold_conv_bn(b['c2'])} for b in elan['blocks']],
            },
        }
    nc = params['fc']['w'].shape[0]
    prep['fc'] = {'wmat': params['fc']['w'].T.astype(jnp.bfloat16),
                  'bias': params['fc']['b'].reshape(1, nc).astype(jnp.float32)}
    return prep


# --------------------------------------------------------------------------
# Deterministic parameter initialization (shapes follow the PyTorch __init__).
# --------------------------------------------------------------------------
def init_conv_bn(key, cin, cout, ksz):
    k1, k2, k3, k4 = jax.random.split(key, 4)
    fan_in = cin * ksz * ksz
    return {
        'w': jax.random.normal(k1, (cout, cin, ksz, ksz), jnp.float32)
             / math.sqrt(fan_in),
        'gamma': 1.0 + 0.1 * jax.random.normal(k2, (cout,), jnp.float32),
        'beta': 0.05 * jax.random.normal(k3, (cout,), jnp.float32),
        'mean': 0.01 * jax.random.normal(k4, (cout,), jnp.float32),
        'var': jnp.ones((cout,), jnp.float32),
    }


def init_elan(key, cin, cout, num_blocks):
    inter = round(cout * 0.5)
    keys = jax.random.split(key, 2 + 2 * num_blocks)
    blocks = []
    for b in range(num_blocks):
        blocks.append({
            'c1': init_conv_bn(keys[2 + 2 * b], inter, inter, 3),
            'c2': init_conv_bn(keys[3 + 2 * b], inter, inter, 3),
        })
    return {
        'input_proj': init_conv_bn(keys[0], cin, inter * 2, 1),
        'output_proj': init_conv_bn(keys[1], (2 + num_blocks) * inter, cout, 1),
        'blocks': blocks,
    }


def init_backbone(key, width=0.25, depth=0.34, ratio=1.0, num_classes=16):
    feat = [round(64 * width), round(128 * width), round(256 * width),
            round(512 * width), round(512 * width * ratio)]
    nblocks = [round(3 * depth), round(6 * depth), round(6 * depth),
               round(3 * depth)]
    ks = jax.random.split(key, 11)
    params = {'layer1': init_conv_bn(ks[0], 3, feat[0], 3)}
    for li, (cin, cout, nb) in enumerate(zip(feat[:4], feat[1:], nblocks)):
        params[f'layer{li + 2}'] = {
            'down': init_conv_bn(ks[1 + 2 * li], cin, cout, 3),
            'elan': init_elan(ks[2 + 2 * li], cout, cout, nb),
        }
    params['fc'] = {
        'w': jax.random.normal(ks[9], (num_classes, feat[4]), jnp.float32)
             / math.sqrt(feat[4]),
        'b': 0.01 * jax.random.normal(ks[10], (num_classes,), jnp.float32),
    }
    return params


if __name__ == "__main__":
    key = jax.random.PRNGKey(0)
    pkey, xkey = jax.random.split(key)

    # Small-but-consistent config: width=0.25, depth=0.34, ratio=1.0, 16 classes.
    raw_params = init_backbone(pkey, width=0.25, depth=0.34, ratio=1.0,
                               num_classes=16)
    prep = prepare_params(raw_params)    # BN fold / transpose / bf16 cast, once

    # Input in PyTorch NCHW convention; 32x32 so 5 stride-2 stages end at 1x1.
    x = jax.random.normal(xkey, (2, 3, 32, 32), jnp.float32)

    fwd = jax.jit(forward)
    out = jax.block_until_ready(fwd(prep, x))

    assert out.shape == (2, 16), out.shape
    assert bool(jnp.all(jnp.isfinite(out)))
    print("KERNEL_OK")
</pallas_src>

<mosaic_0001>
module attributes {stable_mosaic.version = 11 : i64} {
  func.func @_mm_fused_kernel(%arg0: i32, %arg1: i32, %arg2: memref<512x27xbf16, #tpu.memory_space<vmem>>, %arg3: memref<27x16xbf16, #tpu.memory_space<vmem>>, %arg4: memref<1x16xf32, #tpu.memory_space<vmem>>, %arg5: memref<512x16xbf16, #tpu.memory_space<vmem>>) attributes {dimension_semantics = [#tpu.dimension_semantics<parallel>, #tpu.dimension_semantics<parallel>], iteration_bounds = array<i64: 1, 1>, scalar_prefetch = 0 : i64, scratch_operands = 0 : i64, tpu.core_type = #tpu.core_type<tc>, window_params = [{transform_indices = @transform_0, window_bounds = array<i64: 512, 27>}, {transform_indices = @transform_1, window_bounds = array<i64: 27, 16>}, {transform_indices = @transform_2, window_bounds = array<i64: 1, 16>}, {transform_indices = @transform_3, window_bounds = array<i64: 512, 16>}]} {
    %c0 = arith.constant 0 : index
    %c0_0 = arith.constant 0 : index
    %0 = vector.load %arg2[%c0, %c0_0] : memref<512x27xbf16, #tpu.memory_space<vmem>>, vector<512x27xbf16>
    %c0_1 = arith.constant 0 : index
    %c0_2 = arith.constant 0 : index
    %1 = vector.load %arg3[%c0_1, %c0_2] : memref<27x16xbf16, #tpu.memory_space<vmem>>, vector<27x16xbf16>
    %cst = arith.constant dense<0.000000e+00> : vector<512x16xf32>
    %2 = tpu.matmul %0, %1, %cst {dimension_numbers = #tpu.dot_dimension_numbers<[1], [0], [0], [1], [0, 0, 1, 1], [], []>} : vector<512x27xbf16>, vector<27x16xbf16>, vector<512x16xf32> -> vector<512x16xf32>
    %c0_3 = arith.constant 0 : index
    %c0_4 = arith.constant 0 : index
    %3 = vector.load %arg4[%c0_3, %c0_4] : memref<1x16xf32, #tpu.memory_space<vmem>>, vector<1x16xf32>
    %4 = vector.broadcast %3 : vector<1x16xf32> to vector<512x16xf32>
    %5 = arith.addf %2, %4 : vector<512x16xf32>
    %6 = arith.negf %5 : vector<512x16xf32>
    %7 = math.exp %6 : vector<512x16xf32>
    %cst_5 = arith.constant 1.000000e+00 : f32
    %8 = vector.broadcast %cst_5 : f32 to vector<512x16xf32>
    %9 = arith.addf %8, %7 : vector<512x16xf32>
    %10 = arith.divf %8, %9 : vector<512x16xf32>
    %11 = arith.mulf %5, %10 : vector<512x16xf32>
    %12 = arith.truncf %11 : vector<512x16xf32> to vector<512x16xbf16>
    %c0_6 = arith.constant 0 : index
    %c0_7 = arith.constant 0 : index
    %13 = vector.load %arg5[%c0_6, %c0_7] : memref<512x16xbf16, #tpu.memory_space<vmem>>, vector<512x16xbf16>
    tpu.vector_store %arg5[%c0_6, %c0_7], %12 {strides = array<i32>} : memref<512x16xbf16, #tpu.memory_space<vmem>>, vector<512x16xbf16>,
    return
  }
  func.func @transform_0(%arg0: i32, %arg1: i32) -> (i32, i32) {
    %c0_i32 = arith.constant 0 : i32
    %c0_i32_0 = arith.constant 0 : i32
    return %arg0, %c0_i32 : i32, i32
  }
  func.func @transform_1(%arg0: i32, %arg1: i32) -> (i32, i32) {
    %c0_i32 = arith.constant 0 : i32
    %c0_i32_0 = arith.constant 0 : i32
    return %c0_i32, %arg1 : i32, i32
  }
  func.func @transform_2(%arg0: i32, %arg1: i32) -> (i32, i32) {
    %c0_i32 = arith.constant 0 : i32
    %c0_i32_0 = arith.constant 0 : i32
    return %c0_i32, %arg1 : i32, i32
  }
  func.func @transform_3(%arg0: i32, %arg1: i32) -> (i32, i32) {
    %c0_i32 = arith.constant 0 : i32
    return %arg0, %arg1 : i32, i32
  }
}

module attributes {stable_mosaic.version = 11 : i64} {
  func.func @_mm_fused_kernel(%arg0: i32, %arg1: i32, %arg2: memref<128x144xbf16, #tpu.memory_space<vmem>>, %arg3: memref<144x32xbf16, #tpu.memory_space<vmem>>, %arg4: memref<1x32xf32, #tpu.memory_space<vmem>>, %arg5: memref<128x32xbf16, #tpu.memory_space<vmem>>) attributes {dimension_semantics = [#tpu.dimension_semantics<parallel>, #tpu.dimension_semantics<parallel>], iteration_bounds = array<i64: 1, 1>, scalar_prefetch = 0 : i64, scratch_operands = 0 : i64, tpu.core_type = #tpu.core_type<tc>, window_params = [{transform_indices = @transform_0, window_bounds = array<i64: 128, 144>}, {transform_indices = @transform_1, window_bounds = array<i64: 144, 32>}, {transform_indices = @transform_2, window_bounds = array<i64: 1, 32>}, {transform_indices = @transform_3, window_bounds = array<i64: 128, 32>}]} {
    %c0 = arith.constant 0 : index
    %c0_0 = arith.constant 0 : index
    %0 = vector.load %arg2[%c0, %c0_0] : memref<128x144xbf16, #tpu.memory_space<vmem>>, vector<128x144xbf16>
    %c0_1 = arith.constant 0 : index
    %c0_2 = arith.constant 0 : index
    %1 = vector.load %arg3[%c0_1, %c0_2] : memref<144x32xbf16, #tpu.memory_space<vmem>>, vector<144x32xbf16>
    %cst = arith.constant dense<0.000000e+00> : vector<128x32xf32>
    %2 = tpu.matmul %0, %1, %cst {dimension_numbers = #tpu.dot_dimension_numbers<[1], [0], [0], [1], [0, 0, 1, 1], [], []>} : vector<128x144xbf16>, vector<144x32xbf16>, vector<128x32xf32> -> vector<128x32xf32>
    %c0_3 = arith.constant 0 : index
    %c0_4 = arith.constant 0 : index
    %3 = vector.load %arg4[%c0_3, %c0_4] : memref<1x32xf32, #tpu.memory_space<vmem>>, vector<1x32xf32>
    %4 = vector.broadcast %3 : vector<1x32xf32> to vector<128x32xf32>
    %5 = arith.addf %2, %4 : vector<128x32xf32>
    %6 = arith.negf %5 : vector<128x32xf32>
    %7 = math.exp %6 : vector<128x32xf32>
    %cst_5 = arith.constant 1.000000e+00 : f32
    %8 = vector.broadcast %cst_5 : f32 to vector<128x32xf32>
    %9 = arith.addf %8, %7 : vector<128x32xf32>
    %10 = arith.divf %8, %9 : vector<128x32xf32>
    %11 = arith.mulf %5, %10 : vector<128x32xf32>
    %12 = arith.truncf %11 : vector<128x32xf32> to vector<128x32xbf16>
    %c0_6 = arith.constant 0 : index
    %c0_7 = arith.constant 0 : index
    %13 = vector.load %arg5[%c0_6, %c0_7] : memref<128x32xbf16, #tpu.memory_space<vmem>>, vector<128x32xbf16>
    tpu.vector_store %arg5[%c0_6, %c0_7], %12 {strides = array<i32>} : memref<128x32xbf16, #tpu.memory_space<vmem>>, vector<128x32xbf16>,
    return
  }
  func.func @transform_0(%arg0: i32, %arg1: i32) -> (i32, i32) {
    %c0_i32 = arith.constant 0 : i32
    %c0_i32_0 = arith.constant 0 : i32
    return %arg0, %c0_i32 : i32, i32
  }
  func.func @transform_1(%arg0: i32, %arg1: i32) -> (i32, i32) {
    %c0_i32 = arith.constant 0 : i32
    %c0_i32_0 = arith.constant 0 : i32
    return %c0_i32, %arg1 : i32, i32
  }
  func.func @transform_2(%arg0: i32, %arg1: i32) -> (i32, i32) {
    %c0_i32 = arith.constant 0 : i32
    %c0_i32_0 = arith.constant 0 : i32
    return %c0_i32, %arg1 : i32, i32
  }
  func.func @transform_3(%arg0: i32, %arg1: i32) -> (i32, i32) {
    %c0_i32 = arith.constant 0 : i32
    return %arg0, %arg1 : i32, i32
  }
}

module attributes {stable_mosaic.version = 11 : i64} {
  func.func @_mm_fused_kernel(%arg0: i32, %arg1: i32, %arg2: memref<128x32xbf16, #tpu.memory_space<vmem>>, %arg3: memref<32x32xbf16, #tpu.memory_space<vmem>>, %arg4: memref<1x32xf32, #tpu.memory_space<vmem>>, %arg5: memref<128x32xbf16, #tpu.memory_space<vmem>>) attributes {dimension_semantics = [#tpu.dimension_semantics<parallel>, #tpu.dimension_semantics<parallel>], iteration_bounds = array<i64: 1, 1>, scalar_prefetch = 0 : i64, scratch_operands = 0 : i64, tpu.core_type = #tpu.core_type<tc>, window_params = [{transform_indices = @transform_0, window_bounds = array<i64: 128, 32>}, {transform_indices = @transform_1, window_bounds = array<i64: 32, 32>}, {transform_indices = @transform_2, window_bounds = array<i64: 1, 32>}, {transform_indices = @transform_3, window_bounds = array<i64: 128, 32>}]} {
    %c0 = arith.constant 0 : index
    %c0_0 = arith.constant 0 : index
    %0 = vector.load %arg2[%c0, %c0_0] : memref<128x32xbf16, #tpu.memory_space<vmem>>, vector<128x32xbf16>
    %c0_1 = arith.constant 0 : index
    %c0_2 = arith.constant 0 : index
    %1 = vector.load %arg3[%c0_1, %c0_2] : memref<32x32xbf16, #tpu.memory_space<vmem>>, vector<32x32xbf16>
    %cst = arith.constant dense<0.000000e+00> : vector<128x32xf32>
    %2 = tpu.matmul %0, %1, %cst {dimension_numbers = #tpu.dot_dimension_numbers<[1], [0], [0], [1], [0, 0, 1, 1], [], []>} : vector<128x32xbf16>, vector<32x32xbf16>, vector<128x32xf32> -> vector<128x32xf32>
    %c0_3 = arith.constant 0 : index
    %c0_4 = arith.constant 0 : index
    %3 = vector.load %arg4[%c0_3, %c0_4] : memref<1x32xf32, #tpu.memory_space<vmem>>, vector<1x32xf32>
    %4 = vector.broadcast %3 : vector<1x32xf32> to vector<128x32xf32>
    %5 = arith.addf %2, %4 : vector<128x32xf32>
    %6 = arith.negf %5 : vector<128x32xf32>
    %7 = math.exp %6 : vector<128x32xf32>
    %cst_5 = arith.constant 1.000000e+00 : f32
    %8 = vector.broadcast %cst_5 : f32 to vector<128x32xf32>
    %9 = arith.addf %8, %7 : vector<128x32xf32>
    %10 = arith.divf %8, %9 : vector<128x32xf32>
    %11 = arith.mulf %5, %10 : vector<128x32xf32>
    %12 = arith.truncf %11 : vector<128x32xf32> to vector<128x32xbf16>
    %c0_6 = arith.constant 0 : index
    %c0_7 = arith.constant 0 : index
    %13 = vector.load %arg5[%c0_6, %c0_7] : memref<128x32xbf16, #tpu.memory_space<vmem>>, vector<128x32xbf16>
    tpu.vector_store %arg5[%c0_6, %c0_7], %12 {strides = array<i32>} : memref<128x32xbf16, #tpu.memory_space<vmem>>, vector<128x32xbf16>,
    return
  }
  func.func @transform_0(%arg0: i32, %arg1: i32) -> (i32, i32) {
    %c0_i32 = arith.constant 0 : i32
    %c0_i32_0 = arith.constant 0 : i32
    return %arg0, %c0_i32 : i32, i32
  }
  func.func @transform_1(%arg0: i32, %arg1: i32) -> (i32, i32) {
    %c0_i32 = arith.constant 0 : i32
    %c0_i32_0 = arith.constant 0 : i32
    return %c0_i32, %arg1 : i32, i32
  }
  func.func @transform_2(%arg0: i32, %arg1: i32) -> (i32, i32) {
    %c0_i32 = arith.constant 0 : i32
    %c0_i32_0 = arith.constant 0 : i32
    return %c0_i32, %arg1 : i32, i32
  }
  func.func @transform_3(%arg0: i32, %arg1: i32) -> (i32, i32) {
    %c0_i32 = arith.constant 0 : i32
    return %arg0, %arg1 : i32, i32
  }
}

module attributes {stable_mosaic.version = 11 : i64} {
  func.func @_mm_fused_kernel(%arg0: i32, %arg1: i32, %arg2: memref<128x144xbf16, #tpu.memory_space<vmem>>, %arg3: memref<144x16xbf16, #tpu.memory_space<vmem>>, %arg4: memref<1x16xf32, #tpu.memory_space<vmem>>, %arg5: memref<128x16xbf16, #tpu.memory_space<vmem>>) attributes {dimension_semantics = [#tpu.dimension_semantics<parallel>, #tpu.dimension_semantics<parallel>], iteration_bounds = array<i64: 1, 1>, scalar_prefetch = 0 : i64, scratch_operands = 0 : i64, tpu.core_type = #tpu.core_type<tc>, window_params = [{transform_indices = @transform_0, window_bounds = array<i64: 128, 144>}, {transform_indices = @transform_1, window_bounds = array<i64: 144, 16>}, {transform_indices = @transform_2, window_bounds = array<i64: 1, 16>}, {transform_indices = @transform_3, window_bounds = array<i64: 128, 16>}]} {
    %c0 = arith.constant 0 : index
    %c0_0 = arith.constant 0 : index
    %0 = vector.load %arg2[%c0, %c0_0] : memref<128x144xbf16, #tpu.memory_space<vmem>>, vector<128x144xbf16>
    %c0_1 = arith.constant 0 : index
    %c0_2 = arith.constant 0 : index
    %1 = vector.load %arg3[%c0_1, %c0_2] : memref<144x16xbf16, #tpu.memory_space<vmem>>, vector<144x16xbf16>
    %cst = arith.constant dense<0.000000e+00> : vector<128x16xf32>
    %2 = tpu.matmul %0, %1, %cst {dimension_numbers = #tpu.dot_dimension_numbers<[1], [0], [0], [1], [0, 0, 1, 1], [], []>} : vector<128x144xbf16>, vector<144x16xbf16>, vector<128x16xf32> -> vector<128x16xf32>
    %c0_3 = arith.constant 0 : index
    %c0_4 = arith.constant 0 : index
    %3 = vector.load %arg4[%c0_3, %c0_4] : memref<1x16xf32, #tpu.memory_space<vmem>>, vector<1x16xf32>
    %4 = vector.broadcast %3 : vector<1x16xf32> to vector<128x16xf32>
    %5 = arith.addf %2, %4 : vector<128x16xf32>
    %6 = arith.negf %5 : vector<128x16xf32>
    %7 = math.exp %6 : vector<128x16xf32>
    %cst_5 = arith.constant 1.000000e+00 : f32
    %8 = vector.broadcast %cst_5 : f32 to vector<128x16xf32>
    %9 = arith.addf %8, %7 : vector<128x16xf32>
    %10 = arith.divf %8, %9 : vector<128x16xf32>
    %11 = arith.mulf %5, %10 : vector<128x16xf32>
    %12 = arith.truncf %11 : vector<128x16xf32> to vector<128x16xbf16>
    %c0_6 = arith.constant 0 : index
    %c0_7 = arith.constant 0 : index
    %13 = vector.load %arg5[%c0_6, %c0_7] : memref<128x16xbf16, #tpu.memory_space<vmem>>, vector<128x16xbf16>
    tpu.vector_store %arg5[%c0_6, %c0_7], %12 {strides = array<i32>} : memref<128x16xbf16, #tpu.memory_space<vmem>>, vector<128x16xbf16>,
    return
  }
  func.func @transform_0(%arg0: i32, %arg1: i32) -> (i32, i32) {
    %c0_i32 = arith.constant 0 : i32
    %c0_i32_0 = arith.constant 0 : i32
    return %arg0, %c0_i32 : i32, i32
  }
  func.func @transform_1(%arg0: i32, %arg1: i32) -> (i32, i32) {
    %c0_i32 = arith.constant 0 : i32
    %c0_i32_0 = arith.constant 0 : i32
    return %c0_i32, %arg1 : i32, i32
  }
  func.func @transform_2(%arg0: i32, %arg1: i32) -> (i32, i32) {
    %c0_i32 = arith.constant 0 : i32
    %c0_i32_0 = arith.constant 0 : i32
    return %c0_i32, %arg1 : i32, i32
  }
  func.func @transform_3(%arg0: i32, %arg1: i32) -> (i32, i32) {
    %c0_i32 = arith.constant 0 : i32
    return %arg0, %arg1 : i32, i32
  }
}

module attributes {stable_mosaic.version = 11 : i64} {
  func.func @_mm_fused_kernel(%arg0: i32, %arg1: i32, %arg2: memref<128x144xbf16, #tpu.memory_space<vmem>>, %arg3: memref<144x16xbf16, #tpu.memory_space<vmem>>, %arg4: memref<1x16xf32, #tpu.memory_space<vmem>>, %arg5: memref<128x16xbf16, #tpu.memory_space<vmem>>, %arg6: memref<128x16xbf16, #tpu.memory_space<vmem>>) attributes {dimension_semantics = [#tpu.dimension_semantics<parallel>, #tpu.dimension_semantics<parallel>], iteration_bounds = array<i64: 1, 1>, scalar_prefetch = 0 : i64, scratch_operands = 0 : i64, tpu.core_type = #tpu.core_type<tc>, window_params = [{transform_indices = @transform_0, window_bounds = array<i64: 128, 144>}, {transform_indices = @transform_1, window_bounds = array<i64: 144, 16>}, {transform_indices = @transform_2, window_bounds = array<i64: 1, 16>}, {transform_indices = @transform_3, window_bounds = array<i64: 128, 16>}, {transform_indices = @transform_4, window_bounds = array<i64: 128, 16>}]} {
    %c0 = arith.constant 0 : index
    %c0_0 = arith.constant 0 : index
    %0 = vector.load %arg5[%c0, %c0_0] : memref<128x16xbf16, #tpu.memory_space<vmem>>, vector<128x16xbf16>
    %c0_1 = arith.constant 0 : index
    %c0_2 = arith.constant 0 : index
    %1 = vector.load %arg2[%c0_1, %c0_2] : memref<128x144xbf16, #tpu.memory_space<vmem>>, vector<128x144xbf16>
    %c0_3 = arith.constant 0 : index
    %c0_4 = arith.constant 0 : index
    %2 = vector.load %arg3[%c0_3, %c0_4] : memref<144x16xbf16, #tpu.memory_space<vmem>>, vector<144x16xbf16>
    %cst = arith.constant dense<0.000000e+00> : vector<128x16xf32>
    %3 = tpu.matmul %1, %2, %cst {dimension_numbers = #tpu.dot_dimension_numbers<[1], [0], [0], [1], [0, 0, 1, 1], [], []>} : vector<128x144xbf16>, vector<144x16xbf16>, vector<128x16xf32> -> vector<128x16xf32>
    %c0_5 = arith.constant 0 : index
    %c0_6 = arith.constant 0 : index
    %4 = vector.load %arg4[%c0_5, %c0_6] : memref<1x16xf32, #tpu.memory_space<vmem>>, vector<1x16xf32>
    %5 = vector.broadcast %4 : vector<1x16xf32> to vector<128x16xf32>
    %6 = arith.addf %3, %5 : vector<128x16xf32>
    %7 = arith.negf %6 : vector<128x16xf32>
    %8 = math.exp %7 : vector<128x16xf32>
    %cst_7 = arith.constant 1.000000e+00 : f32
    %9 = vector.broadcast %cst_7 : f32 to vector<128x16xf32>
    %10 = arith.addf %9, %8 : vector<128x16xf32>
    %11 = arith.divf %9, %10 : vector<128x16xf32>
    %12 = arith.mulf %6, %11 : vector<128x16xf32>
    %13 = arith.extf %0 : vector<128x16xbf16> to vector<128x16xf32>
    %14 = arith.addf %12, %13 : vector<128x16xf32>
    %15 = arith.truncf %14 : vector<128x16xf32> to vector<128x16xbf16>
    %c0_8 = arith.constant 0 : index
    %c0_9 = arith.constant 0 : index
    %16 = vector.load %arg6[%c0_8, %c0_9] : memref<128x16xbf16, #tpu.memory_space<vmem>>, vector<128x16xbf16>
    tpu.vector_store %arg6[%c0_8, %c0_9], %15 {strides = array<i32>} : memref<128x16xbf16, #tpu.memory_space<vmem>>, vector<128x16xbf16>,
    return
  }
  func.func @transform_0(%arg0: i32, %arg1: i32) -> (i32, i32) {
    %c0_i32 = arith.constant 0 : i32
    %c0_i32_0 = arith.constant 0 : i32
    return %arg0, %c0_i32 : i32, i32
  }
  func.func @transform_1(%arg0: i32, %arg1: i32) -> (i32, i32) {
    %c0_i32 = arith.constant 0 : i32
    %c0_i32_0 = arith.constant 0 : i32
    return %c0_i32, %arg1 : i32, i32
  }
  func.func @transform_2(%arg0: i32, %arg1: i32) -> (i32, i32) {
    %c0_i32 = arith.constant 0 : i32
    %c0_i32_0 = arith.constant 0 : i32
    return %c0_i32, %arg1 : i32, i32
  }
  func.func @transform_3(%arg0: i32, %arg1: i32) -> (i32, i32) {
    %c0_i32 = arith.constant 0 : i32
    return %arg0, %arg1 : i32, i32
  }
  func.func @transform_4(%arg0: i32, %arg1: i32) -> (i32, i32) {
    %c0_i32 = arith.constant 0 : i32
    return %arg0, %arg1 : i32, i32
  }
}

module attributes {stable_mosaic.version = 11 : i64} {
  func.func @_mm_fused_kernel(%arg0: i32, %arg1: i32, %arg2: memref<128x48xbf16, #tpu.memory_space<vmem>>, %arg3: memref<48x32xbf16, #tpu.memory_space<vmem>>, %arg4: memref<1x32xf32, #tpu.memory_space<vmem>>, %arg5: memref<128x32xbf16, #tpu.memory_space<vmem>>) attributes {dimension_semantics = [#tpu.dimension_semantics<parallel>, #tpu.dimension_semantics<parallel>], iteration_bounds = array<i64: 1, 1>, scalar_prefetch = 0 : i64, scratch_operands = 0 : i64, tpu.core_type = #tpu.core_type<tc>, window_params = [{transform_indices = @transform_0, window_bounds = array<i64: 128, 48>}, {transform_indices = @transform_1, window_bounds = array<i64: 48, 32>}, {transform_indices = @transform_2, window_bounds = array<i64: 1, 32>}, {transform_indices = @transform_3, window_bounds = array<i64: 128, 32>}]} {
    %c0 = arith.constant 0 : index
    %c0_0 = arith.constant 0 : index
    %0 = vector.load %arg2[%c0, %c0_0] : memref<128x48xbf16, #tpu.memory_space<vmem>>, vector<128x48xbf16>
    %c0_1 = arith.constant 0 : index
    %c0_2 = arith.constant 0 : index
    %1 = vector.load %arg3[%c0_1, %c0_2] : memref<48x32xbf16, #tpu.memory_space<vmem>>, vector<48x32xbf16>
    %cst = arith.constant dense<0.000000e+00> : vector<128x32xf32>
    %2 = tpu.matmul %0, %1, %cst {dimension_numbers = #tpu.dot_dimension_numbers<[1], [0], [0], [1], [0, 0, 1, 1], [], []>} : vector<128x48xbf16>, vector<48x32xbf16>, vector<128x32xf32> -> vector<128x32xf32>
    %c0_3 = arith.constant 0 : index
    %c0_4 = arith.constant 0 : index
    %3 = vector.load %arg4[%c0_3, %c0_4] : memref<1x32xf32, #tpu.memory_space<vmem>>, vector<1x32xf32>
    %4 = vector.broadcast %3 : vector<1x32xf32> to vector<128x32xf32>
    %5 = arith.addf %2, %4 : vector<128x32xf32>
    %6 = arith.negf %5 : vector<128x32xf32>
    %7 = math.exp %6 : vector<128x32xf32>
    %cst_5 = arith.constant 1.000000e+00 : f32
    %8 = vector.broadcast %cst_5 : f32 to vector<128x32xf32>
    %9 = arith.addf %8, %7 : vector<128x32xf32>
    %10 = arith.divf %8, %9 : vector<128x32xf32>
    %11 = arith.mulf %5, %10 : vector<128x32xf32>
    %12 = arith.truncf %11 : vector<128x32xf32> to vector<128x32xbf16>
    %c0_6 = arith.constant 0 : index
    %c0_7 = arith.constant 0 : index
    %13 = vector.load %arg5[%c0_6, %c0_7] : memref<128x32xbf16, #tpu.memory_space<vmem>>, vector<128x32xbf16>
    tpu.vector_store %arg5[%c0_6, %c0_7], %12 {strides = array<i32>} : memref<128x32xbf16, #tpu.memory_space<vmem>>, vector<128x32xbf16>,
    return
  }
  func.func @transform_0(%arg0: i32, %arg1: i32) -> (i32, i32) {
    %c0_i32 = arith.constant 0 : i32
    %c0_i32_0 = arith.constant 0 : i32
    return %arg0, %c0_i32 : i32, i32
  }
  func.func @transform_1(%arg0: i32, %arg1: i32) -> (i32, i32) {
    %c0_i32 = arith.constant 0 : i32
    %c0_i32_0 = arith.constant 0 : i32
    return %c0_i32, %arg1 : i32, i32
  }
  func.func @transform_2(%arg0: i32, %arg1: i32) -> (i32, i32) {
    %c0_i32 = arith.constant 0 : i32
    %c0_i32_0 = arith.constant 0 : i32
    return %c0_i32, %arg1 : i32, i32
  }
  func.func @transform_3(%arg0: i32, %arg1: i32) -> (i32, i32) {
    %c0_i32 = arith.constant 0 : i32
    return %arg0, %arg1 : i32, i32
  }
}

module attributes {stable_mosaic.version = 11 : i64} {
  func.func @_mm_fused_kernel(%arg0: i32, %arg1: i32, %arg2: memref<32x288xbf16, #tpu.memory_space<vmem>>, %arg3: memref<288x64xbf16, #tpu.memory_space<vmem>>, %arg4: memref<1x64xf32, #tpu.memory_space<vmem>>, %arg5: memref<32x64xbf16, #tpu.memory_space<vmem>>) attributes {dimension_semantics = [#tpu.dimension_semantics<parallel>, #tpu.dimension_semantics<parallel>], iteration_bounds = array<i64: 1, 1>, scalar_prefetch = 0 : i64, scratch_operands = 0 : i64, tpu.core_type = #tpu.core_type<tc>, window_params = [{transform_indices = @transform_0, window_bounds = array<i64: 32, 288>}, {transform_indices = @transform_1, window_bounds = array<i64: 288, 64>}, {transform_indices = @transform_2, window_bounds = array<i64: 1, 64>}, {transform_indices = @transform_3, window_bounds = array<i64: 32, 64>}]} {
    %c0 = arith.constant 0 : index
    %c0_0 = arith.constant 0 : index
    %0 = vector.load %arg2[%c0, %c0_0] : memref<32x288xbf16, #tpu.memory_space<vmem>>, vector<32x288xbf16>
    %c0_1 = arith.constant 0 : index
    %c0_2 = arith.constant 0 : index
    %1 = vector.load %arg3[%c0_1, %c0_2] : memref<288x64xbf16, #tpu.memory_space<vmem>>, vector<288x64xbf16>
    %cst = arith.constant dense<0.000000e+00> : vector<32x64xf32>
    %2 = tpu.matmul %0, %1, %cst {dimension_numbers = #tpu.dot_dimension_numbers<[1], [0], [0], [1], [0, 0, 1, 1], [], []>} : vector<32x288xbf16>, vector<288x64xbf16>, vector<32x64xf32> -> vector<32x64xf32>
    %c0_3 = arith.constant 0 : index
    %c0_4 = arith.constant 0 : index
    %3 = vector.load %arg4[%c0_3, %c0_4] : memref<1x64xf32, #tpu.memory_space<vmem>>, vector<1x64xf32>
    %4 = vector.broadcast %3 : vector<1x64xf32> to vector<32x64xf32>
    %5 = arith.addf %2, %4 : vector<32x64xf32>
    %6 = arith.negf %5 : vector<32x64xf32>
    %7 = math.exp %6 : vector<32x64xf32>
    %cst_5 = arith.constant 1.000000e+00 : f32
    %8 = vector.broadcast %cst_5 : f32 to vector<32x64xf32>
    %9 = arith.addf %8, %7 : vector<32x64xf32>
    %10 = arith.divf %8, %9 : vector<32x64xf32>
    %11 = arith.mulf %5, %10 : vector<32x64xf32>
    %12 = arith.truncf %11 : vector<32x64xf32> to vector<32x64xbf16>
    %c0_6 = arith.constant 0 : index
    %c0_7 = arith.constant 0 : index
    %13 = vector.load %arg5[%c0_6, %c0_7] : memref<32x64xbf16, #tpu.memory_space<vmem>>, vector<32x64xbf16>
    tpu.vector_store %arg5[%c0_6, %c0_7], %12 {strides = array<i32>} : memref<32x64xbf16, #tpu.memory_space<vmem>>, vector<32x64xbf16>,
    return
  }
  func.func @transform_0(%arg0: i32, %arg1: i32) -> (i32, i32) {
    %c0_i32 = arith.constant 0 : i32
    %c0_i32_0 = arith.constant 0 : i32
    return %arg0, %c0_i32 : i32, i32
  }
  func.func @transform_1(%arg0: i32, %arg1: i32) -> (i32, i32) {
    %c0_i32 = arith.constant 0 : i32
    %c0_i32_0 = arith.constant 0 : i32
    return %c0_i32, %arg1 : i32, i32
  }
  func.func @transform_2(%arg0: i32, %arg1: i32) -> (i32, i32) {
    %c0_i32 = arith.constant 0 : i32
    %c0_i32_0 = arith.constant 0 : i32
    return %c0_i32, %arg1 : i32, i32
  }
  func.func @transform_3(%arg0: i32, %arg1: i32) -> (i32, i32) {
    %c0_i32 = arith.constant 0 : i32
    return %arg0, %arg1 : i32, i32
  }
}

module attributes {stable_mosaic.version = 11 : i64} {
  func.func @_mm_fused_kernel(%arg0: i32, %arg1: i32, %arg2: memref<32x64xbf16, #tpu.memory_space<vmem>>, %arg3: memref<64x64xbf16, #tpu.memory_space<vmem>>, %arg4: memref<1x64xf32, #tpu.memory_space<vmem>>, %arg5: memref<32x64xbf16, #tpu.memory_space<vmem>>) attributes {dimension_semantics = [#tpu.dimension_semantics<parallel>, #tpu.dimension_semantics<parallel>], iteration_bounds = array<i64: 1, 1>, scalar_prefetch = 0 : i64, scratch_operands = 0 : i64, tpu.core_type = #tpu.core_type<tc>, window_params = [{transform_indices = @transform_0, window_bounds = array<i64: 32, 64>}, {transform_indices = @transform_1, window_bounds = array<i64: 64, 64>}, {transform_indices = @transform_2, window_bounds = array<i64: 1, 64>}, {transform_indices = @transform_3, window_bounds = array<i64: 32, 64>}]} {
    %c0 = arith.constant 0 : index
    %c0_0 = arith.constant 0 : index
    %0 = vector.load %arg2[%c0, %c0_0] : memref<32x64xbf16, #tpu.memory_space<vmem>>, vector<32x64xbf16>
    %c0_1 = arith.constant 0 : index
    %c0_2 = arith.constant 0 : index
    %1 = vector.load %arg3[%c0_1, %c0_2] : memref<64x64xbf16, #tpu.memory_space<vmem>>, vector<64x64xbf16>
    %cst = arith.constant dense<0.000000e+00> : vector<32x64xf32>
    %2 = tpu.matmul %0, %1, %cst {dimension_numbers = #tpu.dot_dimension_numbers<[1], [0], [0], [1], [0, 0, 1, 1], [], []>} : vector<32x64xbf16>, vector<64x64xbf16>, vector<32x64xf32> -> vector<32x64xf32>
    %c0_3 = arith.constant 0 : index
    %c0_4 = arith.constant 0 : index
    %3 = vector.load %arg4[%c0_3, %c0_4] : memref<1x64xf32, #tpu.memory_space<vmem>>, vector<1x64xf32>
    %4 = vector.broadcast %3 : vector<1x64xf32> to vector<32x64xf32>
    %5 = arith.addf %2, %4 : vector<32x64xf32>
    %6 = arith.negf %5 : vector<32x64xf32>
    %7 = math.exp %6 : vector<32x64xf32>
    %cst_5 = arith.constant 1.000000e+00 : f32
    %8 = vector.broadcast %cst_5 : f32 to vector<32x64xf32>
    %9 = arith.addf %8, %7 : vector<32x64xf32>
    %10 = arith.divf %8, %9 : vector<32x64xf32>
    %11 = arith.mulf %5, %10 : vector<32x64xf32>
    %12 = arith.truncf %11 : vector<32x64xf32> to vector<32x64xbf16>
    %c0_6 = arith.constant 0 : index
    %c0_7 = arith.constant 0 : index
    %13 = vector.load %arg5[%c0_6, %c0_7] : memref<32x64xbf16, #tpu.memory_space<vmem>>, vector<32x64xbf16>
    tpu.vector_store %arg5[%c0_6, %c0_7], %12 {strides = array<i32>} : memref<32x64xbf16, #tpu.memory_space<vmem>>, vector<32x64xbf16>,
    return
  }
  func.func @transform_0(%arg0: i32, %arg1: i32) -> (i32, i32) {
    %c0_i32 = arith.constant 0 : i32
    %c0_i32_0 = arith.constant 0 : i32
    return %arg0, %c0_i32 : i32, i32
  }
  func.func @transform_1(%arg0: i32, %arg1: i32) -> (i32, i32) {
    %c0_i32 = arith.constant 0 : i32
    %c0_i32_0 = arith.constant 0 : i32
    return %c0_i32, %arg1 : i32, i32
  }
  func.func @transform_2(%arg0: i32, %arg1: i32) -> (i32, i32) {
    %c0_i32 = arith.constant 0 : i32
    %c0_i32_0 = arith.constant 0 : i32
    return %c0_i32, %arg1 : i32, i32
  }
  func.func @transform_3(%arg0: i32, %arg1: i32) -> (i32, i32) {
    %c0_i32 = arith.constant 0 : i32
    return %arg0, %arg1 : i32, i32
  }
}

module attributes {stable_mosaic.version = 11 : i64} {
  func.func @_mm_fused_kernel(%arg0: i32, %arg1: i32, %arg2: memref<32x288xbf16, #tpu.memory_space<vmem>>, %arg3: memref<288x32xbf16, #tpu.memory_space<vmem>>, %arg4: memref<1x32xf32, #tpu.memory_space<vmem>>, %arg5: memref<32x32xbf16, #tpu.memory_space<vmem>>) attributes {dimension_semantics = [#tpu.dimension_semantics<parallel>, #tpu.dimension_semantics<parallel>], iteration_bounds = array<i64: 1, 1>, scalar_prefetch = 0 : i64, scratch_operands = 0 : i64, tpu.core_type = #tpu.core_type<tc>, window_params = [{transform_indices = @transform_0, window_bounds = array<i64: 32, 288>}, {transform_indices = @transform_1, window_bounds = array<i64: 288, 32>}, {transform_indices = @transform_2, window_bounds = array<i64: 1, 32>}, {transform_indices = @transform_3, window_bounds = array<i64: 32, 32>}]} {
    %c0 = arith.constant 0 : index
    %c0_0 = arith.constant 0 : index
    %0 = vector.load %arg2[%c0, %c0_0] : memref<32x288xbf16, #tpu.memory_space<vmem>>, vector<32x288xbf16>
    %c0_1 = arith.constant 0 : index
    %c0_2 = arith.constant 0 : index
    %1 = vector.load %arg3[%c0_1, %c0_2] : memref<288x32xbf16, #tpu.memory_space<vmem>>, vector<288x32xbf16>
    %cst = arith.constant dense<0.000000e+00> : vector<32x32xf32>
    %2 = tpu.matmul %0, %1, %cst {dimension_numbers = #tpu.dot_dimension_numbers<[1], [0], [0], [1], [0, 0, 1, 1], [], []>} : vector<32x288xbf16>, vector<288x32xbf16>, vector<32x32xf32> -> vector<32x32xf32>
    %c0_3 = arith.constant 0 : index
    %c0_4 = arith.constant 0 : index
    %3 = vector.load %arg4[%c0_3, %c0_4] : memref<1x32xf32, #tpu.memory_space<vmem>>, vector<1x32xf32>
    %4 = vector.broadcast %3 : vector<1x32xf32> to vector<32x32xf32>
    %5 = arith.addf %2, %4 : vector<32x32xf32>
    %6 = arith.negf %5 : vector<32x32xf32>
    %7 = math.exp %6 : vector<32x32xf32>
    %cst_5 = arith.constant 1.000000e+00 : f32
    %8 = vector.broadcast %cst_5 : f32 to vector<32x32xf32>
    %9 = arith.addf %8, %7 : vector<32x32xf32>
    %10 = arith.divf %8, %9 : vector<32x32xf32>
    %11 = arith.mulf %5, %10 : vector<32x32xf32>
    %12 = arith.truncf %11 : vector<32x32xf32> to vector<32x32xbf16>
    %c0_6 = arith.constant 0 : index
    %c0_7 = arith.constant 0 : index
    %13 = vector.load %arg5[%c0_6, %c0_7] : memref<32x32xbf16, #tpu.memory_space<vmem>>, vector<32x32xbf16>
    tpu.vector_store %arg5[%c0_6, %c0_7], %12 {strides = array<i32>} : memref<32x32xbf16, #tpu.memory_space<vmem>>, vector<32x32xbf16>,
    return
  }
  func.func @transform_0(%arg0: i32, %arg1: i32) -> (i32, i32) {
    %c0_i32 = arith.constant 0 : i32
    %c0_i32_0 = arith.constant 0 : i32
    return %arg0, %c0_i32 : i32, i32
  }
  func.func @transform_1(%arg0: i32, %arg1: i32) -> (i32, i32) {
    %c0_i32 = arith.constant 0 : i32
    %c0_i32_0 = arith.constant 0 : i32
    return %c0_i32, %arg1 : i32, i32
  }
  func.func @transform_2(%arg0: i32, %arg1: i32) -> (i32, i32) {
    %c0_i32 = arith.constant 0 : i32
    %c0_i32_0 = arith.constant 0 : i32
    return %c0_i32, %arg1 : i32, i32
  }
  func.func @transform_3(%arg0: i32, %arg1: i32) -> (i32, i32) {
    %c0_i32 = arith.constant 0 : i32
    return %arg0, %arg1 : i32, i32
  }
}

module attributes {stable_mosaic.version = 11 : i64} {
  func.func @_mm_fused_kernel(%arg0: i32, %arg1: i32, %arg2: memref<32x288xbf16, #tpu.memory_space<vmem>>, %arg3: memref<288x32xbf16, #tpu.memory_space<vmem>>, %arg4: memref<1x32xf32, #tpu.memory_space<vmem>>, %arg5: memref<32x32xbf16, #tpu.memory_space<vmem>>, %arg6: memref<32x32xbf16, #tpu.memory_space<vmem>>) attributes {dimension_semantics = [#tpu.dimension_semantics<parallel>, #tpu.dimension_semantics<parallel>], iteration_bounds = array<i64: 1, 1>, scalar_prefetch = 0 : i64, scratch_operands = 0 : i64, tpu.core_type = #tpu.core_type<tc>, window_params = [{transform_indices = @transform_0, window_bounds = array<i64: 32, 288>}, {transform_indices = @transform_1, window_bounds = array<i64: 288, 32>}, {transform_indices = @transform_2, window_bounds = array<i64: 1, 32>}, {transform_indices = @transform_3, window_bounds = array<i64: 32, 32>}, {transform_indices = @transform_4, window_bounds = array<i64: 32, 32>}]} {
    %c0 = arith.constant 0 : index
    %c0_0 = arith.constant 0 : index
    %0 = vector.load %arg5[%c0, %c0_0] : memref<32x32xbf16, #tpu.memory_space<vmem>>, vector<32x32xbf16>
    %c0_1 = arith.constant 0 : index
    %c0_2 = arith.constant 0 : index
    %1 = vector.load %arg2[%c0_1, %c0_2] : memref<32x288xbf16, #tpu.memory_space<vmem>>, vector<32x288xbf16>
    %c0_3 = arith.constant 0 : index
    %c0_4 = arith.constant 0 : index
    %2 = vector.load %arg3[%c0_3, %c0_4] : memref<288x32xbf16, #tpu.memory_space<vmem>>, vector<288x32xbf16>
    %cst = arith.constant dense<0.000000e+00> : vector<32x32xf32>
    %3 = tpu.matmul %1, %2, %cst {dimension_numbers = #tpu.dot_dimension_numbers<[1], [0], [0], [1], [0, 0, 1, 1], [], []>} : vector<32x288xbf16>, vector<288x32xbf16>, vector<32x32xf32> -> vector<32x32xf32>
    %c0_5 = arith.constant 0 : index
    %c0_6 = arith.constant 0 : index
    %4 = vector.load %arg4[%c0_5, %c0_6] : memref<1x32xf32, #tpu.memory_space<vmem>>, vector<1x32xf32>
    %5 = vector.broadcast %4 : vector<1x32xf32> to vector<32x32xf32>
    %6 = arith.addf %3, %5 : vector<32x32xf32>
    %7 = arith.negf %6 : vector<32x32xf32>
    %8 = math.exp %7 : vector<32x32xf32>
    %cst_7 = arith.constant 1.000000e+00 : f32
    %9 = vector.broadcast %cst_7 : f32 to vector<32x32xf32>
    %10 = arith.addf %9, %8 : vector<32x32xf32>
    %11 = arith.divf %9, %10 : vector<32x32xf32>
    %12 = arith.mulf %6, %11 : vector<32x32xf32>
    %13 = arith.extf %0 : vector<32x32xbf16> to vector<32x32xf32>
    %14 = arith.addf %12, %13 : vector<32x32xf32>
    %15 = arith.truncf %14 : vector<32x32xf32> to vector<32x32xbf16>
    %c0_8 = arith.constant 0 : index
    %c0_9 = arith.constant 0 : index
    %16 = vector.load %arg6[%c0_8, %c0_9] : memref<32x32xbf16, #tpu.memory_space<vmem>>, vector<32x32xbf16>
    tpu.vector_store %arg6[%c0_8, %c0_9], %15 {strides = array<i32>} : memref<32x32xbf16, #tpu.memory_space<vmem>>, vector<32x32xbf16>,
    return
  }
  func.func @transform_0(%arg0: i32, %arg1: i32) -> (i32, i32) {
    %c0_i32 = arith.constant 0 : i32
    %c0_i32_0 = arith.constant 0 : i32
    return %arg0, %c0_i32 : i32, i32
  }
  func.func @transform_1(%arg0: i32, %arg1: i32) -> (i32, i32) {
    %c0_i32 = arith.constant 0 : i32
    %c0_i32_0 = arith.constant 0 : i32
    return %c0_i32, %arg1 : i32, i32
  }
  func.func @transform_2(%arg0: i32, %arg1: i32) -> (i32, i32) {
    %c0_i32 = arith.constant 0 : i32
    %c0_i32_0 = arith.constant 0 : i32
    return %c0_i32, %arg1 : i32, i32
  }
  func.func @transform_3(%arg0: i32, %arg1: i32) -> (i32, i32) {
    %c0_i32 = arith.constant 0 : i32
    return %arg0, %arg1 : i32, i32
  }
  func.func @transform_4(%arg0: i32, %arg1: i32) -> (i32, i32) {
    %c0_i32 = arith.constant 0 : i32
    return %arg0, %arg1 : i32, i32
  }
}

module attributes {stable_mosaic.version = 11 : i64} {
  func.func @_mm_fused_kernel(%arg0: i32, %arg1: i32, %arg2: memref<32x128xbf16, #tpu.memory_space<vmem>>, %arg3: memref<128x64xbf16, #tpu.memory_space<vmem>>, %arg4: memref<1x64xf32, #tpu.memory_space<vmem>>, %arg5: memref<32x64xbf16, #tpu.memory_space<vmem>>) attributes {dimension_semantics = [#tpu.dimension_semantics<parallel>, #tpu.dimension_semantics<parallel>], iteration_bounds = array<i64: 1, 1>, scalar_prefetch = 0 : i64, scratch_operands = 0 : i64, tpu.core_type = #tpu.core_type<tc>, window_params = [{transform_indices = @transform_0, window_bounds = array<i64: 32, 128>}, {transform_indices = @transform_1, window_bounds = array<i64: 128, 64>}, {transform_indices = @transform_2, window_bounds = array<i64: 1, 64>}, {transform_indices = @transform_3, window_bounds = array<i64: 32, 64>}]} {
    %c0 = arith.constant 0 : index
    %c0_0 = arith.constant 0 : index
    %0 = vector.load %arg2[%c0, %c0_0] : memref<32x128xbf16, #tpu.memory_space<vmem>>, vector<32x128xbf16>
    %c0_1 = arith.constant 0 : index
    %c0_2 = arith.constant 0 : index
    %1 = vector.load %arg3[%c0_1, %c0_2] : memref<128x64xbf16, #tpu.memory_space<vmem>>, vector<128x64xbf16>
    %cst = arith.constant dense<0.000000e+00> : vector<32x64xf32>
    %2 = tpu.matmul %0, %1, %cst {dimension_numbers = #tpu.dot_dimension_numbers<[1], [0], [0], [1], [0, 0, 1, 1], [], []>} : vector<32x128xbf16>, vector<128x64xbf16>, vector<32x64xf32> -> vector<32x64xf32>
    %c0_3 = arith.constant 0 : index
    %c0_4 = arith.constant 0 : index
    %3 = vector.load %arg4[%c0_3, %c0_4] : memref<1x64xf32, #tpu.memory_space<vmem>>, vector<1x64xf32>
    %4 = vector.broadcast %3 : vector<1x64xf32> to vector<32x64xf32>
    %5 = arith.addf %2, %4 : vector<32x64xf32>
    %6 = arith.negf %5 : vector<32x64xf32>
    %7 = math.exp %6 : vector<32x64xf32>
    %cst_5 = arith.constant 1.000000e+00 : f32
    %8 = vector.broadcast %cst_5 : f32 to vector<32x64xf32>
    %9 = arith.addf %8, %7 : vector<32x64xf32>
    %10 = arith.divf %8, %9 : vector<32x64xf32>
    %11 = arith.mulf %5, %10 : vector<32x64xf32>
    %12 = arith.truncf %11 : vector<32x64xf32> to vector<32x64xbf16>
    %c0_6 = arith.constant 0 : index
    %c0_7 = arith.constant 0 : index
    %13 = vector.load %arg5[%c0_6, %c0_7] : memref<32x64xbf16, #tpu.memory_space<vmem>>, vector<32x64xbf16>
    tpu.vector_store %arg5[%c0_6, %c0_7], %12 {strides = array<i32>} : memref<32x64xbf16, #tpu.memory_space<vmem>>, vector<32x64xbf16>,
    return
  }
  func.func @transform_0(%arg0: i32, %arg1: i32) -> (i32, i32) {
    %c0_i32 = arith.constant 0 : i32
    %c0_i32_0 = arith.constant 0 : i32
    return %arg0, %c0_i32 : i32, i32
  }
  func.func @transform_1(%arg0: i32, %arg1: i32) -> (i32, i32) {
    %c0_i32 = arith.constant 0 : i32
    %c0_i32_0 = arith.constant 0 : i32
    return %c0_i32, %arg1 : i32, i32
  }
  func.func @transform_2(%arg0: i32, %arg1: i32) -> (i32, i32) {
    %c0_i32 = arith.constant 0 : i32
    %c0_i32_0 = arith.constant 0 : i32
    return %c0_i32, %arg1 : i32, i32
  }
  func.func @transform_3(%arg0: i32, %arg1: i32) -> (i32, i32) {
    %c0_i32 = arith.constant 0 : i32
    return %arg0, %arg1 : i32, i32
  }
}

module attributes {stable_mosaic.version = 11 : i64} {
  func.func @_mm_fused_kernel(%arg0: i32, %arg1: i32, %arg2: memref<8x576xbf16, #tpu.memory_space<vmem>>, %arg3: memref<576x128xbf16, #tpu.memory_space<vmem>>, %arg4: memref<1x128xf32, #tpu.memory_space<vmem>>, %arg5: memref<8x128xbf16, #tpu.memory_space<vmem>>) attributes {dimension_semantics = [#tpu.dimension_semantics<parallel>, #tpu.dimension_semantics<parallel>], iteration_bounds = array<i64: 1, 1>, scalar_prefetch = 0 : i64, scratch_operands = 0 : i64, tpu.core_type = #tpu.core_type<tc>, window_params = [{transform_indices = @transform_0, window_bounds = array<i64: 8, 576>}, {transform_indices = @transform_1, window_bounds = array<i64: 576, 128>}, {transform_indices = @transform_2, window_bounds = array<i64: 1, 128>}, {transform_indices = @transform_3, window_bounds = array<i64: 8, 128>}]} {
    %c0 = arith.constant 0 : index
    %c0_0 = arith.constant 0 : index
    %0 = vector.load %arg2[%c0, %c0_0] : memref<8x576xbf16, #tpu.memory_space<vmem>>, vector<8x576xbf16>
    %c0_1 = arith.constant 0 : index
    %c0_2 = arith.constant 0 : index
    %1 = vector.load %arg3[%c0_1, %c0_2] : memref<576x128xbf16, #tpu.memory_space<vmem>>, vector<576x128xbf16>
    %cst = arith.constant dense<0.000000e+00> : vector<8x128xf32>
    %2 = tpu.matmul %0, %1, %cst {dimension_numbers = #tpu.dot_dimension_numbers<[1], [0], [0], [1], [0, 0, 1, 1], [], []>} : vector<8x576xbf16>, vector<576x128xbf16>, vector<8x128xf32> -> vector<8x128xf32>
    %c0_3 = arith.constant 0 : index
    %c0_4 = arith.constant 0 : index
    %3 = vector.load %arg4[%c0_3, %c0_4] : memref<1x128xf32, #tpu.memory_space<vmem>>, vector<1x128xf32>
    %4 = vector.broadcast %3 : vector<1x128xf32> to vector<8x128xf32>
    %5 = arith.addf %2, %4 : vector<8x128xf32>
    %6 = arith.negf %5 : vector<8x128xf32>
    %7 = math.exp %6 : vector<8x128xf32>
    %cst_5 = arith.constant 1.000000e+00 : f32
    %8 = vector.broadcast %cst_5 : f32 to vector<8x128xf32>
    %9 = arith.addf %8, %7 : vector<8x128xf32>
    %10 = arith.divf %8, %9 : vector<8x128xf32>
    %11 = arith.mulf %5, %10 : vector<8x128xf32>
    %12 = arith.truncf %11 : vector<8x128xf32> to vector<8x128xbf16>
    %c0_6 = arith.constant 0 : index
    %c0_7 = arith.constant 0 : index
    %13 = vector.load %arg5[%c0_6, %c0_7] : memref<8x128xbf16, #tpu.memory_space<vmem>>, vector<8x128xbf16>
    tpu.vector_store %arg5[%c0_6, %c0_7], %12 {strides = array<i32>} : memref<8x128xbf16, #tpu.memory_space<vmem>>, vector<8x128xbf16>,
    return
  }
  func.func @transform_0(%arg0: i32, %arg1: i32) -> (i32, i32) {
    %c0_i32 = arith.constant 0 : i32
    %c0_i32_0 = arith.constant 0 : i32
    return %arg0, %c0_i32 : i32, i32
  }
  func.func @transform_1(%arg0: i32, %arg1: i32) -> (i32, i32) {
    %c0_i32 = arith.constant 0 : i32
    %c0_i32_0 = arith.constant 0 : i32
    return %c0_i32, %arg1 : i32, i32
  }
  func.func @transform_2(%arg0: i32, %arg1: i32) -> (i32, i32) {
    %c0_i32 = arith.constant 0 : i32
    %c0_i32_0 = arith.constant 0 : i32
    return %c0_i32, %arg1 : i32, i32
  }
  func.func @transform_3(%arg0: i32, %arg1: i32) -> (i32, i32) {
    %c0_i32 = arith.constant 0 : i32
    return %arg0, %arg1 : i32, i32
  }
}

module attributes {stable_mosaic.version = 11 : i64} {
  func.func @_mm_fused_kernel(%arg0: i32, %arg1: i32, %arg2: memref<8x128xbf16, #tpu.memory_space<vmem>>, %arg3: memref<128x128xbf16, #tpu.memory_space<vmem>>, %arg4: memref<1x128xf32, #tpu.memory_space<vmem>>, %arg5: memref<8x128xbf16, #tpu.memory_space<vmem>>) attributes {dimension_semantics = [#tpu.dimension_semantics<parallel>, #tpu.dimension_semantics<parallel>], iteration_bounds = array<i64: 1, 1>, scalar_prefetch = 0 : i64, scratch_operands = 0 : i64, tpu.core_type = #tpu.core_type<tc>, window_params = [{transform_indices = @transform_0, window_bounds = array<i64: 8, 128>}, {transform_indices = @transform_1, window_bounds = array<i64: 128, 128>}, {transform_indices = @transform_2, window_bounds = array<i64: 1, 128>}, {transform_indices = @transform_3, window_bounds = array<i64: 8, 128>}]} {
    %c0 = arith.constant 0 : index
    %c0_0 = arith.constant 0 : index
    %0 = vector.load %arg2[%c0, %c0_0] : memref<8x128xbf16, #tpu.memory_space<vmem>>, vector<8x128xbf16>
    %c0_1 = arith.constant 0 : index
    %c0_2 = arith.constant 0 : index
    %1 = vector.load %arg3[%c0_1, %c0_2] : memref<128x128xbf16, #tpu.memory_space<vmem>>, vector<128x128xbf16>
    %cst = arith.constant dense<0.000000e+00> : vector<8x128xf32>
    %2 = tpu.matmul %0, %1, %cst {dimension_numbers = #tpu.dot_dimension_numbers<[1], [0], [0], [1], [0, 0, 1, 1], [], []>} : vector<8x128xbf16>, vector<128x128xbf16>, vector<8x128xf32> -> vector<8x128xf32>
    %c0_3 = arith.constant 0 : index
    %c0_4 = arith.constant 0 : index
    %3 = vector.load %arg4[%c0_3, %c0_4] : memref<1x128xf32, #tpu.memory_space<vmem>>, vector<1x128xf32>
    %4 = vector.broadcast %3 : vector<1x128xf32> to vector<8x128xf32>
    %5 = arith.addf %2, %4 : vector<8x128xf32>
    %6 = arith.negf %5 : vector<8x128xf32>
    %7 = math.exp %6 : vector<8x128xf32>
    %cst_5 = arith.constant 1.000000e+00 : f32
    %8 = vector.broadcast %cst_5 : f32 to vector<8x128xf32>
    %9 = arith.addf %8, %7 : vector<8x128xf32>
    %10 = arith.divf %8, %9 : vector<8x128xf32>
    %11 = arith.mulf %5, %10 : vector<8x128xf32>
    %12 = arith.truncf %11 : vector<8x128xf32> to vector<8x128xbf16>
    %c0_6 = arith.constant 0 : index
    %c0_7 = arith.constant 0 : index
    %13 = vector.load %arg5[%c0_6, %c0_7] : memref<8x128xbf16, #tpu.memory_space<vmem>>, vector<8x128xbf16>
    tpu.vector_store %arg5[%c0_6, %c0_7], %12 {strides = array<i32>} : memref<8x128xbf16, #tpu.memory_space<vmem>>, vector<8x128xbf16>,
    return
  }
  func.func @transform_0(%arg0: i32, %arg1: i32) -> (i32, i32) {
    %c0_i32 = arith.constant 0 : i32
    %c0_i32_0 = arith.constant 0 : i32
    return %arg0, %c0_i32 : i32, i32
  }
  func.func @transform_1(%arg0: i32, %arg1: i32) -> (i32, i32) {
    %c0_i32 = arith.constant 0 : i32
    %c0_i32_0 = arith.constant 0 : i32
    return %c0_i32, %arg1 : i32, i32
  }
  func.func @transform_2(%arg0: i32, %arg1: i32) -> (i32, i32) {
    %c0_i32 = arith.constant 0 : i32
    %c0_i32_0 = arith.constant 0 : i32
    return %c0_i32, %arg1 : i32, i32
  }
  func.func @transform_3(%arg0: i32, %arg1: i32) -> (i32, i32) {
    %c0_i32 = arith.constant 0 : i32
    return %arg0, %arg1 : i32, i32
  }
}

module attributes {stable_mosaic.version = 11 : i64} {
  func.func @_mm_fused_kernel(%arg0: i32, %arg1: i32, %arg2: memref<8x576xbf16, #tpu.memory_space<vmem>>, %arg3: memref<576x64xbf16, #tpu.memory_space<vmem>>, %arg4: memref<1x64xf32, #tpu.memory_space<vmem>>, %arg5: memref<8x64xbf16, #tpu.memory_space<vmem>>) attributes {dimension_semantics = [#tpu.dimension_semantics<parallel>, #tpu.dimension_semantics<parallel>], iteration_bounds = array<i64: 1, 1>, scalar_prefetch = 0 : i64, scratch_operands = 0 : i64, tpu.core_type = #tpu.core_type<tc>, window_params = [{transform_indices = @transform_0, window_bounds = array<i64: 8, 576>}, {transform_indices = @transform_1, window_bounds = array<i64: 576, 64>}, {transform_indices = @transform_2, window_bounds = array<i64: 1, 64>}, {transform_indices = @transform_3, window_bounds = array<i64: 8, 64>}]} {
    %c0 = arith.constant 0 : index
    %c0_0 = arith.constant 0 : index
    %0 = vector.load %arg2[%c0, %c0_0] : memref<8x576xbf16, #tpu.memory_space<vmem>>, vector<8x576xbf16>
    %c0_1 = arith.constant 0 : index
    %c0_2 = arith.constant 0 : index
    %1 = vector.load %arg3[%c0_1, %c0_2] : memref<576x64xbf16, #tpu.memory_space<vmem>>, vector<576x64xbf16>
    %cst = arith.constant dense<0.000000e+00> : vector<8x64xf32>
    %2 = tpu.matmul %0, %1, %cst {dimension_numbers = #tpu.dot_dimension_numbers<[1], [0], [0], [1], [0, 0, 1, 1], [], []>} : vector<8x576xbf16>, vector<576x64xbf16>, vector<8x64xf32> -> vector<8x64xf32>
    %c0_3 = arith.constant 0 : index
    %c0_4 = arith.constant 0 : index
    %3 = vector.load %arg4[%c0_3, %c0_4] : memref<1x64xf32, #tpu.memory_space<vmem>>, vector<1x64xf32>
    %4 = vector.broadcast %3 : vector<1x64xf32> to vector<8x64xf32>
    %5 = arith.addf %2, %4 : vector<8x64xf32>
    %6 = arith.negf %5 : vector<8x64xf32>
    %7 = math.exp %6 : vector<8x64xf32>
    %cst_5 = arith.constant 1.000000e+00 : f32
    %8 = vector.broadcast %cst_5 : f32 to vector<8x64xf32>
    %9 = arith.addf %8, %7 : vector<8x64xf32>
    %10 = arith.divf %8, %9 : vector<8x64xf32>
    %11 = arith.mulf %5, %10 : vector<8x64xf32>
    %12 = arith.truncf %11 : vector<8x64xf32> to vector<8x64xbf16>
    %c0_6 = arith.constant 0 : index
    %c0_7 = arith.constant 0 : index
    %13 = vector.load %arg5[%c0_6, %c0_7] : memref<8x64xbf16, #tpu.memory_space<vmem>>, vector<8x64xbf16>
    tpu.vector_store %arg5[%c0_6, %c0_7], %12 {strides = array<i32>} : memref<8x64xbf16, #tpu.memory_space<vmem>>, vector<8x64xbf16>,
    return
  }
  func.func @transform_0(%arg0: i32, %arg1: i32) -> (i32, i32) {
    %c0_i32 = arith.constant 0 : i32
    %c0_i32_0 = arith.constant 0 : i32
    return %arg0, %c0_i32 : i32, i32
  }
  func.func @transform_1(%arg0: i32, %arg1: i32) -> (i32, i32) {
    %c0_i32 = arith.constant 0 : i32
    %c0_i32_0 = arith.constant 0 : i32
    return %c0_i32, %arg1 : i32, i32
  }
  func.func @transform_2(%arg0: i32, %arg1: i32) -> (i32, i32) {
    %c0_i32 = arith.constant 0 : i32
    %c0_i32_0 = arith.constant 0 : i32
    return %c0_i32, %arg1 : i32, i32
  }
  func.func @transform_3(%arg0: i32, %arg1: i32) -> (i32, i32) {
    %c0_i32 = arith.constant 0 : i32
    return %arg0, %arg1 : i32, i32
  }
}

module attributes {stable_mosaic.version = 11 : i64} {
  func.func @_mm_fused_kernel(%arg0: i32, %arg1: i32, %arg2: memref<8x576xbf16, #tpu.memory_space<vmem>>, %arg3: memref<576x64xbf16, #tpu.memory_space<vmem>>, %arg4: memref<1x64xf32, #tpu.memory_space<vmem>>, %arg5: memref<8x64xbf16, #tpu.memory_space<vmem>>, %arg6: memref<8x64xbf16, #tpu.memory_space<vmem>>) attributes {dimension_semantics = [#tpu.dimension_semantics<parallel>, #tpu.dimension_semantics<parallel>], iteration_bounds = array<i64: 1, 1>, scalar_prefetch = 0 : i64, scratch_operands = 0 : i64, tpu.core_type = #tpu.core_type<tc>, window_params = [{transform_indices = @transform_0, window_bounds = array<i64: 8, 576>}, {transform_indices = @transform_1, window_bounds = array<i64: 576, 64>}, {transform_indices = @transform_2, window_bounds = array<i64: 1, 64>}, {transform_indices = @transform_3, window_bounds = array<i64: 8, 64>}, {transform_indices = @transform_4, window_bounds = array<i64: 8, 64>}]} {
    %c0 = arith.constant 0 : index
    %c0_0 = arith.constant 0 : index
    %0 = vector.load %arg5[%c0, %c0_0] : memref<8x64xbf16, #tpu.memory_space<vmem>>, vector<8x64xbf16>
    %c0_1 = arith.constant 0 : index
    %c0_2 = arith.constant 0 : index
    %1 = vector.load %arg2[%c0_1, %c0_2] : memref<8x576xbf16, #tpu.memory_space<vmem>>, vector<8x576xbf16>
    %c0_3 = arith.constant 0 : index
    %c0_4 = arith.constant 0 : index
    %2 = vector.load %arg3[%c0_3, %c0_4] : memref<576x64xbf16, #tpu.memory_space<vmem>>, vector<576x64xbf16>
    %cst = arith.constant dense<0.000000e+00> : vector<8x64xf32>
    %3 = tpu.matmul %1, %2, %cst {dimension_numbers = #tpu.dot_dimension_numbers<[1], [0], [0], [1], [0, 0, 1, 1], [], []>} : vector<8x576xbf16>, vector<576x64xbf16>, vector<8x64xf32> -> vector<8x64xf32>
    %c0_5 = arith.constant 0 : index
    %c0_6 = arith.constant 0 : index
    %4 = vector.load %arg4[%c0_5, %c0_6] : memref<1x64xf32, #tpu.memory_space<vmem>>, vector<1x64xf32>
    %5 = vector.broadcast %4 : vector<1x64xf32> to vector<8x64xf32>
    %6 = arith.addf %3, %5 : vector<8x64xf32>
    %7 = arith.negf %6 : vector<8x64xf32>
    %8 = math.exp %7 : vector<8x64xf32>
    %cst_7 = arith.constant 1.000000e+00 : f32
    %9 = vector.broadcast %cst_7 : f32 to vector<8x64xf32>
    %10 = arith.addf %9, %8 : vector<8x64xf32>
    %11 = arith.divf %9, %10 : vector<8x64xf32>
    %12 = arith.mulf %6, %11 : vector<8x64xf32>
    %13 = arith.extf %0 : vector<8x64xbf16> to vector<8x64xf32>
    %14 = arith.addf %12, %13 : vector<8x64xf32>
    %15 = arith.truncf %14 : vector<8x64xf32> to vector<8x64xbf16>
    %c0_8 = arith.constant 0 : index
    %c0_9 = arith.constant 0 : index
    %16 = vector.load %arg6[%c0_8, %c0_9] : memref<8x64xbf16, #tpu.memory_space<vmem>>, vector<8x64xbf16>
    tpu.vector_store %arg6[%c0_8, %c0_9], %15 {strides = array<i32>} : memref<8x64xbf16, #tpu.memory_space<vmem>>, vector<8x64xbf16>,
    return
  }
  func.func @transform_0(%arg0: i32, %arg1: i32) -> (i32, i32) {
    %c0_i32 = arith.constant 0 : i32
    %c0_i32_0 = arith.constant 0 : i32
    return %arg0, %c0_i32 : i32, i32
  }
  func.func @transform_1(%arg0: i32, %arg1: i32) -> (i32, i32) {
    %c0_i32 = arith.constant 0 : i32
    %c0_i32_0 = arith.constant 0 : i32
    return %c0_i32, %arg1 : i32, i32
  }
  func.func @transform_2(%arg0: i32, %arg1: i32) -> (i32, i32) {
    %c0_i32 = arith.constant 0 : i32
    %c0_i32_0 = arith.constant 0 : i32
    return %c0_i32, %arg1 : i32, i32
  }
  func.func @transform_3(%arg0: i32, %arg1: i32) -> (i32, i32) {
    %c0_i32 = arith.constant 0 : i32
    return %arg0, %arg1 : i32, i32
  }
  func.func @transform_4(%arg0: i32, %arg1: i32) -> (i32, i32) {
    %c0_i32 = arith.constant 0 : i32
    return %arg0, %arg1 : i32, i32
  }
}

module attributes {stable_mosaic.version = 11 : i64} {
  func.func @_mm_fused_kernel(%arg0: i32, %arg1: i32, %arg2: memref<8x256xbf16, #tpu.memory_space<vmem>>, %arg3: memref<256x128xbf16, #tpu.memory_space<vmem>>, %arg4: memref<1x128xf32, #tpu.memory_space<vmem>>, %arg5: memref<8x128xbf16, #tpu.memory_space<vmem>>) attributes {dimension_semantics = [#tpu.dimension_semantics<parallel>, #tpu.dimension_semantics<parallel>], iteration_bounds = array<i64: 1, 1>, scalar_prefetch = 0 : i64, scratch_operands = 0 : i64, tpu.core_type = #tpu.core_type<tc>, window_params = [{transform_indices = @transform_0, window_bounds = array<i64: 8, 256>}, {transform_indices = @transform_1, window_bounds = array<i64: 256, 128>}, {transform_indices = @transform_2, window_bounds = array<i64: 1, 128>}, {transform_indices = @transform_3, window_bounds = array<i64: 8, 128>}]} {
    %c0 = arith.constant 0 : index
    %c0_0 = arith.constant 0 : index
    %0 = vector.load %arg2[%c0, %c0_0] : memref<8x256xbf16, #tpu.memory_space<vmem>>, vector<8x256xbf16>
    %c0_1 = arith.constant 0 : index
    %c0_2 = arith.constant 0 : index
    %1 = vector.load %arg3[%c0_1, %c0_2] : memref<256x128xbf16, #tpu.memory_space<vmem>>, vector<256x128xbf16>
    %cst = arith.constant dense<0.000000e+00> : vector<8x128xf32>
    %2 = tpu.matmul %0, %1, %cst {dimension_numbers = #tpu.dot_dimension_numbers<[1], [0], [0], [1], [0, 0, 1, 1], [], []>} : vector<8x256xbf16>, vector<256x128xbf16>, vector<8x128xf32> -> vector<8x128xf32>
    %c0_3 = arith.constant 0 : index
    %c0_4 = arith.constant 0 : index
    %3 = vector.load %arg4[%c0_3, %c0_4] : memref<1x128xf32, #tpu.memory_space<vmem>>, vector<1x128xf32>
    %4 = vector.broadcast %3 : vector<1x128xf32> to vector<8x128xf32>
    %5 = arith.addf %2, %4 : vector<8x128xf32>
    %6 = arith.negf %5 : vector<8x128xf32>
    %7 = math.exp %6 : vector<8x128xf32>
    %cst_5 = arith.constant 1.000000e+00 : f32
    %8 = vector.broadcast %cst_5 : f32 to vector<8x128xf32>
    %9 = arith.addf %8, %7 : vector<8x128xf32>
    %10 = arith.divf %8, %9 : vector<8x128xf32>
    %11 = arith.mulf %5, %10 : vector<8x128xf32>
    %12 = arith.truncf %11 : vector<8x128xf32> to vector<8x128xbf16>
    %c0_6 = arith.constant 0 : index
    %c0_7 = arith.constant 0 : index
    %13 = vector.load %arg5[%c0_6, %c0_7] : memref<8x128xbf16, #tpu.memory_space<vmem>>, vector<8x128xbf16>
    tpu.vector_store %arg5[%c0_6, %c0_7], %12 {strides = array<i32>} : memref<8x128xbf16, #tpu.memory_space<vmem>>, vector<8x128xbf16>,
    return
  }
  func.func @transform_0(%arg0: i32, %arg1: i32) -> (i32, i32) {
    %c0_i32 = arith.constant 0 : i32
    %c0_i32_0 = arith.constant 0 : i32
    return %arg0, %c0_i32 : i32, i32
  }
  func.func @transform_1(%arg0: i32, %arg1: i32) -> (i32, i32) {
    %c0_i32 = arith.constant 0 : i32
    %c0_i32_0 = arith.constant 0 : i32
    return %c0_i32, %arg1 : i32, i32
  }
  func.func @transform_2(%arg0: i32, %arg1: i32) -> (i32, i32) {
    %c0_i32 = arith.constant 0 : i32
    %c0_i32_0 = arith.constant 0 : i32
    return %c0_i32, %arg1 : i32, i32
  }
  func.func @transform_3(%arg0: i32, %arg1: i32) -> (i32, i32) {
    %c0_i32 = arith.constant 0 : i32
    return %arg0, %arg1 : i32, i32
  }
}

module attributes {stable_mosaic.version = 11 : i64} {
  func.func @_mm_fused_kernel(%arg0: i32, %arg1: i32, %arg2: memref<8x1152xbf16, #tpu.memory_space<vmem>>, %arg3: memref<1152x128xbf16, #tpu.memory_space<vmem>>, %arg4: memref<1x128xf32, #tpu.memory_space<vmem>>, %arg5: memref<8x128xbf16, #tpu.memory_space<vmem>>) attributes {dimension_semantics = [#tpu.dimension_semantics<parallel>, #tpu.dimension_semantics<parallel>], iteration_bounds = array<i64: 1, 1>, scalar_prefetch = 0 : i64, scratch_operands = 0 : i64, tpu.core_type = #tpu.core_type<tc>, window_params = [{transform_indices = @transform_0, window_bounds = array<i64: 8, 1152>}, {transform_indices = @transform_1, window_bounds = array<i64: 1152, 128>}, {transform_indices = @transform_2, window_bounds = array<i64: 1, 128>}, {transform_indices = @transform_3, window_bounds = array<i64: 8, 128>}]} {
    %c0 = arith.constant 0 : index
    %c0_0 = arith.constant 0 : index
    %0 = vector.load %arg2[%c0, %c0_0] : memref<8x1152xbf16, #tpu.memory_space<vmem>>, vector<8x1152xbf16>
    %c0_1 = arith.constant 0 : index
    %c0_2 = arith.constant 0 : index
    %1 = vector.load %arg3[%c0_1, %c0_2] : memref<1152x128xbf16, #tpu.memory_space<vmem>>, vector<1152x128xbf16>
    %cst = arith.constant dense<0.000000e+00> : vector<8x128xf32>
    %2 = tpu.matmul %0, %1, %cst {dimension_numbers = #tpu.dot_dimension_numbers<[1], [0], [0], [1], [0, 0, 1, 1], [], []>} : vector<8x1152xbf16>, vector<1152x128xbf16>, vector<8x128xf32> -> vector<8x128xf32>
    %c0_3 = arith.constant 0 : index
    %c0_4 = arith.constant 0 : index
    %3 = vector.load %arg4[%c0_3, %c0_4] : memref<1x128xf32, #tpu.memory_space<vmem>>, vector<1x128xf32>
    %4 = vector.broadcast %3 : vector<1x128xf32> to vector<8x128xf32>
    %5 = arith.addf %2, %4 : vector<8x128xf32>
    %6 = arith.negf %5 : vector<8x128xf32>
    %7 = math.exp %6 : vector<8x128xf32>
    %cst_5 = arith.constant 1.000000e+00 : f32
    %8 = vector.broadcast %cst_5 : f32 to vector<8x128xf32>
    %9 = arith.addf %8, %7 : vector<8x128xf32>
    %10 = arith.divf %8, %9 : vector<8x128xf32>
    %11 = arith.mulf %5, %10 : vector<8x128xf32>
    %12 = arith.truncf %11 : vector<8x128xf32> to vector<8x128xbf16>
    %c0_6 = arith.constant 0 : index
    %c0_7 = arith.constant 0 : index
    %13 = vector.load %arg5[%c0_6, %c0_7] : memref<8x128xbf16, #tpu.memory_space<vmem>>, vector<8x128xbf16>
    tpu.vector_store %arg5[%c0_6, %c0_7], %12 {strides = array<i32>} : memref<8x128xbf16, #tpu.memory_space<vmem>>, vector<8x128xbf16>,
    return
  }
  func.func @transform_0(%arg0: i32, %arg1: i32) -> (i32, i32) {
    %c0_i32 = arith.constant 0 : i32
    %c0_i32_0 = arith.constant 0 : i32
    return %arg0, %c0_i32 : i32, i32
  }
  func.func @transform_1(%arg0: i32, %arg1: i32) -> (i32, i32) {
    %c0_i32 = arith.constant 0 : i32
    %c0_i32_0 = arith.constant 0 : i32
    return %c0_i32, %arg1 : i32, i32
  }
  func.func @transform_2(%arg0: i32, %arg1: i32) -> (i32, i32) {
    %c0_i32 = arith.constant 0 : i32
    %c0_i32_0 = arith.constant 0 : i32
    return %c0_i32, %arg1 : i32, i32
  }
  func.func @transform_3(%arg0: i32, %arg1: i32) -> (i32, i32) {
    %c0_i32 = arith.constant 0 : i32
    return %arg0, %arg1 : i32, i32
  }
}

module attributes {stable_mosaic.version = 11 : i64} {
  func.func @_mm_fused_kernel(%arg0: i32, %arg1: i32, %arg2: memref<8x192xbf16, #tpu.memory_space<vmem>>, %arg3: memref<192x128xbf16, #tpu.memory_space<vmem>>, %arg4: memref<1x128xf32, #tpu.memory_space<vmem>>, %arg5: memref<8x128xbf16, #tpu.memory_space<vmem>>) attributes {dimension_semantics = [#tpu.dimension_semantics<parallel>, #tpu.dimension_semantics<parallel>], iteration_bounds = array<i64: 1, 1>, scalar_prefetch = 0 : i64, scratch_operands = 0 : i64, tpu.core_type = #tpu.core_type<tc>, window_params = [{transform_indices = @transform_0, window_bounds = array<i64: 8, 192>}, {transform_indices = @transform_1, window_bounds = array<i64: 192, 128>}, {transform_indices = @transform_2, window_bounds = array<i64: 1, 128>}, {transform_indices = @transform_3, window_bounds = array<i64: 8, 128>}]} {
    %c0 = arith.constant 0 : index
    %c0_0 = arith.constant 0 : index
    %0 = vector.load %arg2[%c0, %c0_0] : memref<8x192xbf16, #tpu.memory_space<vmem>>, vector<8x192xbf16>
    %c0_1 = arith.constant 0 : index
    %c0_2 = arith.constant 0 : index
    %1 = vector.load %arg3[%c0_1, %c0_2] : memref<192x128xbf16, #tpu.memory_space<vmem>>, vector<192x128xbf16>
    %cst = arith.constant dense<0.000000e+00> : vector<8x128xf32>
    %2 = tpu.matmul %0, %1, %cst {dimension_numbers = #tpu.dot_dimension_numbers<[1], [0], [0], [1], [0, 0, 1, 1], [], []>} : vector<8x192xbf16>, vector<192x128xbf16>, vector<8x128xf32> -> vector<8x128xf32>
    %c0_3 = arith.constant 0 : index
    %c0_4 = arith.constant 0 : index
    %3 = vector.load %arg4[%c0_3, %c0_4] : memref<1x128xf32, #tpu.memory_space<vmem>>, vector<1x128xf32>
    %4 = vector.broadcast %3 : vector<1x128xf32> to vector<8x128xf32>
    %5 = arith.addf %2, %4 : vector<8x128xf32>
    %6 = arith.negf %5 : vector<8x128xf32>
    %7 = math.exp %6 : vector<8x128xf32>
    %cst_5 = arith.constant 1.000000e+00 : f32
    %8 = vector.broadcast %cst_5 : f32 to vector<8x128xf32>
    %9 = arith.addf %8, %7 : vector<8x128xf32>
    %10 = arith.divf %8, %9 : vector<8x128xf32>
    %11 = arith.mulf %5, %10 : vector<8x128xf32>
    %12 = arith.truncf %11 : vector<8x128xf32> to vector<8x128xbf16>
    %c0_6 = arith.constant 0 : index
    %c0_7 = arith.constant 0 : index
    %13 = vector.load %arg5[%c0_6, %c0_7] : memref<8x128xbf16, #tpu.memory_space<vmem>>, vector<8x128xbf16>
    tpu.vector_store %arg5[%c0_6, %c0_7], %12 {strides = array<i32>} : memref<8x128xbf16, #tpu.memory_space<vmem>>, vector<8x128xbf16>,
    return
  }
  func.func @transform_0(%arg0: i32, %arg1: i32) -> (i32, i32) {
    %c0_i32 = arith.constant 0 : i32
    %c0_i32_0 = arith.constant 0 : i32
    return %arg0, %c0_i32 : i32, i32
  }
  func.func @transform_1(%arg0: i32, %arg1: i32) -> (i32, i32) {
    %c0_i32 = arith.constant 0 : i32
    %c0_i32_0 = arith.constant 0 : i32
    return %c0_i32, %arg1 : i32, i32
  }
  func.func @transform_2(%arg0: i32, %arg1: i32) -> (i32, i32) {
    %c0_i32 = arith.constant 0 : i32
    %c0_i32_0 = arith.constant 0 : i32
    return %c0_i32, %arg1 : i32, i32
  }
  func.func @transform_3(%arg0: i32, %arg1: i32) -> (i32, i32) {
    %c0_i32 = arith.constant 0 : i32
    return %arg0, %arg1 : i32, i32
  }
}

module attributes {stable_mosaic.version = 11 : i64} {
  func.func @_mm_fused_kernel(%arg0: i32, %arg1: i32, %arg2: memref<8x128xbf16, #tpu.memory_space<vmem>>, %arg3: memref<128x16xbf16, #tpu.memory_space<vmem>>, %arg4: memref<1x16xf32, #tpu.memory_space<vmem>>, %arg5: memref<8x16xf32, #tpu.memory_space<vmem>>) attributes {dimension_semantics = [#tpu.dimension_semantics<parallel>, #tpu.dimension_semantics<parallel>], iteration_bounds = array<i64: 1, 1>, scalar_prefetch = 0 : i64, scratch_operands = 0 : i64, tpu.core_type = #tpu.core_type<tc>, window_params = [{transform_indices = @transform_0, window_bounds = array<i64: 8, 128>}, {transform_indices = @transform_1, window_bounds = array<i64: 128, 16>}, {transform_indices = @transform_2, window_bounds = array<i64: 1, 16>}, {transform_indices = @transform_3, window_bounds = array<i64: 8, 16>}]} {
    %c0 = arith.constant 0 : index
    %c0_0 = arith.constant 0 : index
    %0 = vector.load %arg2[%c0, %c0_0] : memref<8x128xbf16, #tpu.memory_space<vmem>>, vector<8x128xbf16>
    %c0_1 = arith.constant 0 : index
    %c0_2 = arith.constant 0 : index
    %1 = vector.load %arg3[%c0_1, %c0_2] : memref<128x16xbf16, #tpu.memory_space<vmem>>, vector<128x16xbf16>
    %cst = arith.constant dense<0.000000e+00> : vector<8x16xf32>
    %2 = tpu.matmul %0, %1, %cst {dimension_numbers = #tpu.dot_dimension_numbers<[1], [0], [0], [1], [0, 0, 1, 1], [], []>} : vector<8x128xbf16>, vector<128x16xbf16>, vector<8x16xf32> -> vector<8x16xf32>
    %c0_3 = arith.constant 0 : index
    %c0_4 = arith.constant 0 : index
    %3 = vector.load %arg4[%c0_3, %c0_4] : memref<1x16xf32, #tpu.memory_space<vmem>>, vector<1x16xf32>
    %4 = vector.broadcast %3 : vector<1x16xf32> to vector<8x16xf32>
    %5 = arith.addf %2, %4 : vector<8x16xf32>
    %c0_5 = arith.constant 0 : index
    %c0_6 = arith.constant 0 : index
    %6 = vector.load %arg5[%c0_5, %c0_6] : memref<8x16xf32, #tpu.memory_space<vmem>>, vector<8x16xf32>
    tpu.vector_store %arg5[%c0_5, %c0_6], %5 {strides = array<i32>} : memref<8x16xf32, #tpu.memory_space<vmem>>, vector<8x16xf32>,
    return
  }
  func.func @transform_0(%arg0: i32, %arg1: i32) -> (i32, i32) {
    %c0_i32 = arith.constant 0 : i32
    %c0_i32_0 = arith.constant 0 : i32
    return %arg0, %c0_i32 : i32, i32
  }
  func.func @transform_1(%arg0: i32, %arg1: i32) -> (i32, i32) {
    %c0_i32 = arith.constant 0 : i32
    %c0_i32_0 = arith.constant 0 : i32
    return %c0_i32, %arg1 : i32, i32
  }
  func.func @transform_2(%arg0: i32, %arg1: i32) -> (i32, i32) {
    %c0_i32 = arith.constant 0 : i32
    %c0_i32_0 = arith.constant 0 : i32
    return %c0_i32, %arg1 : i32, i32
  }
  func.func @transform_3(%arg0: i32, %arg1: i32) -> (i32, i32) {
    %c0_i32 = arith.constant 0 : i32
    return %arg0, %arg1 : i32, i32
  }
}

</mosaic_0001>

<llo_original>
// kernel: forward.26
$region0: #{forward.26}
  #allocation0 [shape = 'u32[]', space=smem, size = 0x4, offset = 0x4, fixed_abs, tag = 'smem constant byte address 0x4 - core index']
  #allocation1 [shape = 'u32[144,128]{1,0:T(1,128)}', space=vmem, size = 0x12000, scoped, tag = 'internal scratch']
  %s0 = inlined_call_operand.vmem [shape: bf16[512,27], index: 0, kind: input, shape index: {}]
  %s1 = inlined_call_operand.vmem [shape: bf16[27,16], index: 1, kind: input, shape index: {}]
  %s2 = inlined_call_operand.vmem [shape: f32[1,16], index: 2, kind: input, shape index: {}]
  %s3 = inlined_call_operand.vmem [shape: bf16[512,16], index: 3, kind: output, shape index: {}]
  %s4 = sld [smem:[#allocation0]]
  $region22: #{forward.26} parent=0
    _
  %s6 = ssub.s32 1, %s4
  %s7 = scalar_select 0, %s6, %s4
  // Predicated region
  $region2: #{forward.26} parent=0 // pred_check
    _
  $region3: #{forward.26} parent=0 // pred_check_branch
    %9 = sbr.rel (0) target = $region5
  $region4: #{forward.26} parent=0 // pred_region
    _
  $region5: #{forward.26} parent=0 // pred_fallthru
    _
  // Predicated region
  $region6: #{forward.26} parent=0 // pred_check
    _
  $region7: #{forward.26} parent=0 // pred_check_branch
    %11 = sbr.rel (0) target = $region9
  $region8: #{forward.26} parent=0 // pred_region
    _
  $region9: #{forward.26} parent=0 // pred_fallthru
    _
  // Predicated region
  $region10: #{forward.26} parent=0 // pred_check
    _
  $region11: #{forward.26} parent=0 // pred_check_branch
    %13 = sbr.rel (0) target = $region13
  $region12: #{forward.26} parent=0 // pred_region
    _
  $region13: #{forward.26} parent=0 // pred_fallthru
    _
  %v15 = vld [vmem:[%s0] sm:$0xf]
  %v16 = vld [vmem:[%s0 + $0x4] sm:$0xf]
  %v17 = vld [vmem:[%s0 + $0x8] sm:$0xf]
  %v18 = vld [vmem:[%s0 + $0xc] sm:$0xf]
  %v19 = vld [vmem:[%s0 + $0x10] sm:$0xf]
  %v20 = vld [vmem:[%s0 + $0x14] sm:$0xf]
  %v21 = vld [vmem:[%s0 + $0x18] sm:$0xf]
  %v22 = vld [vmem:[%s0 + $0x1c] sm:$0xf]
  %v23 = vld [vmem:[%s0 + $0x20] sm:$0xf]
  %v24 = vld [vmem:[%s0 + $0x24] sm:$0xf]
  %v25 = vld [vmem:[%s0 + $0x28] sm:$0xf]
  %v26 = vld [vmem:[%s0 + $0x2c] sm:$0xf]
  %v27 = vld [vmem:[%s0 + $0x30] sm:$0xf]
  %v28 = vld [vmem:[%s0 + $0x34] sm:$0xf]
  %v29 = vld [vmem:[%s0 + $0x38] sm:$0xf]
  %v30 = vld [vmem:[%s0 + $0x3c] sm:$0xf]
  %v31 = vld [vmem:[%s0 + $0x40] sm:$0xf]
  %v32 = vld [vmem:[%s0 + $0x44] sm:$0xf]
  %v33 = vld [vmem:[%s0 + $0x48] sm:$0xf]
  %v34 = vld [vmem:[%s0 + $0x4c] sm:$0xf]
  %v35 = vld [vmem:[%s0 + $0x50] sm:$0xf]
  %v36 = vld [vmem:[%s0 + $0x54] sm:$0xf]
  %v37 = vld [vmem:[%s0 + $0x58] sm:$0xf]
  %v38 = vld [vmem:[%s0 + $0x5c] sm:$0xf]
  %v39 = vld [vmem:[%s0 + $0x60] sm:$0xf]
  %v40 = vld [vmem:[%s0 + $0x64] sm:$0xf]
  %v41 = vld [vmem:[%s0 + $0x68] sm:$0xf]
  %v42 = vld [vmem:[%s0 + $0x6c] sm:$0xf]
  %v43 = vld [vmem:[%s0 + $0x70] sm:$0xf]
  %v44 = vld [vmem:[%s0 + $0x74] sm:$0xf]
  %v45 = vld [vmem:[%s0 + $0x78] sm:$0xf]
  %v46 = vld [vmem:[%s0 + $0x7c] sm:$0xf]
  %v47 = vld [vmem:[%s0 + $0x80] sm:$0xf]
  %v48 = vld [vmem:[%s0 + $0x84] sm:$0xf]
  %v49 = vld [vmem:[%s0 + $0x88] sm:$0xf]
  %v50 = vld [vmem:[%s0 + $0x8c] sm:$0xf]
  %v51 = vld [vmem:[%s0 + $0x90] sm:$0xf]
  %v52 = vld [vmem:[%s0 + $0x94] sm:$0xf]
  %v53 = vld [vmem:[%s0 + $0x98] sm:$0xf]
  %v54 = vld [vmem:[%s0 + $0x9c] sm:$0xf]
  %v55 = vld [vmem:[%s0 + $0xa0] sm:$0xf]
  %v56 = vld [vmem:[%s0 + $0xa4] sm:$0xf]
  %v57 = vld [vmem:[%s0 + $0xa8] sm:$0xf]
  %v58 = vld [vmem:[%s0 + $0xac] sm:$0xf]
  %v59 = vld [vmem:[%s0 + $0xb0] sm:$0xf]
  %v60 = vld [vmem:[%s0 + $0xb4] sm:$0xf]
  %v61 = vld [vmem:[%s0 + $0xb8] sm:$0xf]
  %v62 = vld [vmem:[%s0 + $0xbc] sm:$0xf]
  %v63 = vld [vmem:[%s0 + $0xc0] sm:$0xf]
  %v64 = vld [vmem:[%s0 + $0xc4] sm:$0xf]
  %v65 = vld [vmem:[%s0 + $0xc8] sm:$0xf]
  %v66 = vld [vmem:[%s0 + $0xcc] sm:$0xf]
  %v67 = vld [vmem:[%s0 + $0xd0] sm:$0xf]
  %v68 = vld [vmem:[%s0 + $0xd4] sm:$0xf]
  %v69 = vld [vmem:[%s0 + $0xd8] sm:$0xf]
  %v70 = vld [vmem:[%s0 + $0xdc] sm:$0xf]
  %v71 = vld [vmem:[%s0 + $0xe0] sm:$0xf]
  %v72 = vld [vmem:[%s0 + $0xe4] sm:$0xf]
  %v73 = vld [vmem:[%s0 + $0xe8] sm:$0xf]
  %v74 = vld [vmem:[%s0 + $0xec] sm:$0xf]
  %v75 = vld [vmem:[%s0 + $0xf0] sm:$0xf]
  %v76 = vld [vmem:[%s0 + $0xf4] sm:$0xf]
  %v77 = vld [vmem:[%s0 + $0xf8] sm:$0xf]
  %v78 = vld [vmem:[%s0 + $0xfc] sm:$0xf]
  %v79 = vld [vmem:[%s1] sm:$0xf]
  %v80 = vld [vmem:[%s1 + $0x4] sm:$0xf]
  %v81 = vld [vmem:[%s1 + $0x8] sm:$0xf]
  %v82 = vld [vmem:[%s1 + $0xc] sm:$0x3]
  %v83 = vld [vmem:[%s2] sm:$0x1]
  %v85 = vlaneseq
  %v86 = vshrl.u32 %v85, 7
  %v87 = vsub.s32 0, %v86
  %v88 = vrot.slane %v83, %v87
  %v154 = vunpack.c.l.b16 %v15
  %v155 = vunpack.c.l.b16 %v16
  %v156 = vunpack.c.l.b16 %v17
  %v157 = vunpack.c.l.b16 %v18
  %v158 = vunpack.c.l.b16 %v19
  %v159 = vunpack.c.l.b16 %v20
  %v160 = vunpack.c.l.b16 %v21
  %v161 = vunpack.c.l.b16 %v22
  %v162 = vunpack.c.l.b16 %v23
  %v163 = vunpack.c.l.b16 %v24
  %v164 = vunpack.c.l.b16 %v25
  %v165 = vunpack.c.l.b16 %v26
  %v166 = vunpack.c.l.b16 %v27
  %v167 = vunpack.c.l.b16 %v28
  %v168 = vunpack.c.l.b16 %v29
  %v169 = vunpack.c.l.b16 %v30
  %v170 = vunpack.c.l.b16 %v31
  %v171 = vunpack.c.l.b16 %v32
  %v172 = vunpack.c.l.b16 %v33
  %v173 = vunpack.c.l.b16 %v34
  %v174 = vunpack.c.l.b16 %v35
  %v175 = vunpack.c.l.b16 %v36
  %v176 = vunpack.c.l.b16 %v37
  %v177 = vunpack.c.l.b16 %v38
  %v178 = vunpack.c.l.b16 %v39
  %v179 = vunpack.c.l.b16 %v40
  %v180 = vunpack.c.l.b16 %v41
  %v181 = vunpack.c.l.b16 %v42
  %v182 = vunpack.c.l.b16 %v43
  %v183 = vunpack.c.l.b16 %v44
  %v184 = vunpack.c.l.b16 %v45
  %v185 = vunpack.c.l.b16 %v46
  %v186 = vunpack.c.l.b16 %v47
  %v187 = vunpack.c.l.b16 %v48
  %v188 = vunpack.c.l.b16 %v49
  %v189 = vunpack.c.l.b16 %v50
  %v190 = vunpack.c.l.b16 %v51
  %v191 = vunpack.c.l.b16 %v52
  %v192 = vunpack.c.l.b16 %v53
  %v193 = vunpack.c.l.b16 %v54
  %v194 = vunpack.c.l.b16 %v55
  %v195 = vunpack.c.l.b16 %v56
  %v196 = vunpack.c.l.b16 %v57
  %v197 = vunpack.c.l.b16 %v58
  %v198 = vunpack.c.l.b16 %v59
  %v199 = vunpack.c.l.b16 %v60
  %v200 = vunpack.c.l.b16 %v61
  %v201 = vunpack.c.l.b16 %v62
  %v202 = vunpack.c.l.b16 %v63
  %v203 = vunpack.c.l.b16 %v64
  %v204 = vunpack.c.l.b16 %v65
  %v205 = vunpack.c.l.b16 %v66
  %v206 = vunpack.c.l.b16 %v67
  %v207 = vunpack.c.l.b16 %v68
  %v208 = vunpack.c.l.b16 %v69
  %v209 = vunpack.c.l.b16 %v70
  %v210 = vunpack.c.l.b16 %v71
  %v211 = vunpack.c.l.b16 %v72
  %v212 = vunpack.c.l.b16 %v73
  %v213 = vunpack.c.l.b16 %v74
  %v214 = vunpack.c.l.b16 %v75
  %v215 = vunpack.c.l.b16 %v76
  %v216 = vunpack.c.l.b16 %v77
  %v217 = vunpack.c.l.b16 %v78
  %v218 = vpack.c.b16 %v155, %v154
  %v219 = vpack.c.b16 %v157, %v156
  %v220 = vpack.c.b16 %v159, %v158
  %v221 = vpack.c.b16 %v161, %v160
  %v222 = vpack.c.b16 %v163, %v162
  %v223 = vpack.c.b16 %v165, %v164
  %v224 = vpack.c.b16 %v167, %v166
  %v225 = vpack.c.b16 %v169, %v168
  %v226 = vpack.c.b16 %v171, %v170
  %v227 = vpack.c.b16 %v173, %v172
  %v228 = vpack.c.b16 %v175, %v174
  %v229 = vpack.c.b16 %v177, %v176
  %v230 = vpack.c.b16 %v179, %v178
  %v231 = vpack.c.b16 %v181, %v180
  %v232 = vpack.c.b16 %v183, %v182
  %v233 = vpack.c.b16 %v185, %v184
  %v234 = vpack.c.b16 %v187, %v186
  %v235 = vpack.c.b16 %v189, %v188
  %v236 = vpack.c.b16 %v191, %v190
  %v237 = vpack.c.b16 %v193, %v192
  %v238 = vpack.c.b16 %v195, %v194
  %v239 = vpack.c.b16 %v197, %v196
  %v240 = vpack.c.b16 %v199, %v198
  %v241 = vpack.c.b16 %v201, %v200
  %v242 = vpack.c.b16 %v203, %v202
  %v243 = vpack.c.b16 %v205, %v204
  %v244 = vpack.c.b16 %v207, %v206
  %v245 = vpack.c.b16 %v209, %v208
  %v246 = vpack.c.b16 %v211, %v210
  %v247 = vpack.c.b16 %v213, %v212
  %v248 = vpack.c.b16 %v215, %v214
  %v249 = vpack.c.b16 %v217, %v216
  %v254 = vunpack.c.l.b16 %v79
  %v255 = vunpack.c.l.b16 %v80
  %v256 = vunpack.c.l.b16 %v81
  %v257 = vunpack.c.l.b16 %v82
  %v258 = vpack.c.b16 %v255, %v254
  %v259 = vpack.c.b16 %v257, %v256
  %vm261 = vcmask 220160
  %v263 = vsel %vm261, %v218, 0
  %v266 = vsel %vm261, %v219, 0
  %v269 = vsel %vm261, %v220, 0
  %v272 = vsel %vm261, %v221, 0
  %v275 = vsel %vm261, %v222, 0
  %v278 = vsel %vm261, %v223, 0
  %v281 = vsel %vm261, %v224, 0
  %v284 = vsel %vm261, %v225, 0
  %v287 = vsel %vm261, %v226, 0
  %v290 = vsel %vm261, %v227, 0
  %v293 = vsel %vm261, %v228, 0
  %v296 = vsel %vm261, %v229, 0
  %v299 = vsel %vm261, %v230, 0
  %v302 = vsel %vm261, %v231, 0
  %v305 = vsel %vm261, %v232, 0
  %v308 = vsel %vm261, %v233, 0
  %v311 = vsel %vm261, %v234, 0
  %v314 = vsel %vm261, %v235, 0
  %v317 = vsel %vm261, %v236, 0
  %v320 = vsel %vm261, %v237, 0
  %v323 = vsel %vm261, %v238, 0
  %v326 = vsel %vm261, %v239, 0
  %v329 = vsel %vm261, %v240, 0
  %v332 = vsel %vm261, %v241, 0
  %v335 = vsel %vm261, %v242, 0
  %v338 = vsel %vm261, %v243, 0
  %v341 = vsel %vm261, %v244, 0
  %v344 = vsel %vm261, %v245, 0
  %v347 = vsel %vm261, %v246, 0
  %v350 = vsel %vm261, %v247, 0
  %v353 = vsel %vm261, %v248, 0
  %v356 = vsel %vm261, %v249, 0
  %vm358 = vcmask 1044480
  %vm359 = vcmask 1045504
  %v360 = vsel %vm358, 4294967295, 65535
  %v361 = vsel %vm359, %v360, 0
  %v363 = vand.u32 %v259, %v361
  %365 = vmatprep.subr.bf16.mxu0 0
  %366 = vmatpush1.bf16.msra.mxu0 0
  %367 = vmatprep.subr.bf16.mxu0 0
  %368 = vmatpush1.bf16.msra.mxu0 0
  %369 = vmatprep.subr.bf16.mxu0 0
  %370 = vmatpush1.bf16.msra.mxu0 0
  %371 = vmatprep.subr.bf16.mxu0 0
  %372 = vmatpush1.bf16.msra.mxu0 0
  %373 = vmatprep.subr.bf16.mxu0 0
  %374 = vmatpush1.bf16.msra.mxu0 0
  %375 = vmatprep.subr.bf16.mxu0 0
  %376 = vmatpush1.bf16.msra.mxu0 0
  %377 = vmatprep.subr.bf16.mxu0 0
  %378 = vmatpush1.bf16.msra.mxu0 %v363
  %379 = vmatprep.subr.bf16.mxu0 0
  %380 = vmatpush1.bf16.msra.mxu0 %v258
  %381 = vmatprep.subr.bf16.mxu0 0
  %382 = vmatpush2.bf16.msra.mxu0 0
  %383 = vmatprep.subr.bf16.mxu0 0
  %384 = vmatpush2.bf16.msra.mxu0 0
  %385 = vmatprep.subr.bf16.mxu0 0
  %386 = vmatpush2.bf16.msra.mxu0 0
  %387 = vmatprep.subr.bf16.mxu0 0
  %388 = vmatpush2.bf16.msra.mxu0 0
  %389 = vmatprep.subr.bf16.mxu0 0
  %390 = vmatpush2.bf16.msra.mxu0 0
  %391 = vmatprep.subr.bf16.mxu0 0
  %392 = vmatpush2.bf16.msra.mxu0 0
  %393 = vmatprep.subr.bf16.mxu0 0
  %394 = vmatpush2.bf16.msra.mxu0 0
  %395 = vmatprep.subr.bf16.mxu0 0
  %396 = vmatpush2.bf16.msra.mxu0 0
  %397 = vmatprep.mubr.bf16.mxu0 0
  %398 = vmatmul.mubr.bf16.gmra.mxu0 %v263
  %v399 = vpop.f32.mrf.mxu0
  %v400 = vadd.f32 %v88, %v399
  %v401 = vpop.f32.mrf.mxu0
  %v402 = vpop.f32.mrf.mxu0
  %v403 = vadd.f32 %v88, %v402
  %v404 = vpop.f32.mrf.mxu0
  %405 = vmatprep.mubr.bf16.mxu0 0
  %406 = vmatmul.mubr.bf16.gmra.mxu0 %v266
  %v407 = vpop.f32.mrf.mxu0
  %v408 = vadd.f32 %v88, %v407
  %v409 = vpop.f32.mrf.mxu0
  %v410 = vpop.f32.mrf.mxu0
  %v411 = vadd.f32 %v88, %v410
  %v412 = vpop.f32.mrf.mxu0
  %413 = vmatprep.mubr.bf16.mxu0 0
  %414 = vmatmul.mubr.bf16.gmra.mxu0 %v269
  %v415 = vpop.f32.mrf.mxu0
  %v416 = vadd.f32 %v88, %v415
  %v417 = vpop.f32.mrf.mxu0
  %v418 = vpop.f32.mrf.mxu0
  %v419 = vadd.f32 %v88, %v418
  %v420 = vpop.f32.mrf.mxu0
  %421 = vmatprep.mubr.bf16.mxu0 0
  %422 = vmatmul.mubr.bf16.gmra.mxu0 %v272
  %v423 = vpop.f32.mrf.mxu0
  %v424 = vadd.f32 %v88, %v423
  %v425 = vpop.f32.mrf.mxu0
  %v426 = vpop.f32.mrf.mxu0
  %v427 = vadd.f32 %v88, %v426
  %v428 = vpop.f32.mrf.mxu0
  %429 = vmatprep.mubr.bf16.mxu0 0
  %430 = vmatmul.mubr.bf16.gmra.mxu0 %v275
  %v431 = vpop.f32.mrf.mxu0
  %v432 = vadd.f32 %v88, %v431
  %v433 = vpop.f32.mrf.mxu0
  %v434 = vpop.f32.mrf.mxu0
  %v435 = vadd.f32 %v88, %v434
  %v436 = vpop.f32.mrf.mxu0
  %437 = vmatprep.mubr.bf16.mxu0 0
  %438 = vmatmul.mubr.bf16.gmra.mxu0 %v278
  %v439 = vpop.f32.mrf.mxu0
  %v440 = vadd.f32 %v88, %v439
  %v441 = vpop.f32.mrf.mxu0
  %v442 = vpop.f32.mrf.mxu0
  %v443 = vadd.f32 %v88, %v442
  %v444 = vpop.f32.mrf.mxu0
  %445 = vmatprep.mubr.bf16.mxu0 0
  %446 = vmatmul.mubr.bf16.gmra.mxu0 %v281
  %v447 = vpop.f32.mrf.mxu0
  %v448 = vadd.f32 %v88, %v447
  %v449 = vpop.f32.mrf.mxu0
  %v450 = vpop.f32.mrf.mxu0
  %v451 = vadd.f32 %v88, %v450
  %v452 = vpop.f32.mrf.mxu0
  %453 = vmatprep.mubr.bf16.mxu0 0
  %454 = vmatmul.mubr.bf16.gmra.mxu0 %v284
  %v455 = vpop.f32.mrf.mxu0
  %v456 = vadd.f32 %v88, %v455
  %v457 = vpop.f32.mrf.mxu0
  %v458 = vpop.f32.mrf.mxu0
  %v459 = vadd.f32 %v88, %v458
  %v460 = vpop.f32.mrf.mxu0
  %461 = vmatprep.mubr.bf16.mxu0 0
  %462 = vmatmul.mubr.bf16.gmra.mxu0 %v287
  %v463 = vpop.f32.mrf.mxu0
  %v464 = vadd.f32 %v88, %v463
  %v465 = vpop.f32.mrf.mxu0
  %v466 = vpop.f32.mrf.mxu0
  %v467 = vadd.f32 %v88, %v466
  %v468 = vpop.f32.mrf.mxu0
  %469 = vmatprep.mubr.bf16.mxu0 0
  %470 = vmatmul.mubr.bf16.gmra.mxu0 %v290
  %v471 = vpop.f32.mrf.mxu0
  %v472 = vadd.f32 %v88, %v471
  %v473 = vpop.f32.mrf.mxu0
  %v474 = vpop.f32.mrf.mxu0
  %v475 = vadd.f32 %v88, %v474
  %v476 = vpop.f32.mrf.mxu0
  %477 = vmatprep.mubr.bf16.mxu0 0
  %478 = vmatmul.mubr.bf16.gmra.mxu0 %v293
  %v479 = vpop.f32.mrf.mxu0
  %v480 = vadd.f32 %v88, %v479
  %v481 = vpop.f32.mrf.mxu0
  %v482 = vpop.f32.mrf.mxu0
  %v483 = vadd.f32 %v88, %v482
  %v484 = vpop.f32.mrf.mxu0
  %485 = vmatprep.mubr.bf16.mxu0 0
  %486 = vmatmul.mubr.bf16.gmra.mxu0 %v296
  %v487 = vpop.f32.mrf.mxu0
  %v488 = vadd.f32 %v88, %v487
  %v489 = vpop.f32.mrf.mxu0
  %v490 = vpop.f32.mrf.mxu0
  %v491 = vadd.f32 %v88, %v490
  %v492 = vpop.f32.mrf.mxu0
  %493 = vmatprep.mubr.bf16.mxu0 0
  %494 = vmatmul.mubr.bf16.gmra.mxu0 %v299
  %v495 = vpop.f32.mrf.mxu0
  %v496 = vadd.f32 %v88, %v495
  %v497 = vpop.f32.mrf.mxu0
  %v498 = vpop.f32.mrf.mxu0
  %v499 = vadd.f32 %v88, %v498
  %v500 = vpop.f32.mrf.mxu0
  %501 = vmatprep.mubr.bf16.mxu0 0
  %502 = vmatmul.mubr.bf16.gmra.mxu0 %v302
  %v503 = vpop.f32.mrf.mxu0
  %v504 = vadd.f32 %v88, %v503
  %v505 = vpop.f32.mrf.mxu0
  %v506 = vpop.f32.mrf.mxu0
  %v507 = vadd.f32 %v88, %v506
  %v508 = vpop.f32.mrf.mxu0
  %509 = vmatprep.mubr.bf16.mxu0 0
  %510 = vmatmul.mubr.bf16.gmra.mxu0 %v305
  %v511 = vpop.f32.mrf.mxu0
  %v512 = vadd.f32 %v88, %v511
  %v513 = vpop.f32.mrf.mxu0
  %v514 = vpop.f32.mrf.mxu0
  %v515 = vadd.f32 %v88, %v514
  %v516 = vpop.f32.mrf.mxu0
  %517 = vmatprep.mubr.bf16.mxu0 0
  %518 = vmatmul.mubr.bf16.gmra.mxu0 %v308
  %v519 = vpop.f32.mrf.mxu0
  %v520 = vadd.f32 %v88, %v519
  %v521 = vpop.f32.mrf.mxu0
  %v522 = vpop.f32.mrf.mxu0
  %v523 = vadd.f32 %v88, %v522
  %v524 = vpop.f32.mrf.mxu0
  %525 = vmatprep.mubr.bf16.mxu0 0
  %526 = vmatmul.mubr.bf16.gmra.mxu0 %v311
  %v527 = vpop.f32.mrf.mxu0
  %v528 = vadd.f32 %v88, %v527
  %v529 = vpop.f32.mrf.mxu0
  %v530 = vpop.f32.mrf.mxu0
  %v531 = vadd.f32 %v88, %v530
  %v532 = vpop.f32.mrf.mxu0
  %533 = vmatprep.mubr.bf16.mxu0 0
  %534 = vmatmul.mubr.bf16.gmra.mxu0 %v314
  %v535 = vpop.f32.mrf.mxu0
  %v536 = vadd.f32 %v88, %v535
  %v537 = vpop.f32.mrf.mxu0
  %v538 = vpop.f32.mrf.mxu0
  %v539 = vadd.f32 %v88, %v538
  %v540 = vpop.f32.mrf.mxu0
  %541 = vmatprep.mubr.bf16.mxu0 0
  %542 = vmatmul.mubr.bf16.gmra.mxu0 %v317
  %v543 = vpop.f32.mrf.mxu0
  %v544 = vadd.f32 %v88, %v543
  %v545 = vpop.f32.mrf.mxu0
  %v546 = vpop.f32.mrf.mxu0
  %v547 = vadd.f32 %v88, %v546
  %v548 = vpop.f32.mrf.mxu0
  %549 = vmatprep.mubr.bf16.mxu0 0
  %550 = vmatmul.mubr.bf16.gmra.mxu0 %v320
  %v551 = vpop.f32.mrf.mxu0
  %v552 = vadd.f32 %v88, %v551
  %v553 = vpop.f32.mrf.mxu0
  %v554 = vpop.f32.mrf.mxu0
  %v555 = vadd.f32 %v88, %v554
  %v556 = vpop.f32.mrf.mxu0
  %557 = vmatprep.mubr.bf16.mxu0 0
  %558 = vmatmul.mubr.bf16.gmra.mxu0 %v323
  %v559 = vpop.f32.mrf.mxu0
  %v560 = vadd.f32 %v88, %v559
  %v561 = vpop.f32.mrf.mxu0
  %v562 = vpop.f32.mrf.mxu0
  %v563 = vadd.f32 %v88, %v562
  %v564 = vpop.f32.mrf.mxu0
  %565 = vmatprep.mubr.bf16.mxu0 0
  %566 = vmatmul.mubr.bf16.gmra.mxu0 %v326
  %v567 = vpop.f32.mrf.mxu0
  %v568 = vadd.f32 %v88, %v567
  %v569 = vpop.f32.mrf.mxu0
  %v570 = vpop.f32.mrf.mxu0
  %v571 = vadd.f32 %v88, %v570
  %v572 = vpop.f32.mrf.mxu0
  %573 = vmatprep.mubr.bf16.mxu0 0
  %574 = vmatmul.mubr.bf16.gmra.mxu0 %v329
  %v575 = vpop.f32.mrf.mxu0
  %v576 = vadd.f32 %v88, %v575
  %v577 = vpop.f32.mrf.mxu0
  %v578 = vpop.f32.mrf.mxu0
  %v579 = vadd.f32 %v88, %v578
  %v580 = vpop.f32.mrf.mxu0
  %581 = vmatprep.mubr.bf16.mxu0 0
  %582 = vmatmul.mubr.bf16.gmra.mxu0 %v332
  %v583 = vpop.f32.mrf.mxu0
  %v584 = vadd.f32 %v88, %v583
  %v585 = vpop.f32.mrf.mxu0
  %v586 = vpop.f32.mrf.mxu0
  %v587 = vadd.f32 %v88, %v586
  %v588 = vpop.f32.mrf.mxu0
  %589 = vmatprep.mubr.bf16.mxu0 0
  %590 = vmatmul.mubr.bf16.gmra.mxu0 %v335
  %v591 = vpop.f32.mrf.mxu0
  %v592 = vadd.f32 %v88, %v591
  %v593 = vpop.f32.mrf.mxu0
  %v594 = vpop.f32.mrf.mxu0
  %v595 = vadd.f32 %v88, %v594
  %v596 = vpop.f32.mrf.mxu0
  %597 = vmatprep.mubr.bf16.mxu0 0
  %598 = vmatmul.mubr.bf16.gmra.mxu0 %v338
  %v599 = vpop.f32.mrf.mxu0
  %v600 = vadd.f32 %v88, %v599
  %v601 = vpop.f32.mrf.mxu0
  %v602 = vpop.f32.mrf.mxu0
  %v603 = vadd.f32 %v88, %v602
  %v604 = vpop.f32.mrf.mxu0
  %605 = vmatprep.mubr.bf16.mxu0 0
  %606 = vmatmul.mubr.bf16.gmra.mxu0 %v341
  %v607 = vpop.f32.mrf.mxu0
  %v608 = vadd.f32 %v88, %v607
  %v609 = vpop.f32.mrf.mxu0
  %v610 = vpop.f32.mrf.mxu0
  %v611 = vadd.f32 %v88, %v610
  %v612 = vpop.f32.mrf.mxu0
  %613 = vmatprep.mubr.bf16.mxu0 0
  %614 = vmatmul.mubr.bf16.gmra.mxu0 %v344
  %v615 = vpop.f32.mrf.mxu0
  %v616 = vadd.f32 %v88, %v615
  %v617 = vpop.f32.mrf.mxu0
  %v618 = vpop.f32.mrf.mxu0
  %v619 = vadd.f32 %v88, %v618
  %v620 = vpop.f32.mrf.mxu0
  %621 = vmatprep.mubr.bf16.mxu0 0
  %622 = vmatmul.mubr.bf16.gmra.mxu0 %v347
  %v623 = vpop.f32.mrf.mxu0
  %v624 = vadd.f32 %v88, %v623
  %v625 = vpop.f32.mrf.mxu0
  %v626 = vpop.f32.mrf.mxu0
  %v627 = vadd.f32 %v88, %v626
  %v628 = vpop.f32.mrf.mxu0
  %629 = vmatprep.mubr.bf16.mxu0 0
  %630 = vmatmul.mubr.bf16.gmra.mxu0 %v350
  %v631 = vpop.f32.mrf.mxu0
  %v632 = vadd.f32 %v88, %v631
  %v633 = vpop.f32.mrf.mxu0
  %v634 = vpop.f32.mrf.mxu0
  %v635 = vadd.f32 %v88, %v634
  %v636 = vpop.f32.mrf.mxu0
  %637 = vmatprep.mubr.bf16.mxu0 0
  %638 = vmatmul.mubr.bf16.gmra.mxu0 %v353
  %v639 = vpop.f32.mrf.mxu0
  %v640 = vadd.f32 %v88, %v639
  %v641 = vpop.f32.mrf.mxu0
  %v642 = vpop.f32.mrf.mxu0
  %v643 = vadd.f32 %v88, %v642
  %v644 = vpop.f32.mrf.mxu0
  %645 = vmatprep.mubr.bf16.mxu0 0
  %646 = vmatmul.mubr.bf16.gmra.mxu0 %v356
  %v647 = vpop.f32.mrf.mxu0
  %v648 = vadd.f32 %v88, %v647
  %v649 = vpop.f32.mrf.mxu0
  %v650 = vpop.f32.mrf.mxu0
  %v651 = vadd.f32 %v88, %v650
  %v652 = vpop.f32.mrf.mxu0
  %653 = vdwg.mxu0
  %v654 = vxor.u32 %v400, 2147483648
  %v655 = vxor.u32 %v403, 2147483648
  %v656 = vxor.u32 %v408, 2147483648
  %v657 = vxor.u32 %v411, 2147483648
  %v658 = vxor.u32 %v416, 2147483648
  %v659 = vxor.u32 %v419, 2147483648
  %v660 = vxor.u32 %v424, 2147483648
  %v661 = vxor.u32 %v427, 2147483648
  %v662 = vxor.u32 %v432, 2147483648
  %v663 = vxor.u32 %v435, 2147483648
  %v664 = vxor.u32 %v440, 2147483648
  %v665 = vxor.u32 %v443, 2147483648
  %v666 = vxor.u32 %v448, 2147483648
  %v667 = vxor.u32 %v451, 2147483648
  %v668 = vxor.u32 %v456, 2147483648
  %v669 = vxor.u32 %v459, 2147483648
  %v670 = vxor.u32 %v464, 2147483648
  %v671 = vxor.u32 %v467, 2147483648
  %v672 = vxor.u32 %v472, 2147483648
  %v673 = vxor.u32 %v475, 2147483648
  %v674 = vxor.u32 %v480, 2147483648
  %v675 = vxor.u32 %v483, 2147483648
  %v676 = vxor.u32 %v488, 2147483648
  %v677 = vxor.u32 %v491, 2147483648
  %v678 = vxor.u32 %v496, 2147483648
  %v679 = vxor.u32 %v499, 2147483648
  %v680 = vxor.u32 %v504, 2147483648
  %v681 = vxor.u32 %v507, 2147483648
  %v682 = vxor.u32 %v512, 2147483648
  %v683 = vxor.u32 %v515, 2147483648
  %v684 = vxor.u32 %v520, 2147483648
  %v685 = vxor.u32 %v523, 2147483648
  %v686 = vxor.u32 %v528, 2147483648
  %v687 = vxor.u32 %v531, 2147483648
  %v688 = vxor.u32 %v536, 2147483648
  %v689 = vxor.u32 %v539, 2147483648
  %v690 = vxor.u32 %v544, 2147483648
  %v691 = vxor.u32 %v547, 2147483648
  %v692 = vxor.u32 %v552, 2147483648
  %v693 = vxor.u32 %v555, 2147483648
  %v694 = vxor.u32 %v560, 2147483648
  %v695 = vxor.u32 %v563, 2147483648
  %v696 = vxor.u32 %v568, 2147483648
  %v697 = vxor.u32 %v571, 2147483648
  %v698 = vxor.u32 %v576, 2147483648
  %v699 = vxor.u32 %v579, 2147483648
  %v700 = vxor.u32 %v584, 2147483648
  %v701 = vxor.u32 %v587, 2147483648
  %v702 = vxor.u32 %v592, 2147483648
  %v703 = vxor.u32 %v595, 2147483648
  %v704 = vxor.u32 %v600, 2147483648
  %v705 = vxor.u32 %v603, 2147483648
  %v706 = vxor.u32 %v608, 2147483648
  %v707 = vxor.u32 %v611, 2147483648
  %v708 = vxor.u32 %v616, 2147483648
  %v709 = vxor.u32 %v619, 2147483648
  %v710 = vxor.u32 %v624, 2147483648
  %v711 = vxor.u32 %v627, 2147483648
  %v712 = vxor.u32 %v632, 2147483648
  %v713 = vxor.u32 %v635, 2147483648
  %v714 = vxor.u32 %v640, 2147483648
  %v715 = vxor.u32 %v643, 2147483648
  %v716 = vxor.u32 %v648, 2147483648
  %v717 = vxor.u32 %v651, 2147483648
  %v718 = vmul.f32 %v654, 1.442695
  %v719 = vpow.pop %v718
  %v720 = vmul.f32 %v655, 1.442695
  %v721 = vpow.pop %v720
  %v722 = vmul.f32 %v656, 1.442695
  %v723 = vpow.pop %v722
  %v724 = vmul.f32 %v657, 1.442695
  %v725 = vpow.pop %v724
  %v726 = vmul.f32 %v658, 1.442695
  %v727 = vpow.pop %v726
  %v728 = vmul.f32 %v659, 1.442695
  %v729 = vpow.pop %v728
  %v730 = vmul.f32 %v660, 1.442695
  %v731 = vpow.pop %v730
  %v732 = vmul.f32 %v661, 1.442695
  %v733 = vpow.pop %v732
  %v734 = vmul.f32 %v662, 1.442695
  %v735 = vpow.pop %v734
  %v736 = vmul.f32 %v663, 1.442695
  %v737 = vpow.pop %v736
  %v738 = vmul.f32 %v664, 1.442695
  %v739 = vpow.pop %v738
  %v740 = vmul.f32 %v665, 1.442695
  %v741 = vpow.pop %v740
  %v742 = vmul.f32 %v666, 1.442695
  %v743 = vpow.pop %v742
  %v744 = vmul.f32 %v667, 1.442695
  %v745 = vpow.pop %v744
  %v746 = vmul.f32 %v668, 1.442695
  %v747 = vpow.pop %v746
  %v748 = vmul.f32 %v669, 1.442695
  %v749 = vpow.pop %v748
  %v750 = vmul.f32 %v670, 1.442695
  %v751 = vpow.pop %v750
  %v752 = vmul.f32 %v671, 1.442695
  %v753 = vpow.pop %v752
  %v754 = vmul.f32 %v672, 1.442695
  %v755 = vpow.pop %v754
  %v756 = vmul.f32 %v673, 1.442695
  %v757 = vpow.pop %v756
  %v758 = vmul.f32 %v674, 1.442695
  %v759 = vpow.pop %v758
  %v760 = vmul.f32 %v675, 1.442695
  %v761 = vpow.pop %v760
  %v762 = vmul.f32 %v676, 1.442695
  %v763 = vpow.pop %v762
  %v764 = vmul.f32 %v677, 1.442695
  %v765 = vpow.pop %v764
  %v766 = vmul.f32 %v678, 1.442695
  %v767 = vpow.pop %v766
  %v768 = vmul.f32 %v679, 1.442695
  %v769 = vpow.pop %v768
  %v770 = vmul.f32 %v680, 1.442695
  %v771 = vpow.pop %v770
  %v772 = vmul.f32 %v681, 1.442695
  %v773 = vpow.pop %v772
  %v774 = vmul.f32 %v682, 1.442695
  %v775 = vpow.pop %v774
  %v776 = vmul.f32 %v683, 1.442695
  %v777 = vpow.pop %v776
  %v778 = vmul.f32 %v684, 1.442695
  %v779 = vpow.pop %v778
  %v780 = vmul.f32 %v685, 1.442695
  %v781 = vpow.pop %v780
  %v782 = vmul.f32 %v686, 1.442695
  %v783 = vpow.pop %v782
  %v784 = vmul.f32 %v687, 1.442695
  %v785 = vpow.pop %v784
  %v786 = vmul.f32 %v688, 1.442695
  %v787 = vpow.pop %v786
  %v788 = vmul.f32 %v689, 1.442695
  %v789 = vpow.pop %v788
  %v790 = vmul.f32 %v690, 1.442695
  %v791 = vpow.pop %v790
  %v792 = vmul.f32 %v691, 1.442695
  %v793 = vpow.pop %v792
  %v794 = vmul.f32 %v692, 1.442695
  %v795 = vpow.pop %v794
  %v796 = vmul.f32 %v693, 1.442695
  %v797 = vpow.pop %v796
  %v798 = vmul.f32 %v694, 1.442695
  %v799 = vpow.pop %v798
  %v800 = vmul.f32 %v695, 1.442695
  %v801 = vpow.pop %v800
  %v802 = vmul.f32 %v696, 1.442695
  %v803 = vpow.pop %v802
  %v804 = vmul.f32 %v697, 1.442695
  %v805 = vpow.pop %v804
  %v806 = vmul.f32 %v698, 1.442695
  %v807 = vpow.pop %v806
  %v808 = vmul.f32 %v699, 1.442695
  %v809 = vpow.pop %v808
  %v810 = vmul.f32 %v700, 1.442695
  %v811 = vpow.pop %v810
  %v812 = vmul.f32 %v701, 1.442695
  %v813 = vpow.pop %v812
  %v814 = vmul.f32 %v702, 1.442695
  %v815 = vpow.pop %v814
  %v816 = vmul.f32 %v703, 1.442695
  %v817 = vpow.pop %v816
  %v818 = vmul.f32 %v704, 1.442695
  %v819 = vpow.pop %v818
  %v820 = vmul.f32 %v705, 1.442695
  %v821 = vpow.pop %v820
  %v822 = vmul.f32 %v706, 1.442695
  %v823 = vpow.pop %v822
  %v824 = vmul.f32 %v707, 1.442695
  %v825 = vpow.pop %v824
  %v826 = vmul.f32 %v708, 1.442695
  %v827 = vpow.pop %v826
  %v828 = vmul.f32 %v709, 1.442695
  %v829 = vpow.pop %v828
  %v830 = vmul.f32 %v710, 1.442695
  %v831 = vpow.pop %v830
  %v832 = vmul.f32 %v711, 1.442695
  %v833 = vpow.pop %v832
  %v834 = vmul.f32 %v712, 1.442695
  %v835 = vpow.pop %v834
  %v836 = vmul.f32 %v713, 1.442695
  %v837 = vpow.pop %v836
  %v838 = vmul.f32 %v714, 1.442695
  %v839 = vpow.pop %v838
  %v840 = vmul.f32 %v715, 1.442695
  %v841 = vpow.pop %v840
  %v842 = vmul.f32 %v716, 1.442695
  %v843 = vpow.pop %v842
  %v844 = vmul.f32 %v717, 1.442695
  %v845 = vpow.pop %v844
  %v846 = vadd.f32 %v719, 1.0
  %v847 = vadd.f32 %v721, 1.0
  %v848 = vadd.f32 %v723, 1.0
  %v849 = vadd.f32 %v725, 1.0
  %v850 = vadd.f32 %v727, 1.0
  %v851 = vadd.f32 %v729, 1.0
  %v852 = vadd.f32 %v731, 1.0
  %v853 = vadd.f32 %v733, 1.0
  %v854 = vadd.f32 %v735, 1.0
  %v855 = vadd.f32 %v737, 1.0
  %v856 = vadd.f32 %v739, 1.0
  %v857 = vadd.f32 %v741, 1.0
  %v858 = vadd.f32 %v743, 1.0
  %v859 = vadd.f32 %v745, 1.0
  %v860 = vadd.f32 %v747, 1.0
  %v861 = vadd.f32 %v749, 1.0
  %v862 = vadd.f32 %v751, 1.0
  %v863 = vadd.f32 %v753, 1.0
  %v864 = vadd.f32 %v755, 1.0
  %v865 = vadd.f32 %v757, 1.0
  %v866 = vadd.f32 %v759, 1.0
  %v867 = vadd.f32 %v761, 1.0
  %v868 = vadd.f32 %v763, 1.0
  %v869 = vadd.f32 %v765, 1.0
  %v870 = vadd.f32 %v767, 1.0
  %v871 = vadd.f32 %v769, 1.0
  %v872 = vadd.f32 %v771, 1.0
  %v873 = vadd.f32 %v773, 1.0
  %v874 = vadd.f32 %v775, 1.0
  %v875 = vadd.f32 %v777, 1.0
  %v876 = vadd.f32 %v779, 1.0
  %v877 = vadd.f32 %v781, 1.0
  %v878 = vadd.f32 %v783, 1.0
  %v879 = vadd.f32 %v785, 1.0
  %v880 = vadd.f32 %v787, 1.0
  %v881 = vadd.f32 %v789, 1.0
  %v882 = vadd.f32 %v791, 1.0
  %v883 = vadd.f32 %v793, 1.0
  %v884 = vadd.f32 %v795, 1.0
  %v885 = vadd.f32 %v797, 1.0
  %v886 = vadd.f32 %v799, 1.0
  %v887 = vadd.f32 %v801, 1.0
  %v888 = vadd.f32 %v803, 1.0
  %v889 = vadd.f32 %v805, 1.0
  %v890 = vadd.f32 %v807, 1.0
  %v891 = vadd.f32 %v809, 1.0
  %v892 = vadd.f32 %v811, 1.0
  %v893 = vadd.f32 %v813, 1.0
  %v894 = vadd.f32 %v815, 1.0
  %v895 = vadd.f32 %v817, 1.0
  %v896 = vadd.f32 %v819, 1.0
  %v897 = vadd.f32 %v821, 1.0
  %v898 = vadd.f32 %v823, 1.0
  %v899 = vadd.f32 %v825, 1.0
  %v900 = vadd.f32 %v827, 1.0
  %v901 = vadd.f32 %v829, 1.0
  %v902 = vadd.f32 %v831, 1.0
  %v903 = vadd.f32 %v833, 1.0
  %v904 = vadd.f32 %v835, 1.0
  %v905 = vadd.f32 %v837, 1.0
  %v906 = vadd.f32 %v839, 1.0
  %v907 = vadd.f32 %v841, 1.0
  %v908 = vadd.f32 %v843, 1.0
  %v909 = vadd.f32 %v845, 1.0
  %v910 = vrcp.pop %v846
  %v911 = vmul.f32 1.0, %v910
  %v912 = vrcp.pop %v847
  %v913 = vmul.f32 1.0, %v912
  %v914 = vrcp.pop %v848
  %v915 = vmul.f32 1.0, %v914
  %v916 = vrcp.pop %v849
  %v917 = vmul.f32 1.0, %v916
  %v918 = vrcp.pop %v850
  %v919 = vmul.f32 1.0, %v918
  %v920 = vrcp.pop %v851
  %v921 = vmul.f32 1.0, %v920
  %v922 = vrcp.pop %v852
  %v923 = vmul.f32 1.0, %v922
  %v924 = vrcp.pop %v853
  %v925 = vmul.f32 1.0, %v924
  %v926 = vrcp.pop %v854
  %v927 = vmul.f32 1.0, %v926
  %v928 = vrcp.pop %v855
  %v929 = vmul.f32 1.0, %v928
  %v930 = vrcp.pop %v856
  %v931 = vmul.f32 1.0, %v930
  %v932 = vrcp.pop %v857
  %v933 = vmul.f32 1.0, %v932
  %v934 = vrcp.pop %v858
  %v935 = vmul.f32 1.0, %v934
  %v936 = vrcp.pop %v859
  %v937 = vmul.f32 1.0, %v936
  %v938 = vrcp.pop %v860
  %v939 = vmul.f32 1.0, %v938
  %v940 = vrcp.pop %v861
  %v941 = vmul.f32 1.0, %v940
  %v942 = vrcp.pop %v862
  %v943 = vmul.f32 1.0, %v942
  %v944 = vrcp.pop %v863
  %v945 = vmul.f32 1.0, %v944
  %v946 = vrcp.pop %v864
  %v947 = vmul.f32 1.0, %v946
  %v948 = vrcp.pop %v865
  %v949 = vmul.f32 1.0, %v948
  %v950 = vrcp.pop %v866
  %v951 = vmul.f32 1.0, %v950
  %v952 = vrcp.pop %v867
  %v953 = vmul.f32 1.0, %v952
  %v954 = vrcp.pop %v868
  %v955 = vmul.f32 1.0, %v954
  %v956 = vrcp.pop %v869
  %v957 = vmul.f32 1.0, %v956
  %v958 = vrcp.pop %v870
  %v959 = vmul.f32 1.0, %v958
  %v960 = vrcp.pop %v871
  %v961 = vmul.f32 1.0, %v960
  %v962 = vrcp.pop %v872
  %v963 = vmul.f32 1.0, %v962
  %v964 = vrcp.pop %v873
  %v965 = vmul.f32 1.0, %v964
  %v966 = vrcp.pop %v874
  %v967 = vmul.f32 1.0, %v966
  %v968 = vrcp.pop %v875
  %v969 = vmul.f32 1.0, %v968
  %v970 = vrcp.pop %v876
  %v971 = vmul.f32 1.0, %v970
  %v972 = vrcp.pop %v877
  %v973 = vmul.f32 1.0, %v972
  %v974 = vrcp.pop %v878
  %v975 = vmul.f32 1.0, %v974
  %v976 = vrcp.pop %v879
  %v977 = vmul.f32 1.0, %v976
  %v978 = vrcp.pop %v880
  %v979 = vmul.f32 1.0, %v978
  %v980 = vrcp.pop %v881
  %v981 = vmul.f32 1.0, %v980
  %v982 = vrcp.pop %v882
  %v983 = vmul.f32 1.0, %v982
  %v984 = vrcp.pop %v883
  %v985 = vmul.f32 1.0, %v984
  %v986 = vrcp.pop %v884
  %v987 = vmul.f32 1.0, %v986
  %v988 = vrcp.pop %v885
  %v989 = vmul.f32 1.0, %v988
  %v990 = vrcp.pop %v886
  %v991 = vmul.f32 1.0, %v990
  %v992 = vrcp.pop %v887
  %v993 = vmul.f32 1.0, %v992
  %v994 = vrcp.pop %v888
  %v995 = vmul.f32 1.0, %v994
  %v996 = vrcp.pop %v889
  %v997 = vmul.f32 1.0, %v996
  %v998 = vrcp.pop %v890
  %v999 = vmul.f32 1.0, %v998
  %v1000 = vrcp.pop %v891
  %v1001 = vmul.f32 1.0, %v1000
  %v1002 = vrcp.pop %v892
  %v1003 = vmul.f32 1.0, %v1002
  %v1004 = vrcp.pop %v893
  %v1005 = vmul.f32 1.0, %v1004
  %v1006 = vrcp.pop %v894
  %v1007 = vmul.f32 1.0, %v1006
  %v1008 = vrcp.pop %v895
  %v1009 = vmul.f32 1.0, %v1008
  %v1010 = vrcp.pop %v896
  %v1011 = vmul.f32 1.0, %v1010
  %v1012 = vrcp.pop %v897
  %v1013 = vmul.f32 1.0, %v1012
  %v1014 = vrcp.pop %v898
  %v1015 = vmul.f32 1.0, %v1014
  %v1016 = vrcp.pop %v899
  %v1017 = vmul.f32 1.0, %v1016
  %v1018 = vrcp.pop %v900
  %v1019 = vmul.f32 1.0, %v1018
  %v1020 = vrcp.pop %v901
  %v1021 = vmul.f32 1.0, %v1020
  %v1022 = vrcp.pop %v902
  %v1023 = vmul.f32 1.0, %v1022
  %v1024 = vrcp.pop %v903
  %v1025 = vmul.f32 1.0, %v1024
  %v1026 = vrcp.pop %v904
  %v1027 = vmul.f32 1.0, %v1026
  %v1028 = vrcp.pop %v905
  %v1029 = vmul.f32 1.0, %v1028
  %v1030 = vrcp.pop %v906
  %v1031 = vmul.f32 1.0, %v1030
  %v1032 = vrcp.pop %v907
  %v1033 = vmul.f32 1.0, %v1032
  %v1034 = vrcp.pop %v908
  %v1035 = vmul.f32 1.0, %v1034
  %v1036 = vrcp.pop %v909
  %v1037 = vmul.f32 1.0, %v1036
  %v1038 = vmul.f32 %v400, %v911
  %v1039 = vmul.f32 %v403, %v913
  %v1040 = vmul.f32 %v408, %v915
  %v1041 = vmul.f32 %v411, %v917
  %v1042 = vmul.f32 %v416, %v919
  %v1043 = vmul.f32 %v419, %v921
  %v1044 = vmul.f32 %v424, %v923
  %v1045 = vmul.f32 %v427, %v925
  %v1046 = vmul.f32 %v432, %v927
  %v1047 = vmul.f32 %v435, %v929
  %v1048 = vmul.f32 %v440, %v931
  %v1049 = vmul.f32 %v443, %v933
  %v1050 = vmul.f32 %v448, %v935
  %v1051 = vmul.f32 %v451, %v937
  %v1052 = vmul.f32 %v456, %v939
  %v1053 = vmul.f32 %v459, %v941
  %v1054 = vmul.f32 %v464, %v943
  %v1055 = vmul.f32 %v467, %v945
  %v1056 = vmul.f32 %v472, %v947
  %v1057 = vmul.f32 %v475, %v949
  %v1058 = vmul.f32 %v480, %v951
  %v1059 = vmul.f32 %v483, %v953
  %v1060 = vmul.f32 %v488, %v955
  %v1061 = vmul.f32 %v491, %v957
  %v1062 = vmul.f32 %v496, %v959
  %v1063 = vmul.f32 %v499, %v961
  %v1064 = vmul.f32 %v504, %v963
  %v1065 = vmul.f32 %v507, %v965
  %v1066 = vmul.f32 %v512, %v967
  %v1067 = vmul.f32 %v515, %v969
  %v1068 = vmul.f32 %v520, %v971
  %v1069 = vmul.f32 %v523, %v973
  %v1070 = vmul.f32 %v528, %v975
  %v1071 = vmul.f32 %v531, %v977
  %v1072 = vmul.f32 %v536, %v979
  %v1073 = vmul.f32 %v539, %v981
  %v1074 = vmul.f32 %v544, %v983
  %v1075 = vmul.f32 %v547, %v985
  %v1076 = vmul.f32 %v552, %v987
  %v1077 = vmul.f32 %v555, %v989
  %v1078 = vmul.f32 %v560, %v991
  %v1079 = vmul.f32 %v563, %v993
  %v1080 = vmul.f32 %v568, %v995
  %v1081 = vmul.f32 %v571, %v997
  %v1082 = vmul.f32 %v576, %v999
  %v1083 = vmul.f32 %v579, %v1001
  %v1084 = vmul.f32 %v584, %v1003
  %v1085 = vmul.f32 %v587, %v1005
  %v1086 = vmul.f32 %v592, %v1007
  %v1087 = vmul.f32 %v595, %v1009
  %v1088 = vmul.f32 %v600, %v1011
  %v1089 = vmul.f32 %v603, %v1013
  %v1090 = vmul.f32 %v608, %v1015
  %v1091 = vmul.f32 %v611, %v1017
  %v1092 = vmul.f32 %v616, %v1019
  %v1093 = vmul.f32 %v619, %v1021
  %v1094 = vmul.f32 %v624, %v1023
  %v1095 = vmul.f32 %v627, %v1025
  %v1096 = vmul.f32 %v632, %v1027
  %v1097 = vmul.f32 %v635, %v1029
  %v1098 = vmul.f32 %v640, %v1031
  %v1099 = vmul.f32 %v643, %v1033
  %v1100 = vmul.f32 %v648, %v1035
  %v1101 = vmul.f32 %v651, %v1037
  %v1102 = vpack.c.bf16 %v1039, %v1038
  %v1103 = vpack.c.bf16 %v1041, %v1040
  %v1104 = vpack.c.bf16 %v1043, %v1042
  %v1105 = vpack.c.bf16 %v1045, %v1044
  %v1106 = vpack.c.bf16 %v1047, %v1046
  %v1107 = vpack.c.bf16 %v1049, %v1048
  %v1108 = vpack.c.bf16 %v1051, %v1050
  %v1109 = vpack.c.bf16 %v1053, %v1052
  %v1110 = vpack.c.bf16 %v1055, %v1054
  %v1111 = vpack.c.bf16 %v1057, %v1056
  %v1112 = vpack.c.bf16 %v1059, %v1058
  %v1113 = vpack.c.bf16 %v1061, %v1060
  %v1114 = vpack.c.bf16 %v1063, %v1062
  %v1115 = vpack.c.bf16 %v1065, %v1064
  %v1116 = vpack.c.bf16 %v1067, %v1066
  %v1117 = vpack.c.bf16 %v1069, %v1068
  %v1118 = vpack.c.bf16 %v1071, %v1070
  %v1119 = vpack.c.bf16 %v1073, %v1072
  %v1120 = vpack.c.bf16 %v1075, %v1074
  %v1121 = vpack.c.bf16 %v1077, %v1076
  %v1122 = vpack.c.bf16 %v1079, %v1078
  %v1123 = vpack.c.bf16 %v1081, %v1080
  %v1124 = vpack.c.bf16 %v1083, %v1082
  %v1125 = vpack.c.bf16 %v1085, %v1084
  %v1126 = vpack.c.bf16 %v1087, %v1086
  %v1127 = vpack.c.bf16 %v1089, %v1088
  %v1128 = vpack.c.bf16 %v1091, %v1090
  %v1129 = vpack.c.bf16 %v1093, %v1092
  %v1130 = vpack.c.bf16 %v1095, %v1094
  %v1131 = vpack.c.bf16 %v1097, %v1096
  %v1132 = vpack.c.bf16 %v1099, %v1098
  %v1133 = vpack.c.bf16 %v1101, %v1100
  %v1166 = vunpack.c.l.b16 %v1102
  %v1167 = vunpack.c.h.b16 %v1102
  %v1168 = vunpack.c.l.b16 %v1103
  %v1169 = vunpack.c.h.b16 %v1103
  %v1170 = vunpack.c.l.b16 %v1104
  %v1171 = vunpack.c.h.b16 %v1104
  %v1172 = vunpack.c.l.b16 %v1105
  %v1173 = vunpack.c.h.b16 %v1105
  %v1174 = vunpack.c.l.b16 %v1106
  %v1175 = vunpack.c.h.b16 %v1106
  %v1176 = vunpack.c.l.b16 %v1107
  %v1177 = vunpack.c.h.b16 %v1107
  %v1178 = vunpack.c.l.b16 %v1108
  %v1179 = vunpack.c.h.b16 %v1108
  %v1180 = vunpack.c.l.b16 %v1109
  %v1181 = vunpack.c.h.b16 %v1109
  %v1182 = vunpack.c.l.b16 %v1110
  %v1183 = vunpack.c.h.b16 %v1110
  %v1184 = vunpack.c.l.b16 %v1111
  %v1185 = vunpack.c.h.b16 %v1111
  %v1186 = vunpack.c.l.b16 %v1112
  %v1187 = vunpack.c.h.b16 %v1112
  %v1188 = vunpack.c.l.b16 %v1113
  %v1189 = vunpack.c.h.b16 %v1113
  %v1190 = vunpack.c.l.b16 %v1114
  %v1191 = vunpack.c.h.b16 %v1114
  %v1192 = vunpack.c.l.b16 %v1115
  %v1193 = vunpack.c.h.b16 %v1115
  %v1194 = vunpack.c.l.b16 %v1116
  %v1195 = vunpack.c.h.b16 %v1116
  %v1196 = vunpack.c.l.b16 %v1117
  %v1197 = vunpack.c.h.b16 %v1117
  %v1198 = vunpack.c.l.b16 %v1118
  %v1199 = vunpack.c.h.b16 %v1118
  %v1200 = vunpack.c.l.b16 %v1119
  %v1201 = vunpack.c.h.b16 %v1119
  %v1202 = vunpack.c.l.b16 %v1120
  %v1203 = vunpack.c.h.b16 %v1120
  %v1204 = vunpack.c.l.b16 %v1121
  %v1205 = vunpack.c.h.b16 %v1121
  %v1206 = vunpack.c.l.b16 %v1122
  %v1207 = vunpack.c.h.b16 %v1122
  %v1208 = vunpack.c.l.b16 %v1123
  %v1209 = vunpack.c.h.b16 %v1123
  %v1210 = vunpack.c.l.b16 %v1124
  %v1211 = vunpack.c.h.b16 %v1124
  %v1212 = vunpack.c.l.b16 %v1125
  %v1213 = vunpack.c.h.b16 %v1125
  %v1214 = vunpack.c.l.b16 %v1126
  %v1215 = vunpack.c.h.b16 %v1126
  %v1216 = vunpack.c.l.b16 %v1127
  %v1217 = vunpack.c.h.b16 %v1127
  %v1218 = vunpack.c.l.b16 %v1128
  %v1219 = vunpack.c.h.b16 %v1128
  %v1220 = vunpack.c.l.b16 %v1129
  %v1221 = vunpack.c.h.b16 %v1129
  %v1222 = vunpack.c.l.b16 %v1130
  %v1223 = vunpack.c.h.b16 %v1130
  %v1224 = vunpack.c.l.b16 %v1131
  %v1225 = vunpack.c.h.b16 %v1131
  %v1226 = vunpack.c.l.b16 %v1132
  %v1227 = vunpack.c.h.b16 %v1132
  %v1228 = vunpack.c.l.b16 %v1133
  %v1229 = vunpack.c.h.b16 %v1133
  %v1230 = vpack.c.b16 %v1166, %v1166
  %v1231 = vpack.c.b16 %v1167, %v1167
  %v1232 = vpack.c.b16 %v1168, %v1168
  %v1233 = vpack.c.b16 %v1169, %v1169
  %v1234 = vpack.c.b16 %v1170, %v1170
  %v1235 = vpack.c.b16 %v1171, %v1171
  %v1236 = vpack.c.b16 %v1172, %v1172
  %v1237 = vpack.c.b16 %v1173, %v1173
  %v1238 = vpack.c.b16 %v1174, %v1174
  %v1239 = vpack.c.b16 %v1175, %v1175
  %v1240 = vpack.c.b16 %v1176, %v1176
  %v1241 = vpack.c.b16 %v1177, %v1177
  %v1242 = vpack.c.b16 %v1178, %v1178
  %v1243 = vpack.c.b16 %v1179, %v1179
  %v1244 = vpack.c.b16 %v1180, %v1180
  %v1245 = vpack.c.b16 %v1181, %v1181
  %v1246 = vpack.c.b16 %v1182, %v1182
  %v1247 = vpack.c.b16 %v1183, %v1183
  %v1248 = vpack.c.b16 %v1184, %v1184
  %v1249 = vpack.c.b16 %v1185, %v1185
  %v1250 = vpack.c.b16 %v1186, %v1186
  %v1251 = vpack.c.b16 %v1187, %v1187
  %v1252 = vpack.c.b16 %v1188, %v1188
  %v1253 = vpack.c.b16 %v1189, %v1189
  %v1254 = vpack.c.b16 %v1190, %v1190
  %v1255 = vpack.c.b16 %v1191, %v1191
  %v1256 = vpack.c.b16 %v1192, %v1192
  %v1257 = vpack.c.b16 %v1193, %v1193
  %v1258 = vpack.c.b16 %v1194, %v1194
  %v1259 = vpack.c.b16 %v1195, %v1195
  %v1260 = vpack.c.b16 %v1196, %v1196
  %v1261 = vpack.c.b16 %v1197, %v1197
  %v1262 = vpack.c.b16 %v1198, %v1198
  %v1263 = vpack.c.b16 %v1199, %v1199
  %v1264 = vpack.c.b16 %v1200, %v1200
  %v1265 = vpack.c.b16 %v1201, %v1201
  %v1266 = vpack.c.b16 %v1202, %v1202
  %v1267 = vpack.c.b16 %v1203, %v1203
  %v1268 = vpack.c.b16 %v1204, %v1204
  %v1269 = vpack.c.b16 %v1205, %v1205
  %v1270 = vpack.c.b16 %v1206, %v1206
  %v1271 = vpack.c.b16 %v1207, %v1207
  %v1272 = vpack.c.b16 %v1208, %v1208
  %v1273 = vpack.c.b16 %v1209, %v1209
  %v1274 = vpack.c.b16 %v1210, %v1210
  %v1275 = vpack.c.b16 %v1211, %v1211
  %v1276 = vpack.c.b16 %v1212, %v1212
  %v1277 = vpack.c.b16 %v1213, %v1213
  %v1278 = vpack.c.b16 %v1214, %v1214
  %v1279 = vpack.c.b16 %v1215, %v1215
  %v1280 = vpack.c.b16 %v1216, %v1216
  %v1281 = vpack.c.b16 %v1217, %v1217
  %v1282 = vpack.c.b16 %v1218, %v1218
  %v1283 = vpack.c.b16 %v1219, %v1219
  %v1284 = vpack.c.b16 %v1220, %v1220
  %v1285 = vpack.c.b16 %v1221, %v1221
  %v1286 = vpack.c.b16 %v1222, %v1222
  %v1287 = vpack.c.b16 %v1223, %v1223
  %v1288 = vpack.c.b16 %v1224, %v1224
  %v1289 = vpack.c.b16 %v1225, %v1225
  %v1290 = vpack.c.b16 %v1226, %v1226
  %v1291 = vpack.c.b16 %v1227, %v1227
  %v1292 = vpack.c.b16 %v1228, %v1228
  %v1293 = vpack.c.b16 %v1229, %v1229
  %vm1358 = vcmask 125952
  %1359 = vst.msk [vmem:[%s3] sm:$0xf] %vm1358, %v1230
  %1360 = vst.msk [vmem:[%s3 + $0x4] sm:$0xf] %vm1358, %v1231
  %1361 = vst.msk [vmem:[%s3 + $0x8] sm:$0xf] %vm1358, %v1232
  %1362 = vst.msk [vmem:[%s3 + $0xc] sm:$0xf] %vm1358, %v1233
  %1363 = vst.msk [vmem:[%s3 + $0x10] sm:$0xf] %vm1358, %v1234
  %1364 = vst.msk [vmem:[%s3 + $0x14] sm:$0xf] %vm1358, %v1235
  %1365 = vst.msk [vmem:[%s3 + $0x18] sm:$0xf] %vm1358, %v1236
  %1366 = vst.msk [vmem:[%s3 + $0x1c] sm:$0xf] %vm1358, %v1237
  %1367 = vst.msk [vmem:[%s3 + $0x20] sm:$0xf] %vm1358, %v1238
  %1368 = vst.msk [vmem:[%s3 + $0x24] sm:$0xf] %vm1358, %v1239
  %1369 = vst.msk [vmem:[%s3 + $0x28] sm:$0xf] %vm1358, %v1240
  %1370 = vst.msk [vmem:[%s3 + $0x2c] sm:$0xf] %vm1358, %v1241
  %1371 = vst.msk [vmem:[%s3 + $0x30] sm:$0xf] %vm1358, %v1242
  %1372 = vst.msk [vmem:[%s3 + $0x34] sm:$0xf] %vm1358, %v1243
  %1373 = vst.msk [vmem:[%s3 + $0x38] sm:$0xf] %vm1358, %v1244
  %1374 = vst.msk [vmem:[%s3 + $0x3c] sm:$0xf] %vm1358, %v1245
  %1375 = vst.msk [vmem:[%s3 + $0x40] sm:$0xf] %vm1358, %v1246
  %1376 = vst.msk [vmem:[%s3 + $0x44] sm:$0xf] %vm1358, %v1247
  %1377 = vst.msk [vmem:[%s3 + $0x48] sm:$0xf] %vm1358, %v1248
  %1378 = vst.msk [vmem:[%s3 + $0x4c] sm:$0xf] %vm1358, %v1249
  %1379 = vst.msk [vmem:[%s3 + $0x50] sm:$0xf] %vm1358, %v1250
  %1380 = vst.msk [vmem:[%s3 + $0x54] sm:$0xf] %vm1358, %v1251
  %1381 = vst.msk [vmem:[%s3 + $0x58] sm:$0xf] %vm1358, %v1252
  %1382 = vst.msk [vmem:[%s3 + $0x5c] sm:$0xf] %vm1358, %v1253
  %1383 = vst.msk [vmem:[%s3 + $0x60] sm:$0xf] %vm1358, %v1254
  %1384 = vst.msk [vmem:[%s3 + $0x64] sm:$0xf] %vm1358, %v1255
  %1385 = vst.msk [vmem:[%s3 + $0x68] sm:$0xf] %vm1358, %v1256
  %1386 = vst.msk [vmem:[%s3 + $0x6c] sm:$0xf] %vm1358, %v1257
  %1387 = vst.msk [vmem:[%s3 + $0x70] sm:$0xf] %vm1358, %v1258
  %1388 = vst.msk [vmem:[%s3 + $0x74] sm:$0xf] %vm1358, %v1259
  %1389 = vst.msk [vmem:[%s3 + $0x78] sm:$0xf] %vm1358, %v1260
  %1390 = vst.msk [vmem:[%s3 + $0x7c] sm:$0xf] %vm1358, %v1261
  %1391 = vst.msk [vmem:[%s3 + $0x80] sm:$0xf] %vm1358, %v1262
  %1392 = vst.msk [vmem:[%s3 + $0x84] sm:$0xf] %vm1358, %v1263
  %1393 = vst.msk [vmem:[%s3 + $0x88] sm:$0xf] %vm1358, %v1264
  %1394 = vst.msk [vmem:[%s3 + $0x8c] sm:$0xf] %vm1358, %v1265
  %1395 = vst.msk [vmem:[%s3 + $0x90] sm:$0xf] %vm1358, %v1266
  %1396 = vst.msk [vmem:[%s3 + $0x94] sm:$0xf] %vm1358, %v1267
  %1397 = vst.msk [vmem:[%s3 + $0x98] sm:$0xf] %vm1358, %v1268
  %1398 = vst.msk [vmem:[%s3 + $0x9c] sm:$0xf] %vm1358, %v1269
  %1399 = vst.msk [vmem:[%s3 + $0xa0] sm:$0xf] %vm1358, %v1270
  %1400 = vst.msk [vmem:[%s3 + $0xa4] sm:$0xf] %vm1358, %v1271
  %1401 = vst.msk [vmem:[%s3 + $0xa8] sm:$0xf] %vm1358, %v1272
  %1402 = vst.msk [vmem:[%s3 + $0xac] sm:$0xf] %vm1358, %v1273
  %1403 = vst.msk [vmem:[%s3 + $0xb0] sm:$0xf] %vm1358, %v1274
  %1404 = vst.msk [vmem:[%s3 + $0xb4] sm:$0xf] %vm1358, %v1275
  %1405 = vst.msk [vmem:[%s3 + $0xb8] sm:$0xf] %vm1358, %v1276
  %1406 = vst.msk [vmem:[%s3 + $0xbc] sm:$0xf] %vm1358, %v1277
  %1407 = vst.msk [vmem:[%s3 + $0xc0] sm:$0xf] %vm1358, %v1278
  %1408 = vst.msk [vmem:[%s3 + $0xc4] sm:$0xf] %vm1358, %v1279
  %1409 = vst.msk [vmem:[%s3 + $0xc8] sm:$0xf] %vm1358, %v1280
  %1410 = vst.msk [vmem:[%s3 + $0xcc] sm:$0xf] %vm1358, %v1281
  %1411 = vst.msk [vmem:[%s3 + $0xd0] sm:$0xf] %vm1358, %v1282
  %1412 = vst.msk [vmem:[%s3 + $0xd4] sm:$0xf] %vm1358, %v1283
  %1413 = vst.msk [vmem:[%s3 + $0xd8] sm:$0xf] %vm1358, %v1284
  %1414 = vst.msk [vmem:[%s3 + $0xdc] sm:$0xf] %vm1358, %v1285
  %1415 = vst.msk [vmem:[%s3 + $0xe0] sm:$0xf] %vm1358, %v1286
  %1416 = vst.msk [vmem:[%s3 + $0xe4] sm:$0xf] %vm1358, %v1287
  %1417 = vst.msk [vmem:[%s3 + $0xe8] sm:$0xf] %vm1358, %v1288
  %1418 = vst.msk [vmem:[%s3 + $0xec] sm:$0xf] %vm1358, %v1289
  %1419 = vst.msk [vmem:[%s3 + $0xf0] sm:$0xf] %vm1358, %v1290
  %1420 = vst.msk [vmem:[%s3 + $0xf4] sm:$0xf] %vm1358, %v1291
  %1421 = vst.msk [vmem:[%s3 + $0xf8] sm:$0xf] %vm1358, %v1292
  %1422 = vst.msk [vmem:[%s3 + $0xfc] sm:$0xf] %vm1358, %v1293
  // Predicated region
  $region14: #{forward.26} parent=0 // pred_check
    _
  $region15: #{forward.26} parent=0 // pred_check_branch
    %1424 = sbr.rel (0) target = $region17
  $region16: #{forward.26} parent=0 // pred_region
    _
  $region17: #{forward.26} parent=0 // pred_fallthru
    _
  // Predicated region
  $region18: #{forward.26} parent=0 // pred_check
    _
  $region19: #{forward.26} parent=0 // pred_check_branch
    %1426 = sbr.rel (0) target = $region21
  $region20: #{forward.26} parent=0 // pred_region
    _
  $region21: #{forward.26} parent=0 // pred_fallthru
    _

// kernel: forward.27
$region0: #{forward.27}
  #allocation0 [shape = 'u32[]', space=smem, size = 0x4, offset = 0x4, fixed_abs, tag = 'smem constant byte address 0x4 - core index']
  #allocation1 [shape = 'u32[144,128]{1,0:T(1,128)}', space=vmem, size = 0x12000, scoped, tag = 'internal scratch']
  %s0 = inlined_call_operand.vmem [shape: bf16[128,144], index: 0, kind: input, shape index: {}]
  %s1 = inlined_call_operand.vmem [shape: bf16[144,32], index: 1, kind: input, shape index: {}]
  %s2 = inlined_call_operand.vmem [shape: f32[1,32], index: 2, kind: input, shape index: {}]
  %s3 = inlined_call_operand.vmem [shape: bf16[128,32], index: 3, kind: output, shape index: {}]
  %s4 = sld [smem:[#allocation0]]
  $region22: #{forward.27} parent=0
    _
  %s6 = ssub.s32 1, %s4
  %s7 = scalar_select 0, %s6, %s4
  // Predicated region
  $region2: #{forward.27} parent=0 // pred_check
    _
  $region3: #{forward.27} parent=0 // pred_check_branch
    %9 = sbr.rel (0) target = $region5
  $region4: #{forward.27} parent=0 // pred_region
    _
  $region5: #{forward.27} parent=0 // pred_fallthru
    _
  // Predicated region
  $region6: #{forward.27} parent=0 // pred_check
    _
  $region7: #{forward.27} parent=0 // pred_check_branch
    %11 = sbr.rel (0) target = $region9
  $region8: #{forward.27} parent=0 // pred_region
    _
  $region9: #{forward.27} parent=0 // pred_fallthru
    _
  // Predicated region
  $region10: #{forward.27} parent=0 // pred_check
    _
  $region11: #{forward.27} parent=0 // pred_check_branch
    %13 = sbr.rel (0) target = $region13
  $region12: #{forward.27} parent=0 // pred_region
    _
  $region13: #{forward.27} parent=0 // pred_fallthru
    _
  %v15 = vld [vmem:[%s0] sm:$0xff]
  %v16 = vld [vmem:[%s0 + $0x8] sm:$0xff]
  %v17 = vld [vmem:[%s0 + $0x10] sm:$0xff]
  %v18 = vld [vmem:[%s0 + $0x18] sm:$0xff]
  %v19 = vld [vmem:[%s0 + $0x20] sm:$0xff]
  %v20 = vld [vmem:[%s0 + $0x28] sm:$0xff]
  %v21 = vld [vmem:[%s0 + $0x30] sm:$0xff]
  %v22 = vld [vmem:[%s0 + $0x38] sm:$0xff]
  %v23 = vld [vmem:[%s0 + $0x40] sm:$0xff]
  %v24 = vld [vmem:[%s0 + $0x48] sm:$0xff]
  %v25 = vld [vmem:[%s0 + $0x50] sm:$0xff]
  %v26 = vld [vmem:[%s0 + $0x58] sm:$0xff]
  %v27 = vld [vmem:[%s0 + $0x60] sm:$0xff]
  %v28 = vld [vmem:[%s0 + $0x68] sm:$0xff]
  %v29 = vld [vmem:[%s0 + $0x70] sm:$0xff]
  %v30 = vld [vmem:[%s0 + $0x78] sm:$0xff]
  %v31 = vld [vmem:[%s1] sm:$0xf]
  %v32 = vld [vmem:[%s1 + $0x4] sm:$0xf]
  %v33 = vld [vmem:[%s1 + $0x8] sm:$0xf]
  %v34 = vld [vmem:[%s1 + $0xc] sm:$0xf]
  %v35 = vld [vmem:[%s1 + $0x10] sm:$0xf]
  %v36 = vld [vmem:[%s1 + $0x14] sm:$0xf]
  %v37 = vld [vmem:[%s1 + $0x18] sm:$0xf]
  %v38 = vld [vmem:[%s1 + $0x1c] sm:$0xf]
  %v39 = vld [vmem:[%s1 + $0x20] sm:$0xf]
  %v40 = vld [vmem:[%s1 + $0x24] sm:$0xf]
  %v41 = vld [vmem:[%s1 + $0x28] sm:$0xf]
  %v42 = vld [vmem:[%s1 + $0x2c] sm:$0xf]
  %v43 = vld [vmem:[%s1 + $0x30] sm:$0xf]
  %v44 = vld [vmem:[%s1 + $0x34] sm:$0xf]
  %v45 = vld [vmem:[%s1 + $0x38] sm:$0xf]
  %v46 = vld [vmem:[%s1 + $0x3c] sm:$0xf]
  %v47 = vld [vmem:[%s1 + $0x40] sm:$0xf]
  %v48 = vld [vmem:[%s1 + $0x44] sm:$0xf]
  %v49 = vld [vmem:[%s2] sm:$0x1]
  %v51 = vlaneseq
  %v52 = vshrl.u32 %v51, 7
  %v53 = vsub.s32 0, %v52
  %v54 = vrot.slane %v49, %v53
  %v72 = vunpack.c.l.b16 %v15
  %v73 = vunpack.c.h.b16 %v15
  %v74 = vunpack.c.l.b16 %v16
  %v75 = vunpack.c.h.b16 %v16
  %v76 = vunpack.c.l.b16 %v17
  %v77 = vunpack.c.h.b16 %v17
  %v78 = vunpack.c.l.b16 %v18
  %v79 = vunpack.c.h.b16 %v18
  %v80 = vunpack.c.l.b16 %v19
  %v81 = vunpack.c.h.b16 %v19
  %v82 = vunpack.c.l.b16 %v20
  %v83 = vunpack.c.h.b16 %v20
  %v84 = vunpack.c.l.b16 %v21
  %v85 = vunpack.c.h.b16 %v21
  %v86 = vunpack.c.l.b16 %v22
  %v87 = vunpack.c.h.b16 %v22
  %v88 = vunpack.c.l.b16 %v23
  %v89 = vunpack.c.h.b16 %v23
  %v90 = vunpack.c.l.b16 %v24
  %v91 = vunpack.c.h.b16 %v24
  %v92 = vunpack.c.l.b16 %v25
  %v93 = vunpack.c.h.b16 %v25
  %v94 = vunpack.c.l.b16 %v26
  %v95 = vunpack.c.h.b16 %v26
  %v96 = vunpack.c.l.b16 %v27
  %v97 = vunpack.c.h.b16 %v27
  %v98 = vunpack.c.l.b16 %v28
  %v99 = vunpack.c.h.b16 %v28
  %v100 = vunpack.c.l.b16 %v29
  %v101 = vunpack.c.h.b16 %v29
  %v102 = vunpack.c.l.b16 %v30
  %v103 = vunpack.c.h.b16 %v30
  %v104 = vpack.c.b16 %v74, %v72
  %v105 = vpack.c.b16 %v75, %v73
  %v106 = vpack.c.b16 %v78, %v76
  %v107 = vpack.c.b16 %v79, %v77
  %v108 = vpack.c.b16 %v82, %v80
  %v109 = vpack.c.b16 %v83, %v81
  %v110 = vpack.c.b16 %v86, %v84
  %v111 = vpack.c.b16 %v87, %v85
  %v112 = vpack.c.b16 %v90, %v88
  %v113 = vpack.c.b16 %v91, %v89
  %v114 = vpack.c.b16 %v94, %v92
  %v115 = vpack.c.b16 %v95, %v93
  %v116 = vpack.c.b16 %v98, %v96
  %v117 = vpack.c.b16 %v99, %v97
  %v118 = vpack.c.b16 %v102, %v100
  %v119 = vpack.c.b16 %v103, %v101
  %v146 = vunpack.c.l.b16 %v31
  %v147 = vunpack.c.l.b16 %v32
  %v148 = vunpack.c.l.b16 %v33
  %v149 = vunpack.c.l.b16 %v34
  %v150 = vunpack.c.l.b16 %v35
  %v151 = vunpack.c.l.b16 %v36
  %v152 = vunpack.c.l.b16 %v37
  %v153 = vunpack.c.l.b16 %v38
  %v154 = vunpack.c.l.b16 %v39
  %v155 = vunpack.c.l.b16 %v40
  %v156 = vunpack.c.l.b16 %v41
  %v157 = vunpack.c.l.b16 %v42
  %v158 = vunpack.c.l.b16 %v43
  %v159 = vunpack.c.l.b16 %v44
  %v160 = vunpack.c.l.b16 %v45
  %v161 = vunpack.c.l.b16 %v46
  %v162 = vunpack.c.l.b16 %v47
  %v163 = vunpack.c.l.b16 %v48
  %v164 = vpack.c.b16 %v147, %v146
  %v165 = vpack.c.b16 %v149, %v148
  %v166 = vpack.c.b16 %v151, %v150
  %v167 = vpack.c.b16 %v153, %v152
  %v168 = vpack.c.b16 %v155, %v154
  %v169 = vpack.c.b16 %v157, %v156
  %v170 = vpack.c.b16 %v159, %v158
  %v171 = vpack.c.b16 %v161, %v160
  %v172 = vpack.c.b16 %v163, %v162
  %vm182 = vcmask 130048
  %v184 = vsel %vm182, %v105, 0
  %v187 = vsel %vm182, %v107, 0
  %v190 = vsel %vm182, %v109, 0
  %v193 = vsel %vm182, %v111, 0
  %v196 = vsel %vm182, %v113, 0
  %v199 = vsel %vm182, %v115, 0
  %v202 = vsel %vm182, %v117, 0
  %v205 = vsel %vm182, %v119, 0
  %207 = vmatprep.subr.bf16.mxu0 0
  %208 = vmatpush1.bf16.msra.mxu0 %v171
  %209 = vmatprep.subr.bf16.mxu0 0
  %210 = vmatpush1.bf16.msra.mxu0 %v170
  %211 = vmatprep.subr.bf16.mxu0 0
  %212 = vmatpush1.bf16.msra.mxu0 %v169
  %213 = vmatprep.subr.bf16.mxu0 0
  %214 = vmatpush1.bf16.msra.mxu0 %v168
  %215 = vmatprep.subr.bf16.mxu0 0
  %216 = vmatpush1.bf16.msra.mxu0 %v167
  %217 = vmatprep.subr.bf16.mxu0 0
  %218 = vmatpush1.bf16.msra.mxu0 %v166
  %219 = vmatprep.subr.bf16.mxu0 0
  %220 = vmatpush1.bf16.msra.mxu0 %v165
  %221 = vmatprep.subr.bf16.mxu0 0
  %222 = vmatpush1.bf16.msra.mxu0 %v164
  %223 = vmatprep.subr.bf16.mxu0 0
  %224 = vmatpush2.bf16.msra.mxu0 0
  %225 = vmatprep.subr.bf16.mxu0 0
  %226 = vmatpush2.bf16.msra.mxu0 0
  %227 = vmatprep.subr.bf16.mxu0 0
  %228 = vmatpush2.bf16.msra.mxu0 0
  %229 = vmatprep.subr.bf16.mxu0 0
  %230 = vmatpush2.bf16.msra.mxu0 0
  %231 = vmatprep.subr.bf16.mxu0 0
  %232 = vmatpush2.bf16.msra.mxu0 0
  %233 = vmatprep.subr.bf16.mxu0 0
  %234 = vmatpush2.bf16.msra.mxu0 0
  %235 = vmatprep.subr.bf16.mxu0 0
  %236 = vmatpush2.bf16.msra.mxu0 0
  %237 = vmatprep.subr.bf16.mxu0 0
  %238 = vmatpush2.bf16.msra.mxu0 %v172
  %239 = vmatprep.mubr.bf16.mxu0 %v184
  %240 = vmatmul.mubr.bf16.gmra.mxu0 %v104
  %v241 = vpop.f32.mrf.mxu0
  %v242 = vadd.f32 %v54, %v241
  %v243 = vpop.f32.mrf.mxu0
  %v244 = vpop.f32.mrf.mxu0
  %v245 = vadd.f32 %v54, %v244
  %v246 = vpop.f32.mrf.mxu0
  %247 = vmatprep.mubr.bf16.mxu0 %v187
  %248 = vmatmul.mubr.bf16.gmra.mxu0 %v106
  %v249 = vpop.f32.mrf.mxu0
  %v250 = vadd.f32 %v54, %v249
  %v251 = vpop.f32.mrf.mxu0
  %v252 = vpop.f32.mrf.mxu0
  %v253 = vadd.f32 %v54, %v252
  %v254 = vpop.f32.mrf.mxu0
  %255 = vmatprep.mubr.bf16.mxu0 %v190
  %256 = vmatmul.mubr.bf16.gmra.mxu0 %v108
  %v257 = vpop.f32.mrf.mxu0
  %v258 = vadd.f32 %v54, %v257
  %v259 = vpop.f32.mrf.mxu0
  %v260 = vpop.f32.mrf.mxu0
  %v261 = vadd.f32 %v54, %v260
  %v262 = vpop.f32.mrf.mxu0
  %263 = vmatprep.mubr.bf16.mxu0 %v193
  %264 = vmatmul.mubr.bf16.gmra.mxu0 %v110
  %v265 = vpop.f32.mrf.mxu0
  %v266 = vadd.f32 %v54, %v265
  %v267 = vpop.f32.mrf.mxu0
  %v268 = vpop.f32.mrf.mxu0
  %v269 = vadd.f32 %v54, %v268
  %v270 = vpop.f32.mrf.mxu0
  %271 = vmatprep.mubr.bf16.mxu0 %v196
  %272 = vmatmul.mubr.bf16.gmra.mxu0 %v112
  %v273 = vpop.f32.mrf.mxu0
  %v274 = vadd.f32 %v54, %v273
  %v275 = vpop.f32.mrf.mxu0
  %v276 = vpop.f32.mrf.mxu0
  %v277 = vadd.f32 %v54, %v276
  %v278 = vpop.f32.mrf.mxu0
  %279 = vmatprep.mubr.bf16.mxu0 %v199
  %280 = vmatmul.mubr.bf16.gmra.mxu0 %v114
  %v281 = vpop.f32.mrf.mxu0
  %v282 = vadd.f32 %v54, %v281
  %v283 = vpop.f32.mrf.mxu0
  %v284 = vpop.f32.mrf.mxu0
  %v285 = vadd.f32 %v54, %v284
  %v286 = vpop.f32.mrf.mxu0
  %287 = vmatprep.mubr.bf16.mxu0 %v202
  %288 = vmatmul.mubr.bf16.gmra.mxu0 %v116
  %v289 = vpop.f32.mrf.mxu0
  %v290 = vadd.f32 %v54, %v289
  %v291 = vpop.f32.mrf.mxu0
  %v292 = vpop.f32.mrf.mxu0
  %v293 = vadd.f32 %v54, %v292
  %v294 = vpop.f32.mrf.mxu0
  %295 = vmatprep.mubr.bf16.mxu0 %v205
  %296 = vmatmul.mubr.bf16.gmra.mxu0 %v118
  %v297 = vpop.f32.mrf.mxu0
  %v298 = vadd.f32 %v54, %v297
  %v299 = vpop.f32.mrf.mxu0
  %v300 = vpop.f32.mrf.mxu0
  %v301 = vadd.f32 %v54, %v300
  %v302 = vpop.f32.mrf.mxu0
  %303 = vdwg.mxu0
  %v304 = vxor.u32 %v242, 2147483648
  %v305 = vxor.u32 %v245, 2147483648
  %v306 = vxor.u32 %v250, 2147483648
  %v307 = vxor.u32 %v253, 2147483648
  %v308 = vxor.u32 %v258, 2147483648
  %v309 = vxor.u32 %v261, 2147483648
  %v310 = vxor.u32 %v266, 2147483648
  %v311 = vxor.u32 %v269, 2147483648
  %v312 = vxor.u32 %v274, 2147483648
  %v313 = vxor.u32 %v277, 2147483648
  %v314 = vxor.u32 %v282, 2147483648
  %v315 = vxor.u32 %v285, 2147483648
  %v316 = vxor.u32 %v290, 2147483648
  %v317 = vxor.u32 %v293, 2147483648
  %v318 = vxor.u32 %v298, 2147483648
  %v319 = vxor.u32 %v301, 2147483648
  %v320 = vmul.f32 %v304, 1.442695
  %v321 = vpow.pop %v320
  %v322 = vmul.f32 %v305, 1.442695
  %v323 = vpow.pop %v322
  %v324 = vmul.f32 %v306, 1.442695
  %v325 = vpow.pop %v324
  %v326 = vmul.f32 %v307, 1.442695
  %v327 = vpow.pop %v326
  %v328 = vmul.f32 %v308, 1.442695
  %v329 = vpow.pop %v328
  %v330 = vmul.f32 %v309, 1.442695
  %v331 = vpow.pop %v330
  %v332 = vmul.f32 %v310, 1.442695
  %v333 = vpow.pop %v332
  %v334 = vmul.f32 %v311, 1.442695
  %v335 = vpow.pop %v334
  %v336 = vmul.f32 %v312, 1.442695
  %v337 = vpow.pop %v336
  %v338 = vmul.f32 %v313, 1.442695
  %v339 = vpow.pop %v338
  %v340 = vmul.f32 %v314, 1.442695
  %v341 = vpow.pop %v340
  %v342 = vmul.f32 %v315, 1.442695
  %v343 = vpow.pop %v342
  %v344 = vmul.f32 %v316, 1.442695
  %v345 = vpow.pop %v344
  %v346 = vmul.f32 %v317, 1.442695
  %v347 = vpow.pop %v346
  %v348 = vmul.f32 %v318, 1.442695
  %v349 = vpow.pop %v348
  %v350 = vmul.f32 %v319, 1.442695
  %v351 = vpow.pop %v350
  %v352 = vadd.f32 %v321, 1.0
  %v353 = vadd.f32 %v323, 1.0
  %v354 = vadd.f32 %v325, 1.0
  %v355 = vadd.f32 %v327, 1.0
  %v356 = vadd.f32 %v329, 1.0
  %v357 = vadd.f32 %v331, 1.0
  %v358 = vadd.f32 %v333, 1.0
  %v359 = vadd.f32 %v335, 1.0
  %v360 = vadd.f32 %v337, 1.0
  %v361 = vadd.f32 %v339, 1.0
  %v362 = vadd.f32 %v341, 1.0
  %v363 = vadd.f32 %v343, 1.0
  %v364 = vadd.f32 %v345, 1.0
  %v365 = vadd.f32 %v347, 1.0
  %v366 = vadd.f32 %v349, 1.0
  %v367 = vadd.f32 %v351, 1.0
  %v368 = vrcp.pop %v352
  %v369 = vmul.f32 1.0, %v368
  %v370 = vrcp.pop %v353
  %v371 = vmul.f32 1.0, %v370
  %v372 = vrcp.pop %v354
  %v373 = vmul.f32 1.0, %v372
  %v374 = vrcp.pop %v355
  %v375 = vmul.f32 1.0, %v374
  %v376 = vrcp.pop %v356
  %v377 = vmul.f32 1.0, %v376
  %v378 = vrcp.pop %v357
  %v379 = vmul.f32 1.0, %v378
  %v380 = vrcp.pop %v358
  %v381 = vmul.f32 1.0, %v380
  %v382 = vrcp.pop %v359
  %v383 = vmul.f32 1.0, %v382
  %v384 = vrcp.pop %v360
  %v385 = vmul.f32 1.0, %v384
  %v386 = vrcp.pop %v361
  %v387 = vmul.f32 1.0, %v386
  %v388 = vrcp.pop %v362
  %v389 = vmul.f32 1.0, %v388
  %v390 = vrcp.pop %v363
  %v391 = vmul.f32 1.0, %v390
  %v392 = vrcp.pop %v364
  %v393 = vmul.f32 1.0, %v392
  %v394 = vrcp.pop %v365
  %v395 = vmul.f32 1.0, %v394
  %v396 = vrcp.pop %v366
  %v397 = vmul.f32 1.0, %v396
  %v398 = vrcp.pop %v367
  %v399 = vmul.f32 1.0, %v398
  %v400 = vmul.f32 %v242, %v369
  %v401 = vmul.f32 %v245, %v371
  %v402 = vmul.f32 %v250, %v373
  %v403 = vmul.f32 %v253, %v375
  %v404 = vmul.f32 %v258, %v377
  %v405 = vmul.f32 %v261, %v379
  %v406 = vmul.f32 %v266, %v381
  %v407 = vmul.f32 %v269, %v383
  %v408 = vmul.f32 %v274, %v385
  %v409 = vmul.f32 %v277, %v387
  %v410 = vmul.f32 %v282, %v389
  %v411 = vmul.f32 %v285, %v391
  %v412 = vmul.f32 %v290, %v393
  %v413 = vmul.f32 %v293, %v395
  %v414 = vmul.f32 %v298, %v397
  %v415 = vmul.f32 %v301, %v399
  %v416 = vpack.c.bf16 %v401, %v400
  %v417 = vpack.c.bf16 %v403, %v402
  %v418 = vpack.c.bf16 %v405, %v404
  %v419 = vpack.c.bf16 %v407, %v406
  %v420 = vpack.c.bf16 %v409, %v408
  %v421 = vpack.c.bf16 %v411, %v410
  %v422 = vpack.c.bf16 %v413, %v412
  %v423 = vpack.c.bf16 %v415, %v414
  %v432 = vunpack.c.l.b16 %v416
  %v433 = vunpack.c.h.b16 %v416
  %v434 = vunpack.c.l.b16 %v417
  %v435 = vunpack.c.h.b16 %v417
  %v436 = vunpack.c.l.b16 %v418
  %v437 = vunpack.c.h.b16 %v418
  %v438 = vunpack.c.l.b16 %v419
  %v439 = vunpack.c.h.b16 %v419
  %v440 = vunpack.c.l.b16 %v420
  %v441 = vunpack.c.h.b16 %v420
  %v442 = vunpack.c.l.b16 %v421
  %v443 = vunpack.c.h.b16 %v421
  %v444 = vunpack.c.l.b16 %v422
  %v445 = vunpack.c.h.b16 %v422
  %v446 = vunpack.c.l.b16 %v423
  %v447 = vunpack.c.h.b16 %v423
  %v448 = vpack.c.b16 %v432, %v432
  %v449 = vpack.c.b16 %v433, %v433
  %v450 = vpack.c.b16 %v434, %v434
  %v451 = vpack.c.b16 %v435, %v435
  %v452 = vpack.c.b16 %v436, %v436
  %v453 = vpack.c.b16 %v437, %v437
  %v454 = vpack.c.b16 %v438, %v438
  %v455 = vpack.c.b16 %v439, %v439
  %v456 = vpack.c.b16 %v440, %v440
  %v457 = vpack.c.b16 %v441, %v441
  %v458 = vpack.c.b16 %v442, %v442
  %v459 = vpack.c.b16 %v443, %v443
  %v460 = vpack.c.b16 %v444, %v444
  %v461 = vpack.c.b16 %v445, %v445
  %v462 = vpack.c.b16 %v446, %v446
  %v463 = vpack.c.b16 %v447, %v447
  %vm480 = vcmask 257024
  %481 = vst.msk [vmem:[%s3] sm:$0xf] %vm480, %v448
  %482 = vst.msk [vmem:[%s3 + $0x4] sm:$0xf] %vm480, %v449
  %483 = vst.msk [vmem:[%s3 + $0x8] sm:$0xf] %vm480, %v450
  %484 = vst.msk [vmem:[%s3 + $0xc] sm:$0xf] %vm480, %v451
  %485 = vst.msk [vmem:[%s3 + $0x10] sm:$0xf] %vm480, %v452
  %486 = vst.msk [vmem:[%s3 + $0x14] sm:$0xf] %vm480, %v453
  %487 = vst.msk [vmem:[%s3 + $0x18] sm:$0xf] %vm480, %v454
  %488 = vst.msk [vmem:[%s3 + $0x1c] sm:$0xf] %vm480, %v455
  %489 = vst.msk [vmem:[%s3 + $0x20] sm:$0xf] %vm480, %v456
  %490 = vst.msk [vmem:[%s3 + $0x24] sm:$0xf] %vm480, %v457
  %491 = vst.msk [vmem:[%s3 + $0x28] sm:$0xf] %vm480, %v458
  %492 = vst.msk [vmem:[%s3 + $0x2c] sm:$0xf] %vm480, %v459
  %493 = vst.msk [vmem:[%s3 + $0x30] sm:$0xf] %vm480, %v460
  %494 = vst.msk [vmem:[%s3 + $0x34] sm:$0xf] %vm480, %v461
  %495 = vst.msk [vmem:[%s3 + $0x38] sm:$0xf] %vm480, %v462
  %496 = vst.msk [vmem:[%s3 + $0x3c] sm:$0xf] %vm480, %v463
  // Predicated region
  $region14: #{forward.27} parent=0 // pred_check
    _
  $region15: #{forward.27} parent=0 // pred_check_branch
    %498 = sbr.rel (0) target = $region17
  $region16: #{forward.27} parent=0 // pred_region
    _
  $region17: #{forward.27} parent=0 // pred_fallthru
    _
  // Predicated region
  $region18: #{forward.27} parent=0 // pred_check
    _
  $region19: #{forward.27} parent=0 // pred_check_branch
    %500 = sbr.rel (0) target = $region21
  $region20: #{forward.27} parent=0 // pred_region
    _
  $region21: #{forward.27} parent=0 // pred_fallthru
    _

// kernel: forward.28
$region0: #{forward.28}
  #allocation0 [shape = 'u32[]', space=smem, size = 0x4, offset = 0x4, fixed_abs, tag = 'smem constant byte address 0x4 - core index']
  #allocation1 [shape = 'u32[144,128]{1,0:T(1,128)}', space=vmem, size = 0x12000, scoped, tag = 'internal scratch']
  %s0 = inlined_call_operand.vmem [shape: bf16[128,32], index: 0, kind: input, shape index: {}]
  %s1 = inlined_call_operand.vmem [shape: bf16[32,32], index: 1, kind: input, shape index: {}]
  %s2 = inlined_call_operand.vmem [shape: f32[1,32], index: 2, kind: input, shape index: {}]
  %s3 = inlined_call_operand.vmem [shape: bf16[128,32], index: 3, kind: output, shape index: {}]
  %s4 = sld [smem:[#allocation0]]
  $region22: #{forward.28} parent=0
    _
  %s6 = ssub.s32 1, %s4
  %s7 = scalar_select 0, %s6, %s4
  // Predicated region
  $region2: #{forward.28} parent=0 // pred_check
    _
  $region3: #{forward.28} parent=0 // pred_check_branch
    %9 = sbr.rel (0) target = $region5
  $region4: #{forward.28} parent=0 // pred_region
    _
  $region5: #{forward.28} parent=0 // pred_fallthru
    _
  // Predicated region
  $region6: #{forward.28} parent=0 // pred_check
    _
  $region7: #{forward.28} parent=0 // pred_check_branch
    %11 = sbr.rel (0) target = $region9
  $region8: #{forward.28} parent=0 // pred_region
    _
  $region9: #{forward.28} parent=0 // pred_fallthru
    _
  // Predicated region
  $region10: #{forward.28} parent=0 // pred_check
    _
  $region11: #{forward.28} parent=0 // pred_check_branch
    %13 = sbr.rel (0) target = $region13
  $region12: #{forward.28} parent=0 // pred_region
    _
  $region13: #{forward.28} parent=0 // pred_fallthru
    _
  %v15 = vld [vmem:[%s0] sm:$0xf]
  %v16 = vld [vmem:[%s0 + $0x4] sm:$0xf]
  %v17 = vld [vmem:[%s0 + $0x8] sm:$0xf]
  %v18 = vld [vmem:[%s0 + $0xc] sm:$0xf]
  %v19 = vld [vmem:[%s0 + $0x10] sm:$0xf]
  %v20 = vld [vmem:[%s0 + $0x14] sm:$0xf]
  %v21 = vld [vmem:[%s0 + $0x18] sm:$0xf]
  %v22 = vld [vmem:[%s0 + $0x1c] sm:$0xf]
  %v23 = vld [vmem:[%s0 + $0x20] sm:$0xf]
  %v24 = vld [vmem:[%s0 + $0x24] sm:$0xf]
  %v25 = vld [vmem:[%s0 + $0x28] sm:$0xf]
  %v26 = vld [vmem:[%s0 + $0x2c] sm:$0xf]
  %v27 = vld [vmem:[%s0 + $0x30] sm:$0xf]
  %v28 = vld [vmem:[%s0 + $0x34] sm:$0xf]
  %v29 = vld [vmem:[%s0 + $0x38] sm:$0xf]
  %v30 = vld [vmem:[%s0 + $0x3c] sm:$0xf]
  %v31 = vld [vmem:[%s1] sm:$0xf]
  %v32 = vld [vmem:[%s1 + $0x4] sm:$0xf]
  %v33 = vld [vmem:[%s1 + $0x8] sm:$0xf]
  %v34 = vld [vmem:[%s1 + $0xc] sm:$0xf]
  %v35 = vld [vmem:[%s2] sm:$0x1]
  %v37 = vlaneseq
  %v38 = vshrl.u32 %v37, 7
  %v39 = vsub.s32 0, %v38
  %v40 = vrot.slane %v35, %v39
  %v58 = vunpack.c.l.b16 %v15
  %v59 = vunpack.c.l.b16 %v16
  %v60 = vunpack.c.l.b16 %v17
  %v61 = vunpack.c.l.b16 %v18
  %v62 = vunpack.c.l.b16 %v19
  %v63 = vunpack.c.l.b16 %v20
  %v64 = vunpack.c.l.b16 %v21
  %v65 = vunpack.c.l.b16 %v22
  %v66 = vunpack.c.l.b16 %v23
  %v67 = vunpack.c.l.b16 %v24
  %v68 = vunpack.c.l.b16 %v25
  %v69 = vunpack.c.l.b16 %v26
  %v70 = vunpack.c.l.b16 %v27
  %v71 = vunpack.c.l.b16 %v28
  %v72 = vunpack.c.l.b16 %v29
  %v73 = vunpack.c.l.b16 %v30
  %v74 = vpack.c.b16 %v59, %v58
  %v75 = vpack.c.b16 %v61, %v60
  %v76 = vpack.c.b16 %v63, %v62
  %v77 = vpack.c.b16 %v65, %v64
  %v78 = vpack.c.b16 %v67, %v66
  %v79 = vpack.c.b16 %v69, %v68
  %v80 = vpack.c.b16 %v71, %v70
  %v81 = vpack.c.b16 %v73, %v72
  %v86 = vunpack.c.l.b16 %v31
  %v87 = vunpack.c.l.b16 %v32
  %v88 = vunpack.c.l.b16 %v33
  %v89 = vunpack.c.l.b16 %v34
  %v90 = vpack.c.b16 %v87, %v86
  %v91 = vpack.c.b16 %v89, %v88
  %vm94 = vcmask 261120
  %v96 = vsel %vm94, %v74, 0
  %v99 = vsel %vm94, %v75, 0
  %v102 = vsel %vm94, %v76, 0
  %v105 = vsel %vm94, %v77, 0
  %v108 = vsel %vm94, %v78, 0
  %v111 = vsel %vm94, %v79, 0
  %v114 = vsel %vm94, %v80, 0
  %v117 = vsel %vm94, %v81, 0
  %119 = vmatprep.subr.bf16.mxu0 0
  %120 = vmatpush1.bf16.msra.mxu0 0
  %121 = vmatprep.subr.bf16.mxu0 0
  %122 = vmatpush1.bf16.msra.mxu0 0
  %123 = vmatprep.subr.bf16.mxu0 0
  %124 = vmatpush1.bf16.msra.mxu0 0
  %125 = vmatprep.subr.bf16.mxu0 0
  %126 = vmatpush1.bf16.msra.mxu0 0
  %127 = vmatprep.subr.bf16.mxu0 0
  %128 = vmatpush1.bf16.msra.mxu0 0
  %129 = vmatprep.subr.bf16.mxu0 0
  %130 = vmatpush1.bf16.msra.mxu0 0
  %131 = vmatprep.subr.bf16.mxu0 0
  %132 = vmatpush1.bf16.msra.mxu0 %v91
  %133 = vmatprep.subr.bf16.mxu0 0
  %134 = vmatpush1.bf16.msra.mxu0 %v90
  %135 = vmatprep.subr.bf16.mxu0 0
  %136 = vmatpush2.bf16.msra.mxu0 0
  %137 = vmatprep.subr.bf16.mxu0 0
  %138 = vmatpush2.bf16.msra.mxu0 0
  %139 = vmatprep.subr.bf16.mxu0 0
  %140 = vmatpush2.bf16.msra.mxu0 0
  %141 = vmatprep.subr.bf16.mxu0 0
  %142 = vmatpush2.bf16.msra.mxu0 0
  %143 = vmatprep.subr.bf16.mxu0 0
  %144 = vmatpush2.bf16.msra.mxu0 0
  %145 = vmatprep.subr.bf16.mxu0 0
  %146 = vmatpush2.bf16.msra.mxu0 0
  %147 = vmatprep.subr.bf16.mxu0 0
  %148 = vmatpush2.bf16.msra.mxu0 0
  %149 = vmatprep.subr.bf16.mxu0 0
  %150 = vmatpush2.bf16.msra.mxu0 0
  %151 = vmatprep.mubr.bf16.mxu0 0
  %152 = vmatmul.mubr.bf16.gmra.mxu0 %v96
  %v153 = vpop.f32.mrf.mxu0
  %v154 = vadd.f32 %v40, %v153
  %v155 = vpop.f32.mrf.mxu0
  %v156 = vpop.f32.mrf.mxu0
  %v157 = vadd.f32 %v40, %v156
  %v158 = vpop.f32.mrf.mxu0
  %159 = vmatprep.mubr.bf16.mxu0 0
  %160 = vmatmul.mubr.bf16.gmra.mxu0 %v99
  %v161 = vpop.f32.mrf.mxu0
  %v162 = vadd.f32 %v40, %v161
  %v163 = vpop.f32.mrf.mxu0
  %v164 = vpop.f32.mrf.mxu0
  %v165 = vadd.f32 %v40, %v164
  %v166 = vpop.f32.mrf.mxu0
  %167 = vmatprep.mubr.bf16.mxu0 0
  %168 = vmatmul.mubr.bf16.gmra.mxu0 %v102
  %v169 = vpop.f32.mrf.mxu0
  %v170 = vadd.f32 %v40, %v169
  %v171 = vpop.f32.mrf.mxu0
  %v172 = vpop.f32.mrf.mxu0
  %v173 = vadd.f32 %v40, %v172
  %v174 = vpop.f32.mrf.mxu0
  %175 = vmatprep.mubr.bf16.mxu0 0
  %176 = vmatmul.mubr.bf16.gmra.mxu0 %v105
  %v177 = vpop.f32.mrf.mxu0
  %v178 = vadd.f32 %v40, %v177
  %v179 = vpop.f32.mrf.mxu0
  %v180 = vpop.f32.mrf.mxu0
  %v181 = vadd.f32 %v40, %v180
  %v182 = vpop.f32.mrf.mxu0
  %183 = vmatprep.mubr.bf16.mxu0 0
  %184 = vmatmul.mubr.bf16.gmra.mxu0 %v108
  %v185 = vpop.f32.mrf.mxu0
  %v186 = vadd.f32 %v40, %v185
  %v187 = vpop.f32.mrf.mxu0
  %v188 = vpop.f32.mrf.mxu0
  %v189 = vadd.f32 %v40, %v188
  %v190 = vpop.f32.mrf.mxu0
  %191 = vmatprep.mubr.bf16.mxu0 0
  %192 = vmatmul.mubr.bf16.gmra.mxu0 %v111
  %v193 = vpop.f32.mrf.mxu0
  %v194 = vadd.f32 %v40, %v193
  %v195 = vpop.f32.mrf.mxu0
  %v196 = vpop.f32.mrf.mxu0
  %v197 = vadd.f32 %v40, %v196
  %v198 = vpop.f32.mrf.mxu0
  %199 = vmatprep.mubr.bf16.mxu0 0
  %200 = vmatmul.mubr.bf16.gmra.mxu0 %v114
  %v201 = vpop.f32.mrf.mxu0
  %v202 = vadd.f32 %v40, %v201
  %v203 = vpop.f32.mrf.mxu0
  %v204 = vpop.f32.mrf.mxu0
  %v205 = vadd.f32 %v40, %v204
  %v206 = vpop.f32.mrf.mxu0
  %207 = vmatprep.mubr.bf16.mxu0 0
  %208 = vmatmul.mubr.bf16.gmra.mxu0 %v117
  %v209 = vpop.f32.mrf.mxu0
  %v210 = vadd.f32 %v40, %v209
  %v211 = vpop.f32.mrf.mxu0
  %v212 = vpop.f32.mrf.mxu0
  %v213 = vadd.f32 %v40, %v212
  %v214 = vpop.f32.mrf.mxu0
  %215 = vdwg.mxu0
  %v216 = vxor.u32 %v154, 2147483648
  %v217 = vxor.u32 %v157, 2147483648
  %v218 = vxor.u32 %v162, 2147483648
  %v219 = vxor.u32 %v165, 2147483648
  %v220 = vxor.u32 %v170, 2147483648
  %v221 = vxor.u32 %v173, 2147483648
  %v222 = vxor.u32 %v178, 2147483648
  %v223 = vxor.u32 %v181, 2147483648
  %v224 = vxor.u32 %v186, 2147483648
  %v225 = vxor.u32 %v189, 2147483648
  %v226 = vxor.u32 %v194, 2147483648
  %v227 = vxor.u32 %v197, 2147483648
  %v228 = vxor.u32 %v202, 2147483648
  %v229 = vxor.u32 %v205, 2147483648
  %v230 = vxor.u32 %v210, 2147483648
  %v231 = vxor.u32 %v213, 2147483648
  %v232 = vmul.f32 %v216, 1.442695
  %v233 = vpow.pop %v232
  %v234 = vmul.f32 %v217, 1.442695
  %v235 = vpow.pop %v234
  %v236 = vmul.f32 %v218, 1.442695
  %v237 = vpow.pop %v236
  %v238 = vmul.f32 %v219, 1.442695
  %v239 = vpow.pop %v238
  %v240 = vmul.f32 %v220, 1.442695
  %v241 = vpow.pop %v240
  %v242 = vmul.f32 %v221, 1.442695
  %v243 = vpow.pop %v242
  %v244 = vmul.f32 %v222, 1.442695
  %v245 = vpow.pop %v244
  %v246 = vmul.f32 %v223, 1.442695
  %v247 = vpow.pop %v246
  %v248 = vmul.f32 %v224, 1.442695
  %v249 = vpow.pop %v248
  %v250 = vmul.f32 %v225, 1.442695
  %v251 = vpow.pop %v250
  %v252 = vmul.f32 %v226, 1.442695
  %v253 = vpow.pop %v252
  %v254 = vmul.f32 %v227, 1.442695
  %v255 = vpow.pop %v254
  %v256 = vmul.f32 %v228, 1.442695
  %v257 = vpow.pop %v256
  %v258 = vmul.f32 %v229, 1.442695
  %v259 = vpow.pop %v258
  %v260 = vmul.f32 %v230, 1.442695
  %v261 = vpow.pop %v260
  %v262 = vmul.f32 %v231, 1.442695
  %v263 = vpow.pop %v262
  %v264 = vadd.f32 %v233, 1.0
  %v265 = vadd.f32 %v235, 1.0
  %v266 = vadd.f32 %v237, 1.0
  %v267 = vadd.f32 %v239, 1.0
  %v268 = vadd.f32 %v241, 1.0
  %v269 = vadd.f32 %v243, 1.0
  %v270 = vadd.f32 %v245, 1.0
  %v271 = vadd.f32 %v247, 1.0
  %v272 = vadd.f32 %v249, 1.0
  %v273 = vadd.f32 %v251, 1.0
  %v274 = vadd.f32 %v253, 1.0
  %v275 = vadd.f32 %v255, 1.0
  %v276 = vadd.f32 %v257, 1.0
  %v277 = vadd.f32 %v259, 1.0
  %v278 = vadd.f32 %v261, 1.0
  %v279 = vadd.f32 %v263, 1.0
  %v280 = vrcp.pop %v264
  %v281 = vmul.f32 1.0, %v280
  %v282 = vrcp.pop %v265
  %v283 = vmul.f32 1.0, %v282
  %v284 = vrcp.pop %v266
  %v285 = vmul.f32 1.0, %v284
  %v286 = vrcp.pop %v267
  %v287 = vmul.f32 1.0, %v286
  %v288 = vrcp.pop %v268
  %v289 = vmul.f32 1.0, %v288
  %v290 = vrcp.pop %v269
  %v291 = vmul.f32 1.0, %v290
  %v292 = vrcp.pop %v270
  %v293 = vmul.f32 1.0, %v292
  %v294 = vrcp.pop %v271
  %v295 = vmul.f32 1.0, %v294
  %v296 = vrcp.pop %v272
  %v297 = vmul.f32 1.0, %v296
  %v298 = vrcp.pop %v273
  %v299 = vmul.f32 1.0, %v298
  %v300 = vrcp.pop %v274
  %v301 = vmul.f32 1.0, %v300
  %v302 = vrcp.pop %v275
  %v303 = vmul.f32 1.0, %v302
  %v304 = vrcp.pop %v276
  %v305 = vmul.f32 1.0, %v304
  %v306 = vrcp.pop %v277
  %v307 = vmul.f32 1.0, %v306
  %v308 = vrcp.pop %v278
  %v309 = vmul.f32 1.0, %v308
  %v310 = vrcp.pop %v279
  %v311 = vmul.f32 1.0, %v310
  %v312 = vmul.f32 %v154, %v281
  %v313 = vmul.f32 %v157, %v283
  %v314 = vmul.f32 %v162, %v285
  %v315 = vmul.f32 %v165, %v287
  %v316 = vmul.f32 %v170, %v289
  %v317 = vmul.f32 %v173, %v291
  %v318 = vmul.f32 %v178, %v293
  %v319 = vmul.f32 %v181, %v295
  %v320 = vmul.f32 %v186, %v297
  %v321 = vmul.f32 %v189, %v299
  %v322 = vmul.f32 %v194, %v301
  %v323 = vmul.f32 %v197, %v303
  %v324 = vmul.f32 %v202, %v305
  %v325 = vmul.f32 %v205, %v307
  %v326 = vmul.f32 %v210, %v309
  %v327 = vmul.f32 %v213, %v311
  %v328 = vpack.c.bf16 %v313, %v312
  %v329 = vpack.c.bf16 %v315, %v314
  %v330 = vpack.c.bf16 %v317, %v316
  %v331 = vpack.c.bf16 %v319, %v318
  %v332 = vpack.c.bf16 %v321, %v320
  %v333 = vpack.c.bf16 %v323, %v322
  %v334 = vpack.c.bf16 %v325, %v324
  %v335 = vpack.c.bf16 %v327, %v326
  %v344 = vunpack.c.l.b16 %v328
  %v345 = vunpack.c.h.b16 %v328
  %v346 = vunpack.c.l.b16 %v329
  %v347 = vunpack.c.h.b16 %v329
  %v348 = vunpack.c.l.b16 %v330
  %v349 = vunpack.c.h.b16 %v330
  %v350 = vunpack.c.l.b16 %v331
  %v351 = vunpack.c.h.b16 %v331
  %v352 = vunpack.c.l.b16 %v332
  %v353 = vunpack.c.h.b16 %v332
  %v354 = vunpack.c.l.b16 %v333
  %v355 = vunpack.c.h.b16 %v333
  %v356 = vunpack.c.l.b16 %v334
  %v357 = vunpack.c.h.b16 %v334
  %v358 = vunpack.c.l.b16 %v335
  %v359 = vunpack.c.h.b16 %v335
  %v360 = vpack.c.b16 %v344, %v344
  %v361 = vpack.c.b16 %v345, %v345
  %v362 = vpack.c.b16 %v346, %v346
  %v363 = vpack.c.b16 %v347, %v347
  %v364 = vpack.c.b16 %v348, %v348
  %v365 = vpack.c.b16 %v349, %v349
  %v366 = vpack.c.b16 %v350, %v350
  %v367 = vpack.c.b16 %v351, %v351
  %v368 = vpack.c.b16 %v352, %v352
  %v369 = vpack.c.b16 %v353, %v353
  %v370 = vpack.c.b16 %v354, %v354
  %v371 = vpack.c.b16 %v355, %v355
  %v372 = vpack.c.b16 %v356, %v356
  %v373 = vpack.c.b16 %v357, %v357
  %v374 = vpack.c.b16 %v358, %v358
  %v375 = vpack.c.b16 %v359, %v359
  %vm392 = vcmask 257024
  %393 = vst.msk [vmem:[%s3] sm:$0xf] %vm392, %v360
  %394 = vst.msk [vmem:[%s3 + $0x4] sm:$0xf] %vm392, %v361
  %395 = vst.msk [vmem:[%s3 + $0x8] sm:$0xf] %vm392, %v362
  %396 = vst.msk [vmem:[%s3 + $0xc] sm:$0xf] %vm392, %v363
  %397 = vst.msk [vmem:[%s3 + $0x10] sm:$0xf] %vm392, %v364
  %398 = vst.msk [vmem:[%s3 + $0x14] sm:$0xf] %vm392, %v365
  %399 = vst.msk [vmem:[%s3 + $0x18] sm:$0xf] %vm392, %v366
  %400 = vst.msk [vmem:[%s3 + $0x1c] sm:$0xf] %vm392, %v367
  %401 = vst.msk [vmem:[%s3 + $0x20] sm:$0xf] %vm392, %v368
  %402 = vst.msk [vmem:[%s3 + $0x24] sm:$0xf] %vm392, %v369
  %403 = vst.msk [vmem:[%s3 + $0x28] sm:$0xf] %vm392, %v370
  %404 = vst.msk [vmem:[%s3 + $0x2c] sm:$0xf] %vm392, %v371
  %405 = vst.msk [vmem:[%s3 + $0x30] sm:$0xf] %vm392, %v372
  %406 = vst.msk [vmem:[%s3 + $0x34] sm:$0xf] %vm392, %v373
  %407 = vst.msk [vmem:[%s3 + $0x38] sm:$0xf] %vm392, %v374
  %408 = vst.msk [vmem:[%s3 + $0x3c] sm:$0xf] %vm392, %v375
  // Predicated region
  $region14: #{forward.28} parent=0 // pred_check
    _
  $region15: #{forward.28} parent=0 // pred_check_branch
    %410 = sbr.rel (0) target = $region17
  $region16: #{forward.28} parent=0 // pred_region
    _
  $region17: #{forward.28} parent=0 // pred_fallthru
    _
  // Predicated region
  $region18: #{forward.28} parent=0 // pred_check
    _
  $region19: #{forward.28} parent=0 // pred_check_branch
    %412 = sbr.rel (0) target = $region21
  $region20: #{forward.28} parent=0 // pred_region
    _
  $region21: #{forward.28} parent=0 // pred_fallthru
    _

// kernel: forward.29
$region0: #{forward.29}
  #allocation0 [shape = 'u32[]', space=smem, size = 0x4, offset = 0x4, fixed_abs, tag = 'smem constant byte address 0x4 - core index']
  #allocation1 [shape = 'u32[144,128]{1,0:T(1,128)}', space=vmem, size = 0x12000, scoped, tag = 'internal scratch']
  %s0 = inlined_call_operand.vmem [shape: bf16[128,144], index: 0, kind: input, shape index: {}]
  %s1 = inlined_call_operand.vmem [shape: bf16[144,16], index: 1, kind: input, shape index: {}]
  %s2 = inlined_call_operand.vmem [shape: f32[1,16], index: 2, kind: input, shape index: {}]
  %s3 = inlined_call_operand.vmem [shape: bf16[128,16], index: 3, kind: output, shape index: {}]
  %s4 = sld [smem:[#allocation0]]
  $region22: #{forward.29} parent=0
    _
  %s6 = ssub.s32 1, %s4
  %s7 = scalar_select 0, %s6, %s4
  // Predicated region
  $region2: #{forward.29} parent=0 // pred_check
    _
  $region3: #{forward.29} parent=0 // pred_check_branch
    %9 = sbr.rel (0) target = $region5
  $region4: #{forward.29} parent=0 // pred_region
    _
  $region5: #{forward.29} parent=0 // pred_fallthru
    _
  // Predicated region
  $region6: #{forward.29} parent=0 // pred_check
    _
  $region7: #{forward.29} parent=0 // pred_check_branch
    %11 = sbr.rel (0) target = $region9
  $region8: #{forward.29} parent=0 // pred_region
    _
  $region9: #{forward.29} parent=0 // pred_fallthru
    _
  // Predicated region
  $region10: #{forward.29} parent=0 // pred_check
    _
  $region11: #{forward.29} parent=0 // pred_check_branch
    %13 = sbr.rel (0) target = $region13
  $region12: #{forward.29} parent=0 // pred_region
    _
  $region13: #{forward.29} parent=0 // pred_fallthru
    _
  %v15 = vld [vmem:[%s0] sm:$0xff]
  %v16 = vld [vmem:[%s0 + $0x8] sm:$0xff]
  %v17 = vld [vmem:[%s0 + $0x10] sm:$0xff]
  %v18 = vld [vmem:[%s0 + $0x18] sm:$0xff]
  %v19 = vld [vmem:[%s0 + $0x20] sm:$0xff]
  %v20 = vld [vmem:[%s0 + $0x28] sm:$0xff]
  %v21 = vld [vmem:[%s0 + $0x30] sm:$0xff]
  %v22 = vld [vmem:[%s0 + $0x38] sm:$0xff]
  %v23 = vld [vmem:[%s0 + $0x40] sm:$0xff]
  %v24 = vld [vmem:[%s0 + $0x48] sm:$0xff]
  %v25 = vld [vmem:[%s0 + $0x50] sm:$0xff]
  %v26 = vld [vmem:[%s0 + $0x58] sm:$0xff]
  %v27 = vld [vmem:[%s0 + $0x60] sm:$0xff]
  %v28 = vld [vmem:[%s0 + $0x68] sm:$0xff]
  %v29 = vld [vmem:[%s0 + $0x70] sm:$0xff]
  %v30 = vld [vmem:[%s0 + $0x78] sm:$0xff]
  %v31 = vld [vmem:[%s1] sm:$0xf]
  %v32 = vld [vmem:[%s1 + $0x4] sm:$0xf]
  %v33 = vld [vmem:[%s1 + $0x8] sm:$0xf]
  %v34 = vld [vmem:[%s1 + $0xc] sm:$0xf]
  %v35 = vld [vmem:[%s1 + $0x10] sm:$0xf]
  %v36 = vld [vmem:[%s1 + $0x14] sm:$0xf]
  %v37 = vld [vmem:[%s1 + $0x18] sm:$0xf]
  %v38 = vld [vmem:[%s1 + $0x1c] sm:$0xf]
  %v39 = vld [vmem:[%s1 + $0x20] sm:$0xf]
  %v40 = vld [vmem:[%s1 + $0x24] sm:$0xf]
  %v41 = vld [vmem:[%s1 + $0x28] sm:$0xf]
  %v42 = vld [vmem:[%s1 + $0x2c] sm:$0xf]
  %v43 = vld [vmem:[%s1 + $0x30] sm:$0xf]
  %v44 = vld [vmem:[%s1 + $0x34] sm:$0xf]
  %v45 = vld [vmem:[%s1 + $0x38] sm:$0xf]
  %v46 = vld [vmem:[%s1 + $0x3c] sm:$0xf]
  %v47 = vld [vmem:[%s1 + $0x40] sm:$0xf]
  %v48 = vld [vmem:[%s1 + $0x44] sm:$0xf]
  %v49 = vld [vmem:[%s2] sm:$0x1]
  %v51 = vlaneseq
  %v52 = vshrl.u32 %v51, 7
  %v53 = vsub.s32 0, %v52
  %v54 = vrot.slane %v49, %v53
  %v72 = vunpack.c.l.b16 %v15
  %v73 = vunpack.c.h.b16 %v15
  %v74 = vunpack.c.l.b16 %v16
  %v75 = vunpack.c.h.b16 %v16
  %v76 = vunpack.c.l.b16 %v17
  %v77 = vunpack.c.h.b16 %v17
  %v78 = vunpack.c.l.b16 %v18
  %v79 = vunpack.c.h.b16 %v18
  %v80 = vunpack.c.l.b16 %v19
  %v81 = vunpack.c.h.b16 %v19
  %v82 = vunpack.c.l.b16 %v20
  %v83 = vunpack.c.h.b16 %v20
  %v84 = vunpack.c.l.b16 %v21
  %v85 = vunpack.c.h.b16 %v21
  %v86 = vunpack.c.l.b16 %v22
  %v87 = vunpack.c.h.b16 %v22
  %v88 = vunpack.c.l.b16 %v23
  %v89 = vunpack.c.h.b16 %v23
  %v90 = vunpack.c.l.b16 %v24
  %v91 = vunpack.c.h.b16 %v24
  %v92 = vunpack.c.l.b16 %v25
  %v93 = vunpack.c.h.b16 %v25
  %v94 = vunpack.c.l.b16 %v26
  %v95 = vunpack.c.h.b16 %v26
  %v96 = vunpack.c.l.b16 %v27
  %v97 = vunpack.c.h.b16 %v27
  %v98 = vunpack.c.l.b16 %v28
  %v99 = vunpack.c.h.b16 %v28
  %v100 = vunpack.c.l.b16 %v29
  %v101 = vunpack.c.h.b16 %v29
  %v102 = vunpack.c.l.b16 %v30
  %v103 = vunpack.c.h.b16 %v30
  %v104 = vpack.c.b16 %v74, %v72
  %v105 = vpack.c.b16 %v75, %v73
  %v106 = vpack.c.b16 %v78, %v76
  %v107 = vpack.c.b16 %v79, %v77
  %v108 = vpack.c.b16 %v82, %v80
  %v109 = vpack.c.b16 %v83, %v81
  %v110 = vpack.c.b16 %v86, %v84
  %v111 = vpack.c.b16 %v87, %v85
  %v112 = vpack.c.b16 %v90, %v88
  %v113 = vpack.c.b16 %v91, %v89
  %v114 = vpack.c.b16 %v94, %v92
  %v115 = vpack.c.b16 %v95, %v93
  %v116 = vpack.c.b16 %v98, %v96
  %v117 = vpack.c.b16 %v99, %v97
  %v118 = vpack.c.b16 %v102, %v100
  %v119 = vpack.c.b16 %v103, %v101
  %v146 = vunpack.c.l.b16 %v31
  %v147 = vunpack.c.l.b16 %v32
  %v148 = vunpack.c.l.b16 %v33
  %v149 = vunpack.c.l.b16 %v34
  %v150 = vunpack.c.l.b16 %v35
  %v151 = vunpack.c.l.b16 %v36
  %v152 = vunpack.c.l.b16 %v37
  %v153 = vunpack.c.l.b16 %v38
  %v154 = vunpack.c.l.b16 %v39
  %v155 = vunpack.c.l.b16 %v40
  %v156 = vunpack.c.l.b16 %v41
  %v157 = vunpack.c.l.b16 %v42
  %v158 = vunpack.c.l.b16 %v43
  %v159 = vunpack.c.l.b16 %v44
  %v160 = vunpack.c.l.b16 %v45
  %v161 = vunpack.c.l.b16 %v46
  %v162 = vunpack.c.l.b16 %v47
  %v163 = vunpack.c.l.b16 %v48
  %v164 = vpack.c.b16 %v147, %v146
  %v165 = vpack.c.b16 %v149, %v148
  %v166 = vpack.c.b16 %v151, %v150
  %v167 = vpack.c.b16 %v153, %v152
  %v168 = vpack.c.b16 %v155, %v154
  %v169 = vpack.c.b16 %v157, %v156
  %v170 = vpack.c.b16 %v159, %v158
  %v171 = vpack.c.b16 %v161, %v160
  %v172 = vpack.c.b16 %v163, %v162
  %vm182 = vcmask 130048
  %v184 = vsel %vm182, %v105, 0
  %v187 = vsel %vm182, %v107, 0
  %v190 = vsel %vm182, %v109, 0
  %v193 = vsel %vm182, %v111, 0
  %v196 = vsel %vm182, %v113, 0
  %v199 = vsel %vm182, %v115, 0
  %v202 = vsel %vm182, %v117, 0
  %v205 = vsel %vm182, %v119, 0
  %207 = vmatprep.subr.bf16.mxu0 0
  %208 = vmatpush1.bf16.msra.mxu0 %v171
  %209 = vmatprep.subr.bf16.mxu0 0
  %210 = vmatpush1.bf16.msra.mxu0 %v170
  %211 = vmatprep.subr.bf16.mxu0 0
  %212 = vmatpush1.bf16.msra.mxu0 %v169
  %213 = vmatprep.subr.bf16.mxu0 0
  %214 = vmatpush1.bf16.msra.mxu0 %v168
  %215 = vmatprep.subr.bf16.mxu0 0
  %216 = vmatpush1.bf16.msra.mxu0 %v167
  %217 = vmatprep.subr.bf16.mxu0 0
  %218 = vmatpush1.bf16.msra.mxu0 %v166
  %219 = vmatprep.subr.bf16.mxu0 0
  %220 = vmatpush1.bf16.msra.mxu0 %v165
  %221 = vmatprep.subr.bf16.mxu0 0
  %222 = vmatpush1.bf16.msra.mxu0 %v164
  %223 = vmatprep.subr.bf16.mxu0 0
  %224 = vmatpush2.bf16.msra.mxu0 0
  %225 = vmatprep.subr.bf16.mxu0 0
  %226 = vmatpush2.bf16.msra.mxu0 0
  %227 = vmatprep.subr.bf16.mxu0 0
  %228 = vmatpush2.bf16.msra.mxu0 0
  %229 = vmatprep.subr.bf16.mxu0 0
  %230 = vmatpush2.bf16.msra.mxu0 0
  %231 = vmatprep.subr.bf16.mxu0 0
  %232 = vmatpush2.bf16.msra.mxu0 0
  %233 = vmatprep.subr.bf16.mxu0 0
  %234 = vmatpush2.bf16.msra.mxu0 0
  %235 = vmatprep.subr.bf16.mxu0 0
  %236 = vmatpush2.bf16.msra.mxu0 0
  %237 = vmatprep.subr.bf16.mxu0 0
  %238 = vmatpush2.bf16.msra.mxu0 %v172
  %239 = vmatprep.mubr.bf16.mxu0 %v184
  %240 = vmatmul.mubr.bf16.gmra.mxu0 %v104
  %v241 = vpop.f32.mrf.mxu0
  %v242 = vadd.f32 %v54, %v241
  %v243 = vpop.f32.mrf.mxu0
  %v244 = vpop.f32.mrf.mxu0
  %v245 = vadd.f32 %v54, %v244
  %v246 = vpop.f32.mrf.mxu0
  %247 = vmatprep.mubr.bf16.mxu0 %v187
  %248 = vmatmul.mubr.bf16.gmra.mxu0 %v106
  %v249 = vpop.f32.mrf.mxu0
  %v250 = vadd.f32 %v54, %v249
  %v251 = vpop.f32.mrf.mxu0
  %v252 = vpop.f32.mrf.mxu0
  %v253 = vadd.f32 %v54, %v252
  %v254 = vpop.f32.mrf.mxu0
  %255 = vmatprep.mubr.bf16.mxu0 %v190
  %256 = vmatmul.mubr.bf16.gmra.mxu0 %v108
  %v257 = vpop.f32.mrf.mxu0
  %v258 = vadd.f32 %v54, %v257
  %v259 = vpop.f32.mrf.mxu0
  %v260 = vpop.f32.mrf.mxu0
  %v261 = vadd.f32 %v54, %v260
  %v262 = vpop.f32.mrf.mxu0
  %263 = vmatprep.mubr.bf16.mxu0 %v193
  %264 = vmatmul.mubr.bf16.gmra.mxu0 %v110
  %v265 = vpop.f32.mrf.mxu0
  %v266 = vadd.f32 %v54, %v265
  %v267 = vpop.f32.mrf.mxu0
  %v268 = vpop.f32.mrf.mxu0
  %v269 = vadd.f32 %v54, %v268
  %v270 = vpop.f32.mrf.mxu0
  %271 = vmatprep.mubr.bf16.mxu0 %v196
  %272 = vmatmul.mubr.bf16.gmra.mxu0 %v112
  %v273 = vpop.f32.mrf.mxu0
  %v274 = vadd.f32 %v54, %v273
  %v275 = vpop.f32.mrf.mxu0
  %v276 = vpop.f32.mrf.mxu0
  %v277 = vadd.f32 %v54, %v276
  %v278 = vpop.f32.mrf.mxu0
  %279 = vmatprep.mubr.bf16.mxu0 %v199
  %280 = vmatmul.mubr.bf16.gmra.mxu0 %v114
  %v281 = vpop.f32.mrf.mxu0
  %v282 = vadd.f32 %v54, %v281
  %v283 = vpop.f32.mrf.mxu0
  %v284 = vpop.f32.mrf.mxu0
  %v285 = vadd.f32 %v54, %v284
  %v286 = vpop.f32.mrf.mxu0
  %287 = vmatprep.mubr.bf16.mxu0 %v202
  %288 = vmatmul.mubr.bf16.gmra.mxu0 %v116
  %v289 = vpop.f32.mrf.mxu0
  %v290 = vadd.f32 %v54, %v289
  %v291 = vpop.f32.mrf.mxu0
  %v292 = vpop.f32.mrf.mxu0
  %v293 = vadd.f32 %v54, %v292
  %v294 = vpop.f32.mrf.mxu0
  %295 = vmatprep.mubr.bf16.mxu0 %v205
  %296 = vmatmul.mubr.bf16.gmra.mxu0 %v118
  %v297 = vpop.f32.mrf.mxu0
  %v298 = vadd.f32 %v54, %v297
  %v299 = vpop.f32.mrf.mxu0
  %v300 = vpop.f32.mrf.mxu0
  %v301 = vadd.f32 %v54, %v300
  %v302 = vpop.f32.mrf.mxu0
  %303 = vdwg.mxu0
  %v304 = vxor.u32 %v242, 2147483648
  %v305 = vxor.u32 %v245, 2147483648
  %v306 = vxor.u32 %v250, 2147483648
  %v307 = vxor.u32 %v253, 2147483648
  %v308 = vxor.u32 %v258, 2147483648
  %v309 = vxor.u32 %v261, 2147483648
  %v310 = vxor.u32 %v266, 2147483648
  %v311 = vxor.u32 %v269, 2147483648
  %v312 = vxor.u32 %v274, 2147483648
  %v313 = vxor.u32 %v277, 2147483648
  %v314 = vxor.u32 %v282, 2147483648
  %v315 = vxor.u32 %v285, 2147483648
  %v316 = vxor.u32 %v290, 2147483648
  %v317 = vxor.u32 %v293, 2147483648
  %v318 = vxor.u32 %v298, 2147483648
  %v319 = vxor.u32 %v301, 2147483648
  %v320 = vmul.f32 %v304, 1.442695
  %v321 = vpow.pop %v320
  %v322 = vmul.f32 %v305, 1.442695
  %v323 = vpow.pop %v322
  %v324 = vmul.f32 %v306, 1.442695
  %v325 = vpow.pop %v324
  %v326 = vmul.f32 %v307, 1.442695
  %v327 = vpow.pop %v326
  %v328 = vmul.f32 %v308, 1.442695
  %v329 = vpow.pop %v328
  %v330 = vmul.f32 %v309, 1.442695
  %v331 = vpow.pop %v330
  %v332 = vmul.f32 %v310, 1.442695
  %v333 = vpow.pop %v332
  %v334 = vmul.f32 %v311, 1.442695
  %v335 = vpow.pop %v334
  %v336 = vmul.f32 %v312, 1.442695
  %v337 = vpow.pop %v336
  %v338 = vmul.f32 %v313, 1.442695
  %v339 = vpow.pop %v338
  %v340 = vmul.f32 %v314, 1.442695
  %v341 = vpow.pop %v340
  %v342 = vmul.f32 %v315, 1.442695
  %v343 = vpow.pop %v342
  %v344 = vmul.f32 %v316, 1.442695
  %v345 = vpow.pop %v344
  %v346 = vmul.f32 %v317, 1.442695
  %v347 = vpow.pop %v346
  %v348 = vmul.f32 %v318, 1.442695
  %v349 = vpow.pop %v348
  %v350 = vmul.f32 %v319, 1.442695
  %v351 = vpow.pop %v350
  %v352 = vadd.f32 %v321, 1.0
  %v353 = vadd.f32 %v323, 1.0
  %v354 = vadd.f32 %v325, 1.0
  %v355 = vadd.f32 %v327, 1.0
  %v356 = vadd.f32 %v329, 1.0
  %v357 = vadd.f32 %v331, 1.0
  %v358 = vadd.f32 %v333, 1.0
  %v359 = vadd.f32 %v335, 1.0
  %v360 = vadd.f32 %v337, 1.0
  %v361 = vadd.f32 %v339, 1.0
  %v362 = vadd.f32 %v341, 1.0
  %v363 = vadd.f32 %v343, 1.0
  %v364 = vadd.f32 %v345, 1.0
  %v365 = vadd.f32 %v347, 1.0
  %v366 = vadd.f32 %v349, 1.0
  %v367 = vadd.f32 %v351, 1.0
  %v368 = vrcp.pop %v352
  %v369 = vmul.f32 1.0, %v368
  %v370 = vrcp.pop %v353
  %v371 = vmul.f32 1.0, %v370
  %v372 = vrcp.pop %v354
  %v373 = vmul.f32 1.0, %v372
  %v374 = vrcp.pop %v355
  %v375 = vmul.f32 1.0, %v374
  %v376 = vrcp.pop %v356
  %v377 = vmul.f32 1.0, %v376
  %v378 = vrcp.pop %v357
  %v379 = vmul.f32 1.0, %v378
  %v380 = vrcp.pop %v358
  %v381 = vmul.f32 1.0, %v380
  %v382 = vrcp.pop %v359
  %v383 = vmul.f32 1.0, %v382
  %v384 = vrcp.pop %v360
  %v385 = vmul.f32 1.0, %v384
  %v386 = vrcp.pop %v361
  %v387 = vmul.f32 1.0, %v386
  %v388 = vrcp.pop %v362
  %v389 = vmul.f32 1.0, %v388
  %v390 = vrcp.pop %v363
  %v391 = vmul.f32 1.0, %v390
  %v392 = vrcp.pop %v364
  %v393 = vmul.f32 1.0, %v392
  %v394 = vrcp.pop %v365
  %v395 = vmul.f32 1.0, %v394
  %v396 = vrcp.pop %v366
  %v397 = vmul.f32 1.0, %v396
  %v398 = vrcp.pop %v367
  %v399 = vmul.f32 1.0, %v398
  %v400 = vmul.f32 %v242, %v369
  %v401 = vmul.f32 %v245, %v371
  %v402 = vmul.f32 %v250, %v373
  %v403 = vmul.f32 %v253, %v375
  %v404 = vmul.f32 %v258, %v377
  %v405 = vmul.f32 %v261, %v379
  %v406 = vmul.f32 %v266, %v381
  %v407 = vmul.f32 %v269, %v383
  %v408 = vmul.f32 %v274, %v385
  %v409 = vmul.f32 %v277, %v387
  %v410 = vmul.f32 %v282, %v389
  %v411 = vmul.f32 %v285, %v391
  %v412 = vmul.f32 %v290, %v393
  %v413 = vmul.f32 %v293, %v395
  %v414 = vmul.f32 %v298, %v397
  %v415 = vmul.f32 %v301, %v399
  %v416 = vpack.c.bf16 %v401, %v400
  %v417 = vpack.c.bf16 %v403, %v402
  %v418 = vpack.c.bf16 %v405, %v404
  %v419 = vpack.c.bf16 %v407, %v406
  %v420 = vpack.c.bf16 %v409, %v408
  %v421 = vpack.c.bf16 %v411, %v410
  %v422 = vpack.c.bf16 %v413, %v412
  %v423 = vpack.c.bf16 %v415, %v414
  %v432 = vunpack.c.l.b16 %v416
  %v433 = vunpack.c.h.b16 %v416
  %v434 = vunpack.c.l.b16 %v417
  %v435 = vunpack.c.h.b16 %v417
  %v436 = vunpack.c.l.b16 %v418
  %v437 = vunpack.c.h.b16 %v418
  %v438 = vunpack.c.l.b16 %v419
  %v439 = vunpack.c.h.b16 %v419
  %v440 = vunpack.c.l.b16 %v420
  %v441 = vunpack.c.h.b16 %v420
  %v442 = vunpack.c.l.b16 %v421
  %v443 = vunpack.c.h.b16 %v421
  %v444 = vunpack.c.l.b16 %v422
  %v445 = vunpack.c.h.b16 %v422
  %v446 = vunpack.c.l.b16 %v423
  %v447 = vunpack.c.h.b16 %v423
  %v448 = vpack.c.b16 %v432, %v432
  %v449 = vpack.c.b16 %v433, %v433
  %v450 = vpack.c.b16 %v434, %v434
  %v451 = vpack.c.b16 %v435, %v435
  %v452 = vpack.c.b16 %v436, %v436
  %v453 = vpack.c.b16 %v437, %v437
  %v454 = vpack.c.b16 %v438, %v438
  %v455 = vpack.c.b16 %v439, %v439
  %v456 = vpack.c.b16 %v440, %v440
  %v457 = vpack.c.b16 %v441, %v441
  %v458 = vpack.c.b16 %v442, %v442
  %v459 = vpack.c.b16 %v443, %v443
  %v460 = vpack.c.b16 %v444, %v444
  %v461 = vpack.c.b16 %v445, %v445
  %v462 = vpack.c.b16 %v446, %v446
  %v463 = vpack.c.b16 %v447, %v447
  %vm480 = vcmask 125952
  %481 = vst.msk [vmem:[%s3] sm:$0xf] %vm480, %v448
  %482 = vst.msk [vmem:[%s3 + $0x4] sm:$0xf] %vm480, %v449
  %483 = vst.msk [vmem:[%s3 + $0x8] sm:$0xf] %vm480, %v450
  %484 = vst.msk [vmem:[%s3 + $0xc] sm:$0xf] %vm480, %v451
  %485 = vst.msk [vmem:[%s3 + $0x10] sm:$0xf] %vm480, %v452
  %486 = vst.msk [vmem:[%s3 + $0x14] sm:$0xf] %vm480, %v453
  %487 = vst.msk [vmem:[%s3 + $0x18] sm:$0xf] %vm480, %v454
  %488 = vst.msk [vmem:[%s3 + $0x1c] sm:$0xf] %vm480, %v455
  %489 = vst.msk [vmem:[%s3 + $0x20] sm:$0xf] %vm480, %v456
  %490 = vst.msk [vmem:[%s3 + $0x24] sm:$0xf] %vm480, %v457
  %491 = vst.msk [vmem:[%s3 + $0x28] sm:$0xf] %vm480, %v458
  %492 = vst.msk [vmem:[%s3 + $0x2c] sm:$0xf] %vm480, %v459
  %493 = vst.msk [vmem:[%s3 + $0x30] sm:$0xf] %vm480, %v460
  %494 = vst.msk [vmem:[%s3 + $0x34] sm:$0xf] %vm480, %v461
  %495 = vst.msk [vmem:[%s3 + $0x38] sm:$0xf] %vm480, %v462
  %496 = vst.msk [vmem:[%s3 + $0x3c] sm:$0xf] %vm480, %v463
  // Predicated region
  $region14: #{forward.29} parent=0 // pred_check
    _
  $region15: #{forward.29} parent=0 // pred_check_branch
    %498 = sbr.rel (0) target = $region17
  $region16: #{forward.29} parent=0 // pred_region
    _
  $region17: #{forward.29} parent=0 // pred_fallthru
    _
  // Predicated region
  $region18: #{forward.29} parent=0 // pred_check
    _
  $region19: #{forward.29} parent=0 // pred_check_branch
    %500 = sbr.rel (0) target = $region21
  $region20: #{forward.29} parent=0 // pred_region
    _
  $region21: #{forward.29} parent=0 // pred_fallthru
    _

// kernel: forward.30
$region0: #{forward.30}
  #allocation0 [shape = 'u32[]', space=smem, size = 0x4, offset = 0x4, fixed_abs, tag = 'smem constant byte address 0x4 - core index']
  #allocation1 [shape = 'u32[144,128]{1,0:T(1,128)}', space=vmem, size = 0x12000, scoped, tag = 'internal scratch']
  %s0 = inlined_call_operand.vmem [shape: bf16[128,144], index: 0, kind: input, shape index: {}]
  %s1 = inlined_call_operand.vmem [shape: bf16[144,16], index: 1, kind: input, shape index: {}]
  %s2 = inlined_call_operand.vmem [shape: f32[1,16], index: 2, kind: input, shape index: {}]
  %s3 = inlined_call_operand.vmem [shape: bf16[128,16], index: 3, kind: input, shape index: {}]
  %s4 = inlined_call_operand.vmem [shape: bf16[128,16], index: 4, kind: output, shape index: {}]
  %s5 = sld [smem:[#allocation0]]
  $region26: #{forward.30} parent=0
    _
  %s7 = ssub.s32 1, %s5
  %s8 = scalar_select 0, %s7, %s5
  // Predicated region
  $region2: #{forward.30} parent=0 // pred_check
    _
  $region3: #{forward.30} parent=0 // pred_check_branch
    %10 = sbr.rel (0) target = $region5
  $region4: #{forward.30} parent=0 // pred_region
    _
  $region5: #{forward.30} parent=0 // pred_fallthru
    _
  // Predicated region
  $region6: #{forward.30} parent=0 // pred_check
    _
  $region7: #{forward.30} parent=0 // pred_check_branch
    %12 = sbr.rel (0) target = $region9
  $region8: #{forward.30} parent=0 // pred_region
    _
  $region9: #{forward.30} parent=0 // pred_fallthru
    _
  // Predicated region
  $region10: #{forward.30} parent=0 // pred_check
    _
  $region11: #{forward.30} parent=0 // pred_check_branch
    %14 = sbr.rel (0) target = $region13
  $region12: #{forward.30} parent=0 // pred_region
    _
  $region13: #{forward.30} parent=0 // pred_fallthru
    _
  // Predicated region
  $region14: #{forward.30} parent=0 // pred_check
    _
  $region15: #{forward.30} parent=0 // pred_check_branch
    %16 = sbr.rel (0) target = $region17
  $region16: #{forward.30} parent=0 // pred_region
    _
  $region17: #{forward.30} parent=0 // pred_fallthru
    _
  %v18 = vld [vmem:[%s3] sm:$0xf]
  %v19 = vld [vmem:[%s3 + $0x4] sm:$0xf]
  %v20 = vld [vmem:[%s3 + $0x8] sm:$0xf]
  %v21 = vld [vmem:[%s3 + $0xc] sm:$0xf]
  %v22 = vld [vmem:[%s3 + $0x10] sm:$0xf]
  %v23 = vld [vmem:[%s3 + $0x14] sm:$0xf]
  %v24 = vld [vmem:[%s3 + $0x18] sm:$0xf]
  %v25 = vld [vmem:[%s3 + $0x1c] sm:$0xf]
  %v26 = vld [vmem:[%s3 + $0x20] sm:$0xf]
  %v27 = vld [vmem:[%s3 + $0x24] sm:$0xf]
  %v28 = vld [vmem:[%s3 + $0x28] sm:$0xf]
  %v29 = vld [vmem:[%s3 + $0x2c] sm:$0xf]
  %v30 = vld [vmem:[%s3 + $0x30] sm:$0xf]
  %v31 = vld [vmem:[%s3 + $0x34] sm:$0xf]
  %v32 = vld [vmem:[%s3 + $0x38] sm:$0xf]
  %v33 = vld [vmem:[%s3 + $0x3c] sm:$0xf]
  %v34 = vld [vmem:[%s0] sm:$0xff]
  %v35 = vld [vmem:[%s0 + $0x8] sm:$0xff]
  %v36 = vld [vmem:[%s0 + $0x10] sm:$0xff]
  %v37 = vld [vmem:[%s0 + $0x18] sm:$0xff]
  %v38 = vld [vmem:[%s0 + $0x20] sm:$0xff]
  %v39 = vld [vmem:[%s0 + $0x28] sm:$0xff]
  %v40 = vld [vmem:[%s0 + $0x30] sm:$0xff]
  %v41 = vld [vmem:[%s0 + $0x38] sm:$0xff]
  %v42 = vld [vmem:[%s0 + $0x40] sm:$0xff]
  %v43 = vld [vmem:[%s0 + $0x48] sm:$0xff]
  %v44 = vld [vmem:[%s0 + $0x50] sm:$0xff]
  %v45 = vld [vmem:[%s0 + $0x58] sm:$0xff]
  %v46 = vld [vmem:[%s0 + $0x60] sm:$0xff]
  %v47 = vld [vmem:[%s0 + $0x68] sm:$0xff]
  %v48 = vld [vmem:[%s0 + $0x70] sm:$0xff]
  %v49 = vld [vmem:[%s0 + $0x78] sm:$0xff]
  %v50 = vld [vmem:[%s1] sm:$0xf]
  %v51 = vld [vmem:[%s1 + $0x4] sm:$0xf]
  %v52 = vld [vmem:[%s1 + $0x8] sm:$0xf]
  %v53 = vld [vmem:[%s1 + $0xc] sm:$0xf]
  %v54 = vld [vmem:[%s1 + $0x10] sm:$0xf]
  %v55 = vld [vmem:[%s1 + $0x14] sm:$0xf]
  %v56 = vld [vmem:[%s1 + $0x18] sm:$0xf]
  %v57 = vld [vmem:[%s1 + $0x1c] sm:$0xf]
  %v58 = vld [vmem:[%s1 + $0x20] sm:$0xf]
  %v59 = vld [vmem:[%s1 + $0x24] sm:$0xf]
  %v60 = vld [vmem:[%s1 + $0x28] sm:$0xf]
  %v61 = vld [vmem:[%s1 + $0x2c] sm:$0xf]
  %v62 = vld [vmem:[%s1 + $0x30] sm:$0xf]
  %v63 = vld [vmem:[%s1 + $0x34] sm:$0xf]
  %v64 = vld [vmem:[%s1 + $0x38] sm:$0xf]
  %v65 = vld [vmem:[%s1 + $0x3c] sm:$0xf]
  %v66 = vld [vmem:[%s1 + $0x40] sm:$0xf]
  %v67 = vld [vmem:[%s1 + $0x44] sm:$0xf]
  %v68 = vld [vmem:[%s2] sm:$0x1]
  %v70 = vlaneseq
  %v71 = vshrl.u32 %v70, 7
  %v72 = vsub.s32 0, %v71
  %v73 = vrot.slane %v68, %v72
  %v91 = vunpack.c.l.b16 %v34
  %v92 = vunpack.c.h.b16 %v34
  %v93 = vunpack.c.l.b16 %v35
  %v94 = vunpack.c.h.b16 %v35
  %v95 = vunpack.c.l.b16 %v36
  %v96 = vunpack.c.h.b16 %v36
  %v97 = vunpack.c.l.b16 %v37
  %v98 = vunpack.c.h.b16 %v37
  %v99 = vunpack.c.l.b16 %v38
  %v100 = vunpack.c.h.b16 %v38
  %v101 = vunpack.c.l.b16 %v39
  %v102 = vunpack.c.h.b16 %v39
  %v103 = vunpack.c.l.b16 %v40
  %v104 = vunpack.c.h.b16 %v40
  %v105 = vunpack.c.l.b16 %v41
  %v106 = vunpack.c.h.b16 %v41
  %v107 = vunpack.c.l.b16 %v42
  %v108 = vunpack.c.h.b16 %v42
  %v109 = vunpack.c.l.b16 %v43
  %v110 = vunpack.c.h.b16 %v43
  %v111 = vunpack.c.l.b16 %v44
  %v112 = vunpack.c.h.b16 %v44
  %v113 = vunpack.c.l.b16 %v45
  %v114 = vunpack.c.h.b16 %v45
  %v115 = vunpack.c.l.b16 %v46
  %v116 = vunpack.c.h.b16 %v46
  %v117 = vunpack.c.l.b16 %v47
  %v118 = vunpack.c.h.b16 %v47
  %v119 = vunpack.c.l.b16 %v48
  %v120 = vunpack.c.h.b16 %v48
  %v121 = vunpack.c.l.b16 %v49
  %v122 = vunpack.c.h.b16 %v49
  %v123 = vpack.c.b16 %v93, %v91
  %v124 = vpack.c.b16 %v94, %v92
  %v125 = vpack.c.b16 %v97, %v95
  %v126 = vpack.c.b16 %v98, %v96
  %v127 = vpack.c.b16 %v101, %v99
  %v128 = vpack.c.b16 %v102, %v100
  %v129 = vpack.c.b16 %v105, %v103
  %v130 = vpack.c.b16 %v106, %v104
  %v131 = vpack.c.b16 %v109, %v107
  %v132 = vpack.c.b16 %v110, %v108
  %v133 = vpack.c.b16 %v113, %v111
  %v134 = vpack.c.b16 %v114, %v112
  %v135 = vpack.c.b16 %v117, %v115
  %v136 = vpack.c.b16 %v118, %v116
  %v137 = vpack.c.b16 %v121, %v119
  %v138 = vpack.c.b16 %v122, %v120
  %v165 = vunpack.c.l.b16 %v50
  %v166 = vunpack.c.l.b16 %v51
  %v167 = vunpack.c.l.b16 %v52
  %v168 = vunpack.c.l.b16 %v53
  %v169 = vunpack.c.l.b16 %v54
  %v170 = vunpack.c.l.b16 %v55
  %v171 = vunpack.c.l.b16 %v56
  %v172 = vunpack.c.l.b16 %v57
  %v173 = vunpack.c.l.b16 %v58
  %v174 = vunpack.c.l.b16 %v59
  %v175 = vunpack.c.l.b16 %v60
  %v176 = vunpack.c.l.b16 %v61
  %v177 = vunpack.c.l.b16 %v62
  %v178 = vunpack.c.l.b16 %v63
  %v179 = vunpack.c.l.b16 %v64
  %v180 = vunpack.c.l.b16 %v65
  %v181 = vunpack.c.l.b16 %v66
  %v182 = vunpack.c.l.b16 %v67
  %v183 = vpack.c.b16 %v166, %v165
  %v184 = vpack.c.b16 %v168, %v167
  %v185 = vpack.c.b16 %v170, %v169
  %v186 = vpack.c.b16 %v172, %v171
  %v187 = vpack.c.b16 %v174, %v173
  %v188 = vpack.c.b16 %v176, %v175
  %v189 = vpack.c.b16 %v178, %v177
  %v190 = vpack.c.b16 %v180, %v179
  %v191 = vpack.c.b16 %v182, %v181
  %vm201 = vcmask 130048
  %v203 = vsel %vm201, %v124, 0
  %v206 = vsel %vm201, %v126, 0
  %v209 = vsel %vm201, %v128, 0
  %v212 = vsel %vm201, %v130, 0
  %v215 = vsel %vm201, %v132, 0
  %v218 = vsel %vm201, %v134, 0
  %v221 = vsel %vm201, %v136, 0
  %v224 = vsel %vm201, %v138, 0
  %226 = vmatprep.subr.bf16.mxu0 0
  %227 = vmatpush1.bf16.msra.mxu0 %v190
  %228 = vmatprep.subr.bf16.mxu0 0
  %229 = vmatpush1.bf16.msra.mxu0 %v189
  %230 = vmatprep.subr.bf16.mxu0 0
  %231 = vmatpush1.bf16.msra.mxu0 %v188
  %232 = vmatprep.subr.bf16.mxu0 0
  %233 = vmatpush1.bf16.msra.mxu0 %v187
  %234 = vmatprep.subr.bf16.mxu0 0
  %235 = vmatpush1.bf16.msra.mxu0 %v186
  %236 = vmatprep.subr.bf16.mxu0 0
  %237 = vmatpush1.bf16.msra.mxu0 %v185
  %238 = vmatprep.subr.bf16.mxu0 0
  %239 = vmatpush1.bf16.msra.mxu0 %v184
  %240 = vmatprep.subr.bf16.mxu0 0
  %241 = vmatpush1.bf16.msra.mxu0 %v183
  %242 = vmatprep.subr.bf16.mxu0 0
  %243 = vmatpush2.bf16.msra.mxu0 0
  %244 = vmatprep.subr.bf16.mxu0 0
  %245 = vmatpush2.bf16.msra.mxu0 0
  %246 = vmatprep.subr.bf16.mxu0 0
  %247 = vmatpush2.bf16.msra.mxu0 0
  %248 = vmatprep.subr.bf16.mxu0 0
  %249 = vmatpush2.bf16.msra.mxu0 0
  %250 = vmatprep.subr.bf16.mxu0 0
  %251 = vmatpush2.bf16.msra.mxu0 0
  %252 = vmatprep.subr.bf16.mxu0 0
  %253 = vmatpush2.bf16.msra.mxu0 0
  %254 = vmatprep.subr.bf16.mxu0 0
  %255 = vmatpush2.bf16.msra.mxu0 0
  %256 = vmatprep.subr.bf16.mxu0 0
  %257 = vmatpush2.bf16.msra.mxu0 %v191
  %258 = vmatprep.mubr.bf16.mxu0 %v203
  %259 = vmatmul.mubr.bf16.gmra.mxu0 %v123
  %v260 = vpop.f32.mrf.mxu0
  %v261 = vadd.f32 %v73, %v260
  %v262 = vpop.f32.mrf.mxu0
  %v263 = vpop.f32.mrf.mxu0
  %v264 = vadd.f32 %v73, %v263
  %v265 = vpop.f32.mrf.mxu0
  %266 = vmatprep.mubr.bf16.mxu0 %v206
  %267 = vmatmul.mubr.bf16.gmra.mxu0 %v125
  %v268 = vpop.f32.mrf.mxu0
  %v269 = vadd.f32 %v73, %v268
  %v270 = vpop.f32.mrf.mxu0
  %v271 = vpop.f32.mrf.mxu0
  %v272 = vadd.f32 %v73, %v271
  %v273 = vpop.f32.mrf.mxu0
  %274 = vmatprep.mubr.bf16.mxu0 %v209
  %275 = vmatmul.mubr.bf16.gmra.mxu0 %v127
  %v276 = vpop.f32.mrf.mxu0
  %v277 = vadd.f32 %v73, %v276
  %v278 = vpop.f32.mrf.mxu0
  %v279 = vpop.f32.mrf.mxu0
  %v280 = vadd.f32 %v73, %v279
  %v281 = vpop.f32.mrf.mxu0
  %282 = vmatprep.mubr.bf16.mxu0 %v212
  %283 = vmatmul.mubr.bf16.gmra.mxu0 %v129
  %v284 = vpop.f32.mrf.mxu0
  %v285 = vadd.f32 %v73, %v284
  %v286 = vpop.f32.mrf.mxu0
  %v287 = vpop.f32.mrf.mxu0
  %v288 = vadd.f32 %v73, %v287
  %v289 = vpop.f32.mrf.mxu0
  %290 = vmatprep.mubr.bf16.mxu0 %v215
  %291 = vmatmul.mubr.bf16.gmra.mxu0 %v131
  %v292 = vpop.f32.mrf.mxu0
  %v293 = vadd.f32 %v73, %v292
  %v294 = vpop.f32.mrf.mxu0
  %v295 = vpop.f32.mrf.mxu0
  %v296 = vadd.f32 %v73, %v295
  %v297 = vpop.f32.mrf.mxu0
  %298 = vmatprep.mubr.bf16.mxu0 %v218
  %299 = vmatmul.mubr.bf16.gmra.mxu0 %v133
  %v300 = vpop.f32.mrf.mxu0
  %v301 = vadd.f32 %v73, %v300
  %v302 = vpop.f32.mrf.mxu0
  %v303 = vpop.f32.mrf.mxu0
  %v304 = vadd.f32 %v73, %v303
  %v305 = vpop.f32.mrf.mxu0
  %306 = vmatprep.mubr.bf16.mxu0 %v221
  %307 = vmatmul.mubr.bf16.gmra.mxu0 %v135
  %v308 = vpop.f32.mrf.mxu0
  %v309 = vadd.f32 %v73, %v308
  %v310 = vpop.f32.mrf.mxu0
  %v311 = vpop.f32.mrf.mxu0
  %v312 = vadd.f32 %v73, %v311
  %v313 = vpop.f32.mrf.mxu0
  %314 = vmatprep.mubr.bf16.mxu0 %v224
  %315 = vmatmul.mubr.bf16.gmra.mxu0 %v137
  %v316 = vpop.f32.mrf.mxu0
  %v317 = vadd.f32 %v73, %v316
  %v318 = vpop.f32.mrf.mxu0
  %v319 = vpop.f32.mrf.mxu0
  %v320 = vadd.f32 %v73, %v319
  %v321 = vpop.f32.mrf.mxu0
  %322 = vdwg.mxu0
  %v323 = vxor.u32 %v261, 2147483648
  %v324 = vxor.u32 %v264, 2147483648
  %v325 = vxor.u32 %v269, 2147483648
  %v326 = vxor.u32 %v272, 2147483648
  %v327 = vxor.u32 %v277, 2147483648
  %v328 = vxor.u32 %v280, 2147483648
  %v329 = vxor.u32 %v285, 2147483648
  %v330 = vxor.u32 %v288, 2147483648
  %v331 = vxor.u32 %v293, 2147483648
  %v332 = vxor.u32 %v296, 2147483648
  %v333 = vxor.u32 %v301, 2147483648
  %v334 = vxor.u32 %v304, 2147483648
  %v335 = vxor.u32 %v309, 2147483648
  %v336 = vxor.u32 %v312, 2147483648
  %v337 = vxor.u32 %v317, 2147483648
  %v338 = vxor.u32 %v320, 2147483648
  %v339 = vmul.f32 %v323, 1.442695
  %v340 = vpow.pop %v339
  %v341 = vmul.f32 %v324, 1.442695
  %v342 = vpow.pop %v341
  %v343 = vmul.f32 %v325, 1.442695
  %v344 = vpow.pop %v343
  %v345 = vmul.f32 %v326, 1.442695
  %v346 = vpow.pop %v345
  %v347 = vmul.f32 %v327, 1.442695
  %v348 = vpow.pop %v347
  %v349 = vmul.f32 %v328, 1.442695
  %v350 = vpow.pop %v349
  %v351 = vmul.f32 %v329, 1.442695
  %v352 = vpow.pop %v351
  %v353 = vmul.f32 %v330, 1.442695
  %v354 = vpow.pop %v353
  %v355 = vmul.f32 %v331, 1.442695
  %v356 = vpow.pop %v355
  %v357 = vmul.f32 %v332, 1.442695
  %v358 = vpow.pop %v357
  %v359 = vmul.f32 %v333, 1.442695
  %v360 = vpow.pop %v359
  %v361 = vmul.f32 %v334, 1.442695
  %v362 = vpow.pop %v361
  %v363 = vmul.f32 %v335, 1.442695
  %v364 = vpow.pop %v363
  %v365 = vmul.f32 %v336, 1.442695
  %v366 = vpow.pop %v365
  %v367 = vmul.f32 %v337, 1.442695
  %v368 = vpow.pop %v367
  %v369 = vmul.f32 %v338, 1.442695
  %v370 = vpow.pop %v369
  %v371 = vadd.f32 %v340, 1.0
  %v372 = vadd.f32 %v342, 1.0
  %v373 = vadd.f32 %v344, 1.0
  %v374 = vadd.f32 %v346, 1.0
  %v375 = vadd.f32 %v348, 1.0
  %v376 = vadd.f32 %v350, 1.0
  %v377 = vadd.f32 %v352, 1.0
  %v378 = vadd.f32 %v354, 1.0
  %v379 = vadd.f32 %v356, 1.0
  %v380 = vadd.f32 %v358, 1.0
  %v381 = vadd.f32 %v360, 1.0
  %v382 = vadd.f32 %v362, 1.0
  %v383 = vadd.f32 %v364, 1.0
  %v384 = vadd.f32 %v366, 1.0
  %v385 = vadd.f32 %v368, 1.0
  %v386 = vadd.f32 %v370, 1.0
  %v387 = vrcp.pop %v371
  %v388 = vmul.f32 1.0, %v387
  %v389 = vrcp.pop %v372
  %v390 = vmul.f32 1.0, %v389
  %v391 = vrcp.pop %v373
  %v392 = vmul.f32 1.0, %v391
  %v393 = vrcp.pop %v374
  %v394 = vmul.f32 1.0, %v393
  %v395 = vrcp.pop %v375
  %v396 = vmul.f32 1.0, %v395
  %v397 = vrcp.pop %v376
  %v398 = vmul.f32 1.0, %v397
  %v399 = vrcp.pop %v377
  %v400 = vmul.f32 1.0, %v399
  %v401 = vrcp.pop %v378
  %v402 = vmul.f32 1.0, %v401
  %v403 = vrcp.pop %v379
  %v404 = vmul.f32 1.0, %v403
  %v405 = vrcp.pop %v380
  %v406 = vmul.f32 1.0, %v405
  %v407 = vrcp.pop %v381
  %v408 = vmul.f32 1.0, %v407
  %v409 = vrcp.pop %v382
  %v410 = vmul.f32 1.0, %v409
  %v411 = vrcp.pop %v383
  %v412 = vmul.f32 1.0, %v411
  %v413 = vrcp.pop %v384
  %v414 = vmul.f32 1.0, %v413
  %v415 = vrcp.pop %v385
  %v416 = vmul.f32 1.0, %v415
  %v417 = vrcp.pop %v386
  %v418 = vmul.f32 1.0, %v417
  %v419 = vmul.f32 %v261, %v388
  %v420 = vmul.f32 %v264, %v390
  %v421 = vmul.f32 %v269, %v392
  %v422 = vmul.f32 %v272, %v394
  %v423 = vmul.f32 %v277, %v396
  %v424 = vmul.f32 %v280, %v398
  %v425 = vmul.f32 %v285, %v400
  %v426 = vmul.f32 %v288, %v402
  %v427 = vmul.f32 %v293, %v404
  %v428 = vmul.f32 %v296, %v406
  %v429 = vmul.f32 %v301, %v408
  %v430 = vmul.f32 %v304, %v410
  %v431 = vmul.f32 %v309, %v412
  %v432 = vmul.f32 %v312, %v414
  %v433 = vmul.f32 %v317, %v416
  %v434 = vmul.f32 %v320, %v418
  %v435 = vunpack.c.l.bf16 %v18
  %v436 = vunpack.c.l.bf16 %v19
  %v437 = vunpack.c.l.bf16 %v20
  %v438 = vunpack.c.l.bf16 %v21
  %v439 = vunpack.c.l.bf16 %v22
  %v440 = vunpack.c.l.bf16 %v23
  %v441 = vunpack.c.l.bf16 %v24
  %v442 = vunpack.c.l.bf16 %v25
  %v443 = vunpack.c.l.bf16 %v26
  %v444 = vunpack.c.l.bf16 %v27
  %v445 = vunpack.c.l.bf16 %v28
  %v446 = vunpack.c.l.bf16 %v29
  %v447 = vunpack.c.l.bf16 %v30
  %v448 = vunpack.c.l.bf16 %v31
  %v449 = vunpack.c.l.bf16 %v32
  %v450 = vunpack.c.l.bf16 %v33
  %v451 = vadd.f32 %v419, %v435
  %v452 = vadd.f32 %v420, %v436
  %v453 = vadd.f32 %v421, %v437
  %v454 = vadd.f32 %v422, %v438
  %v455 = vadd.f32 %v423, %v439
  %v456 = vadd.f32 %v424, %v440
  %v457 = vadd.f32 %v425, %v441
  %v458 = vadd.f32 %v426, %v442
  %v459 = vadd.f32 %v427, %v443
  %v460 = vadd.f32 %v428, %v444
  %v461 = vadd.f32 %v429, %v445
  %v462 = vadd.f32 %v430, %v446
  %v463 = vadd.f32 %v431, %v447
  %v464 = vadd.f32 %v432, %v448
  %v465 = vadd.f32 %v433, %v449
  %v466 = vadd.f32 %v434, %v450
  %v467 = vpack.c.bf16 %v452, %v451
  %v468 = vpack.c.bf16 %v454, %v453
  %v469 = vpack.c.bf16 %v456, %v455
  %v470 = vpack.c.bf16 %v458, %v457
  %v471 = vpack.c.bf16 %v460, %v459
  %v472 = vpack.c.bf16 %v462, %v461
  %v473 = vpack.c.bf16 %v464, %v463
  %v474 = vpack.c.bf16 %v466, %v465
  %v483 = vunpack.c.l.b16 %v467
  %v484 = vunpack.c.h.b16 %v467
  %v485 = vunpack.c.l.b16 %v468
  %v486 = vunpack.c.h.b16 %v468
  %v487 = vunpack.c.l.b16 %v469
  %v488 = vunpack.c.h.b16 %v469
  %v489 = vunpack.c.l.b16 %v470
  %v490 = vunpack.c.h.b16 %v470
  %v491 = vunpack.c.l.b16 %v471
  %v492 = vunpack.c.h.b16 %v471
  %v493 = vunpack.c.l.b16 %v472
  %v494 = vunpack.c.h.b16 %v472
  %v495 = vunpack.c.l.b16 %v473
  %v496 = vunpack.c.h.b16 %v473
  %v497 = vunpack.c.l.b16 %v474
  %v498 = vunpack.c.h.b16 %v474
  %v499 = vpack.c.b16 %v483, %v483
  %v500 = vpack.c.b16 %v484, %v484
  %v501 = vpack.c.b16 %v485, %v485
  %v502 = vpack.c.b16 %v486, %v486
  %v503 = vpack.c.b16 %v487, %v487
  %v504 = vpack.c.b16 %v488, %v488
  %v505 = vpack.c.b16 %v489, %v489
  %v506 = vpack.c.b16 %v490, %v490
  %v507 = vpack.c.b16 %v491, %v491
  %v508 = vpack.c.b16 %v492, %v492
  %v509 = vpack.c.b16 %v493, %v493
  %v510 = vpack.c.b16 %v494, %v494
  %v511 = vpack.c.b16 %v495, %v495
  %v512 = vpack.c.b16 %v496, %v496
  %v513 = vpack.c.b16 %v497, %v497
  %v514 = vpack.c.b16 %v498, %v498
  %vm531 = vcmask 125952
  %532 = vst.msk [vmem:[%s4] sm:$0xf] %vm531, %v499
  %533 = vst.msk [vmem:[%s4 + $0x4] sm:$0xf] %vm531, %v500
  %534 = vst.msk [vmem:[%s4 + $0x8] sm:$0xf] %vm531, %v501
  %535 = vst.msk [vmem:[%s4 + $0xc] sm:$0xf] %vm531, %v502
  %536 = vst.msk [vmem:[%s4 + $0x10] sm:$0xf] %vm531, %v503
  %537 = vst.msk [vmem:[%s4 + $0x14] sm:$0xf] %vm531, %v504
  %538 = vst.msk [vmem:[%s4 + $0x18] sm:$0xf] %vm531, %v505
  %539 = vst.msk [vmem:[%s4 + $0x1c] sm:$0xf] %vm531, %v506
  %540 = vst.msk [vmem:[%s4 + $0x20] sm:$0xf] %vm531, %v507
  %541 = vst.msk [vmem:[%s4 + $0x24] sm:$0xf] %vm531, %v508
  %542 = vst.msk [vmem:[%s4 + $0x28] sm:$0xf] %vm531, %v509
  %543 = vst.msk [vmem:[%s4 + $0x2c] sm:$0xf] %vm531, %v510
  %544 = vst.msk [vmem:[%s4 + $0x30] sm:$0xf] %vm531, %v511
  %545 = vst.msk [vmem:[%s4 + $0x34] sm:$0xf] %vm531, %v512
  %546 = vst.msk [vmem:[%s4 + $0x38] sm:$0xf] %vm531, %v513
  %547 = vst.msk [vmem:[%s4 + $0x3c] sm:$0xf] %vm531, %v514
  // Predicated region
  $region18: #{forward.30} parent=0 // pred_check
    _
  $region19: #{forward.30} parent=0 // pred_check_branch
    %549 = sbr.rel (0) target = $region21
  $region20: #{forward.30} parent=0 // pred_region
    _
  $region21: #{forward.30} parent=0 // pred_fallthru
    _
  // Predicated region
  $region22: #{forward.30} parent=0 // pred_check
    _
  $region23: #{forward.30} parent=0 // pred_check_branch
    %551 = sbr.rel (0) target = $region25
  $region24: #{forward.30} parent=0 // pred_region
    _
  $region25: #{forward.30} parent=0 // pred_fallthru
    _

// kernel: forward.31
$region0: #{forward.31}
  #allocation0 [shape = 'u32[]', space=smem, size = 0x4, offset = 0x4, fixed_abs, tag = 'smem constant byte address 0x4 - core index']
  #allocation1 [shape = 'u32[144,128]{1,0:T(1,128)}', space=vmem, size = 0x12000, scoped, tag = 'internal scratch']
  %s0 = inlined_call_operand.vmem [shape: bf16[128,48], index: 0, kind: input, shape index: {}]
  %s1 = inlined_call_operand.vmem [shape: bf16[48,32], index: 1, kind: input, shape index: {}]
  %s2 = inlined_call_operand.vmem [shape: f32[1,32], index: 2, kind: input, shape index: {}]
  %s3 = inlined_call_operand.vmem [shape: bf16[128,32], index: 3, kind: output, shape index: {}]
  %s4 = sld [smem:[#allocation0]]
  $region22: #{forward.31} parent=0
    _
  %s6 = ssub.s32 1, %s4
  %s7 = scalar_select 0, %s6, %s4
  // Predicated region
  $region2: #{forward.31} parent=0 // pred_check
    _
  $region3: #{forward.31} parent=0 // pred_check_branch
    %9 = sbr.rel (0) target = $region5
  $region4: #{forward.31} parent=0 // pred_region
    _
  $region5: #{forward.31} parent=0 // pred_fallthru
    _
  // Predicated region
  $region6: #{forward.31} parent=0 // pred_check
    _
  $region7: #{forward.31} parent=0 // pred_check_branch
    %11 = sbr.rel (0) target = $region9
  $region8: #{forward.31} parent=0 // pred_region
    _
  $region9: #{forward.31} parent=0 // pred_fallthru
    _
  // Predicated region
  $region10: #{forward.31} parent=0 // pred_check
    _
  $region11: #{forward.31} parent=0 // pred_check_branch
    %13 = sbr.rel (0) target = $region13
  $region12: #{forward.31} parent=0 // pred_region
    _
  $region13: #{forward.31} parent=0 // pred_fallthru
    _
  %v15 = vld [vmem:[%s0] sm:$0xf]
  %v16 = vld [vmem:[%s0 + $0x4] sm:$0xf]
  %v17 = vld [vmem:[%s0 + $0x8] sm:$0xf]
  %v18 = vld [vmem:[%s0 + $0xc] sm:$0xf]
  %v19 = vld [vmem:[%s0 + $0x10] sm:$0xf]
  %v20 = vld [vmem:[%s0 + $0x14] sm:$0xf]
  %v21 = vld [vmem:[%s0 + $0x18] sm:$0xf]
  %v22 = vld [vmem:[%s0 + $0x1c] sm:$0xf]
  %v23 = vld [vmem:[%s0 + $0x20] sm:$0xf]
  %v24 = vld [vmem:[%s0 + $0x24] sm:$0xf]
  %v25 = vld [vmem:[%s0 + $0x28] sm:$0xf]
  %v26 = vld [vmem:[%s0 + $0x2c] sm:$0xf]
  %v27 = vld [vmem:[%s0 + $0x30] sm:$0xf]
  %v28 = vld [vmem:[%s0 + $0x34] sm:$0xf]
  %v29 = vld [vmem:[%s0 + $0x38] sm:$0xf]
  %v30 = vld [vmem:[%s0 + $0x3c] sm:$0xf]
  %v31 = vld [vmem:[%s1] sm:$0xf]
  %v32 = vld [vmem:[%s1 + $0x4] sm:$0xf]
  %v33 = vld [vmem:[%s1 + $0x8] sm:$0xf]
  %v34 = vld [vmem:[%s1 + $0xc] sm:$0xf]
  %v35 = vld [vmem:[%s1 + $0x10] sm:$0xf]
  %v36 = vld [vmem:[%s1 + $0x14] sm:$0xf]
  %v37 = vld [vmem:[%s2] sm:$0x1]
  %v39 = vlaneseq
  %v40 = vshrl.u32 %v39, 7
  %v41 = vsub.s32 0, %v40
  %v42 = vrot.slane %v37, %v41
  %v60 = vunpack.c.l.b16 %v15
  %v61 = vunpack.c.l.b16 %v16
  %v62 = vunpack.c.l.b16 %v17
  %v63 = vunpack.c.l.b16 %v18
  %v64 = vunpack.c.l.b16 %v19
  %v65 = vunpack.c.l.b16 %v20
  %v66 = vunpack.c.l.b16 %v21
  %v67 = vunpack.c.l.b16 %v22
  %v68 = vunpack.c.l.b16 %v23
  %v69 = vunpack.c.l.b16 %v24
  %v70 = vunpack.c.l.b16 %v25
  %v71 = vunpack.c.l.b16 %v26
  %v72 = vunpack.c.l.b16 %v27
  %v73 = vunpack.c.l.b16 %v28
  %v74 = vunpack.c.l.b16 %v29
  %v75 = vunpack.c.l.b16 %v30
  %v76 = vpack.c.b16 %v61, %v60
  %v77 = vpack.c.b16 %v63, %v62
  %v78 = vpack.c.b16 %v65, %v64
  %v79 = vpack.c.b16 %v67, %v66
  %v80 = vpack.c.b16 %v69, %v68
  %v81 = vpack.c.b16 %v71, %v70
  %v82 = vpack.c.b16 %v73, %v72
  %v83 = vpack.c.b16 %v75, %v74
  %v90 = vunpack.c.l.b16 %v31
  %v91 = vunpack.c.l.b16 %v32
  %v92 = vunpack.c.l.b16 %v33
  %v93 = vunpack.c.l.b16 %v34
  %v94 = vunpack.c.l.b16 %v35
  %v95 = vunpack.c.l.b16 %v36
  %v96 = vpack.c.b16 %v91, %v90
  %v97 = vpack.c.b16 %v93, %v92
  %v98 = vpack.c.b16 %v95, %v94
  %vm102 = vcmask 392192
  %v104 = vsel %vm102, %v76, 0
  %v107 = vsel %vm102, %v77, 0
  %v110 = vsel %vm102, %v78, 0
  %v113 = vsel %vm102, %v79, 0
  %v116 = vsel %vm102, %v80, 0
  %v119 = vsel %vm102, %v81, 0
  %v122 = vsel %vm102, %v82, 0
  %v125 = vsel %vm102, %v83, 0
  %127 = vmatprep.subr.bf16.mxu0 0
  %128 = vmatpush1.bf16.msra.mxu0 0
  %129 = vmatprep.subr.bf16.mxu0 0
  %130 = vmatpush1.bf16.msra.mxu0 0
  %131 = vmatprep.subr.bf16.mxu0 0
  %132 = vmatpush1.bf16.msra.mxu0 0
  %133 = vmatprep.subr.bf16.mxu0 0
  %134 = vmatpush1.bf16.msra.mxu0 0
  %135 = vmatprep.subr.bf16.mxu0 0
  %136 = vmatpush1.bf16.msra.mxu0 0
  %137 = vmatprep.subr.bf16.mxu0 0
  %138 = vmatpush1.bf16.msra.mxu0 %v98
  %139 = vmatprep.subr.bf16.mxu0 0
  %140 = vmatpush1.bf16.msra.mxu0 %v97
  %141 = vmatprep.subr.bf16.mxu0 0
  %142 = vmatpush1.bf16.msra.mxu0 %v96
  %143 = vmatprep.subr.bf16.mxu0 0
  %144 = vmatpush2.bf16.msra.mxu0 0
  %145 = vmatprep.subr.bf16.mxu0 0
  %146 = vmatpush2.bf16.msra.mxu0 0
  %147 = vmatprep.subr.bf16.mxu0 0
  %148 = vmatpush2.bf16.msra.mxu0 0
  %149 = vmatprep.subr.bf16.mxu0 0
  %150 = vmatpush2.bf16.msra.mxu0 0
  %151 = vmatprep.subr.bf16.mxu0 0
  %152 = vmatpush2.bf16.msra.mxu0 0
  %153 = vmatprep.subr.bf16.mxu0 0
  %154 = vmatpush2.bf16.msra.mxu0 0
  %155 = vmatprep.subr.bf16.mxu0 0
  %156 = vmatpush2.bf16.msra.mxu0 0
  %157 = vmatprep.subr.bf16.mxu0 0
  %158 = vmatpush2.bf16.msra.mxu0 0
  %159 = vmatprep.mubr.bf16.mxu0 0
  %160 = vmatmul.mubr.bf16.gmra.mxu0 %v104
  %v161 = vpop.f32.mrf.mxu0
  %v162 = vadd.f32 %v42, %v161
  %v163 = vpop.f32.mrf.mxu0
  %v164 = vpop.f32.mrf.mxu0
  %v165 = vadd.f32 %v42, %v164
  %v166 = vpop.f32.mrf.mxu0
  %167 = vmatprep.mubr.bf16.mxu0 0
  %168 = vmatmul.mubr.bf16.gmra.mxu0 %v107
  %v169 = vpop.f32.mrf.mxu0
  %v170 = vadd.f32 %v42, %v169
  %v171 = vpop.f32.mrf.mxu0
  %v172 = vpop.f32.mrf.mxu0
  %v173 = vadd.f32 %v42, %v172
  %v174 = vpop.f32.mrf.mxu0
  %175 = vmatprep.mubr.bf16.mxu0 0
  %176 = vmatmul.mubr.bf16.gmra.mxu0 %v110
  %v177 = vpop.f32.mrf.mxu0
  %v178 = vadd.f32 %v42, %v177
  %v179 = vpop.f32.mrf.mxu0
  %v180 = vpop.f32.mrf.mxu0
  %v181 = vadd.f32 %v42, %v180
  %v182 = vpop.f32.mrf.mxu0
  %183 = vmatprep.mubr.bf16.mxu0 0
  %184 = vmatmul.mubr.bf16.gmra.mxu0 %v113
  %v185 = vpop.f32.mrf.mxu0
  %v186 = vadd.f32 %v42, %v185
  %v187 = vpop.f32.mrf.mxu0
  %v188 = vpop.f32.mrf.mxu0
  %v189 = vadd.f32 %v42, %v188
  %v190 = vpop.f32.mrf.mxu0
  %191 = vmatprep.mubr.bf16.mxu0 0
  %192 = vmatmul.mubr.bf16.gmra.mxu0 %v116
  %v193 = vpop.f32.mrf.mxu0
  %v194 = vadd.f32 %v42, %v193
  %v195 = vpop.f32.mrf.mxu0
  %v196 = vpop.f32.mrf.mxu0
  %v197 = vadd.f32 %v42, %v196
  %v198 = vpop.f32.mrf.mxu0
  %199 = vmatprep.mubr.bf16.mxu0 0
  %200 = vmatmul.mubr.bf16.gmra.mxu0 %v119
  %v201 = vpop.f32.mrf.mxu0
  %v202 = vadd.f32 %v42, %v201
  %v203 = vpop.f32.mrf.mxu0
  %v204 = vpop.f32.mrf.mxu0
  %v205 = vadd.f32 %v42, %v204
  %v206 = vpop.f32.mrf.mxu0
  %207 = vmatprep.mubr.bf16.mxu0 0
  %208 = vmatmul.mubr.bf16.gmra.mxu0 %v122
  %v209 = vpop.f32.mrf.mxu0
  %v210 = vadd.f32 %v42, %v209
  %v211 = vpop.f32.mrf.mxu0
  %v212 = vpop.f32.mrf.mxu0
  %v213 = vadd.f32 %v42, %v212
  %v214 = vpop.f32.mrf.mxu0
  %215 = vmatprep.mubr.bf16.mxu0 0
  %216 = vmatmul.mubr.bf16.gmra.mxu0 %v125
  %v217 = vpop.f32.mrf.mxu0
  %v218 = vadd.f32 %v42, %v217
  %v219 = vpop.f32.mrf.mxu0
  %v220 = vpop.f32.mrf.mxu0
  %v221 = vadd.f32 %v42, %v220
  %v222 = vpop.f32.mrf.mxu0
  %223 = vdwg.mxu0
  %v224 = vxor.u32 %v162, 2147483648
  %v225 = vxor.u32 %v165, 2147483648
  %v226 = vxor.u32 %v170, 2147483648
  %v227 = vxor.u32 %v173, 2147483648
  %v228 = vxor.u32 %v178, 2147483648
  %v229 = vxor.u32 %v181, 2147483648
  %v230 = vxor.u32 %v186, 2147483648
  %v231 = vxor.u32 %v189, 2147483648
  %v232 = vxor.u32 %v194, 2147483648
  %v233 = vxor.u32 %v197, 2147483648
  %v234 = vxor.u32 %v202, 2147483648
  %v235 = vxor.u32 %v205, 2147483648
  %v236 = vxor.u32 %v210, 2147483648
  %v237 = vxor.u32 %v213, 2147483648
  %v238 = vxor.u32 %v218, 2147483648
  %v239 = vxor.u32 %v221, 2147483648
  %v240 = vmul.f32 %v224, 1.442695
  %v241 = vpow.pop %v240
  %v242 = vmul.f32 %v225, 1.442695
  %v243 = vpow.pop %v242
  %v244 = vmul.f32 %v226, 1.442695
  %v245 = vpow.pop %v244
  %v246 = vmul.f32 %v227, 1.442695
  %v247 = vpow.pop %v246
  %v248 = vmul.f32 %v228, 1.442695
  %v249 = vpow.pop %v248
  %v250 = vmul.f32 %v229, 1.442695
  %v251 = vpow.pop %v250
  %v252 = vmul.f32 %v230, 1.442695
  %v253 = vpow.pop %v252
  %v254 = vmul.f32 %v231, 1.442695
  %v255 = vpow.pop %v254
  %v256 = vmul.f32 %v232, 1.442695
  %v257 = vpow.pop %v256
  %v258 = vmul.f32 %v233, 1.442695
  %v259 = vpow.pop %v258
  %v260 = vmul.f32 %v234, 1.442695
  %v261 = vpow.pop %v260
  %v262 = vmul.f32 %v235, 1.442695
  %v263 = vpow.pop %v262
  %v264 = vmul.f32 %v236, 1.442695
  %v265 = vpow.pop %v264
  %v266 = vmul.f32 %v237, 1.442695
  %v267 = vpow.pop %v266
  %v268 = vmul.f32 %v238, 1.442695
  %v269 = vpow.pop %v268
  %v270 = vmul.f32 %v239, 1.442695
  %v271 = vpow.pop %v270
  %v272 = vadd.f32 %v241, 1.0
  %v273 = vadd.f32 %v243, 1.0
  %v274 = vadd.f32 %v245, 1.0
  %v275 = vadd.f32 %v247, 1.0
  %v276 = vadd.f32 %v249, 1.0
  %v277 = vadd.f32 %v251, 1.0
  %v278 = vadd.f32 %v253, 1.0
  %v279 = vadd.f32 %v255, 1.0
  %v280 = vadd.f32 %v257, 1.0
  %v281 = vadd.f32 %v259, 1.0
  %v282 = vadd.f32 %v261, 1.0
  %v283 = vadd.f32 %v263, 1.0
  %v284 = vadd.f32 %v265, 1.0
  %v285 = vadd.f32 %v267, 1.0
  %v286 = vadd.f32 %v269, 1.0
  %v287 = vadd.f32 %v271, 1.0
  %v288 = vrcp.pop %v272
  %v289 = vmul.f32 1.0, %v288
  %v290 = vrcp.pop %v273
  %v291 = vmul.f32 1.0, %v290
  %v292 = vrcp.pop %v274
  %v293 = vmul.f32 1.0, %v292
  %v294 = vrcp.pop %v275
  %v295 = vmul.f32 1.0, %v294
  %v296 = vrcp.pop %v276
  %v297 = vmul.f32 1.0, %v296
  %v298 = vrcp.pop %v277
  %v299 = vmul.f32 1.0, %v298
  %v300 = vrcp.pop %v278
  %v301 = vmul.f32 1.0, %v300
  %v302 = vrcp.pop %v279
  %v303 = vmul.f32 1.0, %v302
  %v304 = vrcp.pop %v280
  %v305 = vmul.f32 1.0, %v304
  %v306 = vrcp.pop %v281
  %v307 = vmul.f32 1.0, %v306
  %v308 = vrcp.pop %v282
  %v309 = vmul.f32 1.0, %v308
  %v310 = vrcp.pop %v283
  %v311 = vmul.f32 1.0, %v310
  %v312 = vrcp.pop %v284
  %v313 = vmul.f32 1.0, %v312
  %v314 = vrcp.pop %v285
  %v315 = vmul.f32 1.0, %v314
  %v316 = vrcp.pop %v286
  %v317 = vmul.f32 1.0, %v316
  %v318 = vrcp.pop %v287
  %v319 = vmul.f32 1.0, %v318
  %v320 = vmul.f32 %v162, %v289
  %v321 = vmul.f32 %v165, %v291
  %v322 = vmul.f32 %v170, %v293
  %v323 = vmul.f32 %v173, %v295
  %v324 = vmul.f32 %v178, %v297
  %v325 = vmul.f32 %v181, %v299
  %v326 = vmul.f32 %v186, %v301
  %v327 = vmul.f32 %v189, %v303
  %v328 = vmul.f32 %v194, %v305
  %v329 = vmul.f32 %v197, %v307
  %v330 = vmul.f32 %v202, %v309
  %v331 = vmul.f32 %v205, %v311
  %v332 = vmul.f32 %v210, %v313
  %v333 = vmul.f32 %v213, %v315
  %v334 = vmul.f32 %v218, %v317
  %v335 = vmul.f32 %v221, %v319
  %v336 = vpack.c.bf16 %v321, %v320
  %v337 = vpack.c.bf16 %v323, %v322
  %v338 = vpack.c.bf16 %v325, %v324
  %v339 = vpack.c.bf16 %v327, %v326
  %v340 = vpack.c.bf16 %v329, %v328
  %v341 = vpack.c.bf16 %v331, %v330
  %v342 = vpack.c.bf16 %v333, %v332
  %v343 = vpack.c.bf16 %v335, %v334
  %v352 = vunpack.c.l.b16 %v336
  %v353 = vunpack.c.h.b16 %v336
  %v354 = vunpack.c.l.b16 %v337
  %v355 = vunpack.c.h.b16 %v337
  %v356 = vunpack.c.l.b16 %v338
  %v357 = vunpack.c.h.b16 %v338
  %v358 = vunpack.c.l.b16 %v339
  %v359 = vunpack.c.h.b16 %v339
  %v360 = vunpack.c.l.b16 %v340
  %v361 = vunpack.c.h.b16 %v340
  %v362 = vunpack.c.l.b16 %v341
  %v363 = vunpack.c.h.b16 %v341
  %v364 = vunpack.c.l.b16 %v342
  %v365 = vunpack.c.h.b16 %v342
  %v366 = vunpack.c.l.b16 %v343
  %v367 = vunpack.c.h.b16 %v343
  %v368 = vpack.c.b16 %v352, %v352
  %v369 = vpack.c.b16 %v353, %v353
  %v370 = vpack.c.b16 %v354, %v354
  %v371 = vpack.c.b16 %v355, %v355
  %v372 = vpack.c.b16 %v356, %v356
  %v373 = vpack.c.b16 %v357, %v357
  %v374 = vpack.c.b16 %v358, %v358
  %v375 = vpack.c.b16 %v359, %v359
  %v376 = vpack.c.b16 %v360, %v360
  %v377 = vpack.c.b16 %v361, %v361
  %v378 = vpack.c.b16 %v362, %v362
  %v379 = vpack.c.b16 %v363, %v363
  %v380 = vpack.c.b16 %v364, %v364
  %v381 = vpack.c.b16 %v365, %v365
  %v382 = vpack.c.b16 %v366, %v366
  %v383 = vpack.c.b16 %v367, %v367
  %vm400 = vcmask 257024
  %401 = vst.msk [vmem:[%s3] sm:$0xf] %vm400, %v368
  %402 = vst.msk [vmem:[%s3 + $0x4] sm:$0xf] %vm400, %v369
  %403 = vst.msk [vmem:[%s3 + $0x8] sm:$0xf] %vm400, %v370
  %404 = vst.msk [vmem:[%s3 + $0xc] sm:$0xf] %vm400, %v371
  %405 = vst.msk [vmem:[%s3 + $0x10] sm:$0xf] %vm400, %v372
  %406 = vst.msk [vmem:[%s3 + $0x14] sm:$0xf] %vm400, %v373
  %407 = vst.msk [vmem:[%s3 + $0x18] sm:$0xf] %vm400, %v374
  %408 = vst.msk [vmem:[%s3 + $0x1c] sm:$0xf] %vm400, %v375
  %409 = vst.msk [vmem:[%s3 + $0x20] sm:$0xf] %vm400, %v376
  %410 = vst.msk [vmem:[%s3 + $0x24] sm:$0xf] %vm400, %v377
  %411 = vst.msk [vmem:[%s3 + $0x28] sm:$0xf] %vm400, %v378
  %412 = vst.msk [vmem:[%s3 + $0x2c] sm:$0xf] %vm400, %v379
  %413 = vst.msk [vmem:[%s3 + $0x30] sm:$0xf] %vm400, %v380
  %414 = vst.msk [vmem:[%s3 + $0x34] sm:$0xf] %vm400, %v381
  %415 = vst.msk [vmem:[%s3 + $0x38] sm:$0xf] %vm400, %v382
  %416 = vst.msk [vmem:[%s3 + $0x3c] sm:$0xf] %vm400, %v383
  // Predicated region
  $region14: #{forward.31} parent=0 // pred_check
    _
  $region15: #{forward.31} parent=0 // pred_check_branch
    %418 = sbr.rel (0) target = $region17
  $region16: #{forward.31} parent=0 // pred_region
    _
  $region17: #{forward.31} parent=0 // pred_fallthru
    _
  // Predicated region
  $region18: #{forward.31} parent=0 // pred_check
    _
  $region19: #{forward.31} parent=0 // pred_check_branch
    %420 = sbr.rel (0) target = $region21
  $region20: #{forward.31} parent=0 // pred_region
    _
  $region21: #{forward.31} parent=0 // pred_fallthru
    _

// kernel: forward.32
$region0: #{forward.32}
  #allocation0 [shape = 'u32[]', space=smem, size = 0x4, offset = 0x4, fixed_abs, tag = 'smem constant byte address 0x4 - core index']
  #allocation1 [shape = 'u32[144,128]{1,0:T(1,128)}', space=vmem, size = 0x12000, scoped, tag = 'internal scratch']
  %s0 = inlined_call_operand.vmem [shape: bf16[32,288], index: 0, kind: input, shape index: {}]
  %s1 = inlined_call_operand.vmem [shape: bf16[288,64], index: 1, kind: input, shape index: {}]
  %s2 = inlined_call_operand.vmem [shape: f32[1,64], index: 2, kind: input, shape index: {}]
  %s3 = inlined_call_operand.vmem [shape: bf16[32,64], index: 3, kind: output, shape index: {}]
  %s4 = sld [smem:[#allocation0]]
  $region22: #{forward.32} parent=0
    _
  %s6 = ssub.s32 1, %s4
  %s7 = scalar_select 0, %s6, %s4
  // Predicated region
  $region2: #{forward.32} parent=0 // pred_check
    _
  $region3: #{forward.32} parent=0 // pred_check_branch
    %9 = sbr.rel (0) target = $region5
  $region4: #{forward.32} parent=0 // pred_region
    _
  $region5: #{forward.32} parent=0 // pred_fallthru
    _
  // Predicated region
  $region6: #{forward.32} parent=0 // pred_check
    _
  $region7: #{forward.32} parent=0 // pred_check_branch
    %11 = sbr.rel (0) target = $region9
  $region8: #{forward.32} parent=0 // pred_region
    _
  $region9: #{forward.32} parent=0 // pred_fallthru
    _
  // Predicated region
  $region10: #{forward.32} parent=0 // pred_check
    _
  $region11: #{forward.32} parent=0 // pred_check_branch
    %13 = sbr.rel (0) target = $region13
  $region12: #{forward.32} parent=0 // pred_region
    _
  $region13: #{forward.32} parent=0 // pred_fallthru
    _
  %v15 = vld [vmem:[%s0] sm:$0xff]
  %v16 = vld [vmem:[%s0 + $0x8] sm:$0xf]
  %v17 = vld [vmem:[%s0 + $0xc] sm:$0xff]
  %v18 = vld [vmem:[%s0 + $0x14] sm:$0xf]
  %v19 = vld [vmem:[%s0 + $0x18] sm:$0xff]
  %v20 = vld [vmem:[%s0 + $0x20] sm:$0xf]
  %v21 = vld [vmem:[%s0 + $0x24] sm:$0xff]
  %v22 = vld [vmem:[%s0 + $0x2c] sm:$0xf]
  %v23 = vld [vmem:[%s1] sm:$0xf]
  %v24 = vld [vmem:[%s1 + $0x4] sm:$0xf]
  %v25 = vld [vmem:[%s1 + $0x8] sm:$0xf]
  %v26 = vld [vmem:[%s1 + $0xc] sm:$0xf]
  %v27 = vld [vmem:[%s1 + $0x10] sm:$0xf]
  %v28 = vld [vmem:[%s1 + $0x14] sm:$0xf]
  %v29 = vld [vmem:[%s1 + $0x18] sm:$0xf]
  %v30 = vld [vmem:[%s1 + $0x1c] sm:$0xf]
  %v31 = vld [vmem:[%s1 + $0x20] sm:$0xf]
  %v32 = vld [vmem:[%s1 + $0x24] sm:$0xf]
  %v33 = vld [vmem:[%s1 + $0x28] sm:$0xf]
  %v34 = vld [vmem:[%s1 + $0x2c] sm:$0xf]
  %v35 = vld [vmem:[%s1 + $0x30] sm:$0xf]
  %v36 = vld [vmem:[%s1 + $0x34] sm:$0xf]
  %v37 = vld [vmem:[%s1 + $0x38] sm:$0xf]
  %v38 = vld [vmem:[%s1 + $0x3c] sm:$0xf]
  %v39 = vld [vmem:[%s1 + $0x40] sm:$0xf]
  %v40 = vld [vmem:[%s1 + $0x44] sm:$0xf]
  %v41 = vld [vmem:[%s1 + $0x48] sm:$0xf]
  %v42 = vld [vmem:[%s1 + $0x4c] sm:$0xf]
  %v43 = vld [vmem:[%s1 + $0x50] sm:$0xf]
  %v44 = vld [vmem:[%s1 + $0x54] sm:$0xf]
  %v45 = vld [vmem:[%s1 + $0x58] sm:$0xf]
  %v46 = vld [vmem:[%s1 + $0x5c] sm:$0xf]
  %v47 = vld [vmem:[%s1 + $0x60] sm:$0xf]
  %v48 = vld [vmem:[%s1 + $0x64] sm:$0xf]
  %v49 = vld [vmem:[%s1 + $0x68] sm:$0xf]
  %v50 = vld [vmem:[%s1 + $0x6c] sm:$0xf]
  %v51 = vld [vmem:[%s1 + $0x70] sm:$0xf]
  %v52 = vld [vmem:[%s1 + $0x74] sm:$0xf]
  %v53 = vld [vmem:[%s1 + $0x78] sm:$0xf]
  %v54 = vld [vmem:[%s1 + $0x7c] sm:$0xf]
  %v55 = vld [vmem:[%s1 + $0x80] sm:$0xf]
  %v56 = vld [vmem:[%s1 + $0x84] sm:$0xf]
  %v57 = vld [vmem:[%s1 + $0x88] sm:$0xf]
  %v58 = vld [vmem:[%s1 + $0x8c] sm:$0xf]
  %v59 = vld [vmem:[%s2] sm:$0x1]
  %v61 = vlaneseq
  %v62 = vshrl.u32 %v61, 7
  %v63 = vsub.s32 0, %v62
  %v64 = vrot.slane %v59, %v63
  %v74 = vunpack.c.l.b16 %v15
  %v75 = vunpack.c.h.b16 %v15
  %v76 = vunpack.c.l.b16 %v16
  %v77 = vunpack.c.l.b16 %v17
  %v78 = vunpack.c.h.b16 %v17
  %v79 = vunpack.c.l.b16 %v18
  %v80 = vunpack.c.l.b16 %v19
  %v81 = vunpack.c.h.b16 %v19
  %v82 = vunpack.c.l.b16 %v20
  %v83 = vunpack.c.l.b16 %v21
  %v84 = vunpack.c.h.b16 %v21
  %v85 = vunpack.c.l.b16 %v22
  %v86 = vpack.c.b16 %v77, %v74
  %v87 = vpack.c.b16 %v78, %v75
  %v88 = vpack.c.b16 %v79, %v76
  %v89 = vpack.c.b16 %v83, %v80
  %v90 = vpack.c.b16 %v84, %v81
  %v91 = vpack.c.b16 %v85, %v82
  %v132 = vunpack.c.l.b16 %v23
  %v133 = vunpack.c.l.b16 %v24
  %v134 = vunpack.c.l.b16 %v25
  %v135 = vunpack.c.l.b16 %v26
  %v136 = vunpack.c.l.b16 %v27
  %v137 = vunpack.c.l.b16 %v28
  %v138 = vunpack.c.l.b16 %v29
  %v139 = vunpack.c.l.b16 %v30
  %v140 = vunpack.c.l.b16 %v31
  %v141 = vunpack.c.l.b16 %v32
  %v142 = vunpack.c.l.b16 %v33
  %v143 = vunpack.c.l.b16 %v34
  %v144 = vunpack.c.l.b16 %v35
  %v145 = vunpack.c.l.b16 %v36
  %v146 = vunpack.c.l.b16 %v37
  %v147 = vunpack.c.l.b16 %v38
  %v148 = vunpack.c.l.b16 %v39
  %v149 = vunpack.c.l.b16 %v40
  %v150 = vunpack.c.l.b16 %v41
  %v151 = vunpack.c.l.b16 %v42
  %v152 = vunpack.c.l.b16 %v43
  %v153 = vunpack.c.l.b16 %v44
  %v154 = vunpack.c.l.b16 %v45
  %v155 = vunpack.c.l.b16 %v46
  %v156 = vunpack.c.l.b16 %v47
  %v157 = vunpack.c.l.b16 %v48
  %v158 = vunpack.c.l.b16 %v49
  %v159 = vunpack.c.l.b16 %v50
  %v160 = vunpack.c.l.b16 %v51
  %v161 = vunpack.c.l.b16 %v52
  %v162 = vunpack.c.l.b16 %v53
  %v163 = vunpack.c.l.b16 %v54
  %v164 = vunpack.c.l.b16 %v55
  %v165 = vunpack.c.l.b16 %v56
  %v166 = vunpack.c.l.b16 %v57
  %v167 = vunpack.c.l.b16 %v58
  %v168 = vpack.c.b16 %v133, %v132
  %v169 = vpack.c.b16 %v135, %v134
  %v170 = vpack.c.b16 %v137, %v136
  %v171 = vpack.c.b16 %v139, %v138
  %v172 = vpack.c.b16 %v141, %v140
  %v173 = vpack.c.b16 %v143, %v142
  %v174 = vpack.c.b16 %v145, %v144
  %v175 = vpack.c.b16 %v147, %v146
  %v176 = vpack.c.b16 %v149, %v148
  %v177 = vpack.c.b16 %v151, %v150
  %v178 = vpack.c.b16 %v153, %v152
  %v179 = vpack.c.b16 %v155, %v154
  %v180 = vpack.c.b16 %v157, %v156
  %v181 = vpack.c.b16 %v159, %v158
  %v182 = vpack.c.b16 %v161, %v160
  %v183 = vpack.c.b16 %v163, %v162
  %v184 = vpack.c.b16 %v165, %v164
  %v185 = vpack.c.b16 %v167, %v166
  %vm204 = vcmask 261120
  %v206 = vsel %vm204, %v88, 0
  %v209 = vsel %vm204, %v91, 0
  %211 = vmatprep.subr.bf16.mxu0 0
  %212 = vmatpush1.bf16.msra.mxu0 %v175
  %213 = vmatprep.subr.bf16.mxu0 0
  %214 = vmatpush1.bf16.msra.mxu0 %v174
  %215 = vmatprep.subr.bf16.mxu0 0
  %216 = vmatpush1.bf16.msra.mxu0 %v173
  %217 = vmatprep.subr.bf16.mxu0 0
  %218 = vmatpush1.bf16.msra.mxu0 %v172
  %219 = vmatprep.subr.bf16.mxu0 0
  %220 = vmatpush1.bf16.msra.mxu0 %v171
  %221 = vmatprep.subr.bf16.mxu0 0
  %222 = vmatpush1.bf16.msra.mxu0 %v170
  %223 = vmatprep.subr.bf16.mxu0 0
  %224 = vmatpush1.bf16.msra.mxu0 %v169
  %225 = vmatprep.subr.bf16.mxu0 0
  %226 = vmatpush1.bf16.msra.mxu0 %v168
  %227 = vmatprep.subr.bf16.mxu0 0
  %228 = vmatpush2.bf16.msra.mxu0 %v183
  %229 = vmatprep.subr.bf16.mxu0 0
  %230 = vmatpush2.bf16.msra.mxu0 %v182
  %231 = vmatprep.subr.bf16.mxu0 0
  %232 = vmatpush2.bf16.msra.mxu0 %v181
  %233 = vmatprep.subr.bf16.mxu0 0
  %234 = vmatpush2.bf16.msra.mxu0 %v180
  %235 = vmatprep.subr.bf16.mxu0 0
  %236 = vmatpush2.bf16.msra.mxu0 %v179
  %237 = vmatprep.subr.bf16.mxu0 0
  %238 = vmatpush2.bf16.msra.mxu0 %v178
  %239 = vmatprep.subr.bf16.mxu0 0
  %240 = vmatpush2.bf16.msra.mxu0 %v177
  %241 = vmatprep.subr.bf16.mxu0 0
  %242 = vmatpush2.bf16.msra.mxu0 %v176
  %243 = vmatprep.mubr.bf16.mxu0 %v87
  %244 = vmatmul.mubr.bf16.gmra.mxu0 %v86
  %v245 = vpop.f32.mrf.mxu0
  %v246 = vadd.f32 %v64, %v245
  %v247 = vpop.f32.mrf.mxu0
  %v248 = vpop.f32.mrf.mxu0
  %v249 = vadd.f32 %v64, %v248
  %v250 = vpop.f32.mrf.mxu0
  %251 = vmatprep.mubr.bf16.mxu0 %v90
  %252 = vmatmul.mubr.bf16.gmra.mxu0 %v89
  %v253 = vpop.f32.mrf.mxu0
  %v254 = vadd.f32 %v64, %v253
  %v255 = vpop.f32.mrf.mxu0
  %v256 = vpop.f32.mrf.mxu0
  %v257 = vadd.f32 %v64, %v256
  %v258 = vpop.f32.mrf.mxu0
  %259 = vdwg.mxu0
  %260 = vmatprep.subr.bf16.mxu0 0
  %261 = vmatpush1.bf16.msra.mxu0 0
  %262 = vmatprep.subr.bf16.mxu0 0
  %263 = vmatpush1.bf16.msra.mxu0 0
  %264 = vmatprep.subr.bf16.mxu0 0
  %265 = vmatpush1.bf16.msra.mxu0 0
  %266 = vmatprep.subr.bf16.mxu0 0
  %267 = vmatpush1.bf16.msra.mxu0 0
  %268 = vmatprep.subr.bf16.mxu0 0
  %269 = vmatpush1.bf16.msra.mxu0 0
  %270 = vmatprep.subr.bf16.mxu0 0
  %271 = vmatpush1.bf16.msra.mxu0 0
  %272 = vmatprep.subr.bf16.mxu0 0
  %273 = vmatpush1.bf16.msra.mxu0 %v185
  %274 = vmatprep.subr.bf16.mxu0 0
  %275 = vmatpush1.bf16.msra.mxu0 %v184
  %276 = vmatprep.subr.bf16.mxu0 0
  %277 = vmatpush2.bf16.msra.mxu0 0
  %278 = vmatprep.subr.bf16.mxu0 0
  %279 = vmatpush2.bf16.msra.mxu0 0
  %280 = vmatprep.subr.bf16.mxu0 0
  %281 = vmatpush2.bf16.msra.mxu0 0
  %282 = vmatprep.subr.bf16.mxu0 0
  %283 = vmatpush2.bf16.msra.mxu0 0
  %284 = vmatprep.subr.bf16.mxu0 0
  %285 = vmatpush2.bf16.msra.mxu0 0
  %286 = vmatprep.subr.bf16.mxu0 0
  %287 = vmatpush2.bf16.msra.mxu0 0
  %288 = vmatprep.subr.bf16.mxu0 0
  %289 = vmatpush2.bf16.msra.mxu0 0
  %290 = vmatprep.subr.bf16.mxu0 0
  %291 = vmatpush2.bf16.msra.mxu0 0
  %292 = vmatprep.mubr.bf16.mxu0 0
  %293 = vmatmul.mubr.bf16.gmra.mxu0 %v206
  %v294 = vpop.f32.mrf.mxu0
  %v295 = vadd.f32 %v246, %v294
  %v296 = vpop.f32.mrf.mxu0
  %v297 = vpop.f32.mrf.mxu0
  %v298 = vadd.f32 %v249, %v297
  %v299 = vpop.f32.mrf.mxu0
  %300 = vmatprep.mubr.bf16.mxu0 0
  %301 = vmatmul.mubr.bf16.gmra.mxu0 %v209
  %v302 = vpop.f32.mrf.mxu0
  %v303 = vadd.f32 %v254, %v302
  %v304 = vpop.f32.mrf.mxu0
  %v305 = vpop.f32.mrf.mxu0
  %v306 = vadd.f32 %v257, %v305
  %v307 = vpop.f32.mrf.mxu0
  %308 = vdwg.mxu0
  %v309 = vxor.u32 %v295, 2147483648
  %v310 = vxor.u32 %v298, 2147483648
  %v311 = vxor.u32 %v303, 2147483648
  %v312 = vxor.u32 %v306, 2147483648
  %v313 = vmul.f32 %v309, 1.442695
  %v314 = vpow.pop %v313
  %v315 = vmul.f32 %v310, 1.442695
  %v316 = vpow.pop %v315
  %v317 = vmul.f32 %v311, 1.442695
  %v318 = vpow.pop %v317
  %v319 = vmul.f32 %v312, 1.442695
  %v320 = vpow.pop %v319
  %v321 = vadd.f32 %v314, 1.0
  %v322 = vadd.f32 %v316, 1.0
  %v323 = vadd.f32 %v318, 1.0
  %v324 = vadd.f32 %v320, 1.0
  %v325 = vrcp.pop %v321
  %v326 = vmul.f32 1.0, %v325
  %v327 = vrcp.pop %v322
  %v328 = vmul.f32 1.0, %v327
  %v329 = vrcp.pop %v323
  %v330 = vmul.f32 1.0, %v329
  %v331 = vrcp.pop %v324
  %v332 = vmul.f32 1.0, %v331
  %v333 = vmul.f32 %v295, %v326
  %v334 = vmul.f32 %v298, %v328
  %v335 = vmul.f32 %v303, %v330
  %v336 = vmul.f32 %v306, %v332
  %v337 = vpack.c.bf16 %v334, %v333
  %v338 = vpack.c.bf16 %v336, %v335
  %v341 = vunpack.c.l.b16 %v337
  %v342 = vunpack.c.h.b16 %v337
  %v343 = vunpack.c.l.b16 %v338
  %v344 = vunpack.c.h.b16 %v338
  %v345 = vpack.c.b16 %v341, %v341
  %v346 = vpack.c.b16 %v342, %v342
  %v347 = vpack.c.b16 %v343, %v343
  %v348 = vpack.c.b16 %v344, %v344
  %vm353 = vcmask 519168
  %354 = vst.msk [vmem:[%s3] sm:$0xf] %vm353, %v345
  %355 = vst.msk [vmem:[%s3 + $0x4] sm:$0xf] %vm353, %v346
  %356 = vst.msk [vmem:[%s3 + $0x8] sm:$0xf] %vm353, %v347
  %357 = vst.msk [vmem:[%s3 + $0xc] sm:$0xf] %vm353, %v348
  // Predicated region
  $region14: #{forward.32} parent=0 // pred_check
    _
  $region15: #{forward.32} parent=0 // pred_check_branch
    %359 = sbr.rel (0) target = $region17
  $region16: #{forward.32} parent=0 // pred_region
    _
  $region17: #{forward.32} parent=0 // pred_fallthru
    _
  // Predicated region
  $region18: #{forward.32} parent=0 // pred_check
    _
  $region19: #{forward.32} parent=0 // pred_check_branch
    %361 = sbr.rel (0) target = $region21
  $region20: #{forward.32} parent=0 // pred_region
    _
  $region21: #{forward.32} parent=0 // pred_fallthru
    _

// kernel: forward.33
$region0: #{forward.33}
  #allocation0 [shape = 'u32[]', space=smem, size = 0x4, offset = 0x4, fixed_abs, tag = 'smem constant byte address 0x4 - core index']
  #allocation1 [shape = 'u32[144,128]{1,0:T(1,128)}', space=vmem, size = 0x12000, scoped, tag = 'internal scratch']
  %s0 = inlined_call_operand.vmem [shape: bf16[32,64], index: 0, kind: input, shape index: {}]
  %s1 = inlined_call_operand.vmem [shape: bf16[64,64], index: 1, kind: input, shape index: {}]
  %s2 = inlined_call_operand.vmem [shape: f32[1,64], index: 2, kind: input, shape index: {}]
  %s3 = inlined_call_operand.vmem [shape: bf16[32,64], index: 3, kind: output, shape index: {}]
  %s4 = sld [smem:[#allocation0]]
  $region22: #{forward.33} parent=0
    _
  %s6 = ssub.s32 1, %s4
  %s7 = scalar_select 0, %s6, %s4
  // Predicated region
  $region2: #{forward.33} parent=0 // pred_check
    _
  $region3: #{forward.33} parent=0 // pred_check_branch
    %9 = sbr.rel (0) target = $region5
  $region4: #{forward.33} parent=0 // pred_region
    _
  $region5: #{forward.33} parent=0 // pred_fallthru
    _
  // Predicated region
  $region6: #{forward.33} parent=0 // pred_check
    _
  $region7: #{forward.33} parent=0 // pred_check_branch
    %11 = sbr.rel (0) target = $region9
  $region8: #{forward.33} parent=0 // pred_region
    _
  $region9: #{forward.33} parent=0 // pred_fallthru
    _
  // Predicated region
  $region10: #{forward.33} parent=0 // pred_check
    _
  $region11: #{forward.33} parent=0 // pred_check_branch
    %13 = sbr.rel (0) target = $region13
  $region12: #{forward.33} parent=0 // pred_region
    _
  $region13: #{forward.33} parent=0 // pred_fallthru
    _
  %v15 = vld [vmem:[%s0] sm:$0xf]
  %v16 = vld [vmem:[%s0 + $0x4] sm:$0xf]
  %v17 = vld [vmem:[%s0 + $0x8] sm:$0xf]
  %v18 = vld [vmem:[%s0 + $0xc] sm:$0xf]
  %v19 = vld [vmem:[%s1] sm:$0xf]
  %v20 = vld [vmem:[%s1 + $0x4] sm:$0xf]
  %v21 = vld [vmem:[%s1 + $0x8] sm:$0xf]
  %v22 = vld [vmem:[%s1 + $0xc] sm:$0xf]
  %v23 = vld [vmem:[%s1 + $0x10] sm:$0xf]
  %v24 = vld [vmem:[%s1 + $0x14] sm:$0xf]
  %v25 = vld [vmem:[%s1 + $0x18] sm:$0xf]
  %v26 = vld [vmem:[%s1 + $0x1c] sm:$0xf]
  %v27 = vld [vmem:[%s2] sm:$0x1]
  %v29 = vlaneseq
  %v30 = vshrl.u32 %v29, 7
  %v31 = vsub.s32 0, %v30
  %v32 = vrot.slane %v27, %v31
  %v38 = vunpack.c.l.b16 %v15
  %v39 = vunpack.c.l.b16 %v16
  %v40 = vunpack.c.l.b16 %v17
  %v41 = vunpack.c.l.b16 %v18
  %v42 = vpack.c.b16 %v39, %v38
  %v43 = vpack.c.b16 %v41, %v40
  %v52 = vunpack.c.l.b16 %v19
  %v53 = vunpack.c.l.b16 %v20
  %v54 = vunpack.c.l.b16 %v21
  %v55 = vunpack.c.l.b16 %v22
  %v56 = vunpack.c.l.b16 %v23
  %v57 = vunpack.c.l.b16 %v24
  %v58 = vunpack.c.l.b16 %v25
  %v59 = vunpack.c.l.b16 %v26
  %v60 = vpack.c.b16 %v53, %v52
  %v61 = vpack.c.b16 %v55, %v54
  %v62 = vpack.c.b16 %v57, %v56
  %v63 = vpack.c.b16 %v59, %v58
  %vm68 = vcmask 523264
  %v70 = vsel %vm68, %v42, 0
  %v73 = vsel %vm68, %v43, 0
  %75 = vmatprep.subr.bf16.mxu0 0
  %76 = vmatpush1.bf16.msra.mxu0 0
  %77 = vmatprep.subr.bf16.mxu0 0
  %78 = vmatpush1.bf16.msra.mxu0 0
  %79 = vmatprep.subr.bf16.mxu0 0
  %80 = vmatpush1.bf16.msra.mxu0 0
  %81 = vmatprep.subr.bf16.mxu0 0
  %82 = vmatpush1.bf16.msra.mxu0 0
  %83 = vmatprep.subr.bf16.mxu0 0
  %84 = vmatpush1.bf16.msra.mxu0 %v63
  %85 = vmatprep.subr.bf16.mxu0 0
  %86 = vmatpush1.bf16.msra.mxu0 %v62
  %87 = vmatprep.subr.bf16.mxu0 0
  %88 = vmatpush1.bf16.msra.mxu0 %v61
  %89 = vmatprep.subr.bf16.mxu0 0
  %90 = vmatpush1.bf16.msra.mxu0 %v60
  %91 = vmatprep.subr.bf16.mxu0 0
  %92 = vmatpush2.bf16.msra.mxu0 0
  %93 = vmatprep.subr.bf16.mxu0 0
  %94 = vmatpush2.bf16.msra.mxu0 0
  %95 = vmatprep.subr.bf16.mxu0 0
  %96 = vmatpush2.bf16.msra.mxu0 0
  %97 = vmatprep.subr.bf16.mxu0 0
  %98 = vmatpush2.bf16.msra.mxu0 0
  %99 = vmatprep.subr.bf16.mxu0 0
  %100 = vmatpush2.bf16.msra.mxu0 0
  %101 = vmatprep.subr.bf16.mxu0 0
  %102 = vmatpush2.bf16.msra.mxu0 0
  %103 = vmatprep.subr.bf16.mxu0 0
  %104 = vmatpush2.bf16.msra.mxu0 0
  %105 = vmatprep.subr.bf16.mxu0 0
  %106 = vmatpush2.bf16.msra.mxu0 0
  %107 = vmatprep.mubr.bf16.mxu0 0
  %108 = vmatmul.mubr.bf16.gmra.mxu0 %v70
  %v109 = vpop.f32.mrf.mxu0
  %v110 = vadd.f32 %v32, %v109
  %v111 = vpop.f32.mrf.mxu0
  %v112 = vpop.f32.mrf.mxu0
  %v113 = vadd.f32 %v32, %v112
  %v114 = vpop.f32.mrf.mxu0
  %115 = vmatprep.mubr.bf16.mxu0 0
  %116 = vmatmul.mubr.bf16.gmra.mxu0 %v73
  %v117 = vpop.f32.mrf.mxu0
  %v118 = vadd.f32 %v32, %v117
  %v119 = vpop.f32.mrf.mxu0
  %v120 = vpop.f32.mrf.mxu0
  %v121 = vadd.f32 %v32, %v120
  %v122 = vpop.f32.mrf.mxu0
  %123 = vdwg.mxu0
  %v124 = vxor.u32 %v110, 2147483648
  %v125 = vxor.u32 %v113, 2147483648
  %v126 = vxor.u32 %v118, 2147483648
  %v127 = vxor.u32 %v121, 2147483648
  %v128 = vmul.f32 %v124, 1.442695
  %v129 = vpow.pop %v128
  %v130 = vmul.f32 %v125, 1.442695
  %v131 = vpow.pop %v130
  %v132 = vmul.f32 %v126, 1.442695
  %v133 = vpow.pop %v132
  %v134 = vmul.f32 %v127, 1.442695
  %v135 = vpow.pop %v134
  %v136 = vadd.f32 %v129, 1.0
  %v137 = vadd.f32 %v131, 1.0
  %v138 = vadd.f32 %v133, 1.0
  %v139 = vadd.f32 %v135, 1.0
  %v140 = vrcp.pop %v136
  %v141 = vmul.f32 1.0, %v140
  %v142 = vrcp.pop %v137
  %v143 = vmul.f32 1.0, %v142
  %v144 = vrcp.pop %v138
  %v145 = vmul.f32 1.0, %v144
  %v146 = vrcp.pop %v139
  %v147 = vmul.f32 1.0, %v146
  %v148 = vmul.f32 %v110, %v141
  %v149 = vmul.f32 %v113, %v143
  %v150 = vmul.f32 %v118, %v145
  %v151 = vmul.f32 %v121, %v147
  %v152 = vpack.c.bf16 %v149, %v148
  %v153 = vpack.c.bf16 %v151, %v150
  %v156 = vunpack.c.l.b16 %v152
  %v157 = vunpack.c.h.b16 %v152
  %v158 = vunpack.c.l.b16 %v153
  %v159 = vunpack.c.h.b16 %v153
  %v160 = vpack.c.b16 %v156, %v156
  %v161 = vpack.c.b16 %v157, %v157
  %v162 = vpack.c.b16 %v158, %v158
  %v163 = vpack.c.b16 %v159, %v159
  %vm168 = vcmask 519168
  %169 = vst.msk [vmem:[%s3] sm:$0xf] %vm168, %v160
  %170 = vst.msk [vmem:[%s3 + $0x4] sm:$0xf] %vm168, %v161
  %171 = vst.msk [vmem:[%s3 + $0x8] sm:$0xf] %vm168, %v162
  %172 = vst.msk [vmem:[%s3 + $0xc] sm:$0xf] %vm168, %v163
  // Predicated region
  $region14: #{forward.33} parent=0 // pred_check
    _
  $region15: #{forward.33} parent=0 // pred_check_branch
    %174 = sbr.rel (0) target = $region17
  $region16: #{forward.33} parent=0 // pred_region
    _
  $region17: #{forward.33} parent=0 // pred_fallthru
    _
  // Predicated region
  $region18: #{forward.33} parent=0 // pred_check
    _
  $region19: #{forward.33} parent=0 // pred_check_branch
    %176 = sbr.rel (0) target = $region21
  $region20: #{forward.33} parent=0 // pred_region
    _
  $region21: #{forward.33} parent=0 // pred_fallthru
    _

// kernel: forward.34
$region0: #{forward.34}
  #allocation0 [shape = 'u32[]', space=smem, size = 0x4, offset = 0x4, fixed_abs, tag = 'smem constant byte address 0x4 - core index']
  #allocation1 [shape = 'u32[144,128]{1,0:T(1,128)}', space=vmem, size = 0x12000, scoped, tag = 'internal scratch']
  %s0 = inlined_call_operand.vmem [shape: bf16[32,288], index: 0, kind: input, shape index: {}]
  %s1 = inlined_call_operand.vmem [shape: bf16[288,32], index: 1, kind: input, shape index: {}]
  %s2 = inlined_call_operand.vmem [shape: f32[1,32], index: 2, kind: input, shape index: {}]
  %s3 = inlined_call_operand.vmem [shape: bf16[32,32], index: 3, kind: output, shape index: {}]
  %s4 = sld [smem:[#allocation0]]
  $region22: #{forward.34} parent=0
    _
  %s6 = ssub.s32 1, %s4
  %s7 = scalar_select 0, %s6, %s4
  // Predicated region
  $region2: #{forward.34} parent=0 // pred_check
    _
  $region3: #{forward.34} parent=0 // pred_check_branch
    %9 = sbr.rel (0) target = $region5
  $region4: #{forward.34} parent=0 // pred_region
    _
  $region5: #{forward.34} parent=0 // pred_fallthru
    _
  // Predicated region
  $region6: #{forward.34} parent=0 // pred_check
    _
  $region7: #{forward.34} parent=0 // pred_check_branch
    %11 = sbr.rel (0) target = $region9
  $region8: #{forward.34} parent=0 // pred_region
    _
  $region9: #{forward.34} parent=0 // pred_fallthru
    _
  // Predicated region
  $region10: #{forward.34} parent=0 // pred_check
    _
  $region11: #{forward.34} parent=0 // pred_check_branch
    %13 = sbr.rel (0) target = $region13
  $region12: #{forward.34} parent=0 // pred_region
    _
  $region13: #{forward.34} parent=0 // pred_fallthru
    _
  %v15 = vld [vmem:[%s0] sm:$0xff]
  %v16 = vld [vmem:[%s0 + $0x8] sm:$0xf]
  %v17 = vld [vmem:[%s0 + $0xc] sm:$0xff]
  %v18 = vld [vmem:[%s0 + $0x14] sm:$0xf]
  %v19 = vld [vmem:[%s0 + $0x18] sm:$0xff]
  %v20 = vld [vmem:[%s0 + $0x20] sm:$0xf]
  %v21 = vld [vmem:[%s0 + $0x24] sm:$0xff]
  %v22 = vld [vmem:[%s0 + $0x2c] sm:$0xf]
  %v23 = vld [vmem:[%s1] sm:$0xf]
  %v24 = vld [vmem:[%s1 + $0x4] sm:$0xf]
  %v25 = vld [vmem:[%s1 + $0x8] sm:$0xf]
  %v26 = vld [vmem:[%s1 + $0xc] sm:$0xf]
  %v27 = vld [vmem:[%s1 + $0x10] sm:$0xf]
  %v28 = vld [vmem:[%s1 + $0x14] sm:$0xf]
  %v29 = vld [vmem:[%s1 + $0x18] sm:$0xf]
  %v30 = vld [vmem:[%s1 + $0x1c] sm:$0xf]
  %v31 = vld [vmem:[%s1 + $0x20] sm:$0xf]
  %v32 = vld [vmem:[%s1 + $0x24] sm:$0xf]
  %v33 = vld [vmem:[%s1 + $0x28] sm:$0xf]
  %v34 = vld [vmem:[%s1 + $0x2c] sm:$0xf]
  %v35 = vld [vmem:[%s1 + $0x30] sm:$0xf]
  %v36 = vld [vmem:[%s1 + $0x34] sm:$0xf]
  %v37 = vld [vmem:[%s1 + $0x38] sm:$0xf]
  %v38 = vld [vmem:[%s1 + $0x3c] sm:$0xf]
  %v39 = vld [vmem:[%s1 + $0x40] sm:$0xf]
  %v40 = vld [vmem:[%s1 + $0x44] sm:$0xf]
  %v41 = vld [vmem:[%s1 + $0x48] sm:$0xf]
  %v42 = vld [vmem:[%s1 + $0x4c] sm:$0xf]
  %v43 = vld [vmem:[%s1 + $0x50] sm:$0xf]
  %v44 = vld [vmem:[%s1 + $0x54] sm:$0xf]
  %v45 = vld [vmem:[%s1 + $0x58] sm:$0xf]
  %v46 = vld [vmem:[%s1 + $0x5c] sm:$0xf]
  %v47 = vld [vmem:[%s1 + $0x60] sm:$0xf]
  %v48 = vld [vmem:[%s1 + $0x64] sm:$0xf]
  %v49 = vld [vmem:[%s1 + $0x68] sm:$0xf]
  %v50 = vld [vmem:[%s1 + $0x6c] sm:$0xf]
  %v51 = vld [vmem:[%s1 + $0x70] sm:$0xf]
  %v52 = vld [vmem:[%s1 + $0x74] sm:$0xf]
  %v53 = vld [vmem:[%s1 + $0x78] sm:$0xf]
  %v54 = vld [vmem:[%s1 + $0x7c] sm:$0xf]
  %v55 = vld [vmem:[%s1 + $0x80] sm:$0xf]
  %v56 = vld [vmem:[%s1 + $0x84] sm:$0xf]
  %v57 = vld [vmem:[%s1 + $0x88] sm:$0xf]
  %v58 = vld [vmem:[%s1 + $0x8c] sm:$0xf]
  %v59 = vld [vmem:[%s2] sm:$0x1]
  %v61 = vlaneseq
  %v62 = vshrl.u32 %v61, 7
  %v63 = vsub.s32 0, %v62
  %v64 = vrot.slane %v59, %v63
  %v74 = vunpack.c.l.b16 %v15
  %v75 = vunpack.c.h.b16 %v15
  %v76 = vunpack.c.l.b16 %v16
  %v77 = vunpack.c.l.b16 %v17
  %v78 = vunpack.c.h.b16 %v17
  %v79 = vunpack.c.l.b16 %v18
  %v80 = vunpack.c.l.b16 %v19
  %v81 = vunpack.c.h.b16 %v19
  %v82 = vunpack.c.l.b16 %v20
  %v83 = vunpack.c.l.b16 %v21
  %v84 = vunpack.c.h.b16 %v21
  %v85 = vunpack.c.l.b16 %v22
  %v86 = vpack.c.b16 %v77, %v74
  %v87 = vpack.c.b16 %v78, %v75
  %v88 = vpack.c.b16 %v79, %v76
  %v89 = vpack.c.b16 %v83, %v80
  %v90 = vpack.c.b16 %v84, %v81
  %v91 = vpack.c.b16 %v85, %v82
  %v132 = vunpack.c.l.b16 %v23
  %v133 = vunpack.c.l.b16 %v24
  %v134 = vunpack.c.l.b16 %v25
  %v135 = vunpack.c.l.b16 %v26
  %v136 = vunpack.c.l.b16 %v27
  %v137 = vunpack.c.l.b16 %v28
  %v138 = vunpack.c.l.b16 %v29
  %v139 = vunpack.c.l.b16 %v30
  %v140 = vunpack.c.l.b16 %v31
  %v141 = vunpack.c.l.b16 %v32
  %v142 = vunpack.c.l.b16 %v33
  %v143 = vunpack.c.l.b16 %v34
  %v144 = vunpack.c.l.b16 %v35
  %v145 = vunpack.c.l.b16 %v36
  %v146 = vunpack.c.l.b16 %v37
  %v147 = vunpack.c.l.b16 %v38
  %v148 = vunpack.c.l.b16 %v39
  %v149 = vunpack.c.l.b16 %v40
  %v150 = vunpack.c.l.b16 %v41
  %v151 = vunpack.c.l.b16 %v42
  %v152 = vunpack.c.l.b16 %v43
  %v153 = vunpack.c.l.b16 %v44
  %v154 = vunpack.c.l.b16 %v45
  %v155 = vunpack.c.l.b16 %v46
  %v156 = vunpack.c.l.b16 %v47
  %v157 = vunpack.c.l.b16 %v48
  %v158 = vunpack.c.l.b16 %v49
  %v159 = vunpack.c.l.b16 %v50
  %v160 = vunpack.c.l.b16 %v51
  %v161 = vunpack.c.l.b16 %v52
  %v162 = vunpack.c.l.b16 %v53
  %v163 = vunpack.c.l.b16 %v54
  %v164 = vunpack.c.l.b16 %v55
  %v165 = vunpack.c.l.b16 %v56
  %v166 = vunpack.c.l.b16 %v57
  %v167 = vunpack.c.l.b16 %v58
  %v168 = vpack.c.b16 %v133, %v132
  %v169 = vpack.c.b16 %v135, %v134
  %v170 = vpack.c.b16 %v137, %v136
  %v171 = vpack.c.b16 %v139, %v138
  %v172 = vpack.c.b16 %v141, %v140
  %v173 = vpack.c.b16 %v143, %v142
  %v174 = vpack.c.b16 %v145, %v144
  %v175 = vpack.c.b16 %v147, %v146
  %v176 = vpack.c.b16 %v149, %v148
  %v177 = vpack.c.b16 %v151, %v150
  %v178 = vpack.c.b16 %v153, %v152
  %v179 = vpack.c.b16 %v155, %v154
  %v180 = vpack.c.b16 %v157, %v156
  %v181 = vpack.c.b16 %v159, %v158
  %v182 = vpack.c.b16 %v161, %v160
  %v183 = vpack.c.b16 %v163, %v162
  %v184 = vpack.c.b16 %v165, %v164
  %v185 = vpack.c.b16 %v167, %v166
  %vm204 = vcmask 261120
  %v206 = vsel %vm204, %v88, 0
  %v209 = vsel %vm204, %v91, 0
  %211 = vmatprep.subr.bf16.mxu0 0
  %212 = vmatpush1.bf16.msra.mxu0 %v175
  %213 = vmatprep.subr.bf16.mxu0 0
  %214 = vmatpush1.bf16.msra.mxu0 %v174
  %215 = vmatprep.subr.bf16.mxu0 0
  %216 = vmatpush1.bf16.msra.mxu0 %v173
  %217 = vmatprep.subr.bf16.mxu0 0
  %218 = vmatpush1.bf16.msra.mxu0 %v172
  %219 = vmatprep.subr.bf16.mxu0 0
  %220 = vmatpush1.bf16.msra.mxu0 %v171
  %221 = vmatprep.subr.bf16.mxu0 0
  %222 = vmatpush1.bf16.msra.mxu0 %v170
  %223 = vmatprep.subr.bf16.mxu0 0
  %224 = vmatpush1.bf16.msra.mxu0 %v169
  %225 = vmatprep.subr.bf16.mxu0 0
  %226 = vmatpush1.bf16.msra.mxu0 %v168
  %227 = vmatprep.subr.bf16.mxu0 0
  %228 = vmatpush2.bf16.msra.mxu0 %v183
  %229 = vmatprep.subr.bf16.mxu0 0
  %230 = vmatpush2.bf16.msra.mxu0 %v182
  %231 = vmatprep.subr.bf16.mxu0 0
  %232 = vmatpush2.bf16.msra.mxu0 %v181
  %233 = vmatprep.subr.bf16.mxu0 0
  %234 = vmatpush2.bf16.msra.mxu0 %v180
  %235 = vmatprep.subr.bf16.mxu0 0
  %236 = vmatpush2.bf16.msra.mxu0 %v179
  %237 = vmatprep.subr.bf16.mxu0 0
  %238 = vmatpush2.bf16.msra.mxu0 %v178
  %239 = vmatprep.subr.bf16.mxu0 0
  %240 = vmatpush2.bf16.msra.mxu0 %v177
  %241 = vmatprep.subr.bf16.mxu0 0
  %242 = vmatpush2.bf16.msra.mxu0 %v176
  %243 = vmatprep.mubr.bf16.mxu0 %v87
  %244 = vmatmul.mubr.bf16.gmra.mxu0 %v86
  %v245 = vpop.f32.mrf.mxu0
  %v246 = vadd.f32 %v64, %v245
  %v247 = vpop.f32.mrf.mxu0
  %v248 = vpop.f32.mrf.mxu0
  %v249 = vadd.f32 %v64, %v248
  %v250 = vpop.f32.mrf.mxu0
  %251 = vmatprep.mubr.bf16.mxu0 %v90
  %252 = vmatmul.mubr.bf16.gmra.mxu0 %v89
  %v253 = vpop.f32.mrf.mxu0
  %v254 = vadd.f32 %v64, %v253
  %v255 = vpop.f32.mrf.mxu0
  %v256 = vpop.f32.mrf.mxu0
  %v257 = vadd.f32 %v64, %v256
  %v258 = vpop.f32.mrf.mxu0
  %259 = vdwg.mxu0
  %260 = vmatprep.subr.bf16.mxu0 0
  %261 = vmatpush1.bf16.msra.mxu0 0
  %262 = vmatprep.subr.bf16.mxu0 0
  %263 = vmatpush1.bf16.msra.mxu0 0
  %264 = vmatprep.subr.bf16.mxu0 0
  %265 = vmatpush1.bf16.msra.mxu0 0
  %266 = vmatprep.subr.bf16.mxu0 0
  %267 = vmatpush1.bf16.msra.mxu0 0
  %268 = vmatprep.subr.bf16.mxu0 0
  %269 = vmatpush1.bf16.msra.mxu0 0
  %270 = vmatprep.subr.bf16.mxu0 0
  %271 = vmatpush1.bf16.msra.mxu0 0
  %272 = vmatprep.subr.bf16.mxu0 0
  %273 = vmatpush1.bf16.msra.mxu0 %v185
  %274 = vmatprep.subr.bf16.mxu0 0
  %275 = vmatpush1.bf16.msra.mxu0 %v184
  %276 = vmatprep.subr.bf16.mxu0 0
  %277 = vmatpush2.bf16.msra.mxu0 0
  %278 = vmatprep.subr.bf16.mxu0 0
  %279 = vmatpush2.bf16.msra.mxu0 0
  %280 = vmatprep.subr.bf16.mxu0 0
  %281 = vmatpush2.bf16.msra.mxu0 0
  %282 = vmatprep.subr.bf16.mxu0 0
  %283 = vmatpush2.bf16.msra.mxu0 0
  %284 = vmatprep.subr.bf16.mxu0 0
  %285 = vmatpush2.bf16.msra.mxu0 0
  %286 = vmatprep.subr.bf16.mxu0 0
  %287 = vmatpush2.bf16.msra.mxu0 0
  %288 = vmatprep.subr.bf16.mxu0 0
  %289 = vmatpush2.bf16.msra.mxu0 0
  %290 = vmatprep.subr.bf16.mxu0 0
  %291 = vmatpush2.bf16.msra.mxu0 0
  %292 = vmatprep.mubr.bf16.mxu0 0
  %293 = vmatmul.mubr.bf16.gmra.mxu0 %v206
  %v294 = vpop.f32.mrf.mxu0
  %v295 = vadd.f32 %v246, %v294
  %v296 = vpop.f32.mrf.mxu0
  %v297 = vpop.f32.mrf.mxu0
  %v298 = vadd.f32 %v249, %v297
  %v299 = vpop.f32.mrf.mxu0
  %300 = vmatprep.mubr.bf16.mxu0 0
  %301 = vmatmul.mubr.bf16.gmra.mxu0 %v209
  %v302 = vpop.f32.mrf.mxu0
  %v303 = vadd.f32 %v254, %v302
  %v304 = vpop.f32.mrf.mxu0
  %v305 = vpop.f32.mrf.mxu0
  %v306 = vadd.f32 %v257, %v305
  %v307 = vpop.f32.mrf.mxu0
  %308 = vdwg.mxu0
  %v309 = vxor.u32 %v295, 2147483648
  %v310 = vxor.u32 %v298, 2147483648
  %v311 = vxor.u32 %v303, 2147483648
  %v312 = vxor.u32 %v306, 2147483648
  %v313 = vmul.f32 %v309, 1.442695
  %v314 = vpow.pop %v313
  %v315 = vmul.f32 %v310, 1.442695
  %v316 = vpow.pop %v315
  %v317 = vmul.f32 %v311, 1.442695
  %v318 = vpow.pop %v317
  %v319 = vmul.f32 %v312, 1.442695
  %v320 = vpow.pop %v319
  %v321 = vadd.f32 %v314, 1.0
  %v322 = vadd.f32 %v316, 1.0
  %v323 = vadd.f32 %v318, 1.0
  %v324 = vadd.f32 %v320, 1.0
  %v325 = vrcp.pop %v321
  %v326 = vmul.f32 1.0, %v325
  %v327 = vrcp.pop %v322
  %v328 = vmul.f32 1.0, %v327
  %v329 = vrcp.pop %v323
  %v330 = vmul.f32 1.0, %v329
  %v331 = vrcp.pop %v324
  %v332 = vmul.f32 1.0, %v331
  %v333 = vmul.f32 %v295, %v326
  %v334 = vmul.f32 %v298, %v328
  %v335 = vmul.f32 %v303, %v330
  %v336 = vmul.f32 %v306, %v332
  %v337 = vpack.c.bf16 %v334, %v333
  %v338 = vpack.c.bf16 %v336, %v335
  %v341 = vunpack.c.l.b16 %v337
  %v342 = vunpack.c.h.b16 %v337
  %v343 = vunpack.c.l.b16 %v338
  %v344 = vunpack.c.h.b16 %v338
  %v345 = vpack.c.b16 %v341, %v341
  %v346 = vpack.c.b16 %v342, %v342
  %v347 = vpack.c.b16 %v343, %v343
  %v348 = vpack.c.b16 %v344, %v344
  %vm353 = vcmask 257024
  %354 = vst.msk [vmem:[%s3] sm:$0xf] %vm353, %v345
  %355 = vst.msk [vmem:[%s3 + $0x4] sm:$0xf] %vm353, %v346
  %356 = vst.msk [vmem:[%s3 + $0x8] sm:$0xf] %vm353, %v347
  %357 = vst.msk [vmem:[%s3 + $0xc] sm:$0xf] %vm353, %v348
  // Predicated region
  $region14: #{forward.34} parent=0 // pred_check
    _
  $region15: #{forward.34} parent=0 // pred_check_branch
    %359 = sbr.rel (0) target = $region17
  $region16: #{forward.34} parent=0 // pred_region
    _
  $region17: #{forward.34} parent=0 // pred_fallthru
    _
  // Predicated region
  $region18: #{forward.34} parent=0 // pred_check
    _
  $region19: #{forward.34} parent=0 // pred_check_branch
    %361 = sbr.rel (0) target = $region21
  $region20: #{forward.34} parent=0 // pred_region
    _
  $region21: #{forward.34} parent=0 // pred_fallthru
    _

// kernel: forward.38
$region0: #{forward.38}
  #allocation0 [shape = 'u32[]', space=smem, size = 0x4, offset = 0x4, fixed_abs, tag = 'smem constant byte address 0x4 - core index']
  #allocation1 [shape = 'u32[144,128]{1,0:T(1,128)}', space=vmem, size = 0x12000, scoped, tag = 'internal scratch']
  %s0 = inlined_call_operand.vmem [shape: bf16[32,128], index: 0, kind: input, shape index: {}]
  %s1 = inlined_call_operand.vmem [shape: bf16[128,64], index: 1, kind: input, shape index: {}]
  %s2 = inlined_call_operand.vmem [shape: f32[1,64], index: 2, kind: input, shape index: {}]
  %s3 = inlined_call_operand.vmem [shape: bf16[32,64], index: 3, kind: output, shape index: {}]
  %s4 = sld [smem:[#allocation0]]
  $region22: #{forward.38} parent=0
    _
  %s6 = ssub.s32 1, %s4
  %s7 = scalar_select 0, %s6, %s4
  // Predicated region
  $region2: #{forward.38} parent=0 // pred_check
    _
  $region3: #{forward.38} parent=0 // pred_check_branch
    %9 = sbr.rel (0) target = $region5
  $region4: #{forward.38} parent=0 // pred_region
    _
  $region5: #{forward.38} parent=0 // pred_fallthru
    _
  // Predicated region
  $region6: #{forward.38} parent=0 // pred_check
    _
  $region7: #{forward.38} parent=0 // pred_check_branch
    %11 = sbr.rel (0) target = $region9
  $region8: #{forward.38} parent=0 // pred_region
    _
  $region9: #{forward.38} parent=0 // pred_fallthru
    _
  // Predicated region
  $region10: #{forward.38} parent=0 // pred_check
    _
  $region11: #{forward.38} parent=0 // pred_check_branch
    %13 = sbr.rel (0) target = $region13
  $region12: #{forward.38} parent=0 // pred_region
    _
  $region13: #{forward.38} parent=0 // pred_fallthru
    _
  %v15 = vld [vmem:[%s0] sm:$0xf]
  %v16 = vld [vmem:[%s0 + $0x4] sm:$0xf]
  %v17 = vld [vmem:[%s0 + $0x8] sm:$0xf]
  %v18 = vld [vmem:[%s0 + $0xc] sm:$0xf]
  %v19 = vld [vmem:[%s1] sm:$0xf]
  %v20 = vld [vmem:[%s1 + $0x4] sm:$0xf]
  %v21 = vld [vmem:[%s1 + $0x8] sm:$0xf]
  %v22 = vld [vmem:[%s1 + $0xc] sm:$0xf]
  %v23 = vld [vmem:[%s1 + $0x10] sm:$0xf]
  %v24 = vld [vmem:[%s1 + $0x14] sm:$0xf]
  %v25 = vld [vmem:[%s1 + $0x18] sm:$0xf]
  %v26 = vld [vmem:[%s1 + $0x1c] sm:$0xf]
  %v27 = vld [vmem:[%s1 + $0x20] sm:$0xf]
  %v28 = vld [vmem:[%s1 + $0x24] sm:$0xf]
  %v29 = vld [vmem:[%s1 + $0x28] sm:$0xf]
  %v30 = vld [vmem:[%s1 + $0x2c] sm:$0xf]
  %v31 = vld [vmem:[%s1 + $0x30] sm:$0xf]
  %v32 = vld [vmem:[%s1 + $0x34] sm:$0xf]
  %v33 = vld [vmem:[%s1 + $0x38] sm:$0xf]
  %v34 = vld [vmem:[%s1 + $0x3c] sm:$0xf]
  %v35 = vld [vmem:[%s2] sm:$0x1]
  %v37 = vlaneseq
  %v38 = vshrl.u32 %v37, 7
  %v39 = vsub.s32 0, %v38
  %v40 = vrot.slane %v35, %v39
  %v46 = vunpack.c.l.b16 %v15
  %v47 = vunpack.c.l.b16 %v16
  %v48 = vunpack.c.l.b16 %v17
  %v49 = vunpack.c.l.b16 %v18
  %v50 = vpack.c.b16 %v47, %v46
  %v51 = vpack.c.b16 %v49, %v48
  %v70 = vunpack.c.l.b16 %v19
  %v71 = vunpack.c.l.b16 %v20
  %v72 = vunpack.c.l.b16 %v21
  %v73 = vunpack.c.l.b16 %v22
  %v74 = vunpack.c.l.b16 %v23
  %v75 = vunpack.c.l.b16 %v24
  %v76 = vunpack.c.l.b16 %v25
  %v77 = vunpack.c.l.b16 %v26
  %v78 = vunpack.c.l.b16 %v27
  %v79 = vunpack.c.l.b16 %v28
  %v80 = vunpack.c.l.b16 %v29
  %v81 = vunpack.c.l.b16 %v30
  %v82 = vunpack.c.l.b16 %v31
  %v83 = vunpack.c.l.b16 %v32
  %v84 = vunpack.c.l.b16 %v33
  %v85 = vunpack.c.l.b16 %v34
  %v86 = vpack.c.b16 %v71, %v70
  %v87 = vpack.c.b16 %v73, %v72
  %v88 = vpack.c.b16 %v75, %v74
  %v89 = vpack.c.b16 %v77, %v76
  %v90 = vpack.c.b16 %v79, %v78
  %v91 = vpack.c.b16 %v81, %v80
  %v92 = vpack.c.b16 %v83, %v82
  %v93 = vpack.c.b16 %v85, %v84
  %102 = vmatprep.subr.bf16.mxu0 0
  %103 = vmatpush1.bf16.msra.mxu0 %v93
  %104 = vmatprep.subr.bf16.mxu0 0
  %105 = vmatpush1.bf16.msra.mxu0 %v92
  %106 = vmatprep.subr.bf16.mxu0 0
  %107 = vmatpush1.bf16.msra.mxu0 %v91
  %108 = vmatprep.subr.bf16.mxu0 0
  %109 = vmatpush1.bf16.msra.mxu0 %v90
  %110 = vmatprep.subr.bf16.mxu0 0
  %111 = vmatpush1.bf16.msra.mxu0 %v89
  %112 = vmatprep.subr.bf16.mxu0 0
  %113 = vmatpush1.bf16.msra.mxu0 %v88
  %114 = vmatprep.subr.bf16.mxu0 0
  %115 = vmatpush1.bf16.msra.mxu0 %v87
  %116 = vmatprep.subr.bf16.mxu0 0
  %117 = vmatpush1.bf16.msra.mxu0 %v86
  %118 = vmatprep.subr.bf16.mxu0 0
  %119 = vmatpush2.bf16.msra.mxu0 0
  %120 = vmatprep.subr.bf16.mxu0 0
  %121 = vmatpush2.bf16.msra.mxu0 0
  %122 = vmatprep.subr.bf16.mxu0 0
  %123 = vmatpush2.bf16.msra.mxu0 0
  %124 = vmatprep.subr.bf16.mxu0 0
  %125 = vmatpush2.bf16.msra.mxu0 0
  %126 = vmatprep.subr.bf16.mxu0 0
  %127 = vmatpush2.bf16.msra.mxu0 0
  %128 = vmatprep.subr.bf16.mxu0 0
  %129 = vmatpush2.bf16.msra.mxu0 0
  %130 = vmatprep.subr.bf16.mxu0 0
  %131 = vmatpush2.bf16.msra.mxu0 0
  %132 = vmatprep.subr.bf16.mxu0 0
  %133 = vmatpush2.bf16.msra.mxu0 0
  %134 = vmatprep.mubr.bf16.mxu0 0
  %135 = vmatmul.mubr.bf16.gmra.mxu0 %v50
  %v136 = vpop.f32.mrf.mxu0
  %v137 = vadd.f32 %v40, %v136
  %v138 = vpop.f32.mrf.mxu0
  %v139 = vpop.f32.mrf.mxu0
  %v140 = vadd.f32 %v40, %v139
  %v141 = vpop.f32.mrf.mxu0
  %142 = vmatprep.mubr.bf16.mxu0 0
  %143 = vmatmul.mubr.bf16.gmra.mxu0 %v51
  %v144 = vpop.f32.mrf.mxu0
  %v145 = vadd.f32 %v40, %v144
  %v146 = vpop.f32.mrf.mxu0
  %v147 = vpop.f32.mrf.mxu0
  %v148 = vadd.f32 %v40, %v147
  %v149 = vpop.f32.mrf.mxu0
  %150 = vdwg.mxu0
  %v151 = vxor.u32 %v137, 2147483648
  %v152 = vxor.u32 %v140, 2147483648
  %v153 = vxor.u32 %v145, 2147483648
  %v154 = vxor.u32 %v148, 2147483648
  %v155 = vmul.f32 %v151, 1.442695
  %v156 = vpow.pop %v155
  %v157 = vmul.f32 %v152, 1.442695
  %v158 = vpow.pop %v157
  %v159 = vmul.f32 %v153, 1.442695
  %v160 = vpow.pop %v159
  %v161 = vmul.f32 %v154, 1.442695
  %v162 = vpow.pop %v161
  %v163 = vadd.f32 %v156, 1.0
  %v164 = vadd.f32 %v158, 1.0
  %v165 = vadd.f32 %v160, 1.0
  %v166 = vadd.f32 %v162, 1.0
  %v167 = vrcp.pop %v163
  %v168 = vmul.f32 1.0, %v167
  %v169 = vrcp.pop %v164
  %v170 = vmul.f32 1.0, %v169
  %v171 = vrcp.pop %v165
  %v172 = vmul.f32 1.0, %v171
  %v173 = vrcp.pop %v166
  %v174 = vmul.f32 1.0, %v173
  %v175 = vmul.f32 %v137, %v168
  %v176 = vmul.f32 %v140, %v170
  %v177 = vmul.f32 %v145, %v172
  %v178 = vmul.f32 %v148, %v174
  %v179 = vpack.c.bf16 %v176, %v175
  %v180 = vpack.c.bf16 %v178, %v177
  %v183 = vunpack.c.l.b16 %v179
  %v184 = vunpack.c.h.b16 %v179
  %v185 = vunpack.c.l.b16 %v180
  %v186 = vunpack.c.h.b16 %v180
  %v187 = vpack.c.b16 %v183, %v183
  %v188 = vpack.c.b16 %v184, %v184
  %v189 = vpack.c.b16 %v185, %v185
  %v190 = vpack.c.b16 %v186, %v186
  %vm195 = vcmask 519168
  %196 = vst.msk [vmem:[%s3] sm:$0xf] %vm195, %v187
  %197 = vst.msk [vmem:[%s3 + $0x4] sm:$0xf] %vm195, %v188
  %198 = vst.msk [vmem:[%s3 + $0x8] sm:$0xf] %vm195, %v189
  %199 = vst.msk [vmem:[%s3 + $0xc] sm:$0xf] %vm195, %v190
  // Predicated region
  $region14: #{forward.38} parent=0 // pred_check
    _
  $region15: #{forward.38} parent=0 // pred_check_branch
    %201 = sbr.rel (0) target = $region17
  $region16: #{forward.38} parent=0 // pred_region
    _
  $region17: #{forward.38} parent=0 // pred_fallthru
    _
  // Predicated region
  $region18: #{forward.38} parent=0 // pred_check
    _
  $region19: #{forward.38} parent=0 // pred_check_branch
    %203 = sbr.rel (0) target = $region21
  $region20: #{forward.38} parent=0 // pred_region
    _
  $region21: #{forward.38} parent=0 // pred_fallthru
    _

// kernel: forward.35
$region0: #{forward.35}
  #allocation0 [shape = 'u32[]', space=smem, size = 0x4, offset = 0x4, fixed_abs, tag = 'smem constant byte address 0x4 - core index']
  #allocation1 [shape = 'u32[144,128]{1,0:T(1,128)}', space=vmem, size = 0x12000, scoped, tag = 'internal scratch']
  %s0 = inlined_call_operand.vmem [shape: bf16[32,288], index: 0, kind: input, shape index: {}]
  %s1 = inlined_call_operand.vmem [shape: bf16[288,32], index: 1, kind: input, shape index: {}]
  %s2 = inlined_call_operand.vmem [shape: f32[1,32], index: 2, kind: input, shape index: {}]
  %s3 = inlined_call_operand.vmem [shape: bf16[32,32], index: 3, kind: input, shape index: {}]
  %s4 = inlined_call_operand.vmem [shape: bf16[32,32], index: 4, kind: output, shape index: {}]
  %s5 = sld [smem:[#allocation0]]
  $region26: #{forward.35} parent=0
    _
  %s7 = ssub.s32 1, %s5
  %s8 = scalar_select 0, %s7, %s5
  // Predicated region
  $region2: #{forward.35} parent=0 // pred_check
    _
  $region3: #{forward.35} parent=0 // pred_check_branch
    %10 = sbr.rel (0) target = $region5
  $region4: #{forward.35} parent=0 // pred_region
    _
  $region5: #{forward.35} parent=0 // pred_fallthru
    _
  // Predicated region
  $region6: #{forward.35} parent=0 // pred_check
    _
  $region7: #{forward.35} parent=0 // pred_check_branch
    %12 = sbr.rel (0) target = $region9
  $region8: #{forward.35} parent=0 // pred_region
    _
  $region9: #{forward.35} parent=0 // pred_fallthru
    _
  // Predicated region
  $region10: #{forward.35} parent=0 // pred_check
    _
  $region11: #{forward.35} parent=0 // pred_check_branch
    %14 = sbr.rel (0) target = $region13
  $region12: #{forward.35} parent=0 // pred_region
    _
  $region13: #{forward.35} parent=0 // pred_fallthru
    _
  // Predicated region
  $region14: #{forward.35} parent=0 // pred_check
    _
  $region15: #{forward.35} parent=0 // pred_check_branch
    %16 = sbr.rel (0) target = $region17
  $region16: #{forward.35} parent=0 // pred_region
    _
  $region17: #{forward.35} parent=0 // pred_fallthru
    _
  %v18 = vld [vmem:[%s3] sm:$0xf]
  %v19 = vld [vmem:[%s3 + $0x4] sm:$0xf]
  %v20 = vld [vmem:[%s3 + $0x8] sm:$0xf]
  %v21 = vld [vmem:[%s3 + $0xc] sm:$0xf]
  %v22 = vld [vmem:[%s0] sm:$0xff]
  %v23 = vld [vmem:[%s0 + $0x8] sm:$0xf]
  %v24 = vld [vmem:[%s0 + $0xc] sm:$0xff]
  %v25 = vld [vmem:[%s0 + $0x14] sm:$0xf]
  %v26 = vld [vmem:[%s0 + $0x18] sm:$0xff]
  %v27 = vld [vmem:[%s0 + $0x20] sm:$0xf]
  %v28 = vld [vmem:[%s0 + $0x24] sm:$0xff]
  %v29 = vld [vmem:[%s0 + $0x2c] sm:$0xf]
  %v30 = vld [vmem:[%s1] sm:$0xf]
  %v31 = vld [vmem:[%s1 + $0x4] sm:$0xf]
  %v32 = vld [vmem:[%s1 + $0x8] sm:$0xf]
  %v33 = vld [vmem:[%s1 + $0xc] sm:$0xf]
  %v34 = vld [vmem:[%s1 + $0x10] sm:$0xf]
  %v35 = vld [vmem:[%s1 + $0x14] sm:$0xf]
  %v36 = vld [vmem:[%s1 + $0x18] sm:$0xf]
  %v37 = vld [vmem:[%s1 + $0x1c] sm:$0xf]
  %v38 = vld [vmem:[%s1 + $0x20] sm:$0xf]
  %v39 = vld [vmem:[%s1 + $0x24] sm:$0xf]
  %v40 = vld [vmem:[%s1 + $0x28] sm:$0xf]
  %v41 = vld [vmem:[%s1 + $0x2c] sm:$0xf]
  %v42 = vld [vmem:[%s1 + $0x30] sm:$0xf]
  %v43 = vld [vmem:[%s1 + $0x34] sm:$0xf]
  %v44 = vld [vmem:[%s1 + $0x38] sm:$0xf]
  %v45 = vld [vmem:[%s1 + $0x3c] sm:$0xf]
  %v46 = vld [vmem:[%s1 + $0x40] sm:$0xf]
  %v47 = vld [vmem:[%s1 + $0x44] sm:$0xf]
  %v48 = vld [vmem:[%s1 + $0x48] sm:$0xf]
  %v49 = vld [vmem:[%s1 + $0x4c] sm:$0xf]
  %v50 = vld [vmem:[%s1 + $0x50] sm:$0xf]
  %v51 = vld [vmem:[%s1 + $0x54] sm:$0xf]
  %v52 = vld [vmem:[%s1 + $0x58] sm:$0xf]
  %v53 = vld [vmem:[%s1 + $0x5c] sm:$0xf]
  %v54 = vld [vmem:[%s1 + $0x60] sm:$0xf]
  %v55 = vld [vmem:[%s1 + $0x64] sm:$0xf]
  %v56 = vld [vmem:[%s1 + $0x68] sm:$0xf]
  %v57 = vld [vmem:[%s1 + $0x6c] sm:$0xf]
  %v58 = vld [vmem:[%s1 + $0x70] sm:$0xf]
  %v59 = vld [vmem:[%s1 + $0x74] sm:$0xf]
  %v60 = vld [vmem:[%s1 + $0x78] sm:$0xf]
  %v61 = vld [vmem:[%s1 + $0x7c] sm:$0xf]
  %v62 = vld [vmem:[%s1 + $0x80] sm:$0xf]
  %v63 = vld [vmem:[%s1 + $0x84] sm:$0xf]
  %v64 = vld [vmem:[%s1 + $0x88] sm:$0xf]
  %v65 = vld [vmem:[%s1 + $0x8c] sm:$0xf]
  %v66 = vld [vmem:[%s2] sm:$0x1]
  %v68 = vlaneseq
  %v69 = vshrl.u32 %v68, 7
  %v70 = vsub.s32 0, %v69
  %v71 = vrot.slane %v66, %v70
  %v81 = vunpack.c.l.b16 %v22
  %v82 = vunpack.c.h.b16 %v22
  %v83 = vunpack.c.l.b16 %v23
  %v84 = vunpack.c.l.b16 %v24
  %v85 = vunpack.c.h.b16 %v24
  %v86 = vunpack.c.l.b16 %v25
  %v87 = vunpack.c.l.b16 %v26
  %v88 = vunpack.c.h.b16 %v26
  %v89 = vunpack.c.l.b16 %v27
  %v90 = vunpack.c.l.b16 %v28
  %v91 = vunpack.c.h.b16 %v28
  %v92 = vunpack.c.l.b16 %v29
  %v93 = vpack.c.b16 %v84, %v81
  %v94 = vpack.c.b16 %v85, %v82
  %v95 = vpack.c.b16 %v86, %v83
  %v96 = vpack.c.b16 %v90, %v87
  %v97 = vpack.c.b16 %v91, %v88
  %v98 = vpack.c.b16 %v92, %v89
  %v139 = vunpack.c.l.b16 %v30
  %v140 = vunpack.c.l.b16 %v31
  %v141 = vunpack.c.l.b16 %v32
  %v142 = vunpack.c.l.b16 %v33
  %v143 = vunpack.c.l.b16 %v34
  %v144 = vunpack.c.l.b16 %v35
  %v145 = vunpack.c.l.b16 %v36
  %v146 = vunpack.c.l.b16 %v37
  %v147 = vunpack.c.l.b16 %v38
  %v148 = vunpack.c.l.b16 %v39
  %v149 = vunpack.c.l.b16 %v40
  %v150 = vunpack.c.l.b16 %v41
  %v151 = vunpack.c.l.b16 %v42
  %v152 = vunpack.c.l.b16 %v43
  %v153 = vunpack.c.l.b16 %v44
  %v154 = vunpack.c.l.b16 %v45
  %v155 = vunpack.c.l.b16 %v46
  %v156 = vunpack.c.l.b16 %v47
  %v157 = vunpack.c.l.b16 %v48
  %v158 = vunpack.c.l.b16 %v49
  %v159 = vunpack.c.l.b16 %v50
  %v160 = vunpack.c.l.b16 %v51
  %v161 = vunpack.c.l.b16 %v52
  %v162 = vunpack.c.l.b16 %v53
  %v163 = vunpack.c.l.b16 %v54
  %v164 = vunpack.c.l.b16 %v55
  %v165 = vunpack.c.l.b16 %v56
  %v166 = vunpack.c.l.b16 %v57
  %v167 = vunpack.c.l.b16 %v58
  %v168 = vunpack.c.l.b16 %v59
  %v169 = vunpack.c.l.b16 %v60
  %v170 = vunpack.c.l.b16 %v61
  %v171 = vunpack.c.l.b16 %v62
  %v172 = vunpack.c.l.b16 %v63
  %v173 = vunpack.c.l.b16 %v64
  %v174 = vunpack.c.l.b16 %v65
  %v175 = vpack.c.b16 %v140, %v139
  %v176 = vpack.c.b16 %v142, %v141
  %v177 = vpack.c.b16 %v144, %v143
  %v178 = vpack.c.b16 %v146, %v145
  %v179 = vpack.c.b16 %v148, %v147
  %v180 = vpack.c.b16 %v150, %v149
  %v181 = vpack.c.b16 %v152, %v151
  %v182 = vpack.c.b16 %v154, %v153
  %v183 = vpack.c.b16 %v156, %v155
  %v184 = vpack.c.b16 %v158, %v157
  %v185 = vpack.c.b16 %v160, %v159
  %v186 = vpack.c.b16 %v162, %v161
  %v187 = vpack.c.b16 %v164, %v163
  %v188 = vpack.c.b16 %v166, %v165
  %v189 = vpack.c.b16 %v168, %v167
  %v190 = vpack.c.b16 %v170, %v169
  %v191 = vpack.c.b16 %v172, %v171
  %v192 = vpack.c.b16 %v174, %v173
  %vm211 = vcmask 261120
  %v213 = vsel %vm211, %v95, 0
  %v216 = vsel %vm211, %v98, 0
  %218 = vmatprep.subr.bf16.mxu0 0
  %219 = vmatpush1.bf16.msra.mxu0 %v182
  %220 = vmatprep.subr.bf16.mxu0 0
  %221 = vmatpush1.bf16.msra.mxu0 %v181
  %222 = vmatprep.subr.bf16.mxu0 0
  %223 = vmatpush1.bf16.msra.mxu0 %v180
  %224 = vmatprep.subr.bf16.mxu0 0
  %225 = vmatpush1.bf16.msra.mxu0 %v179
  %226 = vmatprep.subr.bf16.mxu0 0
  %227 = vmatpush1.bf16.msra.mxu0 %v178
  %228 = vmatprep.subr.bf16.mxu0 0
  %229 = vmatpush1.bf16.msra.mxu0 %v177
  %230 = vmatprep.subr.bf16.mxu0 0
  %231 = vmatpush1.bf16.msra.mxu0 %v176
  %232 = vmatprep.subr.bf16.mxu0 0
  %233 = vmatpush1.bf16.msra.mxu0 %v175
  %234 = vmatprep.subr.bf16.mxu0 0
  %235 = vmatpush2.bf16.msra.mxu0 %v190
  %236 = vmatprep.subr.bf16.mxu0 0
  %237 = vmatpush2.bf16.msra.mxu0 %v189
  %238 = vmatprep.subr.bf16.mxu0 0
  %239 = vmatpush2.bf16.msra.mxu0 %v188
  %240 = vmatprep.subr.bf16.mxu0 0
  %241 = vmatpush2.bf16.msra.mxu0 %v187
  %242 = vmatprep.subr.bf16.mxu0 0
  %243 = vmatpush2.bf16.msra.mxu0 %v186
  %244 = vmatprep.subr.bf16.mxu0 0
  %245 = vmatpush2.bf16.msra.mxu0 %v185
  %246 = vmatprep.subr.bf16.mxu0 0
  %247 = vmatpush2.bf16.msra.mxu0 %v184
  %248 = vmatprep.subr.bf16.mxu0 0
  %249 = vmatpush2.bf16.msra.mxu0 %v183
  %250 = vmatprep.mubr.bf16.mxu0 %v94
  %251 = vmatmul.mubr.bf16.gmra.mxu0 %v93
  %v252 = vpop.f32.mrf.mxu0
  %v253 = vadd.f32 %v71, %v252
  %v254 = vpop.f32.mrf.mxu0
  %v255 = vpop.f32.mrf.mxu0
  %v256 = vadd.f32 %v71, %v255
  %v257 = vpop.f32.mrf.mxu0
  %258 = vmatprep.mubr.bf16.mxu0 %v97
  %259 = vmatmul.mubr.bf16.gmra.mxu0 %v96
  %v260 = vpop.f32.mrf.mxu0
  %v261 = vadd.f32 %v71, %v260
  %v262 = vpop.f32.mrf.mxu0
  %v263 = vpop.f32.mrf.mxu0
  %v264 = vadd.f32 %v71, %v263
  %v265 = vpop.f32.mrf.mxu0
  %266 = vdwg.mxu0
  %267 = vmatprep.subr.bf16.mxu0 0
  %268 = vmatpush1.bf16.msra.mxu0 0
  %269 = vmatprep.subr.bf16.mxu0 0
  %270 = vmatpush1.bf16.msra.mxu0 0
  %271 = vmatprep.subr.bf16.mxu0 0
  %272 = vmatpush1.bf16.msra.mxu0 0
  %273 = vmatprep.subr.bf16.mxu0 0
  %274 = vmatpush1.bf16.msra.mxu0 0
  %275 = vmatprep.subr.bf16.mxu0 0
  %276 = vmatpush1.bf16.msra.mxu0 0
  %277 = vmatprep.subr.bf16.mxu0 0
  %278 = vmatpush1.bf16.msra.mxu0 0
  %279 = vmatprep.subr.bf16.mxu0 0
  %280 = vmatpush1.bf16.msra.mxu0 %v192
  %281 = vmatprep.subr.bf16.mxu0 0
  %282 = vmatpush1.bf16.msra.mxu0 %v191
  %283 = vmatprep.subr.bf16.mxu0 0
  %284 = vmatpush2.bf16.msra.mxu0 0
  %285 = vmatprep.subr.bf16.mxu0 0
  %286 = vmatpush2.bf16.msra.mxu0 0
  %287 = vmatprep.subr.bf16.mxu0 0
  %288 = vmatpush2.bf16.msra.mxu0 0
  %289 = vmatprep.subr.bf16.mxu0 0
  %290 = vmatpush2.bf16.msra.mxu0 0
  %291 = vmatprep.subr.bf16.mxu0 0
  %292 = vmatpush2.bf16.msra.mxu0 0
  %293 = vmatprep.subr.bf16.mxu0 0
  %294 = vmatpush2.bf16.msra.mxu0 0
  %295 = vmatprep.subr.bf16.mxu0 0
  %296 = vmatpush2.bf16.msra.mxu0 0
  %297 = vmatprep.subr.bf16.mxu0 0
  %298 = vmatpush2.bf16.msra.mxu0 0
  %299 = vmatprep.mubr.bf16.mxu0 0
  %300 = vmatmul.mubr.bf16.gmra.mxu0 %v213
  %v301 = vpop.f32.mrf.mxu0
  %v302 = vadd.f32 %v253, %v301
  %v303 = vpop.f32.mrf.mxu0
  %v304 = vpop.f32.mrf.mxu0
  %v305 = vadd.f32 %v256, %v304
  %v306 = vpop.f32.mrf.mxu0
  %307 = vmatprep.mubr.bf16.mxu0 0
  %308 = vmatmul.mubr.bf16.gmra.mxu0 %v216
  %v309 = vpop.f32.mrf.mxu0
  %v310 = vadd.f32 %v261, %v309
  %v311 = vpop.f32.mrf.mxu0
  %v312 = vpop.f32.mrf.mxu0
  %v313 = vadd.f32 %v264, %v312
  %v314 = vpop.f32.mrf.mxu0
  %315 = vdwg.mxu0
  %v316 = vxor.u32 %v302, 2147483648
  %v317 = vxor.u32 %v305, 2147483648
  %v318 = vxor.u32 %v310, 2147483648
  %v319 = vxor.u32 %v313, 2147483648
  %v320 = vmul.f32 %v316, 1.442695
  %v321 = vpow.pop %v320
  %v322 = vmul.f32 %v317, 1.442695
  %v323 = vpow.pop %v322
  %v324 = vmul.f32 %v318, 1.442695
  %v325 = vpow.pop %v324
  %v326 = vmul.f32 %v319, 1.442695
  %v327 = vpow.pop %v326
  %v328 = vadd.f32 %v321, 1.0
  %v329 = vadd.f32 %v323, 1.0
  %v330 = vadd.f32 %v325, 1.0
  %v331 = vadd.f32 %v327, 1.0
  %v332 = vrcp.pop %v328
  %v333 = vmul.f32 1.0, %v332
  %v334 = vrcp.pop %v329
  %v335 = vmul.f32 1.0, %v334
  %v336 = vrcp.pop %v330
  %v337 = vmul.f32 1.0, %v336
  %v338 = vrcp.pop %v331
  %v339 = vmul.f32 1.0, %v338
  %v340 = vmul.f32 %v302, %v333
  %v341 = vmul.f32 %v305, %v335
  %v342 = vmul.f32 %v310, %v337
  %v343 = vmul.f32 %v313, %v339
  %v344 = vunpack.c.l.bf16 %v18
  %v345 = vunpack.c.l.bf16 %v19
  %v346 = vunpack.c.l.bf16 %v20
  %v347 = vunpack.c.l.bf16 %v21
  %v348 = vadd.f32 %v340, %v344
  %v349 = vadd.f32 %v341, %v345
  %v350 = vadd.f32 %v342, %v346
  %v351 = vadd.f32 %v343, %v347
  %v352 = vpack.c.bf16 %v349, %v348
  %v353 = vpack.c.bf16 %v351, %v350
  %v356 = vunpack.c.l.b16 %v352
  %v357 = vunpack.c.h.b16 %v352
  %v358 = vunpack.c.l.b16 %v353
  %v359 = vunpack.c.h.b16 %v353
  %v360 = vpack.c.b16 %v356, %v356
  %v361 = vpack.c.b16 %v357, %v357
  %v362 = vpack.c.b16 %v358, %v358
  %v363 = vpack.c.b16 %v359, %v359
  %vm368 = vcmask 257024
  %369 = vst.msk [vmem:[%s4] sm:$0xf] %vm368, %v360
  %370 = vst.msk [vmem:[%s4 + $0x4] sm:$0xf] %vm368, %v361
  %371 = vst.msk [vmem:[%s4 + $0x8] sm:$0xf] %vm368, %v362
  %372 = vst.msk [vmem:[%s4 + $0xc] sm:$0xf] %vm368, %v363
  // Predicated region
  $region18: #{forward.35} parent=0 // pred_check
    _
  $region19: #{forward.35} parent=0 // pred_check_branch
    %374 = sbr.rel (0) target = $region21
  $region20: #{forward.35} parent=0 // pred_region
    _
  $region21: #{forward.35} parent=0 // pred_fallthru
    _
  // Predicated region
  $region22: #{forward.35} parent=0 // pred_check
    _
  $region23: #{forward.35} parent=0 // pred_check_branch
    %376 = sbr.rel (0) target = $region25
  $region24: #{forward.35} parent=0 // pred_region
    _
  $region25: #{forward.35} parent=0 // pred_fallthru
    _

// kernel: forward.39
$region0: #{forward.39}
  #allocation0 [shape = 'u32[]', space=smem, size = 0x4, offset = 0x4, fixed_abs, tag = 'smem constant byte address 0x4 - core index']
  #allocation1 [shape = 'u32[144,128]{1,0:T(1,128)}', space=vmem, size = 0x12000, scoped, tag = 'internal scratch']
  %s0 = inlined_call_operand.vmem [shape: bf16[8,576], index: 0, kind: input, shape index: {}]
  %s1 = inlined_call_operand.vmem [shape: bf16[576,128], index: 1, kind: input, shape index: {}]
  %s2 = inlined_call_operand.vmem [shape: f32[1,128], index: 2, kind: input, shape index: {}]
  %s3 = inlined_call_operand.vmem [shape: bf16[8,128], index: 3, kind: output, shape index: {}]
  %s4 = sld [smem:[#allocation0]]
  $region22: #{forward.39} parent=0
    _
  %s6 = ssub.s32 1, %s4
  %s7 = scalar_select 0, %s6, %s4
  // Predicated region
  $region2: #{forward.39} parent=0 // pred_check
    _
  $region3: #{forward.39} parent=0 // pred_check_branch
    %9 = sbr.rel (0) target = $region5
  $region4: #{forward.39} parent=0 // pred_region
    _
  $region5: #{forward.39} parent=0 // pred_fallthru
    _
  // Predicated region
  $region6: #{forward.39} parent=0 // pred_check
    _
  $region7: #{forward.39} parent=0 // pred_check_branch
    %11 = sbr.rel (0) target = $region9
  $region8: #{forward.39} parent=0 // pred_region
    _
  $region9: #{forward.39} parent=0 // pred_fallthru
    _
  // Predicated region
  $region10: #{forward.39} parent=0 // pred_check
    _
  $region11: #{forward.39} parent=0 // pred_check_branch
    %13 = sbr.rel (0) target = $region13
  $region12: #{forward.39} parent=0 // pred_region
    _
  $region13: #{forward.39} parent=0 // pred_fallthru
    _
  %v15 = vld [vmem:[%s0] sm:$0xff]
  %v16 = vld [vmem:[%s0 + $0x8] sm:$0xff]
  %v17 = vld [vmem:[%s0 + $0x10] sm:$0xf]
  %v18 = vld [vmem:[%s1] sm:$0xf]
  %v19 = vld [vmem:[%s1 + $0x4] sm:$0xf]
  %v20 = vld [vmem:[%s1 + $0x8] sm:$0xf]
  %v21 = vld [vmem:[%s1 + $0xc] sm:$0xf]
  %v22 = vld [vmem:[%s1 + $0x10] sm:$0xf]
  %v23 = vld [vmem:[%s1 + $0x14] sm:$0xf]
  %v24 = vld [vmem:[%s1 + $0x18] sm:$0xf]
  %v25 = vld [vmem:[%s1 + $0x1c] sm:$0xf]
  %v26 = vld [vmem:[%s1 + $0x20] sm:$0xf]
  %v27 = vld [vmem:[%s1 + $0x24] sm:$0xf]
  %v28 = vld [vmem:[%s1 + $0x28] sm:$0xf]
  %v29 = vld [vmem:[%s1 + $0x2c] sm:$0xf]
  %v30 = vld [vmem:[%s1 + $0x30] sm:$0xf]
  %v31 = vld [vmem:[%s1 + $0x34] sm:$0xf]
  %v32 = vld [vmem:[%s1 + $0x38] sm:$0xf]
  %v33 = vld [vmem:[%s1 + $0x3c] sm:$0xf]
  %v34 = vld [vmem:[%s1 + $0x40] sm:$0xf]
  %v35 = vld [vmem:[%s1 + $0x44] sm:$0xf]
  %v36 = vld [vmem:[%s1 + $0x48] sm:$0xf]
  %v37 = vld [vmem:[%s1 + $0x4c] sm:$0xf]
  %v38 = vld [vmem:[%s1 + $0x50] sm:$0xf]
  %v39 = vld [vmem:[%s1 + $0x54] sm:$0xf]
  %v40 = vld [vmem:[%s1 + $0x58] sm:$0xf]
  %v41 = vld [vmem:[%s1 + $0x5c] sm:$0xf]
  %v42 = vld [vmem:[%s1 + $0x60] sm:$0xf]
  %v43 = vld [vmem:[%s1 + $0x64] sm:$0xf]
  %v44 = vld [vmem:[%s1 + $0x68] sm:$0xf]
  %v45 = vld [vmem:[%s1 + $0x6c] sm:$0xf]
  %v46 = vld [vmem:[%s1 + $0x70] sm:$0xf]
  %v47 = vld [vmem:[%s1 + $0x74] sm:$0xf]
  %v48 = vld [vmem:[%s1 + $0x78] sm:$0xf]
  %v49 = vld [vmem:[%s1 + $0x7c] sm:$0xf]
  %v50 = vld [vmem:[%s1 + $0x80] sm:$0xf]
  %v51 = vld [vmem:[%s1 + $0x84] sm:$0xf]
  %v52 = vld [vmem:[%s1 + $0x88] sm:$0xf]
  %v53 = vld [vmem:[%s1 + $0x8c] sm:$0xf]
  %v54 = vld [vmem:[%s1 + $0x90] sm:$0xf]
  %v55 = vld [vmem:[%s1 + $0x94] sm:$0xf]
  %v56 = vld [vmem:[%s1 + $0x98] sm:$0xf]
  %v57 = vld [vmem:[%s1 + $0x9c] sm:$0xf]
  %v58 = vld [vmem:[%s1 + $0xa0] sm:$0xf]
  %v59 = vld [vmem:[%s1 + $0xa4] sm:$0xf]
  %v60 = vld [vmem:[%s1 + $0xa8] sm:$0xf]
  %v61 = vld [vmem:[%s1 + $0xac] sm:$0xf]
  %v62 = vld [vmem:[%s1 + $0xb0] sm:$0xf]
  %v63 = vld [vmem:[%s1 + $0xb4] sm:$0xf]
  %v64 = vld [vmem:[%s1 + $0xb8] sm:$0xf]
  %v65 = vld [vmem:[%s1 + $0xbc] sm:$0xf]
  %v66 = vld [vmem:[%s1 + $0xc0] sm:$0xf]
  %v67 = vld [vmem:[%s1 + $0xc4] sm:$0xf]
  %v68 = vld [vmem:[%s1 + $0xc8] sm:$0xf]
  %v69 = vld [vmem:[%s1 + $0xcc] sm:$0xf]
  %v70 = vld [vmem:[%s1 + $0xd0] sm:$0xf]
  %v71 = vld [vmem:[%s1 + $0xd4] sm:$0xf]
  %v72 = vld [vmem:[%s1 + $0xd8] sm:$0xf]
  %v73 = vld [vmem:[%s1 + $0xdc] sm:$0xf]
  %v74 = vld [vmem:[%s1 + $0xe0] sm:$0xf]
  %v75 = vld [vmem:[%s1 + $0xe4] sm:$0xf]
  %v76 = vld [vmem:[%s1 + $0xe8] sm:$0xf]
  %v77 = vld [vmem:[%s1 + $0xec] sm:$0xf]
  %v78 = vld [vmem:[%s1 + $0xf0] sm:$0xf]
  %v79 = vld [vmem:[%s1 + $0xf4] sm:$0xf]
  %v80 = vld [vmem:[%s1 + $0xf8] sm:$0xf]
  %v81 = vld [vmem:[%s1 + $0xfc] sm:$0xf]
  %v82 = vld [vmem:[%s1 + $0x100] sm:$0xf]
  %v83 = vld [vmem:[%s1 + $0x104] sm:$0xf]
  %v84 = vld [vmem:[%s1 + $0x108] sm:$0xf]
  %v85 = vld [vmem:[%s1 + $0x10c] sm:$0xf]
  %v86 = vld [vmem:[%s1 + $0x110] sm:$0xf]
  %v87 = vld [vmem:[%s1 + $0x114] sm:$0xf]
  %v88 = vld [vmem:[%s1 + $0x118] sm:$0xf]
  %v89 = vld [vmem:[%s1 + $0x11c] sm:$0xf]
  %v90 = vld [vmem:[%s2] sm:$0x1]
  %v92 = vlaneseq
  %v93 = vshrl.u32 %v92, 7
  %v94 = vsub.s32 0, %v93
  %v95 = vrot.slane %v90, %v94
  %v100 = vunpack.c.l.b16 %v15
  %v101 = vunpack.c.h.b16 %v15
  %v102 = vunpack.c.l.b16 %v16
  %v103 = vunpack.c.h.b16 %v16
  %v104 = vunpack.c.l.b16 %v17
  %v105 = vpack.c.b16 %v100, %v100
  %v106 = vpack.c.b16 %v101, %v101
  %v107 = vpack.c.b16 %v102, %v102
  %v108 = vpack.c.b16 %v103, %v103
  %v109 = vpack.c.b16 %v104, %v104
  %v186 = vunpack.c.l.b16 %v18
  %v187 = vunpack.c.l.b16 %v19
  %v188 = vunpack.c.l.b16 %v20
  %v189 = vunpack.c.l.b16 %v21
  %v190 = vunpack.c.l.b16 %v22
  %v191 = vunpack.c.l.b16 %v23
  %v192 = vunpack.c.l.b16 %v24
  %v193 = vunpack.c.l.b16 %v25
  %v194 = vunpack.c.l.b16 %v26
  %v195 = vunpack.c.l.b16 %v27
  %v196 = vunpack.c.l.b16 %v28
  %v197 = vunpack.c.l.b16 %v29
  %v198 = vunpack.c.l.b16 %v30
  %v199 = vunpack.c.l.b16 %v31
  %v200 = vunpack.c.l.b16 %v32
  %v201 = vunpack.c.l.b16 %v33
  %v202 = vunpack.c.l.b16 %v34
  %v203 = vunpack.c.l.b16 %v35
  %v204 = vunpack.c.l.b16 %v36
  %v205 = vunpack.c.l.b16 %v37
  %v206 = vunpack.c.l.b16 %v38
  %v207 = vunpack.c.l.b16 %v39
  %v208 = vunpack.c.l.b16 %v40
  %v209 = vunpack.c.l.b16 %v41
  %v210 = vunpack.c.l.b16 %v42
  %v211 = vunpack.c.l.b16 %v43
  %v212 = vunpack.c.l.b16 %v44
  %v213 = vunpack.c.l.b16 %v45
  %v214 = vunpack.c.l.b16 %v46
  %v215 = vunpack.c.l.b16 %v47
  %v216 = vunpack.c.l.b16 %v48
  %v217 = vunpack.c.l.b16 %v49
  %v218 = vunpack.c.l.b16 %v50
  %v219 = vunpack.c.l.b16 %v51
  %v220 = vunpack.c.l.b16 %v52
  %v221 = vunpack.c.l.b16 %v53
  %v222 = vunpack.c.l.b16 %v54
  %v223 = vunpack.c.l.b16 %v55
  %v224 = vunpack.c.l.b16 %v56
  %v225 = vunpack.c.l.b16 %v57
  %v226 = vunpack.c.l.b16 %v58
  %v227 = vunpack.c.l.b16 %v59
  %v228 = vunpack.c.l.b16 %v60
  %v229 = vunpack.c.l.b16 %v61
  %v230 = vunpack.c.l.b16 %v62
  %v231 = vunpack.c.l.b16 %v63
  %v232 = vunpack.c.l.b16 %v64
  %v233 = vunpack.c.l.b16 %v65
  %v234 = vunpack.c.l.b16 %v66
  %v235 = vunpack.c.l.b16 %v67
  %v236 = vunpack.c.l.b16 %v68
  %v237 = vunpack.c.l.b16 %v69
  %v238 = vunpack.c.l.b16 %v70
  %v239 = vunpack.c.l.b16 %v71
  %v240 = vunpack.c.l.b16 %v72
  %v241 = vunpack.c.l.b16 %v73
  %v242 = vunpack.c.l.b16 %v74
  %v243 = vunpack.c.l.b16 %v75
  %v244 = vunpack.c.l.b16 %v76
  %v245 = vunpack.c.l.b16 %v77
  %v246 = vunpack.c.l.b16 %v78
  %v247 = vunpack.c.l.b16 %v79
  %v248 = vunpack.c.l.b16 %v80
  %v249 = vunpack.c.l.b16 %v81
  %v250 = vunpack.c.l.b16 %v82
  %v251 = vunpack.c.l.b16 %v83
  %v252 = vunpack.c.l.b16 %v84
  %v253 = vunpack.c.l.b16 %v85
  %v254 = vunpack.c.l.b16 %v86
  %v255 = vunpack.c.l.b16 %v87
  %v256 = vunpack.c.l.b16 %v88
  %v257 = vunpack.c.l.b16 %v89
  %v258 = vpack.c.b16 %v187, %v186
  %v259 = vpack.c.b16 %v189, %v188
  %v260 = vpack.c.b16 %v191, %v190
  %v261 = vpack.c.b16 %v193, %v192
  %v262 = vpack.c.b16 %v195, %v194
  %v263 = vpack.c.b16 %v197, %v196
  %v264 = vpack.c.b16 %v199, %v198
  %v265 = vpack.c.b16 %v201, %v200
  %v266 = vpack.c.b16 %v203, %v202
  %v267 = vpack.c.b16 %v205, %v204
  %v268 = vpack.c.b16 %v207, %v206
  %v269 = vpack.c.b16 %v209, %v208
  %v270 = vpack.c.b16 %v211, %v210
  %v271 = vpack.c.b16 %v213, %v212
  %v272 = vpack.c.b16 %v215, %v214
  %v273 = vpack.c.b16 %v217, %v216
  %v274 = vpack.c.b16 %v219, %v218
  %v275 = vpack.c.b16 %v221, %v220
  %v276 = vpack.c.b16 %v223, %v222
  %v277 = vpack.c.b16 %v225, %v224
  %v278 = vpack.c.b16 %v227, %v226
  %v279 = vpack.c.b16 %v229, %v228
  %v280 = vpack.c.b16 %v231, %v230
  %v281 = vpack.c.b16 %v233, %v232
  %v282 = vpack.c.b16 %v235, %v234
  %v283 = vpack.c.b16 %v237, %v236
  %v284 = vpack.c.b16 %v239, %v238
  %v285 = vpack.c.b16 %v241, %v240
  %v286 = vpack.c.b16 %v243, %v242
  %v287 = vpack.c.b16 %v245, %v244
  %v288 = vpack.c.b16 %v247, %v246
  %v289 = vpack.c.b16 %v249, %v248
  %v290 = vpack.c.b16 %v251, %v250
  %v291 = vpack.c.b16 %v253, %v252
  %v292 = vpack.c.b16 %v255, %v254
  %v293 = vpack.c.b16 %v257, %v256
  %vm330 = vcmask 523264
  %v332 = vsel %vm330, %v109, 0
  %334 = vmatprep.subr.bf16.mxu0 0
  %335 = vmatpush1.bf16.msra.mxu0 %v265
  %336 = vmatprep.subr.bf16.mxu0 0
  %337 = vmatpush1.bf16.msra.mxu0 %v264
  %338 = vmatprep.subr.bf16.mxu0 0
  %339 = vmatpush1.bf16.msra.mxu0 %v263
  %340 = vmatprep.subr.bf16.mxu0 0
  %341 = vmatpush1.bf16.msra.mxu0 %v262
  %342 = vmatprep.subr.bf16.mxu0 0
  %343 = vmatpush1.bf16.msra.mxu0 %v261
  %344 = vmatprep.subr.bf16.mxu0 0
  %345 = vmatpush1.bf16.msra.mxu0 %v260
  %346 = vmatprep.subr.bf16.mxu0 0
  %347 = vmatpush1.bf16.msra.mxu0 %v259
  %348 = vmatprep.subr.bf16.mxu0 0
  %349 = vmatpush1.bf16.msra.mxu0 %v258
  %350 = vmatprep.subr.bf16.mxu0 0
  %351 = vmatpush2.bf16.msra.mxu0 %v273
  %352 = vmatprep.subr.bf16.mxu0 0
  %353 = vmatpush2.bf16.msra.mxu0 %v272
  %354 = vmatprep.subr.bf16.mxu0 0
  %355 = vmatpush2.bf16.msra.mxu0 %v271
  %356 = vmatprep.subr.bf16.mxu0 0
  %357 = vmatpush2.bf16.msra.mxu0 %v270
  %358 = vmatprep.subr.bf16.mxu0 0
  %359 = vmatpush2.bf16.msra.mxu0 %v269
  %360 = vmatprep.subr.bf16.mxu0 0
  %361 = vmatpush2.bf16.msra.mxu0 %v268
  %362 = vmatprep.subr.bf16.mxu0 0
  %363 = vmatpush2.bf16.msra.mxu0 %v267
  %364 = vmatprep.subr.bf16.mxu0 0
  %365 = vmatpush2.bf16.msra.mxu0 %v266
  %366 = vmatprep.mubr.bf16.mxu0 %v106
  %367 = vmatmul.mubr.bf16.gmra.mxu0 %v105
  %v368 = vpop.f32.mrf.mxu0
  %v369 = vadd.f32 %v95, %v368
  %v370 = vpop.f32.mrf.mxu0
  %v371 = vpop.f32.mrf.mxu0
  %v372 = vpop.f32.mrf.mxu0
  %373 = vdwg.mxu0
  %374 = vmatprep.subr.bf16.mxu0 0
  %375 = vmatpush1.bf16.msra.mxu0 %v281
  %376 = vmatprep.subr.bf16.mxu0 0
  %377 = vmatpush1.bf16.msra.mxu0 %v280
  %378 = vmatprep.subr.bf16.mxu0 0
  %379 = vmatpush1.bf16.msra.mxu0 %v279
  %380 = vmatprep.subr.bf16.mxu0 0
  %381 = vmatpush1.bf16.msra.mxu0 %v278
  %382 = vmatprep.subr.bf16.mxu0 0
  %383 = vmatpush1.bf16.msra.mxu0 %v277
  %384 = vmatprep.subr.bf16.mxu0 0
  %385 = vmatpush1.bf16.msra.mxu0 %v276
  %386 = vmatprep.subr.bf16.mxu0 0
  %387 = vmatpush1.bf16.msra.mxu0 %v275
  %388 = vmatprep.subr.bf16.mxu0 0
  %389 = vmatpush1.bf16.msra.mxu0 %v274
  %390 = vmatprep.subr.bf16.mxu0 0
  %391 = vmatpush2.bf16.msra.mxu0 %v289
  %392 = vmatprep.subr.bf16.mxu0 0
  %393 = vmatpush2.bf16.msra.mxu0 %v288
  %394 = vmatprep.subr.bf16.mxu0 0
  %395 = vmatpush2.bf16.msra.mxu0 %v287
  %396 = vmatprep.subr.bf16.mxu0 0
  %397 = vmatpush2.bf16.msra.mxu0 %v286
  %398 = vmatprep.subr.bf16.mxu0 0
  %399 = vmatpush2.bf16.msra.mxu0 %v285
  %400 = vmatprep.subr.bf16.mxu0 0
  %401 = vmatpush2.bf16.msra.mxu0 %v284
  %402 = vmatprep.subr.bf16.mxu0 0
  %403 = vmatpush2.bf16.msra.mxu0 %v283
  %404 = vmatprep.subr.bf16.mxu0 0
  %405 = vmatpush2.bf16.msra.mxu0 %v282
  %406 = vmatprep.mubr.bf16.mxu0 %v108
  %407 = vmatmul.mubr.bf16.gmra.mxu0 %v107
  %v408 = vpop.f32.mrf.mxu0
  %v409 = vadd.f32 %v369, %v408
  %v410 = vpop.f32.mrf.mxu0
  %v411 = vpop.f32.mrf.mxu0
  %v412 = vpop.f32.mrf.mxu0
  %413 = vdwg.mxu0
  %414 = vmatprep.subr.bf16.mxu0 0
  %415 = vmatpush1.bf16.msra.mxu0 0
  %416 = vmatprep.subr.bf16.mxu0 0
  %417 = vmatpush1.bf16.msra.mxu0 0
  %418 = vmatprep.subr.bf16.mxu0 0
  %419 = vmatpush1.bf16.msra.mxu0 0
  %420 = vmatprep.subr.bf16.mxu0 0
  %421 = vmatpush1.bf16.msra.mxu0 0
  %422 = vmatprep.subr.bf16.mxu0 0
  %423 = vmatpush1.bf16.msra.mxu0 %v293
  %424 = vmatprep.subr.bf16.mxu0 0
  %425 = vmatpush1.bf16.msra.mxu0 %v292
  %426 = vmatprep.subr.bf16.mxu0 0
  %427 = vmatpush1.bf16.msra.mxu0 %v291
  %428 = vmatprep.subr.bf16.mxu0 0
  %429 = vmatpush1.bf16.msra.mxu0 %v290
  %430 = vmatprep.subr.bf16.mxu0 0
  %431 = vmatpush2.bf16.msra.mxu0 0
  %432 = vmatprep.subr.bf16.mxu0 0
  %433 = vmatpush2.bf16.msra.mxu0 0
  %434 = vmatprep.subr.bf16.mxu0 0
  %435 = vmatpush2.bf16.msra.mxu0 0
  %436 = vmatprep.subr.bf16.mxu0 0
  %437 = vmatpush2.bf16.msra.mxu0 0
  %438 = vmatprep.subr.bf16.mxu0 0
  %439 = vmatpush2.bf16.msra.mxu0 0
  %440 = vmatprep.subr.bf16.mxu0 0
  %441 = vmatpush2.bf16.msra.mxu0 0
  %442 = vmatprep.subr.bf16.mxu0 0
  %443 = vmatpush2.bf16.msra.mxu0 0
  %444 = vmatprep.subr.bf16.mxu0 0
  %445 = vmatpush2.bf16.msra.mxu0 0
  %446 = vmatprep.mubr.bf16.mxu0 0
  %447 = vmatmul.mubr.bf16.gmra.mxu0 %v332
  %v448 = vpop.f32.mrf.mxu0
  %v449 = vadd.f32 %v409, %v448
  %v450 = vpop.f32.mrf.mxu0
  %v451 = vpop.f32.mrf.mxu0
  %v452 = vpop.f32.mrf.mxu0
  %453 = vdwg.mxu0
  %v454 = vxor.u32 %v449, 2147483648
  %v455 = vmul.f32 %v454, 1.442695
  %v456 = vpow.pop %v455
  %v457 = vadd.f32 %v456, 1.0
  %v458 = vrcp.pop %v457
  %v459 = vmul.f32 1.0, %v458
  %v460 = vmul.f32 %v449, %v459
  %v461 = vpack.c.bf16 %v460, %v460
  %462 = vst [vmem:[%s3] sm:$0xf] %v461
  // Predicated region
  $region14: #{forward.39} parent=0 // pred_check
    _
  $region15: #{forward.39} parent=0 // pred_check_branch
    %464 = sbr.rel (0) target = $region17
  $region16: #{forward.39} parent=0 // pred_region
    _
  $region17: #{forward.39} parent=0 // pred_fallthru
    _
  // Predicated region
  $region18: #{forward.39} parent=0 // pred_check
    _
  $region19: #{forward.39} parent=0 // pred_check_branch
    %466 = sbr.rel (0) target = $region21
  $region20: #{forward.39} parent=0 // pred_region
    _
  $region21: #{forward.39} parent=0 // pred_fallthru
    _

// kernel: forward.40
$region0: #{forward.40}
  #allocation0 [shape = 'u32[]', space=smem, size = 0x4, offset = 0x4, fixed_abs, tag = 'smem constant byte address 0x4 - core index']
  #allocation1 [shape = 'u32[144,128]{1,0:T(1,128)}', space=vmem, size = 0x12000, scoped, tag = 'internal scratch']
  %s0 = inlined_call_operand.vmem [shape: bf16[8,128], index: 0, kind: input, shape index: {}]
  %s1 = inlined_call_operand.vmem [shape: bf16[128,128], index: 1, kind: input, shape index: {}]
  %s2 = inlined_call_operand.vmem [shape: f32[1,128], index: 2, kind: input, shape index: {}]
  %s3 = inlined_call_operand.vmem [shape: bf16[8,128], index: 3, kind: output, shape index: {}]
  %s4 = sld [smem:[#allocation0]]
  $region22: #{forward.40} parent=0
    _
  %s6 = ssub.s32 1, %s4
  %s7 = scalar_select 0, %s6, %s4
  // Predicated region
  $region2: #{forward.40} parent=0 // pred_check
    _
  $region3: #{forward.40} parent=0 // pred_check_branch
    %9 = sbr.rel (0) target = $region5
  $region4: #{forward.40} parent=0 // pred_region
    _
  $region5: #{forward.40} parent=0 // pred_fallthru
    _
  // Predicated region
  $region6: #{forward.40} parent=0 // pred_check
    _
  $region7: #{forward.40} parent=0 // pred_check_branch
    %11 = sbr.rel (0) target = $region9
  $region8: #{forward.40} parent=0 // pred_region
    _
  $region9: #{forward.40} parent=0 // pred_fallthru
    _
  // Predicated region
  $region10: #{forward.40} parent=0 // pred_check
    _
  $region11: #{forward.40} parent=0 // pred_check_branch
    %13 = sbr.rel (0) target = $region13
  $region12: #{forward.40} parent=0 // pred_region
    _
  $region13: #{forward.40} parent=0 // pred_fallthru
    _
  %v15 = vld [vmem:[%s0] sm:$0xf]
  %v16 = vld [vmem:[%s1] sm:$0xf]
  %v17 = vld [vmem:[%s1 + $0x4] sm:$0xf]
  %v18 = vld [vmem:[%s1 + $0x8] sm:$0xf]
  %v19 = vld [vmem:[%s1 + $0xc] sm:$0xf]
  %v20 = vld [vmem:[%s1 + $0x10] sm:$0xf]
  %v21 = vld [vmem:[%s1 + $0x14] sm:$0xf]
  %v22 = vld [vmem:[%s1 + $0x18] sm:$0xf]
  %v23 = vld [vmem:[%s1 + $0x1c] sm:$0xf]
  %v24 = vld [vmem:[%s1 + $0x20] sm:$0xf]
  %v25 = vld [vmem:[%s1 + $0x24] sm:$0xf]
  %v26 = vld [vmem:[%s1 + $0x28] sm:$0xf]
  %v27 = vld [vmem:[%s1 + $0x2c] sm:$0xf]
  %v28 = vld [vmem:[%s1 + $0x30] sm:$0xf]
  %v29 = vld [vmem:[%s1 + $0x34] sm:$0xf]
  %v30 = vld [vmem:[%s1 + $0x38] sm:$0xf]
  %v31 = vld [vmem:[%s1 + $0x3c] sm:$0xf]
  %v32 = vld [vmem:[%s2] sm:$0x1]
  %v34 = vlaneseq
  %v35 = vshrl.u32 %v34, 7
  %v36 = vsub.s32 0, %v35
  %v37 = vrot.slane %v32, %v36
  %v55 = vunpack.c.l.b16 %v16
  %v56 = vunpack.c.l.b16 %v17
  %v57 = vunpack.c.l.b16 %v18
  %v58 = vunpack.c.l.b16 %v19
  %v59 = vunpack.c.l.b16 %v20
  %v60 = vunpack.c.l.b16 %v21
  %v61 = vunpack.c.l.b16 %v22
  %v62 = vunpack.c.l.b16 %v23
  %v63 = vunpack.c.l.b16 %v24
  %v64 = vunpack.c.l.b16 %v25
  %v65 = vunpack.c.l.b16 %v26
  %v66 = vunpack.c.l.b16 %v27
  %v67 = vunpack.c.l.b16 %v28
  %v68 = vunpack.c.l.b16 %v29
  %v69 = vunpack.c.l.b16 %v30
  %v70 = vunpack.c.l.b16 %v31
  %v71 = vpack.c.b16 %v56, %v55
  %v72 = vpack.c.b16 %v58, %v57
  %v73 = vpack.c.b16 %v60, %v59
  %v74 = vpack.c.b16 %v62, %v61
  %v75 = vpack.c.b16 %v64, %v63
  %v76 = vpack.c.b16 %v66, %v65
  %v77 = vpack.c.b16 %v68, %v67
  %v78 = vpack.c.b16 %v70, %v69
  %87 = vmatprep.subr.bf16.mxu0 0
  %88 = vmatpush1.bf16.msra.mxu0 %v78
  %89 = vmatprep.subr.bf16.mxu0 0
  %90 = vmatpush1.bf16.msra.mxu0 %v77
  %91 = vmatprep.subr.bf16.mxu0 0
  %92 = vmatpush1.bf16.msra.mxu0 %v76
  %93 = vmatprep.subr.bf16.mxu0 0
  %94 = vmatpush1.bf16.msra.mxu0 %v75
  %95 = vmatprep.subr.bf16.mxu0 0
  %96 = vmatpush1.bf16.msra.mxu0 %v74
  %97 = vmatprep.subr.bf16.mxu0 0
  %98 = vmatpush1.bf16.msra.mxu0 %v73
  %99 = vmatprep.subr.bf16.mxu0 0
  %100 = vmatpush1.bf16.msra.mxu0 %v72
  %101 = vmatprep.subr.bf16.mxu0 0
  %102 = vmatpush1.bf16.msra.mxu0 %v71
  %103 = vmatprep.subr.bf16.mxu0 0
  %104 = vmatpush2.bf16.msra.mxu0 0
  %105 = vmatprep.subr.bf16.mxu0 0
  %106 = vmatpush2.bf16.msra.mxu0 0
  %107 = vmatprep.subr.bf16.mxu0 0
  %108 = vmatpush2.bf16.msra.mxu0 0
  %109 = vmatprep.subr.bf16.mxu0 0
  %110 = vmatpush2.bf16.msra.mxu0 0
  %111 = vmatprep.subr.bf16.mxu0 0
  %112 = vmatpush2.bf16.msra.mxu0 0
  %113 = vmatprep.subr.bf16.mxu0 0
  %114 = vmatpush2.bf16.msra.mxu0 0
  %115 = vmatprep.subr.bf16.mxu0 0
  %116 = vmatpush2.bf16.msra.mxu0 0
  %117 = vmatprep.subr.bf16.mxu0 0
  %118 = vmatpush2.bf16.msra.mxu0 0
  %119 = vmatprep.mubr.bf16.mxu0 0
  %120 = vmatmul.mubr.bf16.gmra.mxu0 %v15
  %v121 = vpop.f32.mrf.mxu0
  %v122 = vadd.f32 %v37, %v121
  %v123 = vpop.f32.mrf.mxu0
  %v124 = vpop.f32.mrf.mxu0
  %v125 = vpop.f32.mrf.mxu0
  %126 = vdwg.mxu0
  %v127 = vxor.u32 %v122, 2147483648
  %v128 = vmul.f32 %v127, 1.442695
  %v129 = vpow.pop %v128
  %v130 = vadd.f32 %v129, 1.0
  %v131 = vrcp.pop %v130
  %v132 = vmul.f32 1.0, %v131
  %v133 = vmul.f32 %v122, %v132
  %v134 = vpack.c.bf16 %v133, %v133
  %135 = vst [vmem:[%s3] sm:$0xf] %v134
  // Predicated region
  $region14: #{forward.40} parent=0 // pred_check
    _
  $region15: #{forward.40} parent=0 // pred_check_branch
    %137 = sbr.rel (0) target = $region17
  $region16: #{forward.40} parent=0 // pred_region
    _
  $region17: #{forward.40} parent=0 // pred_fallthru
    _
  // Predicated region
  $region18: #{forward.40} parent=0 // pred_check
    _
  $region19: #{forward.40} parent=0 // pred_check_branch
    %139 = sbr.rel (0) target = $region21
  $region20: #{forward.40} parent=0 // pred_region
    _
  $region21: #{forward.40} parent=0 // pred_fallthru
    _

// kernel: forward.41
$region0: #{forward.41}
  #allocation0 [shape = 'u32[]', space=smem, size = 0x4, offset = 0x4, fixed_abs, tag = 'smem constant byte address 0x4 - core index']
  #allocation1 [shape = 'u32[144,128]{1,0:T(1,128)}', space=vmem, size = 0x12000, scoped, tag = 'internal scratch']
  %s0 = inlined_call_operand.vmem [shape: bf16[8,576], index: 0, kind: input, shape index: {}]
  %s1 = inlined_call_operand.vmem [shape: bf16[576,64], index: 1, kind: input, shape index: {}]
  %s2 = inlined_call_operand.vmem [shape: f32[1,64], index: 2, kind: input, shape index: {}]
  %s3 = inlined_call_operand.vmem [shape: bf16[8,64], index: 3, kind: output, shape index: {}]
  %s4 = sld [smem:[#allocation0]]
  $region22: #{forward.41} parent=0
    _
  %s6 = ssub.s32 1, %s4
  %s7 = scalar_select 0, %s6, %s4
  // Predicated region
  $region2: #{forward.41} parent=0 // pred_check
    _
  $region3: #{forward.41} parent=0 // pred_check_branch
    %9 = sbr.rel (0) target = $region5
  $region4: #{forward.41} parent=0 // pred_region
    _
  $region5: #{forward.41} parent=0 // pred_fallthru
    _
  // Predicated region
  $region6: #{forward.41} parent=0 // pred_check
    _
  $region7: #{forward.41} parent=0 // pred_check_branch
    %11 = sbr.rel (0) target = $region9
  $region8: #{forward.41} parent=0 // pred_region
    _
  $region9: #{forward.41} parent=0 // pred_fallthru
    _
  // Predicated region
  $region10: #{forward.41} parent=0 // pred_check
    _
  $region11: #{forward.41} parent=0 // pred_check_branch
    %13 = sbr.rel (0) target = $region13
  $region12: #{forward.41} parent=0 // pred_region
    _
  $region13: #{forward.41} parent=0 // pred_fallthru
    _
  %v15 = vld [vmem:[%s0] sm:$0xff]
  %v16 = vld [vmem:[%s0 + $0x8] sm:$0xff]
  %v17 = vld [vmem:[%s0 + $0x10] sm:$0xf]
  %v18 = vld [vmem:[%s1] sm:$0xf]
  %v19 = vld [vmem:[%s1 + $0x4] sm:$0xf]
  %v20 = vld [vmem:[%s1 + $0x8] sm:$0xf]
  %v21 = vld [vmem:[%s1 + $0xc] sm:$0xf]
  %v22 = vld [vmem:[%s1 + $0x10] sm:$0xf]
  %v23 = vld [vmem:[%s1 + $0x14] sm:$0xf]
  %v24 = vld [vmem:[%s1 + $0x18] sm:$0xf]
  %v25 = vld [vmem:[%s1 + $0x1c] sm:$0xf]
  %v26 = vld [vmem:[%s1 + $0x20] sm:$0xf]
  %v27 = vld [vmem:[%s1 + $0x24] sm:$0xf]
  %v28 = vld [vmem:[%s1 + $0x28] sm:$0xf]
  %v29 = vld [vmem:[%s1 + $0x2c] sm:$0xf]
  %v30 = vld [vmem:[%s1 + $0x30] sm:$0xf]
  %v31 = vld [vmem:[%s1 + $0x34] sm:$0xf]
  %v32 = vld [vmem:[%s1 + $0x38] sm:$0xf]
  %v33 = vld [vmem:[%s1 + $0x3c] sm:$0xf]
  %v34 = vld [vmem:[%s1 + $0x40] sm:$0xf]
  %v35 = vld [vmem:[%s1 + $0x44] sm:$0xf]
  %v36 = vld [vmem:[%s1 + $0x48] sm:$0xf]
  %v37 = vld [vmem:[%s1 + $0x4c] sm:$0xf]
  %v38 = vld [vmem:[%s1 + $0x50] sm:$0xf]
  %v39 = vld [vmem:[%s1 + $0x54] sm:$0xf]
  %v40 = vld [vmem:[%s1 + $0x58] sm:$0xf]
  %v41 = vld [vmem:[%s1 + $0x5c] sm:$0xf]
  %v42 = vld [vmem:[%s1 + $0x60] sm:$0xf]
  %v43 = vld [vmem:[%s1 + $0x64] sm:$0xf]
  %v44 = vld [vmem:[%s1 + $0x68] sm:$0xf]
  %v45 = vld [vmem:[%s1 + $0x6c] sm:$0xf]
  %v46 = vld [vmem:[%s1 + $0x70] sm:$0xf]
  %v47 = vld [vmem:[%s1 + $0x74] sm:$0xf]
  %v48 = vld [vmem:[%s1 + $0x78] sm:$0xf]
  %v49 = vld [vmem:[%s1 + $0x7c] sm:$0xf]
  %v50 = vld [vmem:[%s1 + $0x80] sm:$0xf]
  %v51 = vld [vmem:[%s1 + $0x84] sm:$0xf]
  %v52 = vld [vmem:[%s1 + $0x88] sm:$0xf]
  %v53 = vld [vmem:[%s1 + $0x8c] sm:$0xf]
  %v54 = vld [vmem:[%s1 + $0x90] sm:$0xf]
  %v55 = vld [vmem:[%s1 + $0x94] sm:$0xf]
  %v56 = vld [vmem:[%s1 + $0x98] sm:$0xf]
  %v57 = vld [vmem:[%s1 + $0x9c] sm:$0xf]
  %v58 = vld [vmem:[%s1 + $0xa0] sm:$0xf]
  %v59 = vld [vmem:[%s1 + $0xa4] sm:$0xf]
  %v60 = vld [vmem:[%s1 + $0xa8] sm:$0xf]
  %v61 = vld [vmem:[%s1 + $0xac] sm:$0xf]
  %v62 = vld [vmem:[%s1 + $0xb0] sm:$0xf]
  %v63 = vld [vmem:[%s1 + $0xb4] sm:$0xf]
  %v64 = vld [vmem:[%s1 + $0xb8] sm:$0xf]
  %v65 = vld [vmem:[%s1 + $0xbc] sm:$0xf]
  %v66 = vld [vmem:[%s1 + $0xc0] sm:$0xf]
  %v67 = vld [vmem:[%s1 + $0xc4] sm:$0xf]
  %v68 = vld [vmem:[%s1 + $0xc8] sm:$0xf]
  %v69 = vld [vmem:[%s1 + $0xcc] sm:$0xf]
  %v70 = vld [vmem:[%s1 + $0xd0] sm:$0xf]
  %v71 = vld [vmem:[%s1 + $0xd4] sm:$0xf]
  %v72 = vld [vmem:[%s1 + $0xd8] sm:$0xf]
  %v73 = vld [vmem:[%s1 + $0xdc] sm:$0xf]
  %v74 = vld [vmem:[%s1 + $0xe0] sm:$0xf]
  %v75 = vld [vmem:[%s1 + $0xe4] sm:$0xf]
  %v76 = vld [vmem:[%s1 + $0xe8] sm:$0xf]
  %v77 = vld [vmem:[%s1 + $0xec] sm:$0xf]
  %v78 = vld [vmem:[%s1 + $0xf0] sm:$0xf]
  %v79 = vld [vmem:[%s1 + $0xf4] sm:$0xf]
  %v80 = vld [vmem:[%s1 + $0xf8] sm:$0xf]
  %v81 = vld [vmem:[%s1 + $0xfc] sm:$0xf]
  %v82 = vld [vmem:[%s1 + $0x100] sm:$0xf]
  %v83 = vld [vmem:[%s1 + $0x104] sm:$0xf]
  %v84 = vld [vmem:[%s1 + $0x108] sm:$0xf]
  %v85 = vld [vmem:[%s1 + $0x10c] sm:$0xf]
  %v86 = vld [vmem:[%s1 + $0x110] sm:$0xf]
  %v87 = vld [vmem:[%s1 + $0x114] sm:$0xf]
  %v88 = vld [vmem:[%s1 + $0x118] sm:$0xf]
  %v89 = vld [vmem:[%s1 + $0x11c] sm:$0xf]
  %v90 = vld [vmem:[%s2] sm:$0x1]
  %v92 = vlaneseq
  %v93 = vshrl.u32 %v92, 7
  %v94 = vsub.s32 0, %v93
  %v95 = vrot.slane %v90, %v94
  %v100 = vunpack.c.l.b16 %v15
  %v101 = vunpack.c.h.b16 %v15
  %v102 = vunpack.c.l.b16 %v16
  %v103 = vunpack.c.h.b16 %v16
  %v104 = vunpack.c.l.b16 %v17
  %v105 = vpack.c.b16 %v100, %v100
  %v106 = vpack.c.b16 %v101, %v101
  %v107 = vpack.c.b16 %v102, %v102
  %v108 = vpack.c.b16 %v103, %v103
  %v109 = vpack.c.b16 %v104, %v104
  %v186 = vunpack.c.l.b16 %v18
  %v187 = vunpack.c.l.b16 %v19
  %v188 = vunpack.c.l.b16 %v20
  %v189 = vunpack.c.l.b16 %v21
  %v190 = vunpack.c.l.b16 %v22
  %v191 = vunpack.c.l.b16 %v23
  %v192 = vunpack.c.l.b16 %v24
  %v193 = vunpack.c.l.b16 %v25
  %v194 = vunpack.c.l.b16 %v26
  %v195 = vunpack.c.l.b16 %v27
  %v196 = vunpack.c.l.b16 %v28
  %v197 = vunpack.c.l.b16 %v29
  %v198 = vunpack.c.l.b16 %v30
  %v199 = vunpack.c.l.b16 %v31
  %v200 = vunpack.c.l.b16 %v32
  %v201 = vunpack.c.l.b16 %v33
  %v202 = vunpack.c.l.b16 %v34
  %v203 = vunpack.c.l.b16 %v35
  %v204 = vunpack.c.l.b16 %v36
  %v205 = vunpack.c.l.b16 %v37
  %v206 = vunpack.c.l.b16 %v38
  %v207 = vunpack.c.l.b16 %v39
  %v208 = vunpack.c.l.b16 %v40
  %v209 = vunpack.c.l.b16 %v41
  %v210 = vunpack.c.l.b16 %v42
  %v211 = vunpack.c.l.b16 %v43
  %v212 = vunpack.c.l.b16 %v44
  %v213 = vunpack.c.l.b16 %v45
  %v214 = vunpack.c.l.b16 %v46
  %v215 = vunpack.c.l.b16 %v47
  %v216 = vunpack.c.l.b16 %v48
  %v217 = vunpack.c.l.b16 %v49
  %v218 = vunpack.c.l.b16 %v50
  %v219 = vunpack.c.l.b16 %v51
  %v220 = vunpack.c.l.b16 %v52
  %v221 = vunpack.c.l.b16 %v53
  %v222 = vunpack.c.l.b16 %v54
  %v223 = vunpack.c.l.b16 %v55
  %v224 = vunpack.c.l.b16 %v56
  %v225 = vunpack.c.l.b16 %v57
  %v226 = vunpack.c.l.b16 %v58
  %v227 = vunpack.c.l.b16 %v59
  %v228 = vunpack.c.l.b16 %v60
  %v229 = vunpack.c.l.b16 %v61
  %v230 = vunpack.c.l.b16 %v62
  %v231 = vunpack.c.l.b16 %v63
  %v232 = vunpack.c.l.b16 %v64
  %v233 = vunpack.c.l.b16 %v65
  %v234 = vunpack.c.l.b16 %v66
  %v235 = vunpack.c.l.b16 %v67
  %v236 = vunpack.c.l.b16 %v68
  %v237 = vunpack.c.l.b16 %v69
  %v238 = vunpack.c.l.b16 %v70
  %v239 = vunpack.c.l.b16 %v71
  %v240 = vunpack.c.l.b16 %v72
  %v241 = vunpack.c.l.b16 %v73
  %v242 = vunpack.c.l.b16 %v74
  %v243 = vunpack.c.l.b16 %v75
  %v244 = vunpack.c.l.b16 %v76
  %v245 = vunpack.c.l.b16 %v77
  %v246 = vunpack.c.l.b16 %v78
  %v247 = vunpack.c.l.b16 %v79
  %v248 = vunpack.c.l.b16 %v80
  %v249 = vunpack.c.l.b16 %v81
  %v250 = vunpack.c.l.b16 %v82
  %v251 = vunpack.c.l.b16 %v83
  %v252 = vunpack.c.l.b16 %v84
  %v253 = vunpack.c.l.b16 %v85
  %v254 = vunpack.c.l.b16 %v86
  %v255 = vunpack.c.l.b16 %v87
  %v256 = vunpack.c.l.b16 %v88
  %v257 = vunpack.c.l.b16 %v89
  %v258 = vpack.c.b16 %v187, %v186
  %v259 = vpack.c.b16 %v189, %v188
  %v260 = vpack.c.b16 %v191, %v190
  %v261 = vpack.c.b16 %v193, %v192
  %v262 = vpack.c.b16 %v195, %v194
  %v263 = vpack.c.b16 %v197, %v196
  %v264 = vpack.c.b16 %v199, %v198
  %v265 = vpack.c.b16 %v201, %v200
  %v266 = vpack.c.b16 %v203, %v202
  %v267 = vpack.c.b16 %v205, %v204
  %v268 = vpack.c.b16 %v207, %v206
  %v269 = vpack.c.b16 %v209, %v208
  %v270 = vpack.c.b16 %v211, %v210
  %v271 = vpack.c.b16 %v213, %v212
  %v272 = vpack.c.b16 %v215, %v214
  %v273 = vpack.c.b16 %v217, %v216
  %v274 = vpack.c.b16 %v219, %v218
  %v275 = vpack.c.b16 %v221, %v220
  %v276 = vpack.c.b16 %v223, %v222
  %v277 = vpack.c.b16 %v225, %v224
  %v278 = vpack.c.b16 %v227, %v226
  %v279 = vpack.c.b16 %v229, %v228
  %v280 = vpack.c.b16 %v231, %v230
  %v281 = vpack.c.b16 %v233, %v232
  %v282 = vpack.c.b16 %v235, %v234
  %v283 = vpack.c.b16 %v237, %v236
  %v284 = vpack.c.b16 %v239, %v238
  %v285 = vpack.c.b16 %v241, %v240
  %v286 = vpack.c.b16 %v243, %v242
  %v287 = vpack.c.b16 %v245, %v244
  %v288 = vpack.c.b16 %v247, %v246
  %v289 = vpack.c.b16 %v249, %v248
  %v290 = vpack.c.b16 %v251, %v250
  %v291 = vpack.c.b16 %v253, %v252
  %v292 = vpack.c.b16 %v255, %v254
  %v293 = vpack.c.b16 %v257, %v256
  %vm330 = vcmask 523264
  %v332 = vsel %vm330, %v109, 0
  %334 = vmatprep.subr.bf16.mxu0 0
  %335 = vmatpush1.bf16.msra.mxu0 %v265
  %336 = vmatprep.subr.bf16.mxu0 0
  %337 = vmatpush1.bf16.msra.mxu0 %v264
  %338 = vmatprep.subr.bf16.mxu0 0
  %339 = vmatpush1.bf16.msra.mxu0 %v263
  %340 = vmatprep.subr.bf16.mxu0 0
  %341 = vmatpush1.bf16.msra.mxu0 %v262
  %342 = vmatprep.subr.bf16.mxu0 0
  %343 = vmatpush1.bf16.msra.mxu0 %v261
  %344 = vmatprep.subr.bf16.mxu0 0
  %345 = vmatpush1.bf16.msra.mxu0 %v260
  %346 = vmatprep.subr.bf16.mxu0 0
  %347 = vmatpush1.bf16.msra.mxu0 %v259
  %348 = vmatprep.subr.bf16.mxu0 0
  %349 = vmatpush1.bf16.msra.mxu0 %v258
  %350 = vmatprep.subr.bf16.mxu0 0
  %351 = vmatpush2.bf16.msra.mxu0 %v273
  %352 = vmatprep.subr.bf16.mxu0 0
  %353 = vmatpush2.bf16.msra.mxu0 %v272
  %354 = vmatprep.subr.bf16.mxu0 0
  %355 = vmatpush2.bf16.msra.mxu0 %v271
  %356 = vmatprep.subr.bf16.mxu0 0
  %357 = vmatpush2.bf16.msra.mxu0 %v270
  %358 = vmatprep.subr.bf16.mxu0 0
  %359 = vmatpush2.bf16.msra.mxu0 %v269
  %360 = vmatprep.subr.bf16.mxu0 0
  %361 = vmatpush2.bf16.msra.mxu0 %v268
  %362 = vmatprep.subr.bf16.mxu0 0
  %363 = vmatpush2.bf16.msra.mxu0 %v267
  %364 = vmatprep.subr.bf16.mxu0 0
  %365 = vmatpush2.bf16.msra.mxu0 %v266
  %366 = vmatprep.mubr.bf16.mxu0 %v106
  %367 = vmatmul.mubr.bf16.gmra.mxu0 %v105
  %v368 = vpop.f32.mrf.mxu0
  %v369 = vadd.f32 %v95, %v368
  %v370 = vpop.f32.mrf.mxu0
  %v371 = vpop.f32.mrf.mxu0
  %v372 = vpop.f32.mrf.mxu0
  %373 = vdwg.mxu0
  %374 = vmatprep.subr.bf16.mxu0 0
  %375 = vmatpush1.bf16.msra.mxu0 %v281
  %376 = vmatprep.subr.bf16.mxu0 0
  %377 = vmatpush1.bf16.msra.mxu0 %v280
  %378 = vmatprep.subr.bf16.mxu0 0
  %379 = vmatpush1.bf16.msra.mxu0 %v279
  %380 = vmatprep.subr.bf16.mxu0 0
  %381 = vmatpush1.bf16.msra.mxu0 %v278
  %382 = vmatprep.subr.bf16.mxu0 0
  %383 = vmatpush1.bf16.msra.mxu0 %v277
  %384 = vmatprep.subr.bf16.mxu0 0
  %385 = vmatpush1.bf16.msra.mxu0 %v276
  %386 = vmatprep.subr.bf16.mxu0 0
  %387 = vmatpush1.bf16.msra.mxu0 %v275
  %388 = vmatprep.subr.bf16.mxu0 0
  %389 = vmatpush1.bf16.msra.mxu0 %v274
  %390 = vmatprep.subr.bf16.mxu0 0
  %391 = vmatpush2.bf16.msra.mxu0 %v289
  %392 = vmatprep.subr.bf16.mxu0 0
  %393 = vmatpush2.bf16.msra.mxu0 %v288
  %394 = vmatprep.subr.bf16.mxu0 0
  %395 = vmatpush2.bf16.msra.mxu0 %v287
  %396 = vmatprep.subr.bf16.mxu0 0
  %397 = vmatpush2.bf16.msra.mxu0 %v286
  %398 = vmatprep.subr.bf16.mxu0 0
  %399 = vmatpush2.bf16.msra.mxu0 %v285
  %400 = vmatprep.subr.bf16.mxu0 0
  %401 = vmatpush2.bf16.msra.mxu0 %v284
  %402 = vmatprep.subr.bf16.mxu0 0
  %403 = vmatpush2.bf16.msra.mxu0 %v283
  %404 = vmatprep.subr.bf16.mxu0 0
  %405 = vmatpush2.bf16.msra.mxu0 %v282
  %406 = vmatprep.mubr.bf16.mxu0 %v108
  %407 = vmatmul.mubr.bf16.gmra.mxu0 %v107
  %v408 = vpop.f32.mrf.mxu0
  %v409 = vadd.f32 %v369, %v408
  %v410 = vpop.f32.mrf.mxu0
  %v411 = vpop.f32.mrf.mxu0
  %v412 = vpop.f32.mrf.mxu0
  %413 = vdwg.mxu0
  %414 = vmatprep.subr.bf16.mxu0 0
  %415 = vmatpush1.bf16.msra.mxu0 0
  %416 = vmatprep.subr.bf16.mxu0 0
  %417 = vmatpush1.bf16.msra.mxu0 0
  %418 = vmatprep.subr.bf16.mxu0 0
  %419 = vmatpush1.bf16.msra.mxu0 0
  %420 = vmatprep.subr.bf16.mxu0 0
  %421 = vmatpush1.bf16.msra.mxu0 0
  %422 = vmatprep.subr.bf16.mxu0 0
  %423 = vmatpush1.bf16.msra.mxu0 %v293
  %424 = vmatprep.subr.bf16.mxu0 0
  %425 = vmatpush1.bf16.msra.mxu0 %v292
  %426 = vmatprep.subr.bf16.mxu0 0
  %427 = vmatpush1.bf16.msra.mxu0 %v291
  %428 = vmatprep.subr.bf16.mxu0 0
  %429 = vmatpush1.bf16.msra.mxu0 %v290
  %430 = vmatprep.subr.bf16.mxu0 0
  %431 = vmatpush2.bf16.msra.mxu0 0
  %432 = vmatprep.subr.bf16.mxu0 0
  %433 = vmatpush2.bf16.msra.mxu0 0
  %434 = vmatprep.subr.bf16.mxu0 0
  %435 = vmatpush2.bf16.msra.mxu0 0
  %436 = vmatprep.subr.bf16.mxu0 0
  %437 = vmatpush2.bf16.msra.mxu0 0
  %438 = vmatprep.subr.bf16.mxu0 0
  %439 = vmatpush2.bf16.msra.mxu0 0
  %440 = vmatprep.subr.bf16.mxu0 0
  %441 = vmatpush2.bf16.msra.mxu0 0
  %442 = vmatprep.subr.bf16.mxu0 0
  %443 = vmatpush2.bf16.msra.mxu0 0
  %444 = vmatprep.subr.bf16.mxu0 0
  %445 = vmatpush2.bf16.msra.mxu0 0
  %446 = vmatprep.mubr.bf16.mxu0 0
  %447 = vmatmul.mubr.bf16.gmra.mxu0 %v332
  %v448 = vpop.f32.mrf.mxu0
  %v449 = vadd.f32 %v409, %v448
  %v450 = vpop.f32.mrf.mxu0
  %v451 = vpop.f32.mrf.mxu0
  %v452 = vpop.f32.mrf.mxu0
  %453 = vdwg.mxu0
  %v454 = vxor.u32 %v449, 2147483648
  %v455 = vmul.f32 %v454, 1.442695
  %v456 = vpow.pop %v455
  %v457 = vadd.f32 %v456, 1.0
  %v458 = vrcp.pop %v457
  %v459 = vmul.f32 1.0, %v458
  %v460 = vmul.f32 %v449, %v459
  %v461 = vpack.c.bf16 %v460, %v460
  %vm462 = vcmask 519168
  %463 = vst.msk [vmem:[%s3] sm:$0xf] %vm462, %v461
  // Predicated region
  $region14: #{forward.41} parent=0 // pred_check
    _
  $region15: #{forward.41} parent=0 // pred_check_branch
    %465 = sbr.rel (0) target = $region17
  $region16: #{forward.41} parent=0 // pred_region
    _
  $region17: #{forward.41} parent=0 // pred_fallthru
    _
  // Predicated region
  $region18: #{forward.41} parent=0 // pred_check
    _
  $region19: #{forward.41} parent=0 // pred_check_branch
    %467 = sbr.rel (0) target = $region21
  $region20: #{forward.41} parent=0 // pred_region
    _
  $region21: #{forward.41} parent=0 // pred_fallthru
    _

// kernel: forward.45
$region0: #{forward.45}
  #allocation0 [shape = 'u32[]', space=smem, size = 0x4, offset = 0x4, fixed_abs, tag = 'smem constant byte address 0x4 - core index']
  #allocation1 [shape = 'u32[144,128]{1,0:T(1,128)}', space=vmem, size = 0x12000, scoped, tag = 'internal scratch']
  %s0 = inlined_call_operand.vmem [shape: bf16[8,256], index: 0, kind: input, shape index: {}]
  %s1 = inlined_call_operand.vmem [shape: bf16[256,128], index: 1, kind: input, shape index: {}]
  %s2 = inlined_call_operand.vmem [shape: f32[1,128], index: 2, kind: input, shape index: {}]
  %s3 = inlined_call_operand.vmem [shape: bf16[8,128], index: 3, kind: output, shape index: {}]
  %s4 = sld [smem:[#allocation0]]
  $region22: #{forward.45} parent=0
    _
  %s6 = ssub.s32 1, %s4
  %s7 = scalar_select 0, %s6, %s4
  // Predicated region
  $region2: #{forward.45} parent=0 // pred_check
    _
  $region3: #{forward.45} parent=0 // pred_check_branch
    %9 = sbr.rel (0) target = $region5
  $region4: #{forward.45} parent=0 // pred_region
    _
  $region5: #{forward.45} parent=0 // pred_fallthru
    _
  // Predicated region
  $region6: #{forward.45} parent=0 // pred_check
    _
  $region7: #{forward.45} parent=0 // pred_check_branch
    %11 = sbr.rel (0) target = $region9
  $region8: #{forward.45} parent=0 // pred_region
    _
  $region9: #{forward.45} parent=0 // pred_fallthru
    _
  // Predicated region
  $region10: #{forward.45} parent=0 // pred_check
    _
  $region11: #{forward.45} parent=0 // pred_check_branch
    %13 = sbr.rel (0) target = $region13
  $region12: #{forward.45} parent=0 // pred_region
    _
  $region13: #{forward.45} parent=0 // pred_fallthru
    _
  %v15 = vld [vmem:[%s0] sm:$0xff]
  %v16 = vld [vmem:[%s1] sm:$0xf]
  %v17 = vld [vmem:[%s1 + $0x4] sm:$0xf]
  %v18 = vld [vmem:[%s1 + $0x8] sm:$0xf]
  %v19 = vld [vmem:[%s1 + $0xc] sm:$0xf]
  %v20 = vld [vmem:[%s1 + $0x10] sm:$0xf]
  %v21 = vld [vmem:[%s1 + $0x14] sm:$0xf]
  %v22 = vld [vmem:[%s1 + $0x18] sm:$0xf]
  %v23 = vld [vmem:[%s1 + $0x1c] sm:$0xf]
  %v24 = vld [vmem:[%s1 + $0x20] sm:$0xf]
  %v25 = vld [vmem:[%s1 + $0x24] sm:$0xf]
  %v26 = vld [vmem:[%s1 + $0x28] sm:$0xf]
  %v27 = vld [vmem:[%s1 + $0x2c] sm:$0xf]
  %v28 = vld [vmem:[%s1 + $0x30] sm:$0xf]
  %v29 = vld [vmem:[%s1 + $0x34] sm:$0xf]
  %v30 = vld [vmem:[%s1 + $0x38] sm:$0xf]
  %v31 = vld [vmem:[%s1 + $0x3c] sm:$0xf]
  %v32 = vld [vmem:[%s1 + $0x40] sm:$0xf]
  %v33 = vld [vmem:[%s1 + $0x44] sm:$0xf]
  %v34 = vld [vmem:[%s1 + $0x48] sm:$0xf]
  %v35 = vld [vmem:[%s1 + $0x4c] sm:$0xf]
  %v36 = vld [vmem:[%s1 + $0x50] sm:$0xf]
  %v37 = vld [vmem:[%s1 + $0x54] sm:$0xf]
  %v38 = vld [vmem:[%s1 + $0x58] sm:$0xf]
  %v39 = vld [vmem:[%s1 + $0x5c] sm:$0xf]
  %v40 = vld [vmem:[%s1 + $0x60] sm:$0xf]
  %v41 = vld [vmem:[%s1 + $0x64] sm:$0xf]
  %v42 = vld [vmem:[%s1 + $0x68] sm:$0xf]
  %v43 = vld [vmem:[%s1 + $0x6c] sm:$0xf]
  %v44 = vld [vmem:[%s1 + $0x70] sm:$0xf]
  %v45 = vld [vmem:[%s1 + $0x74] sm:$0xf]
  %v46 = vld [vmem:[%s1 + $0x78] sm:$0xf]
  %v47 = vld [vmem:[%s1 + $0x7c] sm:$0xf]
  %v48 = vld [vmem:[%s2] sm:$0x1]
  %v50 = vlaneseq
  %v51 = vshrl.u32 %v50, 7
  %v52 = vsub.s32 0, %v51
  %v53 = vrot.slane %v48, %v52
  %v56 = vunpack.c.l.b16 %v15
  %v57 = vunpack.c.h.b16 %v15
  %v58 = vpack.c.b16 %v56, %v56
  %v59 = vpack.c.b16 %v57, %v57
  %v94 = vunpack.c.l.b16 %v16
  %v95 = vunpack.c.l.b16 %v17
  %v96 = vunpack.c.l.b16 %v18
  %v97 = vunpack.c.l.b16 %v19
  %v98 = vunpack.c.l.b16 %v20
  %v99 = vunpack.c.l.b16 %v21
  %v100 = vunpack.c.l.b16 %v22
  %v101 = vunpack.c.l.b16 %v23
  %v102 = vunpack.c.l.b16 %v24
  %v103 = vunpack.c.l.b16 %v25
  %v104 = vunpack.c.l.b16 %v26
  %v105 = vunpack.c.l.b16 %v27
  %v106 = vunpack.c.l.b16 %v28
  %v107 = vunpack.c.l.b16 %v29
  %v108 = vunpack.c.l.b16 %v30
  %v109 = vunpack.c.l.b16 %v31
  %v110 = vunpack.c.l.b16 %v32
  %v111 = vunpack.c.l.b16 %v33
  %v112 = vunpack.c.l.b16 %v34
  %v113 = vunpack.c.l.b16 %v35
  %v114 = vunpack.c.l.b16 %v36
  %v115 = vunpack.c.l.b16 %v37
  %v116 = vunpack.c.l.b16 %v38
  %v117 = vunpack.c.l.b16 %v39
  %v118 = vunpack.c.l.b16 %v40
  %v119 = vunpack.c.l.b16 %v41
  %v120 = vunpack.c.l.b16 %v42
  %v121 = vunpack.c.l.b16 %v43
  %v122 = vunpack.c.l.b16 %v44
  %v123 = vunpack.c.l.b16 %v45
  %v124 = vunpack.c.l.b16 %v46
  %v125 = vunpack.c.l.b16 %v47
  %v126 = vpack.c.b16 %v95, %v94
  %v127 = vpack.c.b16 %v97, %v96
  %v128 = vpack.c.b16 %v99, %v98
  %v129 = vpack.c.b16 %v101, %v100
  %v130 = vpack.c.b16 %v103, %v102
  %v131 = vpack.c.b16 %v105, %v104
  %v132 = vpack.c.b16 %v107, %v106
  %v133 = vpack.c.b16 %v109, %v108
  %v134 = vpack.c.b16 %v111, %v110
  %v135 = vpack.c.b16 %v113, %v112
  %v136 = vpack.c.b16 %v115, %v114
  %v137 = vpack.c.b16 %v117, %v116
  %v138 = vpack.c.b16 %v119, %v118
  %v139 = vpack.c.b16 %v121, %v120
  %v140 = vpack.c.b16 %v123, %v122
  %v141 = vpack.c.b16 %v125, %v124
  %158 = vmatprep.subr.bf16.mxu0 0
  %159 = vmatpush1.bf16.msra.mxu0 %v133
  %160 = vmatprep.subr.bf16.mxu0 0
  %161 = vmatpush1.bf16.msra.mxu0 %v132
  %162 = vmatprep.subr.bf16.mxu0 0
  %163 = vmatpush1.bf16.msra.mxu0 %v131
  %164 = vmatprep.subr.bf16.mxu0 0
  %165 = vmatpush1.bf16.msra.mxu0 %v130
  %166 = vmatprep.subr.bf16.mxu0 0
  %167 = vmatpush1.bf16.msra.mxu0 %v129
  %168 = vmatprep.subr.bf16.mxu0 0
  %169 = vmatpush1.bf16.msra.mxu0 %v128
  %170 = vmatprep.subr.bf16.mxu0 0
  %171 = vmatpush1.bf16.msra.mxu0 %v127
  %172 = vmatprep.subr.bf16.mxu0 0
  %173 = vmatpush1.bf16.msra.mxu0 %v126
  %174 = vmatprep.subr.bf16.mxu0 0
  %175 = vmatpush2.bf16.msra.mxu0 %v141
  %176 = vmatprep.subr.bf16.mxu0 0
  %177 = vmatpush2.bf16.msra.mxu0 %v140
  %178 = vmatprep.subr.bf16.mxu0 0
  %179 = vmatpush2.bf16.msra.mxu0 %v139
  %180 = vmatprep.subr.bf16.mxu0 0
  %181 = vmatpush2.bf16.msra.mxu0 %v138
  %182 = vmatprep.subr.bf16.mxu0 0
  %183 = vmatpush2.bf16.msra.mxu0 %v137
  %184 = vmatprep.subr.bf16.mxu0 0
  %185 = vmatpush2.bf16.msra.mxu0 %v136
  %186 = vmatprep.subr.bf16.mxu0 0
  %187 = vmatpush2.bf16.msra.mxu0 %v135
  %188 = vmatprep.subr.bf16.mxu0 0
  %189 = vmatpush2.bf16.msra.mxu0 %v134
  %190 = vmatprep.mubr.bf16.mxu0 %v59
  %191 = vmatmul.mubr.bf16.gmra.mxu0 %v58
  %v192 = vpop.f32.mrf.mxu0
  %v193 = vadd.f32 %v53, %v192
  %v194 = vpop.f32.mrf.mxu0
  %v195 = vpop.f32.mrf.mxu0
  %v196 = vpop.f32.mrf.mxu0
  %197 = vdwg.mxu0
  %v198 = vxor.u32 %v193, 2147483648
  %v199 = vmul.f32 %v198, 1.442695
  %v200 = vpow.pop %v199
  %v201 = vadd.f32 %v200, 1.0
  %v202 = vrcp.pop %v201
  %v203 = vmul.f32 1.0, %v202
  %v204 = vmul.f32 %v193, %v203
  %v205 = vpack.c.bf16 %v204, %v204
  %206 = vst [vmem:[%s3] sm:$0xf] %v205
  // Predicated region
  $region14: #{forward.45} parent=0 // pred_check
    _
  $region15: #{forward.45} parent=0 // pred_check_branch
    %208 = sbr.rel (0) target = $region17
  $region16: #{forward.45} parent=0 // pred_region
    _
  $region17: #{forward.45} parent=0 // pred_fallthru
    _
  // Predicated region
  $region18: #{forward.45} parent=0 // pred_check
    _
  $region19: #{forward.45} parent=0 // pred_check_branch
    %210 = sbr.rel (0) target = $region21
  $region20: #{forward.45} parent=0 // pred_region
    _
  $region21: #{forward.45} parent=0 // pred_fallthru
    _

// kernel: forward.42
$region0: #{forward.42}
  #allocation0 [shape = 'u32[]', space=smem, size = 0x4, offset = 0x4, fixed_abs, tag = 'smem constant byte address 0x4 - core index']
  #allocation1 [shape = 'u32[144,128]{1,0:T(1,128)}', space=vmem, size = 0x12000, scoped, tag = 'internal scratch']
  %s0 = inlined_call_operand.vmem [shape: bf16[8,576], index: 0, kind: input, shape index: {}]
  %s1 = inlined_call_operand.vmem [shape: bf16[576,64], index: 1, kind: input, shape index: {}]
  %s2 = inlined_call_operand.vmem [shape: f32[1,64], index: 2, kind: input, shape index: {}]
  %s3 = inlined_call_operand.vmem [shape: bf16[8,64], index: 3, kind: input, shape index: {}]
  %s4 = inlined_call_operand.vmem [shape: bf16[8,64], index: 4, kind: output, shape index: {}]
  %s5 = sld [smem:[#allocation0]]
  $region26: #{forward.42} parent=0
    _
  %s7 = ssub.s32 1, %s5
  %s8 = scalar_select 0, %s7, %s5
  // Predicated region
  $region2: #{forward.42} parent=0 // pred_check
    _
  $region3: #{forward.42} parent=0 // pred_check_branch
    %10 = sbr.rel (0) target = $region5
  $region4: #{forward.42} parent=0 // pred_region
    _
  $region5: #{forward.42} parent=0 // pred_fallthru
    _
  // Predicated region
  $region6: #{forward.42} parent=0 // pred_check
    _
  $region7: #{forward.42} parent=0 // pred_check_branch
    %12 = sbr.rel (0) target = $region9
  $region8: #{forward.42} parent=0 // pred_region
    _
  $region9: #{forward.42} parent=0 // pred_fallthru
    _
  // Predicated region
  $region10: #{forward.42} parent=0 // pred_check
    _
  $region11: #{forward.42} parent=0 // pred_check_branch
    %14 = sbr.rel (0) target = $region13
  $region12: #{forward.42} parent=0 // pred_region
    _
  $region13: #{forward.42} parent=0 // pred_fallthru
    _
  // Predicated region
  $region14: #{forward.42} parent=0 // pred_check
    _
  $region15: #{forward.42} parent=0 // pred_check_branch
    %16 = sbr.rel (0) target = $region17
  $region16: #{forward.42} parent=0 // pred_region
    _
  $region17: #{forward.42} parent=0 // pred_fallthru
    _
  %v18 = vld [vmem:[%s3] sm:$0xf]
  %v19 = vld [vmem:[%s0] sm:$0xff]
  %v20 = vld [vmem:[%s0 + $0x8] sm:$0xff]
  %v21 = vld [vmem:[%s0 + $0x10] sm:$0xf]
  %v22 = vld [vmem:[%s1] sm:$0xf]
  %v23 = vld [vmem:[%s1 + $0x4] sm:$0xf]
  %v24 = vld [vmem:[%s1 + $0x8] sm:$0xf]
  %v25 = vld [vmem:[%s1 + $0xc] sm:$0xf]
  %v26 = vld [vmem:[%s1 + $0x10] sm:$0xf]
  %v27 = vld [vmem:[%s1 + $0x14] sm:$0xf]
  %v28 = vld [vmem:[%s1 + $0x18] sm:$0xf]
  %v29 = vld [vmem:[%s1 + $0x1c] sm:$0xf]
  %v30 = vld [vmem:[%s1 + $0x20] sm:$0xf]
  %v31 = vld [vmem:[%s1 + $0x24] sm:$0xf]
  %v32 = vld [vmem:[%s1 + $0x28] sm:$0xf]
  %v33 = vld [vmem:[%s1 + $0x2c] sm:$0xf]
  %v34 = vld [vmem:[%s1 + $0x30] sm:$0xf]
  %v35 = vld [vmem:[%s1 + $0x34] sm:$0xf]
  %v36 = vld [vmem:[%s1 + $0x38] sm:$0xf]
  %v37 = vld [vmem:[%s1 + $0x3c] sm:$0xf]
  %v38 = vld [vmem:[%s1 + $0x40] sm:$0xf]
  %v39 = vld [vmem:[%s1 + $0x44] sm:$0xf]
  %v40 = vld [vmem:[%s1 + $0x48] sm:$0xf]
  %v41 = vld [vmem:[%s1 + $0x4c] sm:$0xf]
  %v42 = vld [vmem:[%s1 + $0x50] sm:$0xf]
  %v43 = vld [vmem:[%s1 + $0x54] sm:$0xf]
  %v44 = vld [vmem:[%s1 + $0x58] sm:$0xf]
  %v45 = vld [vmem:[%s1 + $0x5c] sm:$0xf]
  %v46 = vld [vmem:[%s1 + $0x60] sm:$0xf]
  %v47 = vld [vmem:[%s1 + $0x64] sm:$0xf]
  %v48 = vld [vmem:[%s1 + $0x68] sm:$0xf]
  %v49 = vld [vmem:[%s1 + $0x6c] sm:$0xf]
  %v50 = vld [vmem:[%s1 + $0x70] sm:$0xf]
  %v51 = vld [vmem:[%s1 + $0x74] sm:$0xf]
  %v52 = vld [vmem:[%s1 + $0x78] sm:$0xf]
  %v53 = vld [vmem:[%s1 + $0x7c] sm:$0xf]
  %v54 = vld [vmem:[%s1 + $0x80] sm:$0xf]
  %v55 = vld [vmem:[%s1 + $0x84] sm:$0xf]
  %v56 = vld [vmem:[%s1 + $0x88] sm:$0xf]
  %v57 = vld [vmem:[%s1 + $0x8c] sm:$0xf]
  %v58 = vld [vmem:[%s1 + $0x90] sm:$0xf]
  %v59 = vld [vmem:[%s1 + $0x94] sm:$0xf]
  %v60 = vld [vmem:[%s1 + $0x98] sm:$0xf]
  %v61 = vld [vmem:[%s1 + $0x9c] sm:$0xf]
  %v62 = vld [vmem:[%s1 + $0xa0] sm:$0xf]
  %v63 = vld [vmem:[%s1 + $0xa4] sm:$0xf]
  %v64 = vld [vmem:[%s1 + $0xa8] sm:$0xf]
  %v65 = vld [vmem:[%s1 + $0xac] sm:$0xf]
  %v66 = vld [vmem:[%s1 + $0xb0] sm:$0xf]
  %v67 = vld [vmem:[%s1 + $0xb4] sm:$0xf]
  %v68 = vld [vmem:[%s1 + $0xb8] sm:$0xf]
  %v69 = vld [vmem:[%s1 + $0xbc] sm:$0xf]
  %v70 = vld [vmem:[%s1 + $0xc0] sm:$0xf]
  %v71 = vld [vmem:[%s1 + $0xc4] sm:$0xf]
  %v72 = vld [vmem:[%s1 + $0xc8] sm:$0xf]
  %v73 = vld [vmem:[%s1 + $0xcc] sm:$0xf]
  %v74 = vld [vmem:[%s1 + $0xd0] sm:$0xf]
  %v75 = vld [vmem:[%s1 + $0xd4] sm:$0xf]
  %v76 = vld [vmem:[%s1 + $0xd8] sm:$0xf]
  %v77 = vld [vmem:[%s1 + $0xdc] sm:$0xf]
  %v78 = vld [vmem:[%s1 + $0xe0] sm:$0xf]
  %v79 = vld [vmem:[%s1 + $0xe4] sm:$0xf]
  %v80 = vld [vmem:[%s1 + $0xe8] sm:$0xf]
  %v81 = vld [vmem:[%s1 + $0xec] sm:$0xf]
  %v82 = vld [vmem:[%s1 + $0xf0] sm:$0xf]
  %v83 = vld [vmem:[%s1 + $0xf4] sm:$0xf]
  %v84 = vld [vmem:[%s1 + $0xf8] sm:$0xf]
  %v85 = vld [vmem:[%s1 + $0xfc] sm:$0xf]
  %v86 = vld [vmem:[%s1 + $0x100] sm:$0xf]
  %v87 = vld [vmem:[%s1 + $0x104] sm:$0xf]
  %v88 = vld [vmem:[%s1 + $0x108] sm:$0xf]
  %v89 = vld [vmem:[%s1 + $0x10c] sm:$0xf]
  %v90 = vld [vmem:[%s1 + $0x110] sm:$0xf]
  %v91 = vld [vmem:[%s1 + $0x114] sm:$0xf]
  %v92 = vld [vmem:[%s1 + $0x118] sm:$0xf]
  %v93 = vld [vmem:[%s1 + $0x11c] sm:$0xf]
  %v94 = vld [vmem:[%s2] sm:$0x1]
  %v96 = vlaneseq
  %v97 = vshrl.u32 %v96, 7
  %v98 = vsub.s32 0, %v97
  %v99 = vrot.slane %v94, %v98
  %v104 = vunpack.c.l.b16 %v19
  %v105 = vunpack.c.h.b16 %v19
  %v106 = vunpack.c.l.b16 %v20
  %v107 = vunpack.c.h.b16 %v20
  %v108 = vunpack.c.l.b16 %v21
  %v109 = vpack.c.b16 %v104, %v104
  %v110 = vpack.c.b16 %v105, %v105
  %v111 = vpack.c.b16 %v106, %v106
  %v112 = vpack.c.b16 %v107, %v107
  %v113 = vpack.c.b16 %v108, %v108
  %v190 = vunpack.c.l.b16 %v22
  %v191 = vunpack.c.l.b16 %v23
  %v192 = vunpack.c.l.b16 %v24
  %v193 = vunpack.c.l.b16 %v25
  %v194 = vunpack.c.l.b16 %v26
  %v195 = vunpack.c.l.b16 %v27
  %v196 = vunpack.c.l.b16 %v28
  %v197 = vunpack.c.l.b16 %v29
  %v198 = vunpack.c.l.b16 %v30
  %v199 = vunpack.c.l.b16 %v31
  %v200 = vunpack.c.l.b16 %v32
  %v201 = vunpack.c.l.b16 %v33
  %v202 = vunpack.c.l.b16 %v34
  %v203 = vunpack.c.l.b16 %v35
  %v204 = vunpack.c.l.b16 %v36
  %v205 = vunpack.c.l.b16 %v37
  %v206 = vunpack.c.l.b16 %v38
  %v207 = vunpack.c.l.b16 %v39
  %v208 = vunpack.c.l.b16 %v40
  %v209 = vunpack.c.l.b16 %v41
  %v210 = vunpack.c.l.b16 %v42
  %v211 = vunpack.c.l.b16 %v43
  %v212 = vunpack.c.l.b16 %v44
  %v213 = vunpack.c.l.b16 %v45
  %v214 = vunpack.c.l.b16 %v46
  %v215 = vunpack.c.l.b16 %v47
  %v216 = vunpack.c.l.b16 %v48
  %v217 = vunpack.c.l.b16 %v49
  %v218 = vunpack.c.l.b16 %v50
  %v219 = vunpack.c.l.b16 %v51
  %v220 = vunpack.c.l.b16 %v52
  %v221 = vunpack.c.l.b16 %v53
  %v222 = vunpack.c.l.b16 %v54
  %v223 = vunpack.c.l.b16 %v55
  %v224 = vunpack.c.l.b16 %v56
  %v225 = vunpack.c.l.b16 %v57
  %v226 = vunpack.c.l.b16 %v58
  %v227 = vunpack.c.l.b16 %v59
  %v228 = vunpack.c.l.b16 %v60
  %v229 = vunpack.c.l.b16 %v61
  %v230 = vunpack.c.l.b16 %v62
  %v231 = vunpack.c.l.b16 %v63
  %v232 = vunpack.c.l.b16 %v64
  %v233 = vunpack.c.l.b16 %v65
  %v234 = vunpack.c.l.b16 %v66
  %v235 = vunpack.c.l.b16 %v67
  %v236 = vunpack.c.l.b16 %v68
  %v237 = vunpack.c.l.b16 %v69
  %v238 = vunpack.c.l.b16 %v70
  %v239 = vunpack.c.l.b16 %v71
  %v240 = vunpack.c.l.b16 %v72
  %v241 = vunpack.c.l.b16 %v73
  %v242 = vunpack.c.l.b16 %v74
  %v243 = vunpack.c.l.b16 %v75
  %v244 = vunpack.c.l.b16 %v76
  %v245 = vunpack.c.l.b16 %v77
  %v246 = vunpack.c.l.b16 %v78
  %v247 = vunpack.c.l.b16 %v79
  %v248 = vunpack.c.l.b16 %v80
  %v249 = vunpack.c.l.b16 %v81
  %v250 = vunpack.c.l.b16 %v82
  %v251 = vunpack.c.l.b16 %v83
  %v252 = vunpack.c.l.b16 %v84
  %v253 = vunpack.c.l.b16 %v85
  %v254 = vunpack.c.l.b16 %v86
  %v255 = vunpack.c.l.b16 %v87
  %v256 = vunpack.c.l.b16 %v88
  %v257 = vunpack.c.l.b16 %v89
  %v258 = vunpack.c.l.b16 %v90
  %v259 = vunpack.c.l.b16 %v91
  %v260 = vunpack.c.l.b16 %v92
  %v261 = vunpack.c.l.b16 %v93
  %v262 = vpack.c.b16 %v191, %v190
  %v263 = vpack.c.b16 %v193, %v192
  %v264 = vpack.c.b16 %v195, %v194
  %v265 = vpack.c.b16 %v197, %v196
  %v266 = vpack.c.b16 %v199, %v198
  %v267 = vpack.c.b16 %v201, %v200
  %v268 = vpack.c.b16 %v203, %v202
  %v269 = vpack.c.b16 %v205, %v204
  %v270 = vpack.c.b16 %v207, %v206
  %v271 = vpack.c.b16 %v209, %v208
  %v272 = vpack.c.b16 %v211, %v210
  %v273 = vpack.c.b16 %v213, %v212
  %v274 = vpack.c.b16 %v215, %v214
  %v275 = vpack.c.b16 %v217, %v216
  %v276 = vpack.c.b16 %v219, %v218
  %v277 = vpack.c.b16 %v221, %v220
  %v278 = vpack.c.b16 %v223, %v222
  %v279 = vpack.c.b16 %v225, %v224
  %v280 = vpack.c.b16 %v227, %v226
  %v281 = vpack.c.b16 %v229, %v228
  %v282 = vpack.c.b16 %v231, %v230
  %v283 = vpack.c.b16 %v233, %v232
  %v284 = vpack.c.b16 %v235, %v234
  %v285 = vpack.c.b16 %v237, %v236
  %v286 = vpack.c.b16 %v239, %v238
  %v287 = vpack.c.b16 %v241, %v240
  %v288 = vpack.c.b16 %v243, %v242
  %v289 = vpack.c.b16 %v245, %v244
  %v290 = vpack.c.b16 %v247, %v246
  %v291 = vpack.c.b16 %v249, %v248
  %v292 = vpack.c.b16 %v251, %v250
  %v293 = vpack.c.b16 %v253, %v252
  %v294 = vpack.c.b16 %v255, %v254
  %v295 = vpack.c.b16 %v257, %v256
  %v296 = vpack.c.b16 %v259, %v258
  %v297 = vpack.c.b16 %v261, %v260
  %vm334 = vcmask 523264
  %v336 = vsel %vm334, %v113, 0
  %338 = vmatprep.subr.bf16.mxu0 0
  %339 = vmatpush1.bf16.msra.mxu0 %v269
  %340 = vmatprep.subr.bf16.mxu0 0
  %341 = vmatpush1.bf16.msra.mxu0 %v268
  %342 = vmatprep.subr.bf16.mxu0 0
  %343 = vmatpush1.bf16.msra.mxu0 %v267
  %344 = vmatprep.subr.bf16.mxu0 0
  %345 = vmatpush1.bf16.msra.mxu0 %v266
  %346 = vmatprep.subr.bf16.mxu0 0
  %347 = vmatpush1.bf16.msra.mxu0 %v265
  %348 = vmatprep.subr.bf16.mxu0 0
  %349 = vmatpush1.bf16.msra.mxu0 %v264
  %350 = vmatprep.subr.bf16.mxu0 0
  %351 = vmatpush1.bf16.msra.mxu0 %v263
  %352 = vmatprep.subr.bf16.mxu0 0
  %353 = vmatpush1.bf16.msra.mxu0 %v262
  %354 = vmatprep.subr.bf16.mxu0 0
  %355 = vmatpush2.bf16.msra.mxu0 %v277
  %356 = vmatprep.subr.bf16.mxu0 0
  %357 = vmatpush2.bf16.msra.mxu0 %v276
  %358 = vmatprep.subr.bf16.mxu0 0
  %359 = vmatpush2.bf16.msra.mxu0 %v275
  %360 = vmatprep.subr.bf16.mxu0 0
  %361 = vmatpush2.bf16.msra.mxu0 %v274
  %362 = vmatprep.subr.bf16.mxu0 0
  %363 = vmatpush2.bf16.msra.mxu0 %v273
  %364 = vmatprep.subr.bf16.mxu0 0
  %365 = vmatpush2.bf16.msra.mxu0 %v272
  %366 = vmatprep.subr.bf16.mxu0 0
  %367 = vmatpush2.bf16.msra.mxu0 %v271
  %368 = vmatprep.subr.bf16.mxu0 0
  %369 = vmatpush2.bf16.msra.mxu0 %v270
  %370 = vmatprep.mubr.bf16.mxu0 %v110
  %371 = vmatmul.mubr.bf16.gmra.mxu0 %v109
  %v372 = vpop.f32.mrf.mxu0
  %v373 = vadd.f32 %v99, %v372
  %v374 = vpop.f32.mrf.mxu0
  %v375 = vpop.f32.mrf.mxu0
  %v376 = vpop.f32.mrf.mxu0
  %377 = vdwg.mxu0
  %378 = vmatprep.subr.bf16.mxu0 0
  %379 = vmatpush1.bf16.msra.mxu0 %v285
  %380 = vmatprep.subr.bf16.mxu0 0
  %381 = vmatpush1.bf16.msra.mxu0 %v284
  %382 = vmatprep.subr.bf16.mxu0 0
  %383 = vmatpush1.bf16.msra.mxu0 %v283
  %384 = vmatprep.subr.bf16.mxu0 0
  %385 = vmatpush1.bf16.msra.mxu0 %v282
  %386 = vmatprep.subr.bf16.mxu0 0
  %387 = vmatpush1.bf16.msra.mxu0 %v281
  %388 = vmatprep.subr.bf16.mxu0 0
  %389 = vmatpush1.bf16.msra.mxu0 %v280
  %390 = vmatprep.subr.bf16.mxu0 0
  %391 = vmatpush1.bf16.msra.mxu0 %v279
  %392 = vmatprep.subr.bf16.mxu0 0
  %393 = vmatpush1.bf16.msra.mxu0 %v278
  %394 = vmatprep.subr.bf16.mxu0 0
  %395 = vmatpush2.bf16.msra.mxu0 %v293
  %396 = vmatprep.subr.bf16.mxu0 0
  %397 = vmatpush2.bf16.msra.mxu0 %v292
  %398 = vmatprep.subr.bf16.mxu0 0
  %399 = vmatpush2.bf16.msra.mxu0 %v291
  %400 = vmatprep.subr.bf16.mxu0 0
  %401 = vmatpush2.bf16.msra.mxu0 %v290
  %402 = vmatprep.subr.bf16.mxu0 0
  %403 = vmatpush2.bf16.msra.mxu0 %v289
  %404 = vmatprep.subr.bf16.mxu0 0
  %405 = vmatpush2.bf16.msra.mxu0 %v288
  %406 = vmatprep.subr.bf16.mxu0 0
  %407 = vmatpush2.bf16.msra.mxu0 %v287
  %408 = vmatprep.subr.bf16.mxu0 0
  %409 = vmatpush2.bf16.msra.mxu0 %v286
  %410 = vmatprep.mubr.bf16.mxu0 %v112
  %411 = vmatmul.mubr.bf16.gmra.mxu0 %v111
  %v412 = vpop.f32.mrf.mxu0
  %v413 = vadd.f32 %v373, %v412
  %v414 = vpop.f32.mrf.mxu0
  %v415 = vpop.f32.mrf.mxu0
  %v416 = vpop.f32.mrf.mxu0
  %417 = vdwg.mxu0
  %418 = vmatprep.subr.bf16.mxu0 0
  %419 = vmatpush1.bf16.msra.mxu0 0
  %420 = vmatprep.subr.bf16.mxu0 0
  %421 = vmatpush1.bf16.msra.mxu0 0
  %422 = vmatprep.subr.bf16.mxu0 0
  %423 = vmatpush1.bf16.msra.mxu0 0
  %424 = vmatprep.subr.bf16.mxu0 0
  %425 = vmatpush1.bf16.msra.mxu0 0
  %426 = vmatprep.subr.bf16.mxu0 0
  %427 = vmatpush1.bf16.msra.mxu0 %v297
  %428 = vmatprep.subr.bf16.mxu0 0
  %429 = vmatpush1.bf16.msra.mxu0 %v296
  %430 = vmatprep.subr.bf16.mxu0 0
  %431 = vmatpush1.bf16.msra.mxu0 %v295
  %432 = vmatprep.subr.bf16.mxu0 0
  %433 = vmatpush1.bf16.msra.mxu0 %v294
  %434 = vmatprep.subr.bf16.mxu0 0
  %435 = vmatpush2.bf16.msra.mxu0 0
  %436 = vmatprep.subr.bf16.mxu0 0
  %437 = vmatpush2.bf16.msra.mxu0 0
  %438 = vmatprep.subr.bf16.mxu0 0
  %439 = vmatpush2.bf16.msra.mxu0 0
  %440 = vmatprep.subr.bf16.mxu0 0
  %441 = vmatpush2.bf16.msra.mxu0 0
  %442 = vmatprep.subr.bf16.mxu0 0
  %443 = vmatpush2.bf16.msra.mxu0 0
  %444 = vmatprep.subr.bf16.mxu0 0
  %445 = vmatpush2.bf16.msra.mxu0 0
  %446 = vmatprep.subr.bf16.mxu0 0
  %447 = vmatpush2.bf16.msra.mxu0 0
  %448 = vmatprep.subr.bf16.mxu0 0
  %449 = vmatpush2.bf16.msra.mxu0 0
  %450 = vmatprep.mubr.bf16.mxu0 0
  %451 = vmatmul.mubr.bf16.gmra.mxu0 %v336
  %v452 = vpop.f32.mrf.mxu0
  %v453 = vadd.f32 %v413, %v452
  %v454 = vpop.f32.mrf.mxu0
  %v455 = vpop.f32.mrf.mxu0
  %v456 = vpop.f32.mrf.mxu0
  %457 = vdwg.mxu0
  %v458 = vxor.u32 %v453, 2147483648
  %v459 = vmul.f32 %v458, 1.442695
  %v460 = vpow.pop %v459
  %v461 = vadd.f32 %v460, 1.0
  %v462 = vrcp.pop %v461
  %v463 = vmul.f32 1.0, %v462
  %v464 = vmul.f32 %v453, %v463
  %v465 = vunpack.c.l.bf16 %v18
  %v466 = vadd.f32 %v464, %v465
  %v467 = vpack.c.bf16 %v466, %v466
  %vm468 = vcmask 519168
  %469 = vst.msk [vmem:[%s4] sm:$0xf] %vm468, %v467
  // Predicated region
  $region18: #{forward.42} parent=0 // pred_check
    _
  $region19: #{forward.42} parent=0 // pred_check_branch
    %471 = sbr.rel (0) target = $region21
  $region20: #{forward.42} parent=0 // pred_region
    _
  $region21: #{forward.42} parent=0 // pred_fallthru
    _
  // Predicated region
  $region22: #{forward.42} parent=0 // pred_check
    _
  $region23: #{forward.42} parent=0 // pred_check_branch
    %473 = sbr.rel (0) target = $region25
  $region24: #{forward.42} parent=0 // pred_region
    _
  $region25: #{forward.42} parent=0 // pred_fallthru
    _

// kernel: forward.51
$region0: #{forward.51}
  #allocation0 [shape = 'u32[]', space=smem, size = 0x4, offset = 0x4, fixed_abs, tag = 'smem constant byte address 0x4 - core index']
  #allocation1 [shape = 'u32[144,128]{1,0:T(1,128)}', space=vmem, size = 0x12000, scoped, tag = 'internal scratch']
  %s0 = inlined_call_operand.vmem [shape: bf16[8,128], index: 0, kind: input, shape index: {}]
  %s1 = inlined_call_operand.vmem [shape: bf16[128,16], index: 1, kind: input, shape index: {}]
  %s2 = inlined_call_operand.vmem [shape: f32[1,16], index: 2, kind: input, shape index: {}]
  %s3 = inlined_call_operand.vmem [shape: f32[8,16], index: 3, kind: output, shape index: {}]
  %s4 = sld [smem:[#allocation0]]
  $region22: #{forward.51} parent=0
    _
  %s6 = ssub.s32 1, %s4
  %s7 = scalar_select 0, %s6, %s4
  // Predicated region
  $region2: #{forward.51} parent=0 // pred_check
    _
  $region3: #{forward.51} parent=0 // pred_check_branch
    %9 = sbr.rel (0) target = $region5
  $region4: #{forward.51} parent=0 // pred_region
    _
  $region5: #{forward.51} parent=0 // pred_fallthru
    _
  // Predicated region
  $region6: #{forward.51} parent=0 // pred_check
    _
  $region7: #{forward.51} parent=0 // pred_check_branch
    %11 = sbr.rel (0) target = $region9
  $region8: #{forward.51} parent=0 // pred_region
    _
  $region9: #{forward.51} parent=0 // pred_fallthru
    _
  // Predicated region
  $region10: #{forward.51} parent=0 // pred_check
    _
  $region11: #{forward.51} parent=0 // pred_check_branch
    %13 = sbr.rel (0) target = $region13
  $region12: #{forward.51} parent=0 // pred_region
    _
  $region13: #{forward.51} parent=0 // pred_fallthru
    _
  %v15 = vld [vmem:[%s0] sm:$0xf]
  %v16 = vld [vmem:[%s1] sm:$0xf]
  %v17 = vld [vmem:[%s1 + $0x4] sm:$0xf]
  %v18 = vld [vmem:[%s1 + $0x8] sm:$0xf]
  %v19 = vld [vmem:[%s1 + $0xc] sm:$0xf]
  %v20 = vld [vmem:[%s1 + $0x10] sm:$0xf]
  %v21 = vld [vmem:[%s1 + $0x14] sm:$0xf]
  %v22 = vld [vmem:[%s1 + $0x18] sm:$0xf]
  %v23 = vld [vmem:[%s1 + $0x1c] sm:$0xf]
  %v24 = vld [vmem:[%s1 + $0x20] sm:$0xf]
  %v25 = vld [vmem:[%s1 + $0x24] sm:$0xf]
  %v26 = vld [vmem:[%s1 + $0x28] sm:$0xf]
  %v27 = vld [vmem:[%s1 + $0x2c] sm:$0xf]
  %v28 = vld [vmem:[%s1 + $0x30] sm:$0xf]
  %v29 = vld [vmem:[%s1 + $0x34] sm:$0xf]
  %v30 = vld [vmem:[%s1 + $0x38] sm:$0xf]
  %v31 = vld [vmem:[%s1 + $0x3c] sm:$0xf]
  %v32 = vld [vmem:[%s2] sm:$0x1]
  %v34 = vlaneseq
  %v35 = vshrl.u32 %v34, 7
  %v36 = vsub.s32 0, %v35
  %v37 = vrot.slane %v32, %v36
  %v55 = vunpack.c.l.b16 %v16
  %v56 = vunpack.c.l.b16 %v17
  %v57 = vunpack.c.l.b16 %v18
  %v58 = vunpack.c.l.b16 %v19
  %v59 = vunpack.c.l.b16 %v20
  %v60 = vunpack.c.l.b16 %v21
  %v61 = vunpack.c.l.b16 %v22
  %v62 = vunpack.c.l.b16 %v23
  %v63 = vunpack.c.l.b16 %v24
  %v64 = vunpack.c.l.b16 %v25
  %v65 = vunpack.c.l.b16 %v26
  %v66 = vunpack.c.l.b16 %v27
  %v67 = vunpack.c.l.b16 %v28
  %v68 = vunpack.c.l.b16 %v29
  %v69 = vunpack.c.l.b16 %v30
  %v70 = vunpack.c.l.b16 %v31
  %v71 = vpack.c.b16 %v56, %v55
  %v72 = vpack.c.b16 %v58, %v57
  %v73 = vpack.c.b16 %v60, %v59
  %v74 = vpack.c.b16 %v62, %v61
  %v75 = vpack.c.b16 %v64, %v63
  %v76 = vpack.c.b16 %v66, %v65
  %v77 = vpack.c.b16 %v68, %v67
  %v78 = vpack.c.b16 %v70, %v69
  %87 = vmatprep.subr.bf16.mxu0 0
  %88 = vmatpush1.bf16.msra.mxu0 %v78
  %89 = vmatprep.subr.bf16.mxu0 0
  %90 = vmatpush1.bf16.msra.mxu0 %v77
  %91 = vmatprep.subr.bf16.mxu0 0
  %92 = vmatpush1.bf16.msra.mxu0 %v76
  %93 = vmatprep.subr.bf16.mxu0 0
  %94 = vmatpush1.bf16.msra.mxu0 %v75
  %95 = vmatprep.subr.bf16.mxu0 0
  %96 = vmatpush1.bf16.msra.mxu0 %v74
  %97 = vmatprep.subr.bf16.mxu0 0
  %98 = vmatpush1.bf16.msra.mxu0 %v73
  %99 = vmatprep.subr.bf16.mxu0 0
  %100 = vmatpush1.bf16.msra.mxu0 %v72
  %101 = vmatprep.subr.bf16.mxu0 0
  %102 = vmatpush1.bf16.msra.mxu0 %v71
  %103 = vmatprep.subr.bf16.mxu0 0
  %104 = vmatpush2.bf16.msra.mxu0 0
  %105 = vmatprep.subr.bf16.mxu0 0
  %106 = vmatpush2.bf16.msra.mxu0 0
  %107 = vmatprep.subr.bf16.mxu0 0
  %108 = vmatpush2.bf16.msra.mxu0 0
  %109 = vmatprep.subr.bf16.mxu0 0
  %110 = vmatpush2.bf16.msra.mxu0 0
  %111 = vmatprep.subr.bf16.mxu0 0
  %112 = vmatpush2.bf16.msra.mxu0 0
  %113 = vmatprep.subr.bf16.mxu0 0
  %114 = vmatpush2.bf16.msra.mxu0 0
  %115 = vmatprep.subr.bf16.mxu0 0
  %116 = vmatpush2.bf16.msra.mxu0 0
  %117 = vmatprep.subr.bf16.mxu0 0
  %118 = vmatpush2.bf16.msra.mxu0 0
  %119 = vmatprep.mubr.bf16.mxu0 0
  %120 = vmatmul.mubr.bf16.gmra.mxu0 %v15
  %v121 = vpop.f32.mrf.mxu0
  %v122 = vadd.f32 %v37, %v121
  %v123 = vpop.f32.mrf.mxu0
  %v124 = vpop.f32.mrf.mxu0
  %v125 = vpop.f32.mrf.mxu0
  %126 = vdwg.mxu0
  %vm127 = vcmask 130048
  %128 = vst.msk [vmem:[%s3] sm:$0xff] %vm127, %v122
  // Predicated region
  $region14: #{forward.51} parent=0 // pred_check
    _
  $region15: #{forward.51} parent=0 // pred_check_branch
    %130 = sbr.rel (0) target = $region17
  $region16: #{forward.51} parent=0 // pred_region
    _
  $region17: #{forward.51} parent=0 // pred_fallthru
    _
  // Predicated region
  $region18: #{forward.51} parent=0 // pred_check
    _
  $region19: #{forward.51} parent=0 // pred_check_branch
    %132 = sbr.rel (0) target = $region21
  $region20: #{forward.51} parent=0 // pred_region
    _
  $region21: #{forward.51} parent=0 // pred_fallthru
    _

// kernel: forward.46
$region0: #{forward.46}
  #allocation0 [shape = 'u32[]', space=smem, size = 0x4, offset = 0x4, fixed_abs, tag = 'smem constant byte address 0x4 - core index']
  #allocation1 [shape = 'u32[144,128]{1,0:T(1,128)}', space=vmem, size = 0x12000, scoped, tag = 'internal scratch']
  %s0 = inlined_call_operand.vmem [shape: bf16[8,1152], index: 0, kind: input, shape index: {}]
  %s1 = inlined_call_operand.vmem [shape: bf16[1152,128], index: 1, kind: input, shape index: {}]
  %s2 = inlined_call_operand.vmem [shape: f32[1,128], index: 2, kind: input, shape index: {}]
  %s3 = inlined_call_operand.vmem [shape: bf16[8,128], index: 3, kind: output, shape index: {}]
  %s4 = sld [smem:[#allocation0]]
  $region22: #{forward.46} parent=0
    _
  %s6 = ssub.s32 1, %s4
  %s7 = scalar_select 0, %s6, %s4
  // Predicated region
  $region2: #{forward.46} parent=0 // pred_check
    _
  $region3: #{forward.46} parent=0 // pred_check_branch
    %9 = sbr.rel (0) target = $region5
  $region4: #{forward.46} parent=0 // pred_region
    _
  $region5: #{forward.46} parent=0 // pred_fallthru
    _
  // Predicated region
  $region6: #{forward.46} parent=0 // pred_check
    _
  $region7: #{forward.46} parent=0 // pred_check_branch
    %11 = sbr.rel (0) target = $region9
  $region8: #{forward.46} parent=0 // pred_region
    _
  $region9: #{forward.46} parent=0 // pred_fallthru
    _
  // Predicated region
  $region10: #{forward.46} parent=0 // pred_check
    _
  $region11: #{forward.46} parent=0 // pred_check_branch
    %13 = sbr.rel (0) target = $region13
  $region12: #{forward.46} parent=0 // pred_region
    _
  $region13: #{forward.46} parent=0 // pred_fallthru
    _
  %v15 = vld [vmem:[%s0] sm:$0xff]
  %v16 = vld [vmem:[%s0 + $0x8] sm:$0xff]
  %v17 = vld [vmem:[%s0 + $0x10] sm:$0xff]
  %v18 = vld [vmem:[%s0 + $0x18] sm:$0xff]
  %v19 = vld [vmem:[%s0 + $0x20] sm:$0xf]
  %v20 = vld [vmem:[%s1] sm:$0xf]
  %v21 = vld [vmem:[%s1 + $0x4] sm:$0xf]
  %v22 = vld [vmem:[%s1 + $0x8] sm:$0xf]
  %v23 = vld [vmem:[%s1 + $0xc] sm:$0xf]
  %v24 = vld [vmem:[%s1 + $0x10] sm:$0xf]
  %v25 = vld [vmem:[%s1 + $0x14] sm:$0xf]
  %v26 = vld [vmem:[%s1 + $0x18] sm:$0xf]
  %v27 = vld [vmem:[%s1 + $0x1c] sm:$0xf]
  %v28 = vld [vmem:[%s1 + $0x20] sm:$0xf]
  %v29 = vld [vmem:[%s1 + $0x24] sm:$0xf]
  %v30 = vld [vmem:[%s1 + $0x28] sm:$0xf]
  %v31 = vld [vmem:[%s1 + $0x2c] sm:$0xf]
  %v32 = vld [vmem:[%s1 + $0x30] sm:$0xf]
  %v33 = vld [vmem:[%s1 + $0x34] sm:$0xf]
  %v34 = vld [vmem:[%s1 + $0x38] sm:$0xf]
  %v35 = vld [vmem:[%s1 + $0x3c] sm:$0xf]
  %v36 = vld [vmem:[%s1 + $0x40] sm:$0xf]
  %v37 = vld [vmem:[%s1 + $0x44] sm:$0xf]
  %v38 = vld [vmem:[%s1 + $0x48] sm:$0xf]
  %v39 = vld [vmem:[%s1 + $0x4c] sm:$0xf]
  %v40 = vld [vmem:[%s1 + $0x50] sm:$0xf]
  %v41 = vld [vmem:[%s1 + $0x54] sm:$0xf]
  %v42 = vld [vmem:[%s1 + $0x58] sm:$0xf]
  %v43 = vld [vmem:[%s1 + $0x5c] sm:$0xf]
  %v44 = vld [vmem:[%s1 + $0x60] sm:$0xf]
  %v45 = vld [vmem:[%s1 + $0x64] sm:$0xf]
  %v46 = vld [vmem:[%s1 + $0x68] sm:$0xf]
  %v47 = vld [vmem:[%s1 + $0x6c] sm:$0xf]
  %v48 = vld [vmem:[%s1 + $0x70] sm:$0xf]
  %v49 = vld [vmem:[%s1 + $0x74] sm:$0xf]
  %v50 = vld [vmem:[%s1 + $0x78] sm:$0xf]
  %v51 = vld [vmem:[%s1 + $0x7c] sm:$0xf]
  %v52 = vld [vmem:[%s1 + $0x80] sm:$0xf]
  %v53 = vld [vmem:[%s1 + $0x84] sm:$0xf]
  %v54 = vld [vmem:[%s1 + $0x88] sm:$0xf]
  %v55 = vld [vmem:[%s1 + $0x8c] sm:$0xf]
  %v56 = vld [vmem:[%s1 + $0x90] sm:$0xf]
  %v57 = vld [vmem:[%s1 + $0x94] sm:$0xf]
  %v58 = vld [vmem:[%s1 + $0x98] sm:$0xf]
  %v59 = vld [vmem:[%s1 + $0x9c] sm:$0xf]
  %v60 = vld [vmem:[%s1 + $0xa0] sm:$0xf]
  %v61 = vld [vmem:[%s1 + $0xa4] sm:$0xf]
  %v62 = vld [vmem:[%s1 + $0xa8] sm:$0xf]
  %v63 = vld [vmem:[%s1 + $0xac] sm:$0xf]
  %v64 = vld [vmem:[%s1 + $0xb0] sm:$0xf]
  %v65 = vld [vmem:[%s1 + $0xb4] sm:$0xf]
  %v66 = vld [vmem:[%s1 + $0xb8] sm:$0xf]
  %v67 = vld [vmem:[%s1 + $0xbc] sm:$0xf]
  %v68 = vld [vmem:[%s1 + $0xc0] sm:$0xf]
  %v69 = vld [vmem:[%s1 + $0xc4] sm:$0xf]
  %v70 = vld [vmem:[%s1 + $0xc8] sm:$0xf]
  %v71 = vld [vmem:[%s1 + $0xcc] sm:$0xf]
  %v72 = vld [vmem:[%s1 + $0xd0] sm:$0xf]
  %v73 = vld [vmem:[%s1 + $0xd4] sm:$0xf]
  %v74 = vld [vmem:[%s1 + $0xd8] sm:$0xf]
  %v75 = vld [vmem:[%s1 + $0xdc] sm:$0xf]
  %v76 = vld [vmem:[%s1 + $0xe0] sm:$0xf]
  %v77 = vld [vmem:[%s1 + $0xe4] sm:$0xf]
  %v78 = vld [vmem:[%s1 + $0xe8] sm:$0xf]
  %v79 = vld [vmem:[%s1 + $0xec] sm:$0xf]
  %v80 = vld [vmem:[%s1 + $0xf0] sm:$0xf]
  %v81 = vld [vmem:[%s1 + $0xf4] sm:$0xf]
  %v82 = vld [vmem:[%s1 + $0xf8] sm:$0xf]
  %v83 = vld [vmem:[%s1 + $0xfc] sm:$0xf]
  %v84 = vld [vmem:[%s1 + $0x100] sm:$0xf]
  %v85 = vld [vmem:[%s1 + $0x104] sm:$0xf]
  %v86 = vld [vmem:[%s1 + $0x108] sm:$0xf]
  %v87 = vld [vmem:[%s1 + $0x10c] sm:$0xf]
  %v88 = vld [vmem:[%s1 + $0x110] sm:$0xf]
  %v89 = vld [vmem:[%s1 + $0x114] sm:$0xf]
  %v90 = vld [vmem:[%s1 + $0x118] sm:$0xf]
  %v91 = vld [vmem:[%s1 + $0x11c] sm:$0xf]
  %v92 = vld [vmem:[%s1 + $0x120] sm:$0xf]
  %v93 = vld [vmem:[%s1 + $0x124] sm:$0xf]
  %v94 = vld [vmem:[%s1 + $0x128] sm:$0xf]
  %v95 = vld [vmem:[%s1 + $0x12c] sm:$0xf]
  %v96 = vld [vmem:[%s1 + $0x130] sm:$0xf]
  %v97 = vld [vmem:[%s1 + $0x134] sm:$0xf]
  %v98 = vld [vmem:[%s1 + $0x138] sm:$0xf]
  %v99 = vld [vmem:[%s1 + $0x13c] sm:$0xf]
  %v100 = vld [vmem:[%s1 + $0x140] sm:$0xf]
  %v101 = vld [vmem:[%s1 + $0x144] sm:$0xf]
  %v102 = vld [vmem:[%s1 + $0x148] sm:$0xf]
  %v103 = vld [vmem:[%s1 + $0x14c] sm:$0xf]
  %v104 = vld [vmem:[%s1 + $0x150] sm:$0xf]
  %v105 = vld [vmem:[%s1 + $0x154] sm:$0xf]
  %v106 = vld [vmem:[%s1 + $0x158] sm:$0xf]
  %v107 = vld [vmem:[%s1 + $0x15c] sm:$0xf]
  %v108 = vld [vmem:[%s1 + $0x160] sm:$0xf]
  %v109 = vld [vmem:[%s1 + $0x164] sm:$0xf]
  %v110 = vld [vmem:[%s1 + $0x168] sm:$0xf]
  %v111 = vld [vmem:[%s1 + $0x16c] sm:$0xf]
  %v112 = vld [vmem:[%s1 + $0x170] sm:$0xf]
  %v113 = vld [vmem:[%s1 + $0x174] sm:$0xf]
  %v114 = vld [vmem:[%s1 + $0x178] sm:$0xf]
  %v115 = vld [vmem:[%s1 + $0x17c] sm:$0xf]
  %v116 = vld [vmem:[%s1 + $0x180] sm:$0xf]
  %v117 = vld [vmem:[%s1 + $0x184] sm:$0xf]
  %v118 = vld [vmem:[%s1 + $0x188] sm:$0xf]
  %v119 = vld [vmem:[%s1 + $0x18c] sm:$0xf]
  %v120 = vld [vmem:[%s1 + $0x190] sm:$0xf]
  %v121 = vld [vmem:[%s1 + $0x194] sm:$0xf]
  %v122 = vld [vmem:[%s1 + $0x198] sm:$0xf]
  %v123 = vld [vmem:[%s1 + $0x19c] sm:$0xf]
  %v124 = vld [vmem:[%s1 + $0x1a0] sm:$0xf]
  %v125 = vld [vmem:[%s1 + $0x1a4] sm:$0xf]
  %v126 = vld [vmem:[%s1 + $0x1a8] sm:$0xf]
  %v127 = vld [vmem:[%s1 + $0x1ac] sm:$0xf]
  %v128 = vld [vmem:[%s1 + $0x1b0] sm:$0xf]
  %v129 = vld [vmem:[%s1 + $0x1b4] sm:$0xf]
  %v130 = vld [vmem:[%s1 + $0x1b8] sm:$0xf]
  %v131 = vld [vmem:[%s1 + $0x1bc] sm:$0xf]
  %v132 = vld [vmem:[%s1 + $0x1c0] sm:$0xf]
  %v133 = vld [vmem:[%s1 + $0x1c4] sm:$0xf]
  %v134 = vld [vmem:[%s1 + $0x1c8] sm:$0xf]
  %v135 = vld [vmem:[%s1 + $0x1cc] sm:$0xf]
  %v136 = vld [vmem:[%s1 + $0x1d0] sm:$0xf]
  %v137 = vld [vmem:[%s1 + $0x1d4] sm:$0xf]
  %v138 = vld [vmem:[%s1 + $0x1d8] sm:$0xf]
  %v139 = vld [vmem:[%s1 + $0x1dc] sm:$0xf]
  %v140 = vld [vmem:[%s1 + $0x1e0] sm:$0xf]
  %v141 = vld [vmem:[%s1 + $0x1e4] sm:$0xf]
  %v142 = vld [vmem:[%s1 + $0x1e8] sm:$0xf]
  %v143 = vld [vmem:[%s1 + $0x1ec] sm:$0xf]
  %v144 = vld [vmem:[%s1 + $0x1f0] sm:$0xf]
  %v145 = vld [vmem:[%s1 + $0x1f4] sm:$0xf]
  %v146 = vld [vmem:[%s1 + $0x1f8] sm:$0xf]
  %v147 = vld [vmem:[%s1 + $0x1fc] sm:$0xf]
  %v148 = vld [vmem:[%s1 + $0x200] sm:$0xf]
  %v149 = vld [vmem:[%s1 + $0x204] sm:$0xf]
  %v150 = vld [vmem:[%s1 + $0x208] sm:$0xf]
  %v151 = vld [vmem:[%s1 + $0x20c] sm:$0xf]
  %v152 = vld [vmem:[%s1 + $0x210] sm:$0xf]
  %v153 = vld [vmem:[%s1 + $0x214] sm:$0xf]
  %v154 = vld [vmem:[%s1 + $0x218] sm:$0xf]
  %v155 = vld [vmem:[%s1 + $0x21c] sm:$0xf]
  %v156 = vld [vmem:[%s1 + $0x220] sm:$0xf]
  %v157 = vld [vmem:[%s1 + $0x224] sm:$0xf]
  %v158 = vld [vmem:[%s1 + $0x228] sm:$0xf]
  %v159 = vld [vmem:[%s1 + $0x22c] sm:$0xf]
  %v160 = vld [vmem:[%s1 + $0x230] sm:$0xf]
  %v161 = vld [vmem:[%s1 + $0x234] sm:$0xf]
  %v162 = vld [vmem:[%s1 + $0x238] sm:$0xf]
  %v163 = vld [vmem:[%s1 + $0x23c] sm:$0xf]
  %v164 = vld [vmem:[%s2] sm:$0x1]
  %v166 = vlaneseq
  %v167 = vshrl.u32 %v166, 7
  %v168 = vsub.s32 0, %v167
  %v169 = vrot.slane %v164, %v168
  %v176 = vunpack.c.l.b16 %v15
  %v177 = vunpack.c.h.b16 %v15
  %v178 = vunpack.c.l.b16 %v16
  %v179 = vunpack.c.h.b16 %v16
  %v180 = vunpack.c.l.b16 %v17
  %v181 = vunpack.c.h.b16 %v17
  %v182 = vunpack.c.l.b16 %v18
  %v183 = vunpack.c.h.b16 %v18
  %v184 = vunpack.c.l.b16 %v19
  %v185 = vpack.c.b16 %v176, %v176
  %v186 = vpack.c.b16 %v177, %v177
  %v187 = vpack.c.b16 %v178, %v178
  %v188 = vpack.c.b16 %v179, %v179
  %v189 = vpack.c.b16 %v180, %v180
  %v190 = vpack.c.b16 %v181, %v181
  %v191 = vpack.c.b16 %v182, %v182
  %v192 = vpack.c.b16 %v183, %v183
  %v193 = vpack.c.b16 %v184, %v184
  %v347 = vunpack.c.l.b16 %v20
  %v348 = vunpack.c.l.b16 %v21
  %v349 = vunpack.c.l.b16 %v22
  %v350 = vunpack.c.l.b16 %v23
  %v351 = vunpack.c.l.b16 %v24
  %v352 = vunpack.c.l.b16 %v25
  %v353 = vunpack.c.l.b16 %v26
  %v354 = vunpack.c.l.b16 %v27
  %v355 = vunpack.c.l.b16 %v28
  %v356 = vunpack.c.l.b16 %v29
  %v357 = vunpack.c.l.b16 %v30
  %v358 = vunpack.c.l.b16 %v31
  %v359 = vunpack.c.l.b16 %v32
  %v360 = vunpack.c.l.b16 %v33
  %v361 = vunpack.c.l.b16 %v34
  %v362 = vunpack.c.l.b16 %v35
  %v363 = vunpack.c.l.b16 %v36
  %v364 = vunpack.c.l.b16 %v37
  %v365 = vunpack.c.l.b16 %v38
  %v366 = vunpack.c.l.b16 %v39
  %v367 = vunpack.c.l.b16 %v40
  %v368 = vunpack.c.l.b16 %v41
  %v369 = vunpack.c.l.b16 %v42
  %v370 = vunpack.c.l.b16 %v43
  %v371 = vunpack.c.l.b16 %v44
  %v372 = vunpack.c.l.b16 %v45
  %v373 = vunpack.c.l.b16 %v46
  %v374 = vunpack.c.l.b16 %v47
  %v375 = vunpack.c.l.b16 %v48
  %v376 = vunpack.c.l.b16 %v49
  %v377 = vunpack.c.l.b16 %v50
  %v378 = vunpack.c.l.b16 %v51
  %v379 = vunpack.c.l.b16 %v52
  %v380 = vunpack.c.l.b16 %v53
  %v381 = vunpack.c.l.b16 %v54
  %v382 = vunpack.c.l.b16 %v55
  %v383 = vunpack.c.l.b16 %v56
  %v384 = vunpack.c.l.b16 %v57
  %v385 = vunpack.c.l.b16 %v58
  %v386 = vunpack.c.l.b16 %v59
  %v387 = vunpack.c.l.b16 %v60
  %v388 = vunpack.c.l.b16 %v61
  %v389 = vunpack.c.l.b16 %v62
  %v390 = vunpack.c.l.b16 %v63
  %v391 = vunpack.c.l.b16 %v64
  %v392 = vunpack.c.l.b16 %v65
  %v393 = vunpack.c.l.b16 %v66
  %v394 = vunpack.c.l.b16 %v67
  %v395 = vunpack.c.l.b16 %v68
  %v396 = vunpack.c.l.b16 %v69
  %v397 = vunpack.c.l.b16 %v70
  %v398 = vunpack.c.l.b16 %v71
  %v399 = vunpack.c.l.b16 %v72
  %v400 = vunpack.c.l.b16 %v73
  %v401 = vunpack.c.l.b16 %v74
  %v402 = vunpack.c.l.b16 %v75
  %v403 = vunpack.c.l.b16 %v76
  %v404 = vunpack.c.l.b16 %v77
  %v405 = vunpack.c.l.b16 %v78
  %v406 = vunpack.c.l.b16 %v79
  %v407 = vunpack.c.l.b16 %v80
  %v408 = vunpack.c.l.b16 %v81
  %v409 = vunpack.c.l.b16 %v82
  %v410 = vunpack.c.l.b16 %v83
  %v411 = vunpack.c.l.b16 %v84
  %v412 = vunpack.c.l.b16 %v85
  %v413 = vunpack.c.l.b16 %v86
  %v414 = vunpack.c.l.b16 %v87
  %v415 = vunpack.c.l.b16 %v88
  %v416 = vunpack.c.l.b16 %v89
  %v417 = vunpack.c.l.b16 %v90
  %v418 = vunpack.c.l.b16 %v91
  %v419 = vunpack.c.l.b16 %v92
  %v420 = vunpack.c.l.b16 %v93
  %v421 = vunpack.c.l.b16 %v94
  %v422 = vunpack.c.l.b16 %v95
  %v423 = vunpack.c.l.b16 %v96
  %v424 = vunpack.c.l.b16 %v97
  %v425 = vunpack.c.l.b16 %v98
  %v426 = vunpack.c.l.b16 %v99
  %v427 = vunpack.c.l.b16 %v100
  %v428 = vunpack.c.l.b16 %v101
  %v429 = vunpack.c.l.b16 %v102
  %v430 = vunpack.c.l.b16 %v103
  %v431 = vunpack.c.l.b16 %v104
  %v432 = vunpack.c.l.b16 %v105
  %v433 = vunpack.c.l.b16 %v106
  %v434 = vunpack.c.l.b16 %v107
  %v435 = vunpack.c.l.b16 %v108
  %v436 = vunpack.c.l.b16 %v109
  %v437 = vunpack.c.l.b16 %v110
  %v438 = vunpack.c.l.b16 %v111
  %v439 = vunpack.c.l.b16 %v112
  %v440 = vunpack.c.l.b16 %v113
  %v441 = vunpack.c.l.b16 %v114
  %v442 = vunpack.c.l.b16 %v115
  %v443 = vunpack.c.l.b16 %v116
  %v444 = vunpack.c.l.b16 %v117
  %v445 = vunpack.c.l.b16 %v118
  %v446 = vunpack.c.l.b16 %v119
  %v447 = vunpack.c.l.b16 %v120
  %v448 = vunpack.c.l.b16 %v121
  %v449 = vunpack.c.l.b16 %v122
  %v450 = vunpack.c.l.b16 %v123
  %v451 = vunpack.c.l.b16 %v124
  %v452 = vunpack.c.l.b16 %v125
  %v453 = vunpack.c.l.b16 %v126
  %v454 = vunpack.c.l.b16 %v127
  %v455 = vunpack.c.l.b16 %v128
  %v456 = vunpack.c.l.b16 %v129
  %v457 = vunpack.c.l.b16 %v130
  %v458 = vunpack.c.l.b16 %v131
  %v459 = vunpack.c.l.b16 %v132
  %v460 = vunpack.c.l.b16 %v133
  %v461 = vunpack.c.l.b16 %v134
  %v462 = vunpack.c.l.b16 %v135
  %v463 = vunpack.c.l.b16 %v136
  %v464 = vunpack.c.l.b16 %v137
  %v465 = vunpack.c.l.b16 %v138
  %v466 = vunpack.c.l.b16 %v139
  %v467 = vunpack.c.l.b16 %v140
  %v468 = vunpack.c.l.b16 %v141
  %v469 = vunpack.c.l.b16 %v142
  %v470 = vunpack.c.l.b16 %v143
  %v471 = vunpack.c.l.b16 %v144
  %v472 = vunpack.c.l.b16 %v145
  %v473 = vunpack.c.l.b16 %v146
  %v474 = vunpack.c.l.b16 %v147
  %v475 = vunpack.c.l.b16 %v148
  %v476 = vunpack.c.l.b16 %v149
  %v477 = vunpack.c.l.b16 %v150
  %v478 = vunpack.c.l.b16 %v151
  %v479 = vunpack.c.l.b16 %v152
  %v480 = vunpack.c.l.b16 %v153
  %v481 = vunpack.c.l.b16 %v154
  %v482 = vunpack.c.l.b16 %v155
  %v483 = vunpack.c.l.b16 %v156
  %v484 = vunpack.c.l.b16 %v157
  %v485 = vunpack.c.l.b16 %v158
  %v486 = vunpack.c.l.b16 %v159
  %v487 = vunpack.c.l.b16 %v160
  %v488 = vunpack.c.l.b16 %v161
  %v489 = vunpack.c.l.b16 %v162
  %v490 = vunpack.c.l.b16 %v163
  %v491 = vpack.c.b16 %v348, %v347
  %v492 = vpack.c.b16 %v350, %v349
  %v493 = vpack.c.b16 %v352, %v351
  %v494 = vpack.c.b16 %v354, %v353
  %v495 = vpack.c.b16 %v356, %v355
  %v496 = vpack.c.b16 %v358, %v357
  %v497 = vpack.c.b16 %v360, %v359
  %v498 = vpack.c.b16 %v362, %v361
  %v499 = vpack.c.b16 %v364, %v363
  %v500 = vpack.c.b16 %v366, %v365
  %v501 = vpack.c.b16 %v368, %v367
  %v502 = vpack.c.b16 %v370, %v369
  %v503 = vpack.c.b16 %v372, %v371
  %v504 = vpack.c.b16 %v374, %v373
  %v505 = vpack.c.b16 %v376, %v375
  %v506 = vpack.c.b16 %v378, %v377
  %v507 = vpack.c.b16 %v380, %v379
  %v508 = vpack.c.b16 %v382, %v381
  %v509 = vpack.c.b16 %v384, %v383
  %v510 = vpack.c.b16 %v386, %v385
  %v511 = vpack.c.b16 %v388, %v387
  %v512 = vpack.c.b16 %v390, %v389
  %v513 = vpack.c.b16 %v392, %v391
  %v514 = vpack.c.b16 %v394, %v393
  %v515 = vpack.c.b16 %v396, %v395
  %v516 = vpack.c.b16 %v398, %v397
  %v517 = vpack.c.b16 %v400, %v399
  %v518 = vpack.c.b16 %v402, %v401
  %v519 = vpack.c.b16 %v404, %v403
  %v520 = vpack.c.b16 %v406, %v405
  %v521 = vpack.c.b16 %v408, %v407
  %v522 = vpack.c.b16 %v410, %v409
  %v523 = vpack.c.b16 %v412, %v411
  %v524 = vpack.c.b16 %v414, %v413
  %v525 = vpack.c.b16 %v416, %v415
  %v526 = vpack.c.b16 %v418, %v417
  %v527 = vpack.c.b16 %v420, %v419
  %v528 = vpack.c.b16 %v422, %v421
  %v529 = vpack.c.b16 %v424, %v423
  %v530 = vpack.c.b16 %v426, %v425
  %v531 = vpack.c.b16 %v428, %v427
  %v532 = vpack.c.b16 %v430, %v429
  %v533 = vpack.c.b16 %v432, %v431
  %v534 = vpack.c.b16 %v434, %v433
  %v535 = vpack.c.b16 %v436, %v435
  %v536 = vpack.c.b16 %v438, %v437
  %v537 = vpack.c.b16 %v440, %v439
  %v538 = vpack.c.b16 %v442, %v441
  %v539 = vpack.c.b16 %v444, %v443
  %v540 = vpack.c.b16 %v446, %v445
  %v541 = vpack.c.b16 %v448, %v447
  %v542 = vpack.c.b16 %v450, %v449
  %v543 = vpack.c.b16 %v452, %v451
  %v544 = vpack.c.b16 %v454, %v453
  %v545 = vpack.c.b16 %v456, %v455
  %v546 = vpack.c.b16 %v458, %v457
  %v547 = vpack.c.b16 %v460, %v459
  %v548 = vpack.c.b16 %v462, %v461
  %v549 = vpack.c.b16 %v464, %v463
  %v550 = vpack.c.b16 %v466, %v465
  %v551 = vpack.c.b16 %v468, %v467
  %v552 = vpack.c.b16 %v470, %v469
  %v553 = vpack.c.b16 %v472, %v471
  %v554 = vpack.c.b16 %v474, %v473
  %v555 = vpack.c.b16 %v476, %v475
  %v556 = vpack.c.b16 %v478, %v477
  %v557 = vpack.c.b16 %v480, %v479
  %v558 = vpack.c.b16 %v482, %v481
  %v559 = vpack.c.b16 %v484, %v483
  %v560 = vpack.c.b16 %v486, %v485
  %v561 = vpack.c.b16 %v488, %v487
  %v562 = vpack.c.b16 %v490, %v489
  %635 = vmatprep.subr.bf16.mxu0 0
  %636 = vmatpush1.bf16.msra.mxu0 %v498
  %637 = vmatprep.subr.bf16.mxu0 0
  %638 = vmatpush1.bf16.msra.mxu0 %v497
  %639 = vmatprep.subr.bf16.mxu0 0
  %640 = vmatpush1.bf16.msra.mxu0 %v496
  %641 = vmatprep.subr.bf16.mxu0 0
  %642 = vmatpush1.bf16.msra.mxu0 %v495
  %643 = vmatprep.subr.bf16.mxu0 0
  %644 = vmatpush1.bf16.msra.mxu0 %v494
  %645 = vmatprep.subr.bf16.mxu0 0
  %646 = vmatpush1.bf16.msra.mxu0 %v493
  %647 = vmatprep.subr.bf16.mxu0 0
  %648 = vmatpush1.bf16.msra.mxu0 %v492
  %649 = vmatprep.subr.bf16.mxu0 0
  %650 = vmatpush1.bf16.msra.mxu0 %v491
  %651 = vmatprep.subr.bf16.mxu0 0
  %652 = vmatpush2.bf16.msra.mxu0 %v506
  %653 = vmatprep.subr.bf16.mxu0 0
  %654 = vmatpush2.bf16.msra.mxu0 %v505
  %655 = vmatprep.subr.bf16.mxu0 0
  %656 = vmatpush2.bf16.msra.mxu0 %v504
  %657 = vmatprep.subr.bf16.mxu0 0
  %658 = vmatpush2.bf16.msra.mxu0 %v503
  %659 = vmatprep.subr.bf16.mxu0 0
  %660 = vmatpush2.bf16.msra.mxu0 %v502
  %661 = vmatprep.subr.bf16.mxu0 0
  %662 = vmatpush2.bf16.msra.mxu0 %v501
  %663 = vmatprep.subr.bf16.mxu0 0
  %664 = vmatpush2.bf16.msra.mxu0 %v500
  %665 = vmatprep.subr.bf16.mxu0 0
  %666 = vmatpush2.bf16.msra.mxu0 %v499
  %667 = vmatprep.mubr.bf16.mxu0 %v186
  %668 = vmatmul.mubr.bf16.gmra.mxu0 %v185
  %v669 = vpop.f32.mrf.mxu0
  %v670 = vadd.f32 %v169, %v669
  %v671 = vpop.f32.mrf.mxu0
  %v672 = vpop.f32.mrf.mxu0
  %v673 = vpop.f32.mrf.mxu0
  %674 = vdwg.mxu0
  %675 = vmatprep.subr.bf16.mxu0 0
  %676 = vmatpush1.bf16.msra.mxu0 %v514
  %677 = vmatprep.subr.bf16.mxu0 0
  %678 = vmatpush1.bf16.msra.mxu0 %v513
  %679 = vmatprep.subr.bf16.mxu0 0
  %680 = vmatpush1.bf16.msra.mxu0 %v512
  %681 = vmatprep.subr.bf16.mxu0 0
  %682 = vmatpush1.bf16.msra.mxu0 %v511
  %683 = vmatprep.subr.bf16.mxu0 0
  %684 = vmatpush1.bf16.msra.mxu0 %v510
  %685 = vmatprep.subr.bf16.mxu0 0
  %686 = vmatpush1.bf16.msra.mxu0 %v509
  %687 = vmatprep.subr.bf16.mxu0 0
  %688 = vmatpush1.bf16.msra.mxu0 %v508
  %689 = vmatprep.subr.bf16.mxu0 0
  %690 = vmatpush1.bf16.msra.mxu0 %v507
  %691 = vmatprep.subr.bf16.mxu0 0
  %692 = vmatpush2.bf16.msra.mxu0 %v522
  %693 = vmatprep.subr.bf16.mxu0 0
  %694 = vmatpush2.bf16.msra.mxu0 %v521
  %695 = vmatprep.subr.bf16.mxu0 0
  %696 = vmatpush2.bf16.msra.mxu0 %v520
  %697 = vmatprep.subr.bf16.mxu0 0
  %698 = vmatpush2.bf16.msra.mxu0 %v519
  %699 = vmatprep.subr.bf16.mxu0 0
  %700 = vmatpush2.bf16.msra.mxu0 %v518
  %701 = vmatprep.subr.bf16.mxu0 0
  %702 = vmatpush2.bf16.msra.mxu0 %v517
  %703 = vmatprep.subr.bf16.mxu0 0
  %704 = vmatpush2.bf16.msra.mxu0 %v516
  %705 = vmatprep.subr.bf16.mxu0 0
  %706 = vmatpush2.bf16.msra.mxu0 %v515
  %707 = vmatprep.mubr.bf16.mxu0 %v188
  %708 = vmatmul.mubr.bf16.gmra.mxu0 %v187
  %v709 = vpop.f32.mrf.mxu0
  %v710 = vadd.f32 %v670, %v709
  %v711 = vpop.f32.mrf.mxu0
  %v712 = vpop.f32.mrf.mxu0
  %v713 = vpop.f32.mrf.mxu0
  %714 = vdwg.mxu0
  %715 = vmatprep.subr.bf16.mxu0 0
  %716 = vmatpush1.bf16.msra.mxu0 %v530
  %717 = vmatprep.subr.bf16.mxu0 0
  %718 = vmatpush1.bf16.msra.mxu0 %v529
  %719 = vmatprep.subr.bf16.mxu0 0
  %720 = vmatpush1.bf16.msra.mxu0 %v528
  %721 = vmatprep.subr.bf16.mxu0 0
  %722 = vmatpush1.bf16.msra.mxu0 %v527
  %723 = vmatprep.subr.bf16.mxu0 0
  %724 = vmatpush1.bf16.msra.mxu0 %v526
  %725 = vmatprep.subr.bf16.mxu0 0
  %726 = vmatpush1.bf16.msra.mxu0 %v525
  %727 = vmatprep.subr.bf16.mxu0 0
  %728 = vmatpush1.bf16.msra.mxu0 %v524
  %729 = vmatprep.subr.bf16.mxu0 0
  %730 = vmatpush1.bf16.msra.mxu0 %v523
  %731 = vmatprep.subr.bf16.mxu0 0
  %732 = vmatpush2.bf16.msra.mxu0 %v538
  %733 = vmatprep.subr.bf16.mxu0 0
  %734 = vmatpush2.bf16.msra.mxu0 %v537
  %735 = vmatprep.subr.bf16.mxu0 0
  %736 = vmatpush2.bf16.msra.mxu0 %v536
  %737 = vmatprep.subr.bf16.mxu0 0
  %738 = vmatpush2.bf16.msra.mxu0 %v535
  %739 = vmatprep.subr.bf16.mxu0 0
  %740 = vmatpush2.bf16.msra.mxu0 %v534
  %741 = vmatprep.subr.bf16.mxu0 0
  %742 = vmatpush2.bf16.msra.mxu0 %v533
  %743 = vmatprep.subr.bf16.mxu0 0
  %744 = vmatpush2.bf16.msra.mxu0 %v532
  %745 = vmatprep.subr.bf16.mxu0 0
  %746 = vmatpush2.bf16.msra.mxu0 %v531
  %747 = vmatprep.mubr.bf16.mxu0 %v190
  %748 = vmatmul.mubr.bf16.gmra.mxu0 %v189
  %v749 = vpop.f32.mrf.mxu0
  %v750 = vadd.f32 %v710, %v749
  %v751 = vpop.f32.mrf.mxu0
  %v752 = vpop.f32.mrf.mxu0
  %v753 = vpop.f32.mrf.mxu0
  %754 = vdwg.mxu0
  %755 = vmatprep.subr.bf16.mxu0 0
  %756 = vmatpush1.bf16.msra.mxu0 %v546
  %757 = vmatprep.subr.bf16.mxu0 0
  %758 = vmatpush1.bf16.msra.mxu0 %v545
  %759 = vmatprep.subr.bf16.mxu0 0
  %760 = vmatpush1.bf16.msra.mxu0 %v544
  %761 = vmatprep.subr.bf16.mxu0 0
  %762 = vmatpush1.bf16.msra.mxu0 %v543
  %763 = vmatprep.subr.bf16.mxu0 0
  %764 = vmatpush1.bf16.msra.mxu0 %v542
  %765 = vmatprep.subr.bf16.mxu0 0
  %766 = vmatpush1.bf16.msra.mxu0 %v541
  %767 = vmatprep.subr.bf16.mxu0 0
  %768 = vmatpush1.bf16.msra.mxu0 %v540
  %769 = vmatprep.subr.bf16.mxu0 0
  %770 = vmatpush1.bf16.msra.mxu0 %v539
  %771 = vmatprep.subr.bf16.mxu0 0
  %772 = vmatpush2.bf16.msra.mxu0 %v554
  %773 = vmatprep.subr.bf16.mxu0 0
  %774 = vmatpush2.bf16.msra.mxu0 %v553
  %775 = vmatprep.subr.bf16.mxu0 0
  %776 = vmatpush2.bf16.msra.mxu0 %v552
  %777 = vmatprep.subr.bf16.mxu0 0
  %778 = vmatpush2.bf16.msra.mxu0 %v551
  %779 = vmatprep.subr.bf16.mxu0 0
  %780 = vmatpush2.bf16.msra.mxu0 %v550
  %781 = vmatprep.subr.bf16.mxu0 0
  %782 = vmatpush2.bf16.msra.mxu0 %v549
  %783 = vmatprep.subr.bf16.mxu0 0
  %784 = vmatpush2.bf16.msra.mxu0 %v548
  %785 = vmatprep.subr.bf16.mxu0 0
  %786 = vmatpush2.bf16.msra.mxu0 %v547
  %787 = vmatprep.mubr.bf16.mxu0 %v192
  %788 = vmatmul.mubr.bf16.gmra.mxu0 %v191
  %v789 = vpop.f32.mrf.mxu0
  %v790 = vadd.f32 %v750, %v789
  %v791 = vpop.f32.mrf.mxu0
  %v792 = vpop.f32.mrf.mxu0
  %v793 = vpop.f32.mrf.mxu0
  %794 = vdwg.mxu0
  %795 = vmatprep.subr.bf16.mxu0 0
  %796 = vmatpush1.bf16.msra.mxu0 %v562
  %797 = vmatprep.subr.bf16.mxu0 0
  %798 = vmatpush1.bf16.msra.mxu0 %v561
  %799 = vmatprep.subr.bf16.mxu0 0
  %800 = vmatpush1.bf16.msra.mxu0 %v560
  %801 = vmatprep.subr.bf16.mxu0 0
  %802 = vmatpush1.bf16.msra.mxu0 %v559
  %803 = vmatprep.subr.bf16.mxu0 0
  %804 = vmatpush1.bf16.msra.mxu0 %v558
  %805 = vmatprep.subr.bf16.mxu0 0
  %806 = vmatpush1.bf16.msra.mxu0 %v557
  %807 = vmatprep.subr.bf16.mxu0 0
  %808 = vmatpush1.bf16.msra.mxu0 %v556
  %809 = vmatprep.subr.bf16.mxu0 0
  %810 = vmatpush1.bf16.msra.mxu0 %v555
  %811 = vmatprep.subr.bf16.mxu0 0
  %812 = vmatpush2.bf16.msra.mxu0 0
  %813 = vmatprep.subr.bf16.mxu0 0
  %814 = vmatpush2.bf16.msra.mxu0 0
  %815 = vmatprep.subr.bf16.mxu0 0
  %816 = vmatpush2.bf16.msra.mxu0 0
  %817 = vmatprep.subr.bf16.mxu0 0
  %818 = vmatpush2.bf16.msra.mxu0 0
  %819 = vmatprep.subr.bf16.mxu0 0
  %820 = vmatpush2.bf16.msra.mxu0 0
  %821 = vmatprep.subr.bf16.mxu0 0
  %822 = vmatpush2.bf16.msra.mxu0 0
  %823 = vmatprep.subr.bf16.mxu0 0
  %824 = vmatpush2.bf16.msra.mxu0 0
  %825 = vmatprep.subr.bf16.mxu0 0
  %826 = vmatpush2.bf16.msra.mxu0 0
  %827 = vmatprep.mubr.bf16.mxu0 0
  %828 = vmatmul.mubr.bf16.gmra.mxu0 %v193
  %v829 = vpop.f32.mrf.mxu0
  %v830 = vadd.f32 %v790, %v829
  %v831 = vpop.f32.mrf.mxu0
  %v832 = vpop.f32.mrf.mxu0
  %v833 = vpop.f32.mrf.mxu0
  %834 = vdwg.mxu0
  %v835 = vxor.u32 %v830, 2147483648
  %v836 = vmul.f32 %v835, 1.442695
  %v837 = vpow.pop %v836
  %v838 = vadd.f32 %v837, 1.0
  %v839 = vrcp.pop %v838
  %v840 = vmul.f32 1.0, %v839
  %v841 = vmul.f32 %v830, %v840
  %v842 = vpack.c.bf16 %v841, %v841
  %843 = vst [vmem:[%s3] sm:$0xf] %v842
  // Predicated region
  $region14: #{forward.46} parent=0 // pred_check
    _
  $region15: #{forward.46} parent=0 // pred_check_branch
    %845 = sbr.rel (0) target = $region17
  $region16: #{forward.46} parent=0 // pred_region
    _
  $region17: #{forward.46} parent=0 // pred_fallthru
    _
  // Predicated region
  $region18: #{forward.46} parent=0 // pred_check
    _
  $region19: #{forward.46} parent=0 // pred_check_branch
    %847 = sbr.rel (0) target = $region21
  $region20: #{forward.46} parent=0 // pred_region
    _
  $region21: #{forward.46} parent=0 // pred_fallthru
    _

// kernel: forward.50
$region0: #{forward.50}
  #allocation0 [shape = 'u32[]', space=smem, size = 0x4, offset = 0x4, fixed_abs, tag = 'smem constant byte address 0x4 - core index']
  #allocation1 [shape = 'u32[144,128]{1,0:T(1,128)}', space=vmem, size = 0x12000, scoped, tag = 'internal scratch']
  %s0 = inlined_call_operand.vmem [shape: bf16[8,192], index: 0, kind: input, shape index: {}]
  %s1 = inlined_call_operand.vmem [shape: bf16[192,128], index: 1, kind: input, shape index: {}]
  %s2 = inlined_call_operand.vmem [shape: f32[1,128], index: 2, kind: input, shape index: {}]
  %s3 = inlined_call_operand.vmem [shape: bf16[8,128], index: 3, kind: output, shape index: {}]
  %s4 = sld [smem:[#allocation0]]
  $region22: #{forward.50} parent=0
    _
  %s6 = ssub.s32 1, %s4
  %s7 = scalar_select 0, %s6, %s4
  // Predicated region
  $region2: #{forward.50} parent=0 // pred_check
    _
  $region3: #{forward.50} parent=0 // pred_check_branch
    %9 = sbr.rel (0) target = $region5
  $region4: #{forward.50} parent=0 // pred_region
    _
  $region5: #{forward.50} parent=0 // pred_fallthru
    _
  // Predicated region
  $region6: #{forward.50} parent=0 // pred_check
    _
  $region7: #{forward.50} parent=0 // pred_check_branch
    %11 = sbr.rel (0) target = $region9
  $region8: #{forward.50} parent=0 // pred_region
    _
  $region9: #{forward.50} parent=0 // pred_fallthru
    _
  // Predicated region
  $region10: #{forward.50} parent=0 // pred_check
    _
  $region11: #{forward.50} parent=0 // pred_check_branch
    %13 = sbr.rel (0) target = $region13
  $region12: #{forward.50} parent=0 // pred_region
    _
  $region13: #{forward.50} parent=0 // pred_fallthru
    _
  %v15 = vld [vmem:[%s0] sm:$0xff]
  %v16 = vld [vmem:[%s1] sm:$0xf]
  %v17 = vld [vmem:[%s1 + $0x4] sm:$0xf]
  %v18 = vld [vmem:[%s1 + $0x8] sm:$0xf]
  %v19 = vld [vmem:[%s1 + $0xc] sm:$0xf]
  %v20 = vld [vmem:[%s1 + $0x10] sm:$0xf]
  %v21 = vld [vmem:[%s1 + $0x14] sm:$0xf]
  %v22 = vld [vmem:[%s1 + $0x18] sm:$0xf]
  %v23 = vld [vmem:[%s1 + $0x1c] sm:$0xf]
  %v24 = vld [vmem:[%s1 + $0x20] sm:$0xf]
  %v25 = vld [vmem:[%s1 + $0x24] sm:$0xf]
  %v26 = vld [vmem:[%s1 + $0x28] sm:$0xf]
  %v27 = vld [vmem:[%s1 + $0x2c] sm:$0xf]
  %v28 = vld [vmem:[%s1 + $0x30] sm:$0xf]
  %v29 = vld [vmem:[%s1 + $0x34] sm:$0xf]
  %v30 = vld [vmem:[%s1 + $0x38] sm:$0xf]
  %v31 = vld [vmem:[%s1 + $0x3c] sm:$0xf]
  %v32 = vld [vmem:[%s1 + $0x40] sm:$0xf]
  %v33 = vld [vmem:[%s1 + $0x44] sm:$0xf]
  %v34 = vld [vmem:[%s1 + $0x48] sm:$0xf]
  %v35 = vld [vmem:[%s1 + $0x4c] sm:$0xf]
  %v36 = vld [vmem:[%s1 + $0x50] sm:$0xf]
  %v37 = vld [vmem:[%s1 + $0x54] sm:$0xf]
  %v38 = vld [vmem:[%s1 + $0x58] sm:$0xf]
  %v39 = vld [vmem:[%s1 + $0x5c] sm:$0xf]
  %v40 = vld [vmem:[%s2] sm:$0x1]
  %v42 = vlaneseq
  %v43 = vshrl.u32 %v42, 7
  %v44 = vsub.s32 0, %v43
  %v45 = vrot.slane %v40, %v44
  %v48 = vunpack.c.l.b16 %v15
  %v49 = vunpack.c.h.b16 %v15
  %v50 = vpack.c.b16 %v48, %v48
  %v51 = vpack.c.b16 %v49, %v49
  %v77 = vunpack.c.l.b16 %v16
  %v78 = vunpack.c.l.b16 %v17
  %v79 = vunpack.c.l.b16 %v18
  %v80 = vunpack.c.l.b16 %v19
  %v81 = vunpack.c.l.b16 %v20
  %v82 = vunpack.c.l.b16 %v21
  %v83 = vunpack.c.l.b16 %v22
  %v84 = vunpack.c.l.b16 %v23
  %v85 = vunpack.c.l.b16 %v24
  %v86 = vunpack.c.l.b16 %v25
  %v87 = vunpack.c.l.b16 %v26
  %v88 = vunpack.c.l.b16 %v27
  %v89 = vunpack.c.l.b16 %v28
  %v90 = vunpack.c.l.b16 %v29
  %v91 = vunpack.c.l.b16 %v30
  %v92 = vunpack.c.l.b16 %v31
  %v93 = vunpack.c.l.b16 %v32
  %v94 = vunpack.c.l.b16 %v33
  %v95 = vunpack.c.l.b16 %v34
  %v96 = vunpack.c.l.b16 %v35
  %v97 = vunpack.c.l.b16 %v36
  %v98 = vunpack.c.l.b16 %v37
  %v99 = vunpack.c.l.b16 %v38
  %v100 = vunpack.c.l.b16 %v39
  %v101 = vpack.c.b16 %v78, %v77
  %v102 = vpack.c.b16 %v80, %v79
  %v103 = vpack.c.b16 %v82, %v81
  %v104 = vpack.c.b16 %v84, %v83
  %v105 = vpack.c.b16 %v86, %v85
  %v106 = vpack.c.b16 %v88, %v87
  %v107 = vpack.c.b16 %v90, %v89
  %v108 = vpack.c.b16 %v92, %v91
  %v109 = vpack.c.b16 %v94, %v93
  %v110 = vpack.c.b16 %v96, %v95
  %v111 = vpack.c.b16 %v98, %v97
  %v112 = vpack.c.b16 %v100, %v99
  %vm125 = vcmask 523264
  %v127 = vsel %vm125, %v51, 0
  %129 = vmatprep.subr.bf16.mxu0 0
  %130 = vmatpush1.bf16.msra.mxu0 %v108
  %131 = vmatprep.subr.bf16.mxu0 0
  %132 = vmatpush1.bf16.msra.mxu0 %v107
  %133 = vmatprep.subr.bf16.mxu0 0
  %134 = vmatpush1.bf16.msra.mxu0 %v106
  %135 = vmatprep.subr.bf16.mxu0 0
  %136 = vmatpush1.bf16.msra.mxu0 %v105
  %137 = vmatprep.subr.bf16.mxu0 0
  %138 = vmatpush1.bf16.msra.mxu0 %v104
  %139 = vmatprep.subr.bf16.mxu0 0
  %140 = vmatpush1.bf16.msra.mxu0 %v103
  %141 = vmatprep.subr.bf16.mxu0 0
  %142 = vmatpush1.bf16.msra.mxu0 %v102
  %143 = vmatprep.subr.bf16.mxu0 0
  %144 = vmatpush1.bf16.msra.mxu0 %v101
  %145 = vmatprep.subr.bf16.mxu0 0
  %146 = vmatpush2.bf16.msra.mxu0 0
  %147 = vmatprep.subr.bf16.mxu0 0
  %148 = vmatpush2.bf16.msra.mxu0 0
  %149 = vmatprep.subr.bf16.mxu0 0
  %150 = vmatpush2.bf16.msra.mxu0 0
  %151 = vmatprep.subr.bf16.mxu0 0
  %152 = vmatpush2.bf16.msra.mxu0 0
  %153 = vmatprep.subr.bf16.mxu0 0
  %154 = vmatpush2.bf16.msra.mxu0 %v112
  %155 = vmatprep.subr.bf16.mxu0 0
  %156 = vmatpush2.bf16.msra.mxu0 %v111
  %157 = vmatprep.subr.bf16.mxu0 0
  %158 = vmatpush2.bf16.msra.mxu0 %v110
  %159 = vmatprep.subr.bf16.mxu0 0
  %160 = vmatpush2.bf16.msra.mxu0 %v109
  %161 = vmatprep.mubr.bf16.mxu0 %v127
  %162 = vmatmul.mubr.bf16.gmra.mxu0 %v50
  %v163 = vpop.f32.mrf.mxu0
  %v164 = vadd.f32 %v45, %v163
  %v165 = vpop.f32.mrf.mxu0
  %v166 = vpop.f32.mrf.mxu0
  %v167 = vpop.f32.mrf.mxu0
  %168 = vdwg.mxu0
  %v169 = vxor.u32 %v164, 2147483648
  %v170 = vmul.f32 %v169, 1.442695
  %v171 = vpow.pop %v170
  %v172 = vadd.f32 %v171, 1.0
  %v173 = vrcp.pop %v172
  %v174 = vmul.f32 1.0, %v173
  %v175 = vmul.f32 %v164, %v174
  %v176 = vpack.c.bf16 %v175, %v175
  %177 = vst [vmem:[%s3] sm:$0xf] %v176
  // Predicated region
  $region14: #{forward.50} parent=0 // pred_check
    _
  $region15: #{forward.50} parent=0 // pred_check_branch
    %179 = sbr.rel (0) target = $region17
  $region16: #{forward.50} parent=0 // pred_region
    _
  $region17: #{forward.50} parent=0 // pred_fallthru
    _
  // Predicated region
  $region18: #{forward.50} parent=0 // pred_check
    _
  $region19: #{forward.50} parent=0 // pred_check_branch
    %181 = sbr.rel (0) target = $region21
  $region20: #{forward.50} parent=0 // pred_region
    _
  $region21: #{forward.50} parent=0 // pred_fallthru
    _

</llo_original>
